<compile_context>
chip_gen: v7x
topology: tpu7x:2x2x1
jax: 0.10.0
libtpu: 0.0.40
codegen_flags: <defaults>
</compile_context>

<pallas_src>
import functools

import jax
import jax.numpy as jnp
from jax import lax
from jax.experimental import pallas as pl
from jax.experimental.pallas import tpu as pltpu

EPS = 1e-5
_LANE = 128
# Scoped-VMEM budget safe on every generation (v5e/v6e: 128 MiB physical,
# v7x: 64 MiB physical).  Tiles below are budgeted well under it; on v5e/v6e
# this can be raised (e.g. ~96 MiB) to hold K/V resident per batch.
_VMEM_LIMIT_BYTES = 48 * 1024 * 1024


def _cparams(dim_sem):
    return pltpu.CompilerParams(dimension_semantics=dim_sem,
                                vmem_limit_bytes=_VMEM_LIMIT_BYTES)


def _pick_tile(total, target):
    """Largest of (target, total) that divides total; falls back to 128."""
    t = min(target, total)
    if total % t != 0:
        t = _LANE
    return t


# ---------- kernel 1: fused conv1/conv2/conv3 (1x1, C -> 3*(C//2), no bias) --
def _qkv_proj_kernel(x_ref, w_ref, n1_ref, n2_ref, n3_ref, *, c, mxu_dtype):
    x = x_ref[0].astype(mxu_dtype)            # (C, thw)
    w = w_ref[...].astype(mxu_dtype)          # (3c, C) == concat(w1, w2, w3)
    y = jnp.dot(w, x, preferred_element_type=jnp.float32)       # (3c, thw)
    # c % 8 == 0 -> sublane-aligned slices, plain stores (no relayout).
    n1_ref[0] = y[:c].astype(n1_ref.dtype)
    n2_ref[0] = y[c:2 * c].astype(n2_ref.dtype)
    n3_ref[0] = y[2 * c:].astype(n3_ref.dtype)


# ---------- kernel 2: flash attention (online softmax, q/kv tiled) -----------
def _flash_attn_kernel(q_ref, k_ref, v_ref, o_ref, m_sc, l_sc, acc_sc, *,
                       mxu_dtype):
    ki = pl.program_id(2)

    @pl.when(ki == 0)
    def _():
        m_sc[...] = jnp.full_like(m_sc, -jnp.inf)
        l_sc[...] = jnp.zeros_like(l_sc)
        acc_sc[...] = jnp.zeros_like(acc_sc)

    q = q_ref[0].astype(mxu_dtype)            # (tq, c)
    k = k_ref[0].astype(mxu_dtype)            # (c, tkv)
    s = jnp.dot(q, k, preferred_element_type=jnp.float32)       # (tq, tkv)

    m_prev = m_sc[...]                                          # (tq, 1)
    m_new = jnp.maximum(m_prev, jnp.max(s, axis=-1, keepdims=True))
    alpha = jnp.exp(m_prev - m_new)
    # TODO(synk): on v6e/v7x a bf16 exp here doubles EUP throughput once the
    # MXU runs bf16; kept in f32 for accuracy and v5e portability.
    p = jnp.exp(s - m_new)                                      # f32 softmax
    l_sc[...] = alpha * l_sc[...] + jnp.sum(p, axis=-1, keepdims=True)
    pv = jnp.dot(p.astype(mxu_dtype), v_ref[0].astype(mxu_dtype),
                 preferred_element_type=jnp.float32)            # (tq, c)
    acc_sc[...] = alpha * acc_sc[...] + pv
    m_sc[...] = m_new

    @pl.when(ki == pl.num_programs(2) - 1)
    def _():
        # Exact normalization: the approximate reciprocal's relative error is
        # amplified by BatchNorm's 1/std downstream, so divide exactly.
        o_ref[0] = (acc_sc[...] / l_sc[...]).astype(o_ref.dtype)


# ---------- kernel 3: conv4 (1x1, C//2 -> C), BN partial statistics only -----
def _conv4_stats_kernel(res_ref, w4_ref, shiftk_ref, sum_ref, ssq_ref, *,
                        lane_chunks, mxu_dtype):
    t = pl.program_id(2)
    y = jnp.dot(w4_ref[...].astype(mxu_dtype), res_ref[0].astype(mxu_dtype),
                preferred_element_type=jnp.float32)             # (C, thw)
    # Shifted one-pass variance: K ~= mean(y) removes the cancellation in
    # E[y^2] - mean^2 (y is never written to HBM; it is recomputed in k4).
    y = y - shiftk_ref[...]

    @pl.when(t == 0)
    def _():
        sum_ref[...] = jnp.zeros_like(sum_ref)
        ssq_ref[...] = jnp.zeros_like(ssq_ref)

    # Lane-dense (C, 128) accumulation straight into the (VMEM-resident)
    # output refs: unmasked stores, only one (C, 128) block live per chunk
    # (no register spill for large C).  Final lane reduction done outside.
    for j in range(lane_chunks):                  # static, small unroll
        blk = y[:, j * _LANE:(j + 1) * _LANE]
        sum_ref[0, 0] = sum_ref[0, 0] + blk
        ssq_ref[0, 0] = ssq_ref[0, 0] + blk * blk


# ---------- kernel 4: conv4 recompute + BN apply (scale/shift) + residual ----
def _bn_conv_residual_kernel(res_ref, x_ref, w4_ref, scale_ref, shift_ref,
                             o_ref, *, mxu_dtype):
    y = jnp.dot(w4_ref[...].astype(mxu_dtype), res_ref[0].astype(mxu_dtype),
                preferred_element_type=jnp.float32)             # (C, thw)
    # Scale applied post-matmul in f32 (same cost as folding into the weight,
    # better accuracy when the weight is bf16).
    o_ref[0] = (y * scale_ref[...] + shift_ref[...]
                + x_ref[0].astype(jnp.float32)).astype(o_ref.dtype)


# ---------------------------------------------------------------------------
def pam_forward(x, w1, w2, w3, w4, gamma, beta, *,
                hw_tile=1024, q_tile=1024, kv_tile=2048,
                mxu_dtype=jnp.bfloat16, stats_split=2):
    """PAM forward.

    Tile sizes are 128-multiples and should be swept per generation:
      v5e/v6e (128 MiB VMEM): q_tile 512-1024+, kv_tile up to HW (K/V resident
        per batch) with vmem_limit raised towards ~96 MiB.
      v7x (64 MiB VMEM, 2 TCs): keep the 48 MiB budget, prefer larger q_tile
        over resident K/V; stats_split=2 keeps both cores busy at small B.
    mxu_dtype=bf16 (default) gives native MXU rate with f32 accumulation;
    use jnp.float32 for strict numerics.
    """
    B, C, H, W = x.shape
    c = C // 2
    HW = H * W
    assert C % 2 == 0 and c % 8 == 0, "need C//2 to be a multiple of 8"
    assert HW % _LANE == 0, "H*W must be a multiple of 128"

    thw = _pick_tile(HW, hw_tile)
    tq = _pick_tile(HW, q_tile)
    tkv = _pick_tile(HW, kv_tile)

    xf = x.reshape(B, C, HW).astype(jnp.float32)
    w123 = jnp.concatenate([w1, w2, w3], axis=0).astype(mxu_dtype)   # (3c, C)
    w4m = w4.astype(mxu_dtype)                                       # (C, c)
    w4f = w4.astype(jnp.float32)

    # --- 1. fused conv1/conv2/conv3, HW-tiled, one (3c,C)@(C,thw) matmul ---
    n1, n2, n3 = pl.pallas_call(
        functools.partial(_qkv_proj_kernel, c=c, mxu_dtype=mxu_dtype),
        out_shape=[jax.ShapeDtypeStruct((B, c, HW), mxu_dtype)] * 3,
        grid=(B, HW // thw),
        in_specs=[pl.BlockSpec((1, C, thw), lambda b, t: (b, 0, t)),
                  pl.BlockSpec((3 * c, C), lambda b, t: (0, 0))],
        out_specs=[pl.BlockSpec((1, c, thw), lambda b, t: (b, 0, t))] * 3,
        compiler_params=_cparams(("parallel", "parallel")),
    )(xf, w123)

    # torch `.view(b, -1, c)` is a raw row-major reinterpretation of the
    # (b, c, h*w) buffer (NOT a transpose): one relayout copy each for q/v.
    q = n1.reshape(B, HW, c)
    v = n3.reshape(B, HW, c)

    # --- 2. flash-style attention: softmax(q @ n2) @ v, never (HW,HW) ---
    r = pl.pallas_call(
        functools.partial(_flash_attn_kernel, mxu_dtype=mxu_dtype),
        out_shape=jax.ShapeDtypeStruct((B, HW, c), mxu_dtype),
        grid=(B, HW // tq, HW // tkv),
        in_specs=[pl.BlockSpec((1, tq, c), lambda b, qi, ki: (b, qi, 0)),
                  pl.BlockSpec((1, c, tkv), lambda b, qi, ki: (b, 0, ki)),
                  pl.BlockSpec((1, tkv, c), lambda b, qi, ki: (b, ki, 0))],
        out_specs=pl.BlockSpec((1, tq, c), lambda b, qi, ki: (b, qi, 0)),
        scratch_shapes=[pltpu.VMEM((tq, 1), jnp.float32),   # running max
                        pltpu.VMEM((tq, 1), jnp.float32),   # running denom
                        pltpu.VMEM((tq, c), jnp.float32)],  # running acc
        compiler_params=_cparams(("parallel", "parallel", "arbitrary")),
    )(q, n2, v)

    # torch `res.view(b, c, h, w)`: raw reinterpretation again (one copy).
    res = r.reshape(B, c, HW)

    # Cheap per-channel shift K ~= mean(conv4(res)) from a small probe slice;
    # only needs to land within a few std of the true mean.
    probe = min(HW, 1024)
    res_probe_mean = jnp.mean(res[:, :, :probe].astype(jnp.float32),
                              axis=(0, 2))                           # (c,)
    shift_k = (w4f @ res_probe_mean).reshape(C, 1)                   # (C, 1)

    # --- 3. conv4 + per-batch BN partial statistics (y never hits HBM) ---
    n_tiles = HW // thw
    n_split = stats_split if (stats_split > 0 and n_tiles % stats_split == 0) else 1
    tps = n_tiles // n_split
    psum, pssq = pl.pallas_call(
        functools.partial(_conv4_stats_kernel, lane_chunks=thw // _LANE,
                          mxu_dtype=mxu_dtype),
        out_shape=[jax.ShapeDtypeStruct((B, n_split, C, _LANE), jnp.float32)] * 2,
        grid=(B, n_split, tps),
        in_specs=[pl.BlockSpec((1, c, thw),
                               lambda b, s, t: (b, 0, s * tps + t)),
                  pl.BlockSpec((C, c), lambda b, s, t: (0, 0)),
                  pl.BlockSpec((C, 1), lambda b, s, t: (0, 0))],
        out_specs=[pl.BlockSpec((1, 1, C, _LANE),
                                lambda b, s, t: (b, s, 0, 0))] * 2,
        compiler_params=_cparams(("parallel", "parallel", "arbitrary")),
    )(res, w4m, shift_k)

    # Tiny (C,)-sized reductions + BN scale/shift in plain JAX (negligible).
    n_elems = float(B * HW)
    mean_s = jnp.sum(psum, axis=(0, 1, 3)) / n_elems     # E[y - K]  (~0)
    e2_s = jnp.sum(pssq, axis=(0, 1, 3)) / n_elems       # E[(y - K)^2]
    var = jnp.maximum(e2_s - mean_s * mean_s, 0.0)       # centered -> stable
    mean = shift_k.reshape(C) + mean_s
    inv_std = lax.rsqrt(var + EPS)
    g = gamma.reshape(C).astype(jnp.float32)
    bta = beta.reshape(C).astype(jnp.float32)
    scale = (g * inv_std).reshape(C, 1)
    shift = (bta - g * inv_std * mean).reshape(C, 1)

    # --- 4. conv4 recompute + BN apply + residual add (fully parallel) ---
    out = pl.pallas_call(
        functools.partial(_bn_conv_residual_kernel, mxu_dtype=mxu_dtype),
        out_shape=jax.ShapeDtypeStruct((B, C, HW), jnp.float32),
        grid=(B, HW // thw),
        in_specs=[pl.BlockSpec((1, c, thw), lambda b, t: (b, 0, t)),
                  pl.BlockSpec((1, C, thw), lambda b, t: (b, 0, t)),
                  pl.BlockSpec((C, c), lambda b, t: (0, 0)),
                  pl.BlockSpec((C, 1), lambda b, t: (0, 0)),
                  pl.BlockSpec((C, 1), lambda b, t: (0, 0))],
        out_specs=pl.BlockSpec((1, C, thw), lambda b, t: (b, 0, t)),
        compiler_params=_cparams(("parallel", "parallel")),
    )(res, xf, w4m, scale, shift)

    return out.reshape(B, C, H, W)


# ---------------------------------------------------------------------------
def pam_reference(x, w1, w2, w3, w4, gamma, beta):
    """Pure-JAX reference matching the PyTorch forward exactly."""
    B, C, H, W = x.shape
    c = C // 2
    HW = H * W
    xf = x.reshape(B, C, HW)
    n1 = jnp.einsum('oc,bcp->bop', w1, xf)
    n2 = jnp.einsum('oc,bcp->bop', w2, xf)
    n3 = jnp.einsum('oc,bcp->bop', w3, xf)
    s = jnp.einsum('bpc,bcq->bpq', n1.reshape(B, HW, c), n2)
    a = jax.nn.softmax(s, axis=-1)
    r = jnp.einsum('bpq,bqc->bpc', a, n3.reshape(B, HW, c))
    y = jnp.einsum('oc,bcp->bop', w4, r.reshape(B, c, HW))
    mean = jnp.mean(y, axis=(0, 2), keepdims=True)
    var = jnp.mean((y - mean) ** 2, axis=(0, 2), keepdims=True)
    out = ((y - mean) / jnp.sqrt(var + EPS) * gamma.reshape(1, C, 1)
           + beta.reshape(1, C, 1) + xf)
    return out.reshape(B, C, H, W)


if __name__ == "__main__":
    # Accurate f32 matmuls for the XLA reference (and traced dots) on TPU.
    jax.config.update("jax_default_matmul_precision", "highest")

    B, C, H, W = 2, 16, 16, 16          # HW = 256 (multiple of 128), c = 8
    c = C // 2

    key = jax.random.PRNGKey(0)
    k1, k2, k3, k4, kx = jax.random.split(key, 5)
    # Conv2d 1x1 weights: (out_channels, in_channels) — deterministic init.
    w1 = jax.random.normal(k1, (c, C), jnp.float32) * 0.1
    w2 = jax.random.normal(k2, (c, C), jnp.float32) * 0.1
    w3 = jax.random.normal(k3, (c, C), jnp.float32) * 0.1
    w4 = jax.random.normal(k4, (C, c), jnp.float32) * 0.1
    gamma = jnp.ones((C,), jnp.float32)   # BatchNorm2d default weight
    beta = jnp.zeros((C,), jnp.float32)   # BatchNorm2d default bias
    x = jax.random.normal(kx, (B, C, H, W), jnp.float32)

    ref = pam_reference(x, w1, w2, w3, w4, gamma, beta)

    # f32 MXU path with small tiles: exercises the multi-step online softmax,
    # multi-tile stats accumulation and the 2-way stats split; checked tight.
    pam_f32 = jax.jit(functools.partial(pam_forward, hw_tile=128, q_tile=128,
                                        kv_tile=128, mxu_dtype=jnp.float32))
    out_f32 = jax.block_until_ready(pam_f32(x, w1, w2, w3, w4, gamma, beta))
    assert out_f32.shape == (B, C, H, W)
    err_f32 = float(jnp.max(jnp.abs(out_f32 - ref)))
    assert err_f32 < 3e-3, f"f32 path max error {err_f32}"

    # Default production path (bf16 MXU + bf16 intermediates, default tiles):
    # bf16 relative error is amplified by BatchNorm's 1/std, hence the looser
    # bound; accumulation and softmax/BN math remain f32.
    pam_bf16 = jax.jit(pam_forward)
    out_bf16 = jax.block_until_ready(pam_bf16(x, w1, w2, w3, w4, gamma, beta))
    assert out_bf16.shape == (B, C, H, W)
    err_bf16 = float(jnp.max(jnp.abs(out_bf16 - ref)))
    assert err_bf16 < 0.15, f"bf16 path max error {err_bf16}"

    print("KERNEL_OK")
</pallas_src>

<mosaic_0001>
module attributes {stable_mosaic.version = 11 : i64} {
  func.func @_qkv_proj_kernel(%arg0: i32, %arg1: i32, %arg2: memref<1x16x128xf32, #tpu.memory_space<vmem>>, %arg3: memref<24x16xf32, #tpu.memory_space<vmem>>, %arg4: memref<1x8x128xf32, #tpu.memory_space<vmem>>, %arg5: memref<1x8x128xf32, #tpu.memory_space<vmem>>, %arg6: memref<1x8x128xf32, #tpu.memory_space<vmem>>) attributes {dimension_semantics = [#tpu.dimension_semantics<parallel>, #tpu.dimension_semantics<parallel>], iteration_bounds = array<i64: 2, 2>, scalar_prefetch = 0 : i64, scratch_operands = 0 : i64, tpu.core_type = #tpu.core_type<tc>, window_params = [{transform_indices = @transform_0, window_bounds = array<i64: 1, 16, 128>}, {pipeline_mode = #tpu.pipeline_mode<synchronous>, transform_indices = @transform_1, window_bounds = array<i64: 24, 16>}, {transform_indices = @transform_2, window_bounds = array<i64: 1, 8, 128>}, {transform_indices = @transform_3, window_bounds = array<i64: 1, 8, 128>}, {transform_indices = @transform_4, window_bounds = array<i64: 1, 8, 128>}]} {
    %c0 = arith.constant 0 : index
    %c0_0 = arith.constant 0 : index
    %c0_1 = arith.constant 0 : index
    %0 = vector.load %arg2[%c0, %c0_0, %c0_1] : memref<1x16x128xf32, #tpu.memory_space<vmem>>, vector<1x16x128xf32>
    %1 = vector.shape_cast %0 : vector<1x16x128xf32> to vector<16x128xf32>
    %c0_2 = arith.constant 0 : index
    %c0_3 = arith.constant 0 : index
    %2 = vector.load %arg3[%c0_2, %c0_3] : memref<24x16xf32, #tpu.memory_space<vmem>>, vector<24x16xf32>
    %cst = arith.constant dense<0.000000e+00> : vector<24x128xf32>
    %3 = tpu.matmul %2, %1, %cst {dimension_numbers = #tpu.dot_dimension_numbers<[1], [0], [0], [1], [0, 0, 1, 1], [], []>, precision = #tpu.contract_precision<fp32>} : vector<24x16xf32>, vector<16x128xf32>, vector<24x128xf32> -> vector<24x128xf32>
    %4 = vector.extract_strided_slice %3 {offsets = [0, 0], sizes = [8, 128], strides = [1, 1]} : vector<24x128xf32> to vector<8x128xf32>
    %c0_4 = arith.constant 0 : index
    %c0_5 = arith.constant 0 : index
    %c0_6 = arith.constant 0 : index
    %5 = vector.load %arg4[%c0_4, %c0_5, %c0_6] : memref<1x8x128xf32, #tpu.memory_space<vmem>>, vector<1x8x128xf32>
    %6 = vector.shape_cast %5 : vector<1x8x128xf32> to vector<8x128xf32>
    %7 = vector.shape_cast %4 : vector<8x128xf32> to vector<1x8x128xf32>
    tpu.vector_store %arg4[%c0_4, %c0_5, %c0_6], %7 {strides = array<i32>} : memref<1x8x128xf32, #tpu.memory_space<vmem>>, vector<1x8x128xf32>,
    %8 = vector.extract_strided_slice %3 {offsets = [8, 0], sizes = [8, 128], strides = [1, 1]} : vector<24x128xf32> to vector<8x128xf32>
    %c0_7 = arith.constant 0 : index
    %c0_8 = arith.constant 0 : index
    %c0_9 = arith.constant 0 : index
    %9 = vector.load %arg5[%c0_7, %c0_8, %c0_9] : memref<1x8x128xf32, #tpu.memory_space<vmem>>, vector<1x8x128xf32>
    %10 = vector.shape_cast %9 : vector<1x8x128xf32> to vector<8x128xf32>
    %11 = vector.shape_cast %8 : vector<8x128xf32> to vector<1x8x128xf32>
    tpu.vector_store %arg5[%c0_7, %c0_8, %c0_9], %11 {strides = array<i32>} : memref<1x8x128xf32, #tpu.memory_space<vmem>>, vector<1x8x128xf32>,
    %12 = vector.extract_strided_slice %3 {offsets = [16, 0], sizes = [8, 128], strides = [1, 1]} : vector<24x128xf32> to vector<8x128xf32>
    %c0_10 = arith.constant 0 : index
    %c0_11 = arith.constant 0 : index
    %c0_12 = arith.constant 0 : index
    %13 = vector.load %arg6[%c0_10, %c0_11, %c0_12] : memref<1x8x128xf32, #tpu.memory_space<vmem>>, vector<1x8x128xf32>
    %14 = vector.shape_cast %13 : vector<1x8x128xf32> to vector<8x128xf32>
    %15 = vector.shape_cast %12 : vector<8x128xf32> to vector<1x8x128xf32>
    tpu.vector_store %arg6[%c0_10, %c0_11, %c0_12], %15 {strides = array<i32>} : memref<1x8x128xf32, #tpu.memory_space<vmem>>, vector<1x8x128xf32>,
    return
  }
  func.func @transform_0(%arg0: i32, %arg1: i32) -> (i32, i32, i32) {
    %c0_i32 = arith.constant 0 : i32
    %c0_i32_0 = arith.constant 0 : i32
    return %arg0, %c0_i32, %arg1 : i32, i32, i32
  }
  func.func @transform_1(%arg0: i32, %arg1: i32) -> (i32, i32) {
    %c0_i32 = arith.constant 0 : i32
    %c0_i32_0 = arith.constant 0 : i32
    %c0_i32_1 = arith.constant 0 : i32
    return %c0_i32, %c0_i32_0 : i32, i32
  }
  func.func @transform_2(%arg0: i32, %arg1: i32) -> (i32, i32, i32) {
    %c0_i32 = arith.constant 0 : i32
    %c0_i32_0 = arith.constant 0 : i32
    return %arg0, %c0_i32, %arg1 : i32, i32, i32
  }
  func.func @transform_3(%arg0: i32, %arg1: i32) -> (i32, i32, i32) {
    %c0_i32 = arith.constant 0 : i32
    %c0_i32_0 = arith.constant 0 : i32
    return %arg0, %c0_i32, %arg1 : i32, i32, i32
  }
  func.func @transform_4(%arg0: i32, %arg1: i32) -> (i32, i32, i32) {
    %c0_i32 = arith.constant 0 : i32
    %c0_i32_0 = arith.constant 0 : i32
    return %arg0, %c0_i32, %arg1 : i32, i32, i32
  }
}

module attributes {stable_mosaic.version = 11 : i64} {
  func.func @_flash_attn_kernel(%arg0: i32, %arg1: i32, %arg2: i32, %arg3: memref<1x128x8xf32, #tpu.memory_space<vmem>>, %arg4: memref<1x8x128xf32, #tpu.memory_space<vmem>>, %arg5: memref<1x128x8xf32, #tpu.memory_space<vmem>>, %arg6: memref<1x128x8xf32, #tpu.memory_space<vmem>>, %arg7: memref<128x1xf32, #tpu.memory_space<vmem>>, %arg8: memref<128x1xf32, #tpu.memory_space<vmem>>, %arg9: memref<128x8xf32, #tpu.memory_space<vmem>>) attributes {dimension_semantics = [#tpu.dimension_semantics<parallel>, #tpu.dimension_semantics<parallel>, #tpu.dimension_semantics<arbitrary>], iteration_bounds = array<i64: 2, 2, 2>, scalar_prefetch = 0 : i64, scratch_operands = 3 : i64, tpu.core_type = #tpu.core_type<tc>, window_params = [{transform_indices = @transform_0, window_bounds = array<i64: 1, 128, 8>}, {transform_indices = @transform_1, window_bounds = array<i64: 1, 8, 128>}, {transform_indices = @transform_2, window_bounds = array<i64: 1, 128, 8>}, {transform_indices = @transform_3, window_bounds = array<i64: 1, 128, 8>}]} {
    %c0_i32 = arith.constant 0 : i32
    %0 = arith.cmpi eq, %arg2, %c0_i32 : i32
    %1 = arith.extui %0 : i1 to i32
    %c0_i32_0 = arith.constant 0 : i32
    %2 = arith.cmpi ne, %1, %c0_i32_0 : i32
    scf.if %2 {
      %cst_25 = arith.constant 0xFF800000 : f32
      %35 = vector.broadcast %cst_25 : f32 to vector<128x1xf32>
      %c0_26 = arith.constant 0 : index
      %c0_27 = arith.constant 0 : index
      %36 = vector.load %arg7[%c0_26, %c0_27] : memref<128x1xf32, #tpu.memory_space<vmem>>, vector<128x1xf32>
      tpu.vector_store %arg7[%c0_26, %c0_27], %35 {strides = array<i32>} : memref<128x1xf32, #tpu.memory_space<vmem>>, vector<128x1xf32>,
      %cst_28 = arith.constant 0.000000e+00 : f32
      %37 = vector.broadcast %cst_28 : f32 to vector<128x1xf32>
      %c0_29 = arith.constant 0 : index
      %c0_30 = arith.constant 0 : index
      %38 = vector.load %arg8[%c0_29, %c0_30] : memref<128x1xf32, #tpu.memory_space<vmem>>, vector<128x1xf32>
      tpu.vector_store %arg8[%c0_29, %c0_30], %37 {strides = array<i32>} : memref<128x1xf32, #tpu.memory_space<vmem>>, vector<128x1xf32>,
      %cst_31 = arith.constant 0.000000e+00 : f32
      %39 = vector.broadcast %cst_31 : f32 to vector<128x8xf32>
      %c0_32 = arith.constant 0 : index
      %c0_33 = arith.constant 0 : index
      %40 = vector.load %arg9[%c0_32, %c0_33] : memref<128x8xf32, #tpu.memory_space<vmem>>, vector<128x8xf32>
      tpu.vector_store %arg9[%c0_32, %c0_33], %39 {strides = array<i32>} : memref<128x8xf32, #tpu.memory_space<vmem>>, vector<128x8xf32>,
    } else {
    }
    %c0 = arith.constant 0 : index
    %c0_1 = arith.constant 0 : index
    %c0_2 = arith.constant 0 : index
    %3 = vector.load %arg3[%c0, %c0_1, %c0_2] : memref<1x128x8xf32, #tpu.memory_space<vmem>>, vector<1x128x8xf32>
    %4 = vector.shape_cast %3 : vector<1x128x8xf32> to vector<128x8xf32>
    %c0_3 = arith.constant 0 : index
    %c0_4 = arith.constant 0 : index
    %c0_5 = arith.constant 0 : index
    %5 = vector.load %arg4[%c0_3, %c0_4, %c0_5] : memref<1x8x128xf32, #tpu.memory_space<vmem>>, vector<1x8x128xf32>
    %6 = vector.shape_cast %5 : vector<1x8x128xf32> to vector<8x128xf32>
    %cst = arith.constant dense<0.000000e+00> : vector<128x128xf32>
    %7 = tpu.matmul %4, %6, %cst {dimension_numbers = #tpu.dot_dimension_numbers<[1], [0], [0], [1], [0, 0, 1, 1], [], []>, precision = #tpu.contract_precision<fp32>} : vector<128x8xf32>, vector<8x128xf32>, vector<128x128xf32> -> vector<128x128xf32>
    %c0_6 = arith.constant 0 : index
    %c0_7 = arith.constant 0 : index
    %8 = vector.load %arg7[%c0_6, %c0_7] : memref<128x1xf32, #tpu.memory_space<vmem>>, vector<128x1xf32>
    %cst_8 = arith.constant dense<0xFF800000> : vector<128xf32>
    %9 = vector.multi_reduction <maximumf>, %7, %cst_8 [1] : vector<128x128xf32> to vector<128xf32>
    %10 = vector.shape_cast %9 : vector<128xf32> to vector<128x1xf32>
    %11 = arith.maximumf %8, %10 : vector<128x1xf32>
    %12 = arith.subf %8, %11 : vector<128x1xf32>
    %13 = math.exp %12 : vector<128x1xf32>
    %14 = vector.broadcast %11 : vector<128x1xf32> to vector<128x128xf32>
    %15 = arith.subf %7, %14 : vector<128x128xf32>
    %16 = math.exp %15 : vector<128x128xf32>
    %c0_9 = arith.constant 0 : index
    %c0_10 = arith.constant 0 : index
    %17 = vector.load %arg8[%c0_9, %c0_10] : memref<128x1xf32, #tpu.memory_space<vmem>>, vector<128x1xf32>
    %18 = arith.mulf %13, %17 : vector<128x1xf32>
    %cst_11 = arith.constant dense<0.000000e+00> : vector<128xf32>
    %19 = vector.multi_reduction <add>, %16, %cst_11 [1] : vector<128x128xf32> to vector<128xf32>
    %20 = vector.shape_cast %19 : vector<128xf32> to vector<128x1xf32>
    %21 = arith.addf %18, %20 : vector<128x1xf32>
    %c0_12 = arith.constant 0 : index
    %c0_13 = arith.constant 0 : index
    %22 = vector.load %arg8[%c0_12, %c0_13] : memref<128x1xf32, #tpu.memory_space<vmem>>, vector<128x1xf32>
    tpu.vector_store %arg8[%c0_12, %c0_13], %21 {strides = array<i32>} : memref<128x1xf32, #tpu.memory_space<vmem>>, vector<128x1xf32>,
    %c0_14 = arith.constant 0 : index
    %c0_15 = arith.constant 0 : index
    %c0_16 = arith.constant 0 : index
    %23 = vector.load %arg5[%c0_14, %c0_15, %c0_16] : memref<1x128x8xf32, #tpu.memory_space<vmem>>, vector<1x128x8xf32>
    %24 = vector.shape_cast %23 : vector<1x128x8xf32> to vector<128x8xf32>
    %cst_17 = arith.constant dense<0.000000e+00> : vector<128x8xf32>
    %25 = tpu.matmul %16, %24, %cst_17 {dimension_numbers = #tpu.dot_dimension_numbers<[1], [0], [0], [1], [0, 0, 1, 1], [], []>, precision = #tpu.contract_precision<fp32>} : vector<128x128xf32>, vector<128x8xf32>, vector<128x8xf32> -> vector<128x8xf32>
    %c0_18 = arith.constant 0 : index
    %c0_19 = arith.constant 0 : index
    %26 = vector.load %arg9[%c0_18, %c0_19] : memref<128x8xf32, #tpu.memory_space<vmem>>, vector<128x8xf32>
    %27 = vector.broadcast %13 : vector<128x1xf32> to vector<128x8xf32>
    %28 = arith.mulf %27, %26 : vector<128x8xf32>
    %29 = arith.addf %28, %25 : vector<128x8xf32>
    %c0_20 = arith.constant 0 : index
    %c0_21 = arith.constant 0 : index
    %30 = vector.load %arg9[%c0_20, %c0_21] : memref<128x8xf32, #tpu.memory_space<vmem>>, vector<128x8xf32>
    tpu.vector_store %arg9[%c0_20, %c0_21], %29 {strides = array<i32>} : memref<128x8xf32, #tpu.memory_space<vmem>>, vector<128x8xf32>,
    %c0_22 = arith.constant 0 : index
    %c0_23 = arith.constant 0 : index
    %31 = vector.load %arg7[%c0_22, %c0_23] : memref<128x1xf32, #tpu.memory_space<vmem>>, vector<128x1xf32>
    tpu.vector_store %arg7[%c0_22, %c0_23], %11 {strides = array<i32>} : memref<128x1xf32, #tpu.memory_space<vmem>>, vector<128x1xf32>,
    %c1_i32 = arith.constant 1 : i32
    %32 = arith.cmpi eq, %arg2, %c1_i32 : i32
    %33 = arith.extui %32 : i1 to i32
    %c0_i32_24 = arith.constant 0 : i32
    %34 = arith.cmpi ne, %33, %c0_i32_24 : i32
    scf.if %34 {
      %c0_25 = arith.constant 0 : index
      %c0_26 = arith.constant 0 : index
      %35 = vector.load %arg9[%c0_25, %c0_26] : memref<128x8xf32, #tpu.memory_space<vmem>>, vector<128x8xf32>
      %c0_27 = arith.constant 0 : index
      %c0_28 = arith.constant 0 : index
      %36 = vector.load %arg8[%c0_27, %c0_28] : memref<128x1xf32, #tpu.memory_space<vmem>>, vector<128x1xf32>
      %37 = vector.broadcast %36 : vector<128x1xf32> to vector<128x8xf32>
      %38 = arith.divf %35, %37 : vector<128x8xf32>
      %c0_29 = arith.constant 0 : index
      %c0_30 = arith.constant 0 : index
      %c0_31 = arith.constant 0 : index
      %39 = vector.load %arg6[%c0_29, %c0_30, %c0_31] : memref<1x128x8xf32, #tpu.memory_space<vmem>>, vector<1x128x8xf32>
      %40 = vector.shape_cast %39 : vector<1x128x8xf32> to vector<128x8xf32>
      %41 = vector.shape_cast %38 : vector<128x8xf32> to vector<1x128x8xf32>
      tpu.vector_store %arg6[%c0_29, %c0_30, %c0_31], %41 {strides = array<i32>} : memref<1x128x8xf32, #tpu.memory_space<vmem>>, vector<1x128x8xf32>,
    } else {
    }
    return
  }
  func.func @transform_0(%arg0: i32, %arg1: i32, %arg2: i32) -> (i32, i32, i32) {
    %c0_i32 = arith.constant 0 : i32
    %c0_i32_0 = arith.constant 0 : i32
    return %arg0, %arg1, %c0_i32 : i32, i32, i32
  }
  func.func @transform_1(%arg0: i32, %arg1: i32, %arg2: i32) -> (i32, i32, i32) {
    %c0_i32 = arith.constant 0 : i32
    %c0_i32_0 = arith.constant 0 : i32
    return %arg0, %c0_i32, %arg2 : i32, i32, i32
  }
  func.func @transform_2(%arg0: i32, %arg1: i32, %arg2: i32) -> (i32, i32, i32) {
    %c0_i32 = arith.constant 0 : i32
    %c0_i32_0 = arith.constant 0 : i32
    return %arg0, %arg2, %c0_i32 : i32, i32, i32
  }
  func.func @transform_3(%arg0: i32, %arg1: i32, %arg2: i32) -> (i32, i32, i32) {
    %c0_i32 = arith.constant 0 : i32
    %c0_i32_0 = arith.constant 0 : i32
    return %arg0, %arg1, %c0_i32 : i32, i32, i32
  }
}

module attributes {stable_mosaic.version = 11 : i64} {
  func.func @_conv4_stats_kernel(%arg0: i32, %arg1: i32, %arg2: i32, %arg3: memref<1x8x128xf32, #tpu.memory_space<vmem>>, %arg4: memref<16x8xf32, #tpu.memory_space<vmem>>, %arg5: memref<16x1xf32, #tpu.memory_space<vmem>>, %arg6: memref<1x1x16x128xf32, #tpu.memory_space<vmem>>, %arg7: memref<1x1x16x128xf32, #tpu.memory_space<vmem>>) attributes {dimension_semantics = [#tpu.dimension_semantics<parallel>, #tpu.dimension_semantics<parallel>, #tpu.dimension_semantics<arbitrary>], iteration_bounds = array<i64: 2, 2, 1>, scalar_prefetch = 0 : i64, scratch_operands = 0 : i64, tpu.core_type = #tpu.core_type<tc>, window_params = [{transform_indices = @transform_0, window_bounds = array<i64: 1, 8, 128>}, {pipeline_mode = #tpu.pipeline_mode<synchronous>, transform_indices = @transform_1, window_bounds = array<i64: 16, 8>}, {pipeline_mode = #tpu.pipeline_mode<synchronous>, transform_indices = @transform_2, window_bounds = array<i64: 16, 1>}, {transform_indices = @transform_3, window_bounds = array<i64: 1, 1, 16, 128>}, {transform_indices = @transform_4, window_bounds = array<i64: 1, 1, 16, 128>}]} {
    %c0 = arith.constant 0 : index
    %c0_0 = arith.constant 0 : index
    %0 = vector.load %arg4[%c0, %c0_0] : memref<16x8xf32, #tpu.memory_space<vmem>>, vector<16x8xf32>
    %c0_1 = arith.constant 0 : index
    %c0_2 = arith.constant 0 : index
    %c0_3 = arith.constant 0 : index
    %1 = vector.load %arg3[%c0_1, %c0_2, %c0_3] : memref<1x8x128xf32, #tpu.memory_space<vmem>>, vector<1x8x128xf32>
    %2 = vector.shape_cast %1 : vector<1x8x128xf32> to vector<8x128xf32>
    %cst = arith.constant dense<0.000000e+00> : vector<16x128xf32>
    %3 = tpu.matmul %0, %2, %cst {dimension_numbers = #tpu.dot_dimension_numbers<[1], [0], [0], [1], [0, 0, 1, 1], [], []>, precision = #tpu.contract_precision<fp32>} : vector<16x8xf32>, vector<8x128xf32>, vector<16x128xf32> -> vector<16x128xf32>
    %c0_4 = arith.constant 0 : index
    %c0_5 = arith.constant 0 : index
    %4 = vector.load %arg5[%c0_4, %c0_5] : memref<16x1xf32, #tpu.memory_space<vmem>>, vector<16x1xf32>
    %5 = vector.broadcast %4 : vector<16x1xf32> to vector<16x128xf32>
    %6 = arith.subf %3, %5 : vector<16x128xf32>
    %c0_i32 = arith.constant 0 : i32
    %7 = arith.cmpi eq, %arg2, %c0_i32 : i32
    %8 = arith.extui %7 : i1 to i32
    %c0_i32_6 = arith.constant 0 : i32
    %9 = arith.cmpi ne, %8, %c0_i32_6 : i32
    scf.if %9 {
      %cst_23 = arith.constant 0.000000e+00 : f32
      %23 = vector.broadcast %cst_23 : f32 to vector<1x1x16x128xf32>
      %c0_24 = arith.constant 0 : index
      %c0_25 = arith.constant 0 : index
      %c0_26 = arith.constant 0 : index
      %c0_27 = arith.constant 0 : index
      %24 = vector.load %arg6[%c0_24, %c0_25, %c0_26, %c0_27] : memref<1x1x16x128xf32, #tpu.memory_space<vmem>>, vector<1x1x16x128xf32>
      tpu.vector_store %arg6[%c0_24, %c0_25, %c0_26, %c0_27], %23 {strides = array<i32>} : memref<1x1x16x128xf32, #tpu.memory_space<vmem>>, vector<1x1x16x128xf32>,
      %cst_28 = arith.constant 0.000000e+00 : f32
      %25 = vector.broadcast %cst_28 : f32 to vector<1x1x16x128xf32>
      %c0_29 = arith.constant 0 : index
      %c0_30 = arith.constant 0 : index
      %c0_31 = arith.constant 0 : index
      %c0_32 = arith.constant 0 : index
      %26 = vector.load %arg7[%c0_29, %c0_30, %c0_31, %c0_32] : memref<1x1x16x128xf32, #tpu.memory_space<vmem>>, vector<1x1x16x128xf32>
      tpu.vector_store %arg7[%c0_29, %c0_30, %c0_31, %c0_32], %25 {strides = array<i32>} : memref<1x1x16x128xf32, #tpu.memory_space<vmem>>, vector<1x1x16x128xf32>,
    } else {
    }
    %c0_7 = arith.constant 0 : index
    %c0_8 = arith.constant 0 : index
    %c0_9 = arith.constant 0 : index
    %c0_10 = arith.constant 0 : index
    %10 = vector.load %arg6[%c0_7, %c0_8, %c0_9, %c0_10] : memref<1x1x16x128xf32, #tpu.memory_space<vmem>>, vector<1x1x16x128xf32>
    %11 = vector.shape_cast %10 : vector<1x1x16x128xf32> to vector<16x128xf32>
    %12 = arith.addf %11, %6 : vector<16x128xf32>
    %c0_11 = arith.constant 0 : index
    %c0_12 = arith.constant 0 : index
    %c0_13 = arith.constant 0 : index
    %c0_14 = arith.constant 0 : index
    %13 = vector.load %arg6[%c0_11, %c0_12, %c0_13, %c0_14] : memref<1x1x16x128xf32, #tpu.memory_space<vmem>>, vector<1x1x16x128xf32>
    %14 = vector.shape_cast %13 : vector<1x1x16x128xf32> to vector<16x128xf32>
    %15 = vector.shape_cast %12 : vector<16x128xf32> to vector<1x1x16x128xf32>
    tpu.vector_store %arg6[%c0_11, %c0_12, %c0_13, %c0_14], %15 {strides = array<i32>} : memref<1x1x16x128xf32, #tpu.memory_space<vmem>>, vector<1x1x16x128xf32>,
    %c0_15 = arith.constant 0 : index
    %c0_16 = arith.constant 0 : index
    %c0_17 = arith.constant 0 : index
    %c0_18 = arith.constant 0 : index
    %16 = vector.load %arg7[%c0_15, %c0_16, %c0_17, %c0_18] : memref<1x1x16x128xf32, #tpu.memory_space<vmem>>, vector<1x1x16x128xf32>
    %17 = vector.shape_cast %16 : vector<1x1x16x128xf32> to vector<16x128xf32>
    %18 = arith.mulf %6, %6 : vector<16x128xf32>
    %19 = arith.addf %17, %18 : vector<16x128xf32>
    %c0_19 = arith.constant 0 : index
    %c0_20 = arith.constant 0 : index
    %c0_21 = arith.constant 0 : index
    %c0_22 = arith.constant 0 : index
    %20 = vector.load %arg7[%c0_19, %c0_20, %c0_21, %c0_22] : memref<1x1x16x128xf32, #tpu.memory_space<vmem>>, vector<1x1x16x128xf32>
    %21 = vector.shape_cast %20 : vector<1x1x16x128xf32> to vector<16x128xf32>
    %22 = vector.shape_cast %19 : vector<16x128xf32> to vector<1x1x16x128xf32>
    tpu.vector_store %arg7[%c0_19, %c0_20, %c0_21, %c0_22], %22 {strides = array<i32>} : memref<1x1x16x128xf32, #tpu.memory_space<vmem>>, vector<1x1x16x128xf32>,
    return
  }
  func.func @transform_0(%arg0: i32, %arg1: i32, %arg2: i32) -> (i32, i32, i32) {
    %c1_i32 = arith.constant 1 : i32
    %0 = arith.muli %arg1, %c1_i32 : i32
    %1 = arith.addi %0, %arg2 : i32
    %c0_i32 = arith.constant 0 : i32
    %c0_i32_0 = arith.constant 0 : i32
    return %arg0, %c0_i32, %1 : i32, i32, i32
  }
  func.func @transform_1(%arg0: i32, %arg1: i32, %arg2: i32) -> (i32, i32) {
    %c0_i32 = arith.constant 0 : i32
    %c0_i32_0 = arith.constant 0 : i32
    %c0_i32_1 = arith.constant 0 : i32
    return %c0_i32, %c0_i32_0 : i32, i32
  }
  func.func @transform_2(%arg0: i32, %arg1: i32, %arg2: i32) -> (i32, i32) {
    %c0_i32 = arith.constant 0 : i32
    %c0_i32_0 = arith.constant 0 : i32
    %c0_i32_1 = arith.constant 0 : i32
    return %c0_i32, %c0_i32_0 : i32, i32
  }
  func.func @transform_3(%arg0: i32, %arg1: i32, %arg2: i32) -> (i32, i32, i32, i32) {
    %c0_i32 = arith.constant 0 : i32
    %c0_i32_0 = arith.constant 0 : i32
    %c0_i32_1 = arith.constant 0 : i32
    return %arg0, %arg1, %c0_i32, %c0_i32_0 : i32, i32, i32, i32
  }
  func.func @transform_4(%arg0: i32, %arg1: i32, %arg2: i32) -> (i32, i32, i32, i32) {
    %c0_i32 = arith.constant 0 : i32
    %c0_i32_0 = arith.constant 0 : i32
    %c0_i32_1 = arith.constant 0 : i32
    return %arg0, %arg1, %c0_i32, %c0_i32_0 : i32, i32, i32, i32
  }
}

module attributes {stable_mosaic.version = 11 : i64} {
  func.func @_bn_conv_residual_kernel(%arg0: i32, %arg1: i32, %arg2: memref<1x8x128xf32, #tpu.memory_space<vmem>>, %arg3: memref<1x16x128xf32, #tpu.memory_space<vmem>>, %arg4: memref<16x8xf32, #tpu.memory_space<vmem>>, %arg5: memref<16x1xf32, #tpu.memory_space<vmem>>, %arg6: memref<16x1xf32, #tpu.memory_space<vmem>>, %arg7: memref<1x16x128xf32, #tpu.memory_space<vmem>>) attributes {dimension_semantics = [#tpu.dimension_semantics<parallel>, #tpu.dimension_semantics<parallel>], iteration_bounds = array<i64: 2, 2>, scalar_prefetch = 0 : i64, scratch_operands = 0 : i64, tpu.core_type = #tpu.core_type<tc>, window_params = [{transform_indices = @transform_0, window_bounds = array<i64: 1, 8, 128>}, {transform_indices = @transform_1, window_bounds = array<i64: 1, 16, 128>}, {pipeline_mode = #tpu.pipeline_mode<synchronous>, transform_indices = @transform_2, window_bounds = array<i64: 16, 8>}, {pipeline_mode = #tpu.pipeline_mode<synchronous>, transform_indices = @transform_3, window_bounds = array<i64: 16, 1>}, {pipeline_mode = #tpu.pipeline_mode<synchronous>, transform_indices = @transform_4, window_bounds = array<i64: 16, 1>}, {transform_indices = @transform_5, window_bounds = array<i64: 1, 16, 128>}]} {
    %c0 = arith.constant 0 : index
    %c0_0 = arith.constant 0 : index
    %0 = vector.load %arg4[%c0, %c0_0] : memref<16x8xf32, #tpu.memory_space<vmem>>, vector<16x8xf32>
    %c0_1 = arith.constant 0 : index
    %c0_2 = arith.constant 0 : index
    %c0_3 = arith.constant 0 : index
    %1 = vector.load %arg2[%c0_1, %c0_2, %c0_3] : memref<1x8x128xf32, #tpu.memory_space<vmem>>, vector<1x8x128xf32>
    %2 = vector.shape_cast %1 : vector<1x8x128xf32> to vector<8x128xf32>
    %cst = arith.constant dense<0.000000e+00> : vector<16x128xf32>
    %3 = tpu.matmul %0, %2, %cst {dimension_numbers = #tpu.dot_dimension_numbers<[1], [0], [0], [1], [0, 0, 1, 1], [], []>, precision = #tpu.contract_precision<fp32>} : vector<16x8xf32>, vector<8x128xf32>, vector<16x128xf32> -> vector<16x128xf32>
    %c0_4 = arith.constant 0 : index
    %c0_5 = arith.constant 0 : index
    %4 = vector.load %arg5[%c0_4, %c0_5] : memref<16x1xf32, #tpu.memory_space<vmem>>, vector<16x1xf32>
    %5 = vector.broadcast %4 : vector<16x1xf32> to vector<16x128xf32>
    %6 = arith.mulf %3, %5 : vector<16x128xf32>
    %c0_6 = arith.constant 0 : index
    %c0_7 = arith.constant 0 : index
    %7 = vector.load %arg6[%c0_6, %c0_7] : memref<16x1xf32, #tpu.memory_space<vmem>>, vector<16x1xf32>
    %8 = vector.broadcast %7 : vector<16x1xf32> to vector<16x128xf32>
    %9 = arith.addf %6, %8 : vector<16x128xf32>
    %c0_8 = arith.constant 0 : index
    %c0_9 = arith.constant 0 : index
    %c0_10 = arith.constant 0 : index
    %10 = vector.load %arg3[%c0_8, %c0_9, %c0_10] : memref<1x16x128xf32, #tpu.memory_space<vmem>>, vector<1x16x128xf32>
    %11 = vector.shape_cast %10 : vector<1x16x128xf32> to vector<16x128xf32>
    %12 = arith.addf %9, %11 : vector<16x128xf32>
    %c0_11 = arith.constant 0 : index
    %c0_12 = arith.constant 0 : index
    %c0_13 = arith.constant 0 : index
    %13 = vector.load %arg7[%c0_11, %c0_12, %c0_13] : memref<1x16x128xf32, #tpu.memory_space<vmem>>, vector<1x16x128xf32>
    %14 = vector.shape_cast %13 : vector<1x16x128xf32> to vector<16x128xf32>
    %15 = vector.shape_cast %12 : vector<16x128xf32> to vector<1x16x128xf32>
    tpu.vector_store %arg7[%c0_11, %c0_12, %c0_13], %15 {strides = array<i32>} : memref<1x16x128xf32, #tpu.memory_space<vmem>>, vector<1x16x128xf32>,
    return
  }
  func.func @transform_0(%arg0: i32, %arg1: i32) -> (i32, i32, i32) {
    %c0_i32 = arith.constant 0 : i32
    %c0_i32_0 = arith.constant 0 : i32
    return %arg0, %c0_i32, %arg1 : i32, i32, i32
  }
  func.func @transform_1(%arg0: i32, %arg1: i32) -> (i32, i32, i32) {
    %c0_i32 = arith.constant 0 : i32
    %c0_i32_0 = arith.constant 0 : i32
    return %arg0, %c0_i32, %arg1 : i32, i32, i32
  }
  func.func @transform_2(%arg0: i32, %arg1: i32) -> (i32, i32) {
    %c0_i32 = arith.constant 0 : i32
    %c0_i32_0 = arith.constant 0 : i32
    %c0_i32_1 = arith.constant 0 : i32
    return %c0_i32, %c0_i32_0 : i32, i32
  }
  func.func @transform_3(%arg0: i32, %arg1: i32) -> (i32, i32) {
    %c0_i32 = arith.constant 0 : i32
    %c0_i32_0 = arith.constant 0 : i32
    %c0_i32_1 = arith.constant 0 : i32
    return %c0_i32, %c0_i32_0 : i32, i32
  }
  func.func @transform_4(%arg0: i32, %arg1: i32) -> (i32, i32) {
    %c0_i32 = arith.constant 0 : i32
    %c0_i32_0 = arith.constant 0 : i32
    %c0_i32_1 = arith.constant 0 : i32
    return %c0_i32, %c0_i32_0 : i32, i32
  }
  func.func @transform_5(%arg0: i32, %arg1: i32) -> (i32, i32, i32) {
    %c0_i32 = arith.constant 0 : i32
    %c0_i32_0 = arith.constant 0 : i32
    return %arg0, %c0_i32, %arg1 : i32, i32, i32
  }
}

</mosaic_0001>

<llo_original>
// kernel: pam_forward.4
$region0: #{pam_forward.4}
  #allocation0 [shape = 'u32[]', space=smem, size = 0x4, offset = 0x4, fixed_abs, tag = 'smem constant byte address 0x4 - core index']
  #allocation1 [shape = 'u32[144,128]{1,0:T(1,128)}', space=vmem, size = 0x12000, scoped, tag = 'internal scratch']
  %s0 = inlined_call_operand.vmem [shape: f32[2,16,256], index: 0, kind: input, shape index: {}]
  %s1 = inlined_call_operand.vmem [shape: f32[24,16], index: 1, kind: input, shape index: {}]
  %s2 = inlined_call_operand.vmem [shape: f32[2,8,256], index: 2, kind: output, shape index: {0}]
  %s3 = inlined_call_operand.vmem [shape: f32[2,8,256], index: 3, kind: output, shape index: {1}]
  %s4 = inlined_call_operand.vmem [shape: f32[2,8,256], index: 4, kind: output, shape index: {2}]
  %5 = xla_tuple %s2, %s3, %s4
  %s6 = sld [smem:[#allocation0]]
  $region95: #{pam_forward.4} parent=0
    _
  %s8 = ssub.s32 1, %s6
  %s9 = scalar_select 0, %s8, %s6
  $region1: #{pam_forward.4} parent=0
    #allocation2 [shape = 'u8[16384]{0}', space=vmem, size = 0x4000, scoped, tag = 'input window, operand 0']
    loop: start=0, step=1, limit=6
    $region2: #{pam_forward.4} parent=1 // loop_pre_header
      _
    $region3: #{pam_forward.4} parent=1 // loop_header
      %s11 = sphi 0, %s15
      %p12 = scmp.ge.s32.totalorder %s11, 6
      %s18 = sphi 0, %s30
      %s19 = sphi 0, %s26
      %s20 = sphi 0, %s18
      %s21 = sphi 0, %s19
      %s22 = sphi 0, %s20
      %s23 = sphi 0, %s21
      %s35 = sphi 0, %s37
      %s38 = sphi 0, %s35
      %s39 = sphi 0, %s38
      %s55 = sphi 0, %s39
      %s59 = sphi 0, %s59
      %s61 = sphi 0, %s59
      %s62 = sphi 0, %s61
      %s76 = sphi 0, %s62
      %s84 = sphi 0, %s86
      %s87 = sphi 0, %s84
      %s88 = sphi 0, %s87
      %s104 = sphi 0, %s88
      %s112 = sphi 0, %s114
      %s115 = sphi 0, %s112
      %s116 = sphi 0, %s115
      %s132 = sphi 0, %s116
      %s140 = sphi 0, %s142
      %s143 = sphi 0, %s140
      %s144 = sphi 0, %s143
      %s160 = sphi 0, %s144
    $region4: #{pam_forward.4} parent=1 // loop_header_branch
      %14 = sbr.rel (%p12) target = $region8
    $region5: #{pam_forward.4} parent=1 // loop_body
      %s16 = ssub.s32 %s11, 1
      %s17 = ssub.s32 %s11, 2
      %s24 = sadd.s32 1, %s19
      %p25 = scmp.ge.s32.totalorder %s24, 2
      %s26 = scalar_select %p25, 0, %s24
      %s27 = sadd.s32 1, %s18
      %s28 = scalar_select %p25, %s27, %s18
      %p29 = scmp.ge.s32.totalorder %s28, 2
      %s30 = scalar_select %p29, 0, %s28
      %s31 = ssub.s32 %s18, %s30
      %s32 = ssub.s32 %s19, %s26
      %s33 = sor.u32 %s31, %s32
      %p34 = scmp.eq.s32.totalorder %s33, 0
      %s36 = sadd.s32 %s35, 1
      %s37 = scalar_select %p34, %s35, %s36
      %p40 = pneg %p34
      %p41 = scmp.eq.s32.totalorder %s11, 3
      %p42 = por %p40, %p41
      %p43 = scmp.ne.s32.totalorder %s35, %s38
      %p44 = scmp.eq.s32.totalorder %s11, 0
      %p45 = por %p43, %p44
      %p46 = scmp.ne.s32.totalorder %s35, %s38
      %p47 = scmp.eq.s32.totalorder %s16, 3
      %p48 = por %p46, %p47
      %p49 = scmp.ne.s32.totalorder %s38, %s39
      %p50 = scmp.eq.s32.totalorder %s16, 0
      %p51 = por %p49, %p50
      %p52 = scmp.ne.s32.totalorder %s38, %s39
      %p53 = scmp.eq.s32.totalorder %s17, 3
      %p54 = por %p52, %p53
      %p56 = scmp.ne.s32.totalorder %s39, %s55
      %p57 = scmp.eq.s32.totalorder %s17, 0
      %p58 = por %p56, %p57
      %s60 = sadd.s32 %s59, 1
      %p63 = scmp.eq.s32.totalorder %s11, 3
      %p64 = scmp.ne.s32.totalorder %s59, %s61
      %p65 = scmp.eq.s32.totalorder %s11, 0
      %p66 = por %p64, %p65
      %p67 = scmp.ne.s32.totalorder %s59, %s61
      %p68 = scmp.eq.s32.totalorder %s16, 3
      %p69 = por %p67, %p68
      %p70 = scmp.ne.s32.totalorder %s61, %s62
      %p71 = scmp.eq.s32.totalorder %s16, 0
      %p72 = por %p70, %p71
      %p73 = scmp.ne.s32.totalorder %s61, %s62
      %p74 = scmp.eq.s32.totalorder %s17, 3
      %p75 = por %p73, %p74
      %p77 = scmp.ne.s32.totalorder %s62, %s76
      %p78 = scmp.eq.s32.totalorder %s17, 0
      %p79 = por %p77, %p78
      %s80 = ssub.s32 %s18, %s30
      %s81 = ssub.s32 %s19, %s26
      %s82 = sor.u32 %s80, %s81
      %p83 = scmp.eq.s32.totalorder %s82, 0
      %s85 = sadd.s32 %s84, 1
      %s86 = scalar_select %p83, %s84, %s85
      %p89 = pneg %p83
      %p90 = scmp.eq.s32.totalorder %s11, 3
      %p91 = por %p89, %p90
      %p92 = scmp.ne.s32.totalorder %s84, %s87
      %p93 = scmp.eq.s32.totalorder %s11, 0
      %p94 = por %p92, %p93
      %p95 = scmp.ne.s32.totalorder %s84, %s87
      %p96 = scmp.eq.s32.totalorder %s16, 3
      %p97 = por %p95, %p96
      %p98 = scmp.ne.s32.totalorder %s87, %s88
      %p99 = scmp.eq.s32.totalorder %s16, 0
      %p100 = por %p98, %p99
      %p101 = scmp.ne.s32.totalorder %s87, %s88
      %p102 = scmp.eq.s32.totalorder %s17, 3
      %p103 = por %p101, %p102
      %p105 = scmp.ne.s32.totalorder %s88, %s104
      %p106 = scmp.eq.s32.totalorder %s17, 0
      %p107 = por %p105, %p106
      %s108 = ssub.s32 %s18, %s30
      %s109 = ssub.s32 %s19, %s26
      %s110 = sor.u32 %s108, %s109
      %p111 = scmp.eq.s32.totalorder %s110, 0
      %s113 = sadd.s32 %s112, 1
      %s114 = scalar_select %p111, %s112, %s113
      %p117 = pneg %p111
      %p118 = scmp.eq.s32.totalorder %s11, 3
      %p119 = por %p117, %p118
      %p120 = scmp.ne.s32.totalorder %s112, %s115
      %p121 = scmp.eq.s32.totalorder %s11, 0
      %p122 = por %p120, %p121
      %p123 = scmp.ne.s32.totalorder %s112, %s115
      %p124 = scmp.eq.s32.totalorder %s16, 3
      %p125 = por %p123, %p124
      %p126 = scmp.ne.s32.totalorder %s115, %s116
      %p127 = scmp.eq.s32.totalorder %s16, 0
      %p128 = por %p126, %p127
      %p129 = scmp.ne.s32.totalorder %s115, %s116
      %p130 = scmp.eq.s32.totalorder %s17, 3
      %p131 = por %p129, %p130
      %p133 = scmp.ne.s32.totalorder %s116, %s132
      %p134 = scmp.eq.s32.totalorder %s17, 0
      %p135 = por %p133, %p134
      %s136 = ssub.s32 %s18, %s30
      %s137 = ssub.s32 %s19, %s26
      %s138 = sor.u32 %s136, %s137
      %p139 = scmp.eq.s32.totalorder %s138, 0
      %s141 = sadd.s32 %s140, 1
      %s142 = scalar_select %p139, %s140, %s141
      %p145 = pneg %p139
      %p146 = scmp.eq.s32.totalorder %s11, 3
      %p147 = por %p145, %p146
      %p148 = scmp.ne.s32.totalorder %s140, %s143
      %p149 = scmp.eq.s32.totalorder %s11, 0
      %p150 = por %p148, %p149
      %p151 = scmp.ne.s32.totalorder %s140, %s143
      %p152 = scmp.eq.s32.totalorder %s16, 3
      %p153 = por %p151, %p152
      %p154 = scmp.ne.s32.totalorder %s143, %s144
      %p155 = scmp.eq.s32.totalorder %s16, 0
      %p156 = por %p154, %p155
      %p157 = scmp.ne.s32.totalorder %s143, %s144
      %p158 = scmp.eq.s32.totalorder %s17, 3
      %p159 = por %p157, %p158
      %p161 = scmp.ne.s32.totalorder %s144, %s160
      %p162 = scmp.eq.s32.totalorder %s17, 0
      %p163 = por %p161, %p162
      %p164 = scmp.le.s32.totalorder 1, %s11
      %p165 = scmp.lt.s32.totalorder %s11, 5
      %p166 = pnand %p164, %p165
      %p167 = pneg %p166
      // Predicated region
      $region9: #{pam_forward.4} parent=5 // pred_check
        _
      $region10: #{pam_forward.4} parent=5 // pred_check_branch
        %169 = sbr.rel (%p166) target = $region12
      $region11: #{pam_forward.4} parent=5 // pred_region
        %s170 = ssub.s32 %s11, 1
        // Predicated region
        $region13: #{pam_forward.4} parent=11 // pred_check
          %p171 = pneg %p72
        $region14: #{pam_forward.4} parent=11 // pred_check_branch
          %173 = sbr.rel (%p171) target = $region16
        $region15: #{pam_forward.4} parent=11 // pred_region
          _
        $region16: #{pam_forward.4} parent=11 // pred_fallthru
          _
      $region12: #{pam_forward.4} parent=5 // pred_fallthru
        _
      %p174 = scmp.lt.s32.totalorder %s11, 4
      // Predicated region
      $region17: #{pam_forward.4} parent=5 // pred_check
        %p175 = pneg %p174
      $region18: #{pam_forward.4} parent=5 // pred_check_branch
        %177 = sbr.rel (%p175) target = $region20
      $region19: #{pam_forward.4} parent=5 // pred_region
        // Predicated region
        $region21: #{pam_forward.4} parent=19 // pred_check
          %p178 = pneg %p45
        $region22: #{pam_forward.4} parent=19 // pred_check_branch
          %180 = sbr.rel (%p178) target = $region24
        $region23: #{pam_forward.4} parent=19 // pred_region
          %s181 = sand.u32 %s35, 1
          %s182 = sand.u32 %s35, 1
          %s183 = smul.addr %s182, 16
          %s184 = scalar_lea.vmem [#allocation2], %s183
          %s185 = smul.addr %s18, 4
          %s186 = sadd.s32 %s19, %s185
          %s187 = smul.addr %s186, 8
          %s188 = scalar_lea.vmem %s0, %s187
          // Predicated region
          $region25: #{pam_forward.4} parent=23 // pred_check
            _
          $region26: #{pam_forward.4} parent=23 // pred_check_branch
            %190 = sbr.rel (0) target = $region28
          $region27: #{pam_forward.4} parent=23 // pred_region
            // Predicated region
            $region29: #{pam_forward.4} parent=27 // pred_check
              _
            $region30: #{pam_forward.4} parent=27 // pred_check_branch
              %192 = sbr.rel (0) target = $region32
            $region31: #{pam_forward.4} parent=27 // pred_region
              // Predicated region
              $region44: #{pam_forward.4} parent=31 // pred_check
                _
              $region45: #{pam_forward.4} parent=31 // pred_check_branch
                %209 = sbr.rel (0) target = $region47
              $region46: #{pam_forward.4} parent=31 // pred_region
                loop: start=0, step=1, limit=1
                $region48: #{pam_forward.4} parent=46 // loop_pre_header
                  _
                $region49: #{pam_forward.4} parent=46 // loop_header
                  %s211 = sphi 0, %s215
                  %p212 = scmp.ge.s32.totalorder %s211, 1
                  %s216 = sphi %s188, %s188
                  %s217 = sphi %s184, %s184
                $region50: #{pam_forward.4} parent=46 // loop_header_branch
                  %214 = sbr.rel (%p212) target = $region54
                $region51: #{pam_forward.4} parent=46 // loop_body
                  %v218 = vld [vmem:[%s216] sm:$0xff]
                  %219 = vst [vmem:[%s217] sm:$0xff] %v218
                  %v220 = vld [vmem:[%s216 + $0x10] sm:$0xff]
                  %221 = vst [vmem:[%s217 + $0x8] sm:$0xff] %v220
                $region52: #{pam_forward.4} parent=46 // loop_footer
                  %s215 = sadd.s32 1, %s211
                $region53: #{pam_forward.4} parent=46 // loop_footer_branch
                  %210 = sbr.rel target = $region49
                $region54: #{pam_forward.4} parent=46 // loop_exit
                  _
              $region47: #{pam_forward.4} parent=31 // pred_fallthru
                _
              // Predicated region
              $region55: #{pam_forward.4} parent=31 // pred_check
                _
              $region56: #{pam_forward.4} parent=31 // pred_check_branch
                %223 = sbr.rel target = $region58
              $region57: #{pam_forward.4} parent=31 // pred_region
                _
              $region58: #{pam_forward.4} parent=31 // pred_fallthru
                _
            $region32: #{pam_forward.4} parent=27 // pred_fallthru
              _
            // Predicated region
            $region33: #{pam_forward.4} parent=27 // pred_check
              _
            $region34: #{pam_forward.4} parent=27 // pred_check_branch
              %194 = sbr.rel target = $region36
            $region35: #{pam_forward.4} parent=27 // pred_region
              loop: start=0, step=1, limit=1
              $region37: #{pam_forward.4} parent=35 // loop_pre_header
                _
              $region38: #{pam_forward.4} parent=35 // loop_header
                %s197 = sphi 0, %s201
                %p198 = scmp.ge.s32.totalorder %s197, 1
                %s202 = sphi %s188, %s188
                %s203 = sphi %s184, %s184
              $region39: #{pam_forward.4} parent=35 // loop_header_branch
                %200 = sbr.rel (%p198) target = $region43
              $region40: #{pam_forward.4} parent=35 // loop_body
                %v204 = vld [vmem:[%s202] sm:$0xff]
                %205 = vst [vmem:[%s203] sm:$0xff] %v204
                %v206 = vld [vmem:[%s202 + $0x10] sm:$0xff]
                %207 = vst [vmem:[%s203 + $0x8] sm:$0xff] %v206
              $region41: #{pam_forward.4} parent=35 // loop_footer
                %s201 = sadd.s32 1, %s197
              $region42: #{pam_forward.4} parent=35 // loop_footer_branch
                %196 = sbr.rel target = $region38
              $region43: #{pam_forward.4} parent=35 // loop_exit
                _
            $region36: #{pam_forward.4} parent=27 // pred_fallthru
              _
          $region28: #{pam_forward.4} parent=23 // pred_fallthru
            _
          %224 = vnop
        $region24: #{pam_forward.4} parent=19 // pred_fallthru
          _
      $region20: #{pam_forward.4} parent=5 // pred_fallthru
        _
      %p225 = scmp.le.s32.totalorder 1, %s11
      %p226 = scmp.lt.s32.totalorder %s11, 5
      %p227 = pnand %p225, %p226
      %p228 = pneg %p227
      // Predicated region
      $region59: #{pam_forward.4} parent=5 // pred_check
        _
      $region60: #{pam_forward.4} parent=5 // pred_check_branch
        %230 = sbr.rel (%p227) target = $region62
      $region61: #{pam_forward.4} parent=5 // pred_region
        %s231 = ssub.s32 %s11, 1
        %s232 = sand.u32 %s38, 1
        %s233 = sand.u32 %s38, 1
        %s234 = smul.addr %s233, 16
        %s235 = scalar_lea.vmem [#allocation2], %s234
        // Predicated region
        $region63: #{pam_forward.4} parent=61 // pred_check
          %p236 = pneg %p51
        $region64: #{pam_forward.4} parent=61 // pred_check_branch
          %238 = sbr.rel (%p236) target = $region66
        $region65: #{pam_forward.4} parent=61 // pred_region
          _
        $region66: #{pam_forward.4} parent=61 // pred_fallthru
          _
        %s239 = sand.u32 %s38, 1
        %s240 = sand.u32 %s38, 1
        %s241 = smul.addr %s240, 16
        %s242 = scalar_lea.vmem [#allocation2], %s241
        %p243 = pneg %p51
        %p244 = pneg %p48
        %p245 = pneg %p72
        %p246 = pneg %p69
        %p247 = pneg %p100
        %p248 = pneg %p97
        %p249 = scmp.lt.s32.totalorder %s20, 1
        %s250 = scalar_select %p249, %s20, 1
        %p251 = scmp.lt.s32.totalorder %s21, 1
        %s252 = scalar_select %p251, %s21, 1
        %s253 = smul.addr %s250, 2
        %s254 = sadd.s32 %s252, %s253
        %s255 = smul.addr %s254, 8
        %s256 = scalar_lea.vmem %s2, %s255
        %p257 = pneg %p128
        %p258 = pneg %p125
        %p259 = scmp.lt.s32.totalorder %s20, 1
        %s260 = scalar_select %p259, %s20, 1
        %p261 = scmp.lt.s32.totalorder %s21, 1
        %s262 = scalar_select %p261, %s21, 1
        %s263 = smul.addr %s260, 2
        %s264 = sadd.s32 %s262, %s263
        %s265 = smul.addr %s264, 8
        %s266 = scalar_lea.vmem %s3, %s265
        %p267 = pneg %p156
        %p268 = pneg %p153
        %p269 = scmp.lt.s32.totalorder %s20, 1
        %s270 = scalar_select %p269, %s20, 1
        %p271 = scmp.lt.s32.totalorder %s21, 1
        %s272 = scalar_select %p271, %s21, 1
        %s273 = smul.addr %s270, 2
        %s274 = sadd.s32 %s272, %s273
        %s275 = smul.addr %s274, 8
        %s276 = scalar_lea.vmem %s4, %s275
        %p277 = scmp.lt.s32.totalorder %s20, 1
        %s278 = scalar_select %p277, %s20, 1
        %p279 = scmp.lt.s32.totalorder %s21, 1
        %s280 = scalar_select %p279, %s21, 1
        %s281 = smul.addr %s278, 2
        %s282 = sadd.s32 %s280, %s281
        %s283 = smul.addr %s282, 8
        %s284 = scalar_lea.vmem %s2, %s283
        %p285 = scmp.lt.s32.totalorder %s20, 1
        %s286 = scalar_select %p285, %s20, 1
        %p287 = scmp.lt.s32.totalorder %s21, 1
        %s288 = scalar_select %p287, %s21, 1
        %s289 = smul.addr %s286, 2
        %s290 = sadd.s32 %s288, %s289
        %s291 = smul.addr %s290, 8
        %s292 = scalar_lea.vmem %s3, %s291
        %p293 = scmp.lt.s32.totalorder %s20, 1
        %s294 = scalar_select %p293, %s20, 1
        %p295 = scmp.lt.s32.totalorder %s21, 1
        %s296 = scalar_select %p295, %s21, 1
        %s297 = smul.addr %s294, 2
        %s298 = sadd.s32 %s296, %s297
        %s299 = smul.addr %s298, 8
        %s300 = scalar_lea.vmem %s4, %s299
        %v301 = vld [vmem:[%s235] sm:$0xff]
        %v302 = vld [vmem:[%s235 + $0x8] sm:$0xff]
        %v303 = vld [vmem:[%s1] sm:$0xff]
        %v304 = vld [vmem:[%s1 + $0x8] sm:$0xff]
        %v305 = vld [vmem:[%s1 + $0x10] sm:$0xff]
        %vm306 = vcmask 130048
        %v308 = vsel %vm306, %v303, 0
        %v311 = vsel %vm306, %v304, 0
        %v314 = vsel %vm306, %v305, 0
        %316 = vmatprep.subr.mxu0 0.0
        %v317 = vand.u32 %v301, 4294901760
        %318 = vmatpush1.msra.mxu0 %v317
        %319 = vmatprep.subr.mxu0 0.0
        %v320 = vand.u32 %v302, 4294901760
        %321 = vmatpush1.msra.mxu0 %v320
        %322 = vmatprep.subr.mxu0 0.0
        %323 = vmatpush1.msra.mxu0 0.0
        %324 = vmatprep.subr.mxu0 0.0
        %325 = vmatpush1.msra.mxu0 0.0
        %326 = vmatprep.subr.mxu0 0.0
        %327 = vmatpush1.msra.mxu0 0.0
        %328 = vmatprep.subr.mxu0 0.0
        %329 = vmatpush1.msra.mxu0 0.0
        %330 = vmatprep.subr.mxu0 0.0
        %331 = vmatpush1.msra.mxu0 0.0
        %332 = vmatprep.subr.mxu0 0.0
        %333 = vmatpush1.msra.mxu0 0.0
        %334 = vmatprep.subr.mxu0 0.0
        %335 = vmatpush1.msra.mxu0 0.0
        %336 = vmatprep.subr.mxu0 0.0
        %337 = vmatpush1.msra.mxu0 0.0
        %338 = vmatprep.subr.mxu0 0.0
        %339 = vmatpush1.msra.mxu0 0.0
        %340 = vmatprep.subr.mxu0 0.0
        %341 = vmatpush1.msra.mxu0 0.0
        %342 = vmatprep.subr.mxu0 0.0
        %343 = vmatpush1.msra.mxu0 0.0
        %344 = vmatprep.subr.mxu0 0.0
        %345 = vmatpush1.msra.mxu0 0.0
        %346 = vmatprep.subr.mxu0 0.0
        %347 = vmatpush1.msra.mxu0 0.0
        %348 = vmatprep.subr.mxu0 0.0
        %349 = vmatpush1.msra.mxu0 0.0
        %350 = vmatprep.subr.mxu0 0.0
        %351 = vmatpush1.msra.mxu0 0.0
        %352 = vmatprep.subr.mxu0 0.0
        %353 = vmatpush1.msra.mxu0 0.0
        %354 = vmatprep.subr.mxu0 0.0
        %355 = vmatpush1.msra.mxu0 0.0
        %356 = vmatprep.subr.mxu0 0.0
        %357 = vmatpush1.msra.mxu0 0.0
        %358 = vmatprep.subr.mxu0 0.0
        %359 = vmatpush1.msra.mxu0 0.0
        %360 = vmatprep.subr.mxu0 0.0
        %361 = vmatpush1.msra.mxu0 0.0
        %362 = vmatprep.subr.mxu0 0.0
        %363 = vmatpush1.msra.mxu0 0.0
        %364 = vmatprep.subr.mxu0 0.0
        %365 = vmatpush1.msra.mxu0 0.0
        %366 = vmatprep.subr.mxu0 0.0
        %367 = vmatpush1.msra.mxu0 0.0
        %368 = vmatprep.subr.mxu0 0.0
        %369 = vmatpush1.msra.mxu0 0.0
        %370 = vmatprep.subr.mxu0 0.0
        %371 = vmatpush1.msra.mxu0 0.0
        %372 = vmatprep.subr.mxu0 0.0
        %373 = vmatpush1.msra.mxu0 0.0
        %374 = vmatprep.subr.mxu0 0.0
        %375 = vmatpush1.msra.mxu0 0.0
        %376 = vmatprep.subr.mxu0 0.0
        %377 = vmatpush1.msra.mxu0 0.0
        %378 = vmatprep.subr.mxu0 0.0
        %379 = vmatpush1.msra.mxu0 0.0
        %380 = vmatprep.subr.mxu0 0.0
        %381 = vmatpush1.msra.mxu0 0.0
        %382 = vmatprep.mubr.f32.mxu0 0.0
        %v383 = vand.u32 %v308, 4294901760
        %v384 = vsub.f32 %v308, %v383
        %v385 = vand.u32 %v384, 4294901760
        %v386 = vsub.f32 %v384, %v385
        %v387 = vand.u32 %v386, 4294901760
        %388 = vmatmul.mubr.f32.gmra.mrb[0].mxu0 %v387
        %v389 = vpop.f32.mrb[0].mxu0
        %v390 = vadd.f32 0.0, %v389
        %v391 = vpop.f32.mrb[0].mxu0
        %392 = vmatprep.mubr.f32.mxu0 0.0
        %v393 = vand.u32 %v311, 4294901760
        %v394 = vsub.f32 %v311, %v393
        %v395 = vand.u32 %v394, 4294901760
        %v396 = vsub.f32 %v394, %v395
        %v397 = vand.u32 %v396, 4294901760
        %398 = vmatmul.mubr.f32.gmra.mrb[0].mxu0 %v397
        %v399 = vpop.f32.mrb[0].mxu0
        %v400 = vadd.f32 0.0, %v399
        %v401 = vpop.f32.mrb[0].mxu0
        %402 = vmatprep.mubr.f32.mxu0 0.0
        %v403 = vand.u32 %v314, 4294901760
        %v404 = vsub.f32 %v314, %v403
        %v405 = vand.u32 %v404, 4294901760
        %v406 = vsub.f32 %v404, %v405
        %v407 = vand.u32 %v406, 4294901760
        %408 = vmatmul.mubr.f32.gmra.mrb[0].mxu0 %v407
        %v409 = vpop.f32.mrb[0].mxu0
        %v410 = vadd.f32 0.0, %v409
        %v411 = vpop.f32.mrb[0].mxu0
        %412 = vdwg.mxu0
        %413 = vmatprep.subr.mxu0 0.0
        %v414 = vand.u32 %v301, 4294901760
        %v415 = vsub.f32 %v301, %v414
        %v416 = vand.u32 %v415, 4294901760
        %v417 = vsub.f32 %v415, %v416
        %v418 = vand.u32 %v417, 4294901760
        %419 = vmatpush1.msra.mxu0 %v418
        %420 = vmatprep.subr.mxu0 0.0
        %v421 = vand.u32 %v302, 4294901760
        %v422 = vsub.f32 %v302, %v421
        %v423 = vand.u32 %v422, 4294901760
        %v424 = vsub.f32 %v422, %v423
        %v425 = vand.u32 %v424, 4294901760
        %426 = vmatpush1.msra.mxu0 %v425
        %427 = vmatprep.subr.mxu0 0.0
        %428 = vmatpush1.msra.mxu0 0.0
        %429 = vmatprep.subr.mxu0 0.0
        %430 = vmatpush1.msra.mxu0 0.0
        %431 = vmatprep.subr.mxu0 0.0
        %432 = vmatpush1.msra.mxu0 0.0
        %433 = vmatprep.subr.mxu0 0.0
        %434 = vmatpush1.msra.mxu0 0.0
        %435 = vmatprep.subr.mxu0 0.0
        %436 = vmatpush1.msra.mxu0 0.0
        %437 = vmatprep.subr.mxu0 0.0
        %438 = vmatpush1.msra.mxu0 0.0
        %439 = vmatprep.subr.mxu0 0.0
        %440 = vmatpush1.msra.mxu0 0.0
        %441 = vmatprep.subr.mxu0 0.0
        %442 = vmatpush1.msra.mxu0 0.0
        %443 = vmatprep.subr.mxu0 0.0
        %444 = vmatpush1.msra.mxu0 0.0
        %445 = vmatprep.subr.mxu0 0.0
        %446 = vmatpush1.msra.mxu0 0.0
        %447 = vmatprep.subr.mxu0 0.0
        %448 = vmatpush1.msra.mxu0 0.0
        %449 = vmatprep.subr.mxu0 0.0
        %450 = vmatpush1.msra.mxu0 0.0
        %451 = vmatprep.subr.mxu0 0.0
        %452 = vmatpush1.msra.mxu0 0.0
        %453 = vmatprep.subr.mxu0 0.0
        %454 = vmatpush1.msra.mxu0 0.0
        %455 = vmatprep.subr.mxu0 0.0
        %456 = vmatpush1.msra.mxu0 0.0
        %457 = vmatprep.subr.mxu0 0.0
        %458 = vmatpush1.msra.mxu0 0.0
        %459 = vmatprep.subr.mxu0 0.0
        %460 = vmatpush1.msra.mxu0 0.0
        %461 = vmatprep.subr.mxu0 0.0
        %462 = vmatpush1.msra.mxu0 0.0
        %463 = vmatprep.subr.mxu0 0.0
        %464 = vmatpush1.msra.mxu0 0.0
        %465 = vmatprep.subr.mxu0 0.0
        %466 = vmatpush1.msra.mxu0 0.0
        %467 = vmatprep.subr.mxu0 0.0
        %468 = vmatpush1.msra.mxu0 0.0
        %469 = vmatprep.subr.mxu0 0.0
        %470 = vmatpush1.msra.mxu0 0.0
        %471 = vmatprep.subr.mxu0 0.0
        %472 = vmatpush1.msra.mxu0 0.0
        %473 = vmatprep.subr.mxu0 0.0
        %474 = vmatpush1.msra.mxu0 0.0
        %475 = vmatprep.subr.mxu0 0.0
        %476 = vmatpush1.msra.mxu0 0.0
        %477 = vmatprep.subr.mxu0 0.0
        %478 = vmatpush1.msra.mxu0 0.0
        %479 = vmatprep.subr.mxu0 0.0
        %480 = vmatpush1.msra.mxu0 0.0
        %481 = vmatprep.subr.mxu0 0.0
        %482 = vmatpush1.msra.mxu0 0.0
        %483 = vmatprep.subr.mxu0 0.0
        %484 = vmatpush1.msra.mxu0 0.0
        %485 = vmatprep.subr.mxu0 0.0
        %486 = vmatpush1.msra.mxu0 0.0
        %487 = vmatprep.mubr.f32.mxu0 0.0
        %v488 = vand.u32 %v308, 4294901760
        %489 = vmatmul.mubr.f32.gmra.mrb[0].mxu0 %v488
        %v490 = vpop.f32.mrb[0].mxu0
        %v491 = vadd.f32 %v390, %v490
        %v492 = vpop.f32.mrb[0].mxu0
        %493 = vmatprep.mubr.f32.mxu0 0.0
        %v494 = vand.u32 %v311, 4294901760
        %495 = vmatmul.mubr.f32.gmra.mrb[0].mxu0 %v494
        %v496 = vpop.f32.mrb[0].mxu0
        %v497 = vadd.f32 %v400, %v496
        %v498 = vpop.f32.mrb[0].mxu0
        %499 = vmatprep.mubr.f32.mxu0 0.0
        %v500 = vand.u32 %v314, 4294901760
        %501 = vmatmul.mubr.f32.gmra.mrb[0].mxu0 %v500
        %v502 = vpop.f32.mrb[0].mxu0
        %v503 = vadd.f32 %v410, %v502
        %v504 = vpop.f32.mrb[0].mxu0
        %505 = vdwg.mxu0
        %506 = vmatprep.subr.mxu0 0.0
        %v507 = vand.u32 %v301, 4294901760
        %v508 = vsub.f32 %v301, %v507
        %509 = vmatpush1.msra.mxu0 %v508
        %510 = vmatprep.subr.mxu0 0.0
        %v511 = vand.u32 %v302, 4294901760
        %v512 = vsub.f32 %v302, %v511
        %513 = vmatpush1.msra.mxu0 %v512
        %514 = vmatprep.subr.mxu0 0.0
        %515 = vmatpush1.msra.mxu0 0.0
        %516 = vmatprep.subr.mxu0 0.0
        %517 = vmatpush1.msra.mxu0 0.0
        %518 = vmatprep.subr.mxu0 0.0
        %519 = vmatpush1.msra.mxu0 0.0
        %520 = vmatprep.subr.mxu0 0.0
        %521 = vmatpush1.msra.mxu0 0.0
        %522 = vmatprep.subr.mxu0 0.0
        %523 = vmatpush1.msra.mxu0 0.0
        %524 = vmatprep.subr.mxu0 0.0
        %525 = vmatpush1.msra.mxu0 0.0
        %526 = vmatprep.subr.mxu0 0.0
        %527 = vmatpush1.msra.mxu0 0.0
        %528 = vmatprep.subr.mxu0 0.0
        %529 = vmatpush1.msra.mxu0 0.0
        %530 = vmatprep.subr.mxu0 0.0
        %531 = vmatpush1.msra.mxu0 0.0
        %532 = vmatprep.subr.mxu0 0.0
        %533 = vmatpush1.msra.mxu0 0.0
        %534 = vmatprep.subr.mxu0 0.0
        %535 = vmatpush1.msra.mxu0 0.0
        %536 = vmatprep.subr.mxu0 0.0
        %537 = vmatpush1.msra.mxu0 0.0
        %538 = vmatprep.subr.mxu0 0.0
        %539 = vmatpush1.msra.mxu0 0.0
        %540 = vmatprep.subr.mxu0 0.0
        %541 = vmatpush1.msra.mxu0 0.0
        %542 = vmatprep.subr.mxu0 0.0
        %543 = vmatpush1.msra.mxu0 0.0
        %544 = vmatprep.subr.mxu0 0.0
        %545 = vmatpush1.msra.mxu0 0.0
        %546 = vmatprep.subr.mxu0 0.0
        %547 = vmatpush1.msra.mxu0 0.0
        %548 = vmatprep.subr.mxu0 0.0
        %549 = vmatpush1.msra.mxu0 0.0
        %550 = vmatprep.subr.mxu0 0.0
        %551 = vmatpush1.msra.mxu0 0.0
        %552 = vmatprep.subr.mxu0 0.0
        %553 = vmatpush1.msra.mxu0 0.0
        %554 = vmatprep.subr.mxu0 0.0
        %555 = vmatpush1.msra.mxu0 0.0
        %556 = vmatprep.subr.mxu0 0.0
        %557 = vmatpush1.msra.mxu0 0.0
        %558 = vmatprep.subr.mxu0 0.0
        %559 = vmatpush1.msra.mxu0 0.0
        %560 = vmatprep.subr.mxu0 0.0
        %561 = vmatpush1.msra.mxu0 0.0
        %562 = vmatprep.subr.mxu0 0.0
        %563 = vmatpush1.msra.mxu0 0.0
        %564 = vmatprep.subr.mxu0 0.0
        %565 = vmatpush1.msra.mxu0 0.0
        %566 = vmatprep.subr.mxu0 0.0
        %567 = vmatpush1.msra.mxu0 0.0
        %568 = vmatprep.subr.mxu0 0.0
        %569 = vmatpush1.msra.mxu0 0.0
        %570 = vmatprep.subr.mxu0 0.0
        %571 = vmatpush1.msra.mxu0 0.0
        %572 = vmatprep.subr.mxu0 0.0
        %573 = vmatpush1.msra.mxu0 0.0
        %574 = vmatprep.mubr.f32.mxu0 0.0
        %v575 = vand.u32 %v308, 4294901760
        %v576 = vsub.f32 %v308, %v575
        %577 = vmatmul.mubr.f32.gmra.mrb[0].mxu0 %v576
        %v578 = vpop.f32.mrb[0].mxu0
        %v579 = vadd.f32 %v491, %v578
        %v580 = vpop.f32.mrb[0].mxu0
        %581 = vmatprep.mubr.f32.mxu0 0.0
        %v582 = vand.u32 %v311, 4294901760
        %v583 = vsub.f32 %v311, %v582
        %584 = vmatmul.mubr.f32.gmra.mrb[0].mxu0 %v583
        %v585 = vpop.f32.mrb[0].mxu0
        %v586 = vadd.f32 %v497, %v585
        %v587 = vpop.f32.mrb[0].mxu0
        %588 = vmatprep.mubr.f32.mxu0 0.0
        %v589 = vand.u32 %v314, 4294901760
        %v590 = vsub.f32 %v314, %v589
        %591 = vmatmul.mubr.f32.gmra.mrb[0].mxu0 %v590
        %v592 = vpop.f32.mrb[0].mxu0
        %v593 = vadd.f32 %v503, %v592
        %v594 = vpop.f32.mrb[0].mxu0
        %595 = vdwg.mxu0
        %596 = vmatprep.subr.mxu0 0.0
        %v597 = vand.u32 %v301, 4294901760
        %598 = vmatpush1.msra.mxu0 %v597
        %599 = vmatprep.subr.mxu0 0.0
        %v600 = vand.u32 %v302, 4294901760
        %601 = vmatpush1.msra.mxu0 %v600
        %602 = vmatprep.subr.mxu0 0.0
        %603 = vmatpush1.msra.mxu0 0.0
        %604 = vmatprep.subr.mxu0 0.0
        %605 = vmatpush1.msra.mxu0 0.0
        %606 = vmatprep.subr.mxu0 0.0
        %607 = vmatpush1.msra.mxu0 0.0
        %608 = vmatprep.subr.mxu0 0.0
        %609 = vmatpush1.msra.mxu0 0.0
        %610 = vmatprep.subr.mxu0 0.0
        %611 = vmatpush1.msra.mxu0 0.0
        %612 = vmatprep.subr.mxu0 0.0
        %613 = vmatpush1.msra.mxu0 0.0
        %614 = vmatprep.subr.mxu0 0.0
        %615 = vmatpush1.msra.mxu0 0.0
        %616 = vmatprep.subr.mxu0 0.0
        %617 = vmatpush1.msra.mxu0 0.0
        %618 = vmatprep.subr.mxu0 0.0
        %619 = vmatpush1.msra.mxu0 0.0
        %620 = vmatprep.subr.mxu0 0.0
        %621 = vmatpush1.msra.mxu0 0.0
        %622 = vmatprep.subr.mxu0 0.0
        %623 = vmatpush1.msra.mxu0 0.0
        %624 = vmatprep.subr.mxu0 0.0
        %625 = vmatpush1.msra.mxu0 0.0
        %626 = vmatprep.subr.mxu0 0.0
        %627 = vmatpush1.msra.mxu0 0.0
        %628 = vmatprep.subr.mxu0 0.0
        %629 = vmatpush1.msra.mxu0 0.0
        %630 = vmatprep.subr.mxu0 0.0
        %631 = vmatpush1.msra.mxu0 0.0
        %632 = vmatprep.subr.mxu0 0.0
        %633 = vmatpush1.msra.mxu0 0.0
        %634 = vmatprep.subr.mxu0 0.0
        %635 = vmatpush1.msra.mxu0 0.0
        %636 = vmatprep.subr.mxu0 0.0
        %637 = vmatpush1.msra.mxu0 0.0
        %638 = vmatprep.subr.mxu0 0.0
        %639 = vmatpush1.msra.mxu0 0.0
        %640 = vmatprep.subr.mxu0 0.0
        %641 = vmatpush1.msra.mxu0 0.0
        %642 = vmatprep.subr.mxu0 0.0
        %643 = vmatpush1.msra.mxu0 0.0
        %644 = vmatprep.subr.mxu0 0.0
        %645 = vmatpush1.msra.mxu0 0.0
        %646 = vmatprep.subr.mxu0 0.0
        %647 = vmatpush1.msra.mxu0 0.0
        %648 = vmatprep.subr.mxu0 0.0
        %649 = vmatpush1.msra.mxu0 0.0
        %650 = vmatprep.subr.mxu0 0.0
        %651 = vmatpush1.msra.mxu0 0.0
        %652 = vmatprep.subr.mxu0 0.0
        %653 = vmatpush1.msra.mxu0 0.0
        %654 = vmatprep.subr.mxu0 0.0
        %655 = vmatpush1.msra.mxu0 0.0
        %656 = vmatprep.subr.mxu0 0.0
        %657 = vmatpush1.msra.mxu0 0.0
        %658 = vmatprep.subr.mxu0 0.0
        %659 = vmatpush1.msra.mxu0 0.0
        %660 = vmatprep.subr.mxu0 0.0
        %661 = vmatpush1.msra.mxu0 0.0
        %662 = vmatprep.mubr.f32.mxu0 0.0
        %v663 = vand.u32 %v308, 4294901760
        %v664 = vsub.f32 %v308, %v663
        %v665 = vand.u32 %v664, 4294901760
        %666 = vmatmul.mubr.f32.gmra.mrb[0].mxu0 %v665
        %v667 = vpop.f32.mrb[0].mxu0
        %v668 = vadd.f32 %v579, %v667
        %v669 = vpop.f32.mrb[0].mxu0
        %670 = vmatprep.mubr.f32.mxu0 0.0
        %v671 = vand.u32 %v311, 4294901760
        %v672 = vsub.f32 %v311, %v671
        %v673 = vand.u32 %v672, 4294901760
        %674 = vmatmul.mubr.f32.gmra.mrb[0].mxu0 %v673
        %v675 = vpop.f32.mrb[0].mxu0
        %v676 = vadd.f32 %v586, %v675
        %v677 = vpop.f32.mrb[0].mxu0
        %678 = vmatprep.mubr.f32.mxu0 0.0
        %v679 = vand.u32 %v314, 4294901760
        %v680 = vsub.f32 %v314, %v679
        %v681 = vand.u32 %v680, 4294901760
        %682 = vmatmul.mubr.f32.gmra.mrb[0].mxu0 %v681
        %v683 = vpop.f32.mrb[0].mxu0
        %v684 = vadd.f32 %v593, %v683
        %v685 = vpop.f32.mrb[0].mxu0
        %686 = vdwg.mxu0
        %687 = vmatprep.subr.mxu0 0.0
        %v688 = vand.u32 %v301, 4294901760
        %v689 = vsub.f32 %v301, %v688
        %v690 = vand.u32 %v689, 4294901760
        %691 = vmatpush1.msra.mxu0 %v690
        %692 = vmatprep.subr.mxu0 0.0
        %v693 = vand.u32 %v302, 4294901760
        %v694 = vsub.f32 %v302, %v693
        %v695 = vand.u32 %v694, 4294901760
        %696 = vmatpush1.msra.mxu0 %v695
        %697 = vmatprep.subr.mxu0 0.0
        %698 = vmatpush1.msra.mxu0 0.0
        %699 = vmatprep.subr.mxu0 0.0
        %700 = vmatpush1.msra.mxu0 0.0
        %701 = vmatprep.subr.mxu0 0.0
        %702 = vmatpush1.msra.mxu0 0.0
        %703 = vmatprep.subr.mxu0 0.0
        %704 = vmatpush1.msra.mxu0 0.0
        %705 = vmatprep.subr.mxu0 0.0
        %706 = vmatpush1.msra.mxu0 0.0
        %707 = vmatprep.subr.mxu0 0.0
        %708 = vmatpush1.msra.mxu0 0.0
        %709 = vmatprep.subr.mxu0 0.0
        %710 = vmatpush1.msra.mxu0 0.0
        %711 = vmatprep.subr.mxu0 0.0
        %712 = vmatpush1.msra.mxu0 0.0
        %713 = vmatprep.subr.mxu0 0.0
        %714 = vmatpush1.msra.mxu0 0.0
        %715 = vmatprep.subr.mxu0 0.0
        %716 = vmatpush1.msra.mxu0 0.0
        %717 = vmatprep.subr.mxu0 0.0
        %718 = vmatpush1.msra.mxu0 0.0
        %719 = vmatprep.subr.mxu0 0.0
        %720 = vmatpush1.msra.mxu0 0.0
        %721 = vmatprep.subr.mxu0 0.0
        %722 = vmatpush1.msra.mxu0 0.0
        %723 = vmatprep.subr.mxu0 0.0
        %724 = vmatpush1.msra.mxu0 0.0
        %725 = vmatprep.subr.mxu0 0.0
        %726 = vmatpush1.msra.mxu0 0.0
        %727 = vmatprep.subr.mxu0 0.0
        %728 = vmatpush1.msra.mxu0 0.0
        %729 = vmatprep.subr.mxu0 0.0
        %730 = vmatpush1.msra.mxu0 0.0
        %731 = vmatprep.subr.mxu0 0.0
        %732 = vmatpush1.msra.mxu0 0.0
        %733 = vmatprep.subr.mxu0 0.0
        %734 = vmatpush1.msra.mxu0 0.0
        %735 = vmatprep.subr.mxu0 0.0
        %736 = vmatpush1.msra.mxu0 0.0
        %737 = vmatprep.subr.mxu0 0.0
        %738 = vmatpush1.msra.mxu0 0.0
        %739 = vmatprep.subr.mxu0 0.0
        %740 = vmatpush1.msra.mxu0 0.0
        %741 = vmatprep.subr.mxu0 0.0
        %742 = vmatpush1.msra.mxu0 0.0
        %743 = vmatprep.subr.mxu0 0.0
        %744 = vmatpush1.msra.mxu0 0.0
        %745 = vmatprep.subr.mxu0 0.0
        %746 = vmatpush1.msra.mxu0 0.0
        %747 = vmatprep.subr.mxu0 0.0
        %748 = vmatpush1.msra.mxu0 0.0
        %749 = vmatprep.subr.mxu0 0.0
        %750 = vmatpush1.msra.mxu0 0.0
        %751 = vmatprep.subr.mxu0 0.0
        %752 = vmatpush1.msra.mxu0 0.0
        %753 = vmatprep.subr.mxu0 0.0
        %754 = vmatpush1.msra.mxu0 0.0
        %755 = vmatprep.subr.mxu0 0.0
        %756 = vmatpush1.msra.mxu0 0.0
        %757 = vmatprep.mubr.f32.mxu0 0.0
        %v758 = vand.u32 %v308, 4294901760
        %759 = vmatmul.mubr.f32.gmra.mrb[0].mxu0 %v758
        %v760 = vpop.f32.mrb[0].mxu0
        %v761 = vadd.f32 %v668, %v760
        %v762 = vpop.f32.mrb[0].mxu0
        %763 = vmatprep.mubr.f32.mxu0 0.0
        %v764 = vand.u32 %v311, 4294901760
        %765 = vmatmul.mubr.f32.gmra.mrb[0].mxu0 %v764
        %v766 = vpop.f32.mrb[0].mxu0
        %v767 = vadd.f32 %v676, %v766
        %v768 = vpop.f32.mrb[0].mxu0
        %769 = vmatprep.mubr.f32.mxu0 0.0
        %v770 = vand.u32 %v314, 4294901760
        %771 = vmatmul.mubr.f32.gmra.mrb[0].mxu0 %v770
        %v772 = vpop.f32.mrb[0].mxu0
        %v773 = vadd.f32 %v684, %v772
        %v774 = vpop.f32.mrb[0].mxu0
        %775 = vdwg.mxu0
        %776 = vmatprep.subr.mxu0 0.0
        %v777 = vand.u32 %v301, 4294901760
        %778 = vmatpush1.msra.mxu0 %v777
        %779 = vmatprep.subr.mxu0 0.0
        %v780 = vand.u32 %v302, 4294901760
        %781 = vmatpush1.msra.mxu0 %v780
        %782 = vmatprep.subr.mxu0 0.0
        %783 = vmatpush1.msra.mxu0 0.0
        %784 = vmatprep.subr.mxu0 0.0
        %785 = vmatpush1.msra.mxu0 0.0
        %786 = vmatprep.subr.mxu0 0.0
        %787 = vmatpush1.msra.mxu0 0.0
        %788 = vmatprep.subr.mxu0 0.0
        %789 = vmatpush1.msra.mxu0 0.0
        %790 = vmatprep.subr.mxu0 0.0
        %791 = vmatpush1.msra.mxu0 0.0
        %792 = vmatprep.subr.mxu0 0.0
        %793 = vmatpush1.msra.mxu0 0.0
        %794 = vmatprep.subr.mxu0 0.0
        %795 = vmatpush1.msra.mxu0 0.0
        %796 = vmatprep.subr.mxu0 0.0
        %797 = vmatpush1.msra.mxu0 0.0
        %798 = vmatprep.subr.mxu0 0.0
        %799 = vmatpush1.msra.mxu0 0.0
        %800 = vmatprep.subr.mxu0 0.0
        %801 = vmatpush1.msra.mxu0 0.0
        %802 = vmatprep.subr.mxu0 0.0
        %803 = vmatpush1.msra.mxu0 0.0
        %804 = vmatprep.subr.mxu0 0.0
        %805 = vmatpush1.msra.mxu0 0.0
        %806 = vmatprep.subr.mxu0 0.0
        %807 = vmatpush1.msra.mxu0 0.0
        %808 = vmatprep.subr.mxu0 0.0
        %809 = vmatpush1.msra.mxu0 0.0
        %810 = vmatprep.subr.mxu0 0.0
        %811 = vmatpush1.msra.mxu0 0.0
        %812 = vmatprep.subr.mxu0 0.0
        %813 = vmatpush1.msra.mxu0 0.0
        %814 = vmatprep.subr.mxu0 0.0
        %815 = vmatpush1.msra.mxu0 0.0
        %816 = vmatprep.subr.mxu0 0.0
        %817 = vmatpush1.msra.mxu0 0.0
        %818 = vmatprep.subr.mxu0 0.0
        %819 = vmatpush1.msra.mxu0 0.0
        %820 = vmatprep.subr.mxu0 0.0
        %821 = vmatpush1.msra.mxu0 0.0
        %822 = vmatprep.subr.mxu0 0.0
        %823 = vmatpush1.msra.mxu0 0.0
        %824 = vmatprep.subr.mxu0 0.0
        %825 = vmatpush1.msra.mxu0 0.0
        %826 = vmatprep.subr.mxu0 0.0
        %827 = vmatpush1.msra.mxu0 0.0
        %828 = vmatprep.subr.mxu0 0.0
        %829 = vmatpush1.msra.mxu0 0.0
        %830 = vmatprep.subr.mxu0 0.0
        %831 = vmatpush1.msra.mxu0 0.0
        %832 = vmatprep.subr.mxu0 0.0
        %833 = vmatpush1.msra.mxu0 0.0
        %834 = vmatprep.subr.mxu0 0.0
        %835 = vmatpush1.msra.mxu0 0.0
        %836 = vmatprep.subr.mxu0 0.0
        %837 = vmatpush1.msra.mxu0 0.0
        %838 = vmatprep.subr.mxu0 0.0
        %839 = vmatpush1.msra.mxu0 0.0
        %840 = vmatprep.subr.mxu0 0.0
        %841 = vmatpush1.msra.mxu0 0.0
        %842 = vmatprep.mubr.f32.mxu0 0.0
        %v843 = vand.u32 %v308, 4294901760
        %844 = vmatmul.mubr.f32.gmra.mrb[0].mxu0 %v843
        %v845 = vpop.f32.mrb[0].mxu0
        %v846 = vadd.f32 %v761, %v845
        %v847 = vpop.f32.mrb[0].mxu0
        %848 = vmatprep.mubr.f32.mxu0 0.0
        %v849 = vand.u32 %v311, 4294901760
        %850 = vmatmul.mubr.f32.gmra.mrb[0].mxu0 %v849
        %v851 = vpop.f32.mrb[0].mxu0
        %v852 = vadd.f32 %v767, %v851
        %v853 = vpop.f32.mrb[0].mxu0
        %854 = vmatprep.mubr.f32.mxu0 0.0
        %v855 = vand.u32 %v314, 4294901760
        %856 = vmatmul.mubr.f32.gmra.mrb[0].mxu0 %v855
        %v857 = vpop.f32.mrb[0].mxu0
        %v858 = vadd.f32 %v773, %v857
        %v859 = vpop.f32.mrb[0].mxu0
        %860 = vdwg.mxu0
        %861 = vst [vmem:[%s284] sm:$0xff] %v846
        %862 = vst [vmem:[%s292] sm:$0xff] %v852
        %863 = vst [vmem:[%s300] sm:$0xff] %v858
        %p864 = scmp.lt.s32.totalorder %s20, 1
        %s865 = scalar_select %p864, %s20, 1
        %p866 = scmp.lt.s32.totalorder %s21, 1
        %s867 = scalar_select %p866, %s21, 1
        %s868 = smul.addr %s865, 2
        %s869 = sadd.s32 %s867, %s868
        %s870 = smul.addr %s869, 8
        %s871 = scalar_lea.vmem %s2, %s870
        %p872 = scmp.lt.s32.totalorder %s20, 1
        %s873 = scalar_select %p872, %s20, 1
        %p874 = scmp.lt.s32.totalorder %s21, 1
        %s875 = scalar_select %p874, %s21, 1
        %s876 = smul.addr %s873, 2
        %s877 = sadd.s32 %s875, %s876
        %s878 = smul.addr %s877, 8
        %s879 = scalar_lea.vmem %s3, %s878
        %p880 = scmp.lt.s32.totalorder %s20, 1
        %s881 = scalar_select %p880, %s20, 1
        %p882 = scmp.lt.s32.totalorder %s21, 1
        %s883 = scalar_select %p882, %s21, 1
        %s884 = smul.addr %s881, 2
        %s885 = sadd.s32 %s883, %s884
        %s886 = smul.addr %s885, 8
        %s887 = scalar_lea.vmem %s4, %s886
        // Predicated region
        $region67: #{pam_forward.4} parent=61 // pred_check
          %p888 = pneg %p97
        $region68: #{pam_forward.4} parent=61 // pred_check_branch
          %890 = sbr.rel (%p888) target = $region70
        $region69: #{pam_forward.4} parent=61 // pred_region
          _
        $region70: #{pam_forward.4} parent=61 // pred_fallthru
          _
        // Predicated region
        $region71: #{pam_forward.4} parent=61 // pred_check
          %p891 = pneg %p125
        $region72: #{pam_forward.4} parent=61 // pred_check_branch
          %893 = sbr.rel (%p891) target = $region74
        $region73: #{pam_forward.4} parent=61 // pred_region
          _
        $region74: #{pam_forward.4} parent=61 // pred_fallthru
          _
        // Predicated region
        $region75: #{pam_forward.4} parent=61 // pred_check
          %p894 = pneg %p153
        $region76: #{pam_forward.4} parent=61 // pred_check_branch
          %896 = sbr.rel (%p894) target = $region78
        $region77: #{pam_forward.4} parent=61 // pred_region
          _
        $region78: #{pam_forward.4} parent=61 // pred_fallthru
          _
      $region62: #{pam_forward.4} parent=5 // pred_fallthru
        _
      %p897 = scmp.le.s32.totalorder 2, %s11
      // Predicated region
      $region79: #{pam_forward.4} parent=5 // pred_check
        %p898 = pneg %p897
      $region80: #{pam_forward.4} parent=5 // pred_check_branch
        %900 = sbr.rel (%p898) target = $region82
      $region81: #{pam_forward.4} parent=5 // pred_region
        %s901 = ssub.s32 %s11, 2
        // Predicated region
        $region83: #{pam_forward.4} parent=81 // pred_check
          %p902 = pneg %p103
        $region84: #{pam_forward.4} parent=81 // pred_check_branch
          %904 = sbr.rel (%p902) target = $region86
        $region85: #{pam_forward.4} parent=81 // pred_region
          %p905 = scmp.lt.s32.totalorder %s22, 1
          %s906 = scalar_select %p905, %s22, 1
          %p907 = scmp.lt.s32.totalorder %s23, 1
          %s908 = scalar_select %p907, %s23, 1
          %s909 = smul.addr %s906, 2
          %s910 = sadd.s32 %s908, %s909
          %s911 = smul.addr %s910, 8
          %s912 = scalar_lea.vmem %s2, %s911
        $region86: #{pam_forward.4} parent=81 // pred_fallthru
          _
        // Predicated region
        $region87: #{pam_forward.4} parent=81 // pred_check
          %p913 = pneg %p131
        $region88: #{pam_forward.4} parent=81 // pred_check_branch
          %915 = sbr.rel (%p913) target = $region90
        $region89: #{pam_forward.4} parent=81 // pred_region
          %p916 = scmp.lt.s32.totalorder %s22, 1
          %s917 = scalar_select %p916, %s22, 1
          %p918 = scmp.lt.s32.totalorder %s23, 1
          %s919 = scalar_select %p918, %s23, 1
          %s920 = smul.addr %s917, 2
          %s921 = sadd.s32 %s919, %s920
          %s922 = smul.addr %s921, 8
          %s923 = scalar_lea.vmem %s3, %s922
        $region90: #{pam_forward.4} parent=81 // pred_fallthru
          _
        // Predicated region
        $region91: #{pam_forward.4} parent=81 // pred_check
          %p924 = pneg %p159
        $region92: #{pam_forward.4} parent=81 // pred_check_branch
          %926 = sbr.rel (%p924) target = $region94
        $region93: #{pam_forward.4} parent=81 // pred_region
          %p927 = scmp.lt.s32.totalorder %s22, 1
          %s928 = scalar_select %p927, %s22, 1
          %p929 = scmp.lt.s32.totalorder %s23, 1
          %s930 = scalar_select %p929, %s23, 1
          %s931 = smul.addr %s928, 2
          %s932 = sadd.s32 %s930, %s931
          %s933 = smul.addr %s932, 8
          %s934 = scalar_lea.vmem %s4, %s933
        $region94: #{pam_forward.4} parent=81 // pred_fallthru
          _
      $region82: #{pam_forward.4} parent=5 // pred_fallthru
        _
    $region6: #{pam_forward.4} parent=1 // loop_footer
      %s15 = sadd.s32 1, %s11
    $region7: #{pam_forward.4} parent=1 // loop_footer_branch
      %10 = sbr.rel target = $region3
    $region8: #{pam_forward.4} parent=1 // loop_exit
      _

// kernel: pam_forward.5
$region0: #{pam_forward.5}
  #allocation0 [shape = 'u32[]', space=smem, size = 0x4, offset = 0x4, fixed_abs, tag = 'smem constant byte address 0x4 - core index']
  #allocation1 [shape = 'u32[144,128]{1,0:T(1,128)}', space=vmem, size = 0x12000, scoped, tag = 'internal scratch']
  #allocation2 [shape = 'f32[128,1]{1,0:T(8,128)}', space=vmem, size = 0x10000, scoped, tag = 'scratch operand']
  #allocation3 [shape = 'f32[128,1]{1,0:T(8,128)}', space=vmem, size = 0x10000, scoped, tag = 'scratch operand']
  #allocation4 [shape = 'f32[128,8]{1,0:T(8,128)}', space=vmem, size = 0x10000, scoped, tag = 'scratch operand']
  %s0 = inlined_call_operand.vmem [shape: f32[2,256,8], index: 0, kind: input, shape index: {}]
  %s1 = inlined_call_operand.vmem [shape: f32[2,8,256], index: 1, kind: input, shape index: {}]
  %s2 = inlined_call_operand.vmem [shape: f32[2,256,8], index: 2, kind: input, shape index: {}]
  %s3 = inlined_call_operand.vmem [shape: f32[2,256,8], index: 3, kind: output, shape index: {}]
  %s4 = sld [smem:[#allocation0]]
  $region53: #{pam_forward.5} parent=0
    _
  %s6 = ssub.s32 1, %s4
  %s7 = scalar_select 0, %s6, %s4
  loop: start=0, step=1, limit=10
  $region2: #{pam_forward.5} parent=0 // loop_pre_header
    _
  $region3: #{pam_forward.5} parent=0 // loop_header
    %s9 = sphi 0, %s13
    %p10 = scmp.ge.s32.totalorder %s9, 10
    %s16 = sphi 0, %s35
    %s17 = sphi 0, %s31
    %s18 = sphi 0, %s27
    %s19 = sphi 0, %s16
    %s20 = sphi 0, %s17
    %s21 = sphi 0, %s18
    %s22 = sphi 0, %s19
    %s23 = sphi 0, %s20
    %s24 = sphi 0, %s21
    %s40 = sphi 0, %s42
    %s43 = sphi 0, %s40
    %s44 = sphi 0, %s43
    %s60 = sphi 0, %s44
    %s68 = sphi 0, %s70
    %s71 = sphi 0, %s68
    %s72 = sphi 0, %s71
    %s88 = sphi 0, %s72
    %s96 = sphi 0, %s98
    %s99 = sphi 0, %s96
    %s100 = sphi 0, %s99
    %s116 = sphi 0, %s100
    %s124 = sphi 0, %s126
    %s127 = sphi 0, %s124
    %s128 = sphi 0, %s127
    %s144 = sphi 0, %s128
  $region4: #{pam_forward.5} parent=0 // loop_header_branch
    %12 = sbr.rel (%p10) target = $region8
  $region5: #{pam_forward.5} parent=0 // loop_body
    %s14 = ssub.s32 %s9, 1
    %s15 = ssub.s32 %s9, 2
    %s25 = sadd.s32 1, %s18
    %p26 = scmp.ge.s32.totalorder %s25, 2
    %s27 = scalar_select %p26, 0, %s25
    %s28 = sadd.s32 1, %s17
    %s29 = scalar_select %p26, %s28, %s17
    %p30 = scmp.ge.s32.totalorder %s29, 2
    %s31 = scalar_select %p30, 0, %s29
    %s32 = sadd.s32 1, %s16
    %s33 = scalar_select %p30, %s32, %s16
    %p34 = scmp.ge.s32.totalorder %s33, 2
    %s35 = scalar_select %p34, 0, %s33
    %s36 = ssub.s32 %s16, %s35
    %s37 = ssub.s32 %s17, %s31
    %s38 = sor.u32 %s36, %s37
    %p39 = scmp.eq.s32.totalorder %s38, 0
    %s41 = sadd.s32 %s40, 1
    %s42 = scalar_select %p39, %s40, %s41
    %p45 = pneg %p39
    %p46 = scmp.eq.s32.totalorder %s9, 7
    %p47 = por %p45, %p46
    %p48 = scmp.ne.s32.totalorder %s40, %s43
    %p49 = scmp.eq.s32.totalorder %s9, 0
    %p50 = por %p48, %p49
    %p51 = scmp.ne.s32.totalorder %s40, %s43
    %p52 = scmp.eq.s32.totalorder %s14, 7
    %p53 = por %p51, %p52
    %p54 = scmp.ne.s32.totalorder %s43, %s44
    %p55 = scmp.eq.s32.totalorder %s14, 0
    %p56 = por %p54, %p55
    %p57 = scmp.ne.s32.totalorder %s43, %s44
    %p58 = scmp.eq.s32.totalorder %s15, 7
    %p59 = por %p57, %p58
    %p61 = scmp.ne.s32.totalorder %s44, %s60
    %p62 = scmp.eq.s32.totalorder %s15, 0
    %p63 = por %p61, %p62
    %s64 = ssub.s32 %s16, %s35
    %s65 = ssub.s32 %s18, %s27
    %s66 = sor.u32 %s64, %s65
    %p67 = scmp.eq.s32.totalorder %s66, 0
    %s69 = sadd.s32 %s68, 1
    %s70 = scalar_select %p67, %s68, %s69
    %p73 = pneg %p67
    %p74 = scmp.eq.s32.totalorder %s9, 7
    %p75 = por %p73, %p74
    %p76 = scmp.ne.s32.totalorder %s68, %s71
    %p77 = scmp.eq.s32.totalorder %s9, 0
    %p78 = por %p76, %p77
    %p79 = scmp.ne.s32.totalorder %s68, %s71
    %p80 = scmp.eq.s32.totalorder %s14, 7
    %p81 = por %p79, %p80
    %p82 = scmp.ne.s32.totalorder %s71, %s72
    %p83 = scmp.eq.s32.totalorder %s14, 0
    %p84 = por %p82, %p83
    %p85 = scmp.ne.s32.totalorder %s71, %s72
    %p86 = scmp.eq.s32.totalorder %s15, 7
    %p87 = por %p85, %p86
    %p89 = scmp.ne.s32.totalorder %s72, %s88
    %p90 = scmp.eq.s32.totalorder %s15, 0
    %p91 = por %p89, %p90
    %s92 = ssub.s32 %s16, %s35
    %s93 = ssub.s32 %s18, %s27
    %s94 = sor.u32 %s92, %s93
    %p95 = scmp.eq.s32.totalorder %s94, 0
    %s97 = sadd.s32 %s96, 1
    %s98 = scalar_select %p95, %s96, %s97
    %p101 = pneg %p95
    %p102 = scmp.eq.s32.totalorder %s9, 7
    %p103 = por %p101, %p102
    %p104 = scmp.ne.s32.totalorder %s96, %s99
    %p105 = scmp.eq.s32.totalorder %s9, 0
    %p106 = por %p104, %p105
    %p107 = scmp.ne.s32.totalorder %s96, %s99
    %p108 = scmp.eq.s32.totalorder %s14, 7
    %p109 = por %p107, %p108
    %p110 = scmp.ne.s32.totalorder %s99, %s100
    %p111 = scmp.eq.s32.totalorder %s14, 0
    %p112 = por %p110, %p111
    %p113 = scmp.ne.s32.totalorder %s99, %s100
    %p114 = scmp.eq.s32.totalorder %s15, 7
    %p115 = por %p113, %p114
    %p117 = scmp.ne.s32.totalorder %s100, %s116
    %p118 = scmp.eq.s32.totalorder %s15, 0
    %p119 = por %p117, %p118
    %s120 = ssub.s32 %s16, %s35
    %s121 = ssub.s32 %s17, %s31
    %s122 = sor.u32 %s120, %s121
    %p123 = scmp.eq.s32.totalorder %s122, 0
    %s125 = sadd.s32 %s124, 1
    %s126 = scalar_select %p123, %s124, %s125
    %p129 = pneg %p123
    %p130 = scmp.eq.s32.totalorder %s9, 7
    %p131 = por %p129, %p130
    %p132 = scmp.ne.s32.totalorder %s124, %s127
    %p133 = scmp.eq.s32.totalorder %s9, 0
    %p134 = por %p132, %p133
    %p135 = scmp.ne.s32.totalorder %s124, %s127
    %p136 = scmp.eq.s32.totalorder %s14, 7
    %p137 = por %p135, %p136
    %p138 = scmp.ne.s32.totalorder %s127, %s128
    %p139 = scmp.eq.s32.totalorder %s14, 0
    %p140 = por %p138, %p139
    %p141 = scmp.ne.s32.totalorder %s127, %s128
    %p142 = scmp.eq.s32.totalorder %s15, 7
    %p143 = por %p141, %p142
    %p145 = scmp.ne.s32.totalorder %s128, %s144
    %p146 = scmp.eq.s32.totalorder %s15, 0
    %p147 = por %p145, %p146
    %p148 = scmp.le.s32.totalorder 1, %s9
    %p149 = scmp.lt.s32.totalorder %s9, 9
    %p150 = pnand %p148, %p149
    %p151 = pneg %p150
    // Predicated region
    $region9: #{pam_forward.5} parent=5 // pred_check
      _
    $region10: #{pam_forward.5} parent=5 // pred_check_branch
      %153 = sbr.rel (%p150) target = $region12
    $region11: #{pam_forward.5} parent=5 // pred_region
      %s154 = ssub.s32 %s9, 1
    $region12: #{pam_forward.5} parent=5 // pred_fallthru
      _
    %p155 = scmp.lt.s32.totalorder %s9, 8
    // Predicated region
    $region13: #{pam_forward.5} parent=5 // pred_check
      %p156 = pneg %p155
    $region14: #{pam_forward.5} parent=5 // pred_check_branch
      %158 = sbr.rel (%p156) target = $region16
    $region15: #{pam_forward.5} parent=5 // pred_region
      // Predicated region
      $region17: #{pam_forward.5} parent=15 // pred_check
        %p159 = pneg %p50
      $region18: #{pam_forward.5} parent=15 // pred_check_branch
        %161 = sbr.rel (%p159) target = $region20
      $region19: #{pam_forward.5} parent=15 // pred_region
        %s162 = smul.u32 16, %s17
        %p163 = scmp.lt.s32.totalorder %s16, 1
        %s164 = scalar_select %p163, %s16, 1
        %p165 = scmp.lt.s32.totalorder %s162, 31
        %s166 = scalar_select %p165, %s162, 31
        %s167 = smul.addr %s164, 32
        %s168 = sadd.s32 %s166, %s167
        %s169 = smul.addr %s168, 8
        %s170 = scalar_lea.vmem %s0, %s169
        %s171 = smul.u32 16, %s17
      $region20: #{pam_forward.5} parent=15 // pred_fallthru
        _
      // Predicated region
      $region21: #{pam_forward.5} parent=15 // pred_check
        %p172 = pneg %p78
      $region22: #{pam_forward.5} parent=15 // pred_check_branch
        %174 = sbr.rel (%p172) target = $region24
      $region23: #{pam_forward.5} parent=15 // pred_region
        %p175 = scmp.lt.s32.totalorder %s16, 1
        %s176 = scalar_select %p175, %s16, 1
        %p177 = scmp.lt.s32.totalorder %s18, 1
        %s178 = scalar_select %p177, %s18, 1
        %s179 = smul.addr %s176, 2
        %s180 = sadd.s32 %s178, %s179
        %s181 = smul.addr %s180, 8
        %s182 = scalar_lea.vmem %s1, %s181
      $region24: #{pam_forward.5} parent=15 // pred_fallthru
        _
      // Predicated region
      $region25: #{pam_forward.5} parent=15 // pred_check
        %p183 = pneg %p106
      $region26: #{pam_forward.5} parent=15 // pred_check_branch
        %185 = sbr.rel (%p183) target = $region28
      $region27: #{pam_forward.5} parent=15 // pred_region
        %s186 = smul.u32 16, %s18
        %p187 = scmp.lt.s32.totalorder %s16, 1
        %s188 = scalar_select %p187, %s16, 1
        %p189 = scmp.lt.s32.totalorder %s186, 31
        %s190 = scalar_select %p189, %s186, 31
        %s191 = smul.addr %s188, 32
        %s192 = sadd.s32 %s190, %s191
        %s193 = smul.addr %s192, 8
        %s194 = scalar_lea.vmem %s2, %s193
        %s195 = smul.u32 16, %s18
      $region28: #{pam_forward.5} parent=15 // pred_fallthru
        _
    $region16: #{pam_forward.5} parent=5 // pred_fallthru
      _
    %p196 = scmp.le.s32.totalorder 1, %s9
    %p197 = scmp.lt.s32.totalorder %s9, 9
    %p198 = pnand %p196, %p197
    %p199 = pneg %p198
    // Predicated region
    $region29: #{pam_forward.5} parent=5 // pred_check
      _
    $region30: #{pam_forward.5} parent=5 // pred_check_branch
      %201 = sbr.rel (%p198) target = $region32
    $region31: #{pam_forward.5} parent=5 // pred_region
      %s202 = ssub.s32 %s9, 1
      %s203 = smul.u32 16, %s20
      %p204 = scmp.lt.s32.totalorder %s19, 1
      %s205 = scalar_select %p204, %s19, 1
      %p206 = scmp.lt.s32.totalorder %s203, 31
      %s207 = scalar_select %p206, %s203, 31
      %s208 = smul.addr %s205, 32
      %s209 = sadd.s32 %s207, %s208
      %s210 = smul.addr %s209, 8
      %s211 = scalar_lea.vmem %s0, %s210
      %p212 = pneg %p56
      %p213 = pneg %p53
      %p214 = scmp.lt.s32.totalorder %s19, 1
      %s215 = scalar_select %p214, %s19, 1
      %p216 = scmp.lt.s32.totalorder %s21, 1
      %s217 = scalar_select %p216, %s21, 1
      %s218 = smul.addr %s215, 2
      %s219 = sadd.s32 %s217, %s218
      %s220 = smul.addr %s219, 8
      %s221 = scalar_lea.vmem %s1, %s220
      %p222 = pneg %p84
      %p223 = pneg %p81
      %s224 = smul.u32 16, %s21
      %p225 = scmp.lt.s32.totalorder %s19, 1
      %s226 = scalar_select %p225, %s19, 1
      %p227 = scmp.lt.s32.totalorder %s224, 31
      %s228 = scalar_select %p227, %s224, 31
      %s229 = smul.addr %s226, 32
      %s230 = sadd.s32 %s228, %s229
      %s231 = smul.addr %s230, 8
      %s232 = scalar_lea.vmem %s2, %s231
      %p233 = pneg %p112
      %p234 = pneg %p109
      %p235 = pneg %p140
      %p236 = pneg %p137
      %s237 = smul.u32 16, %s20
      %p238 = scmp.lt.s32.totalorder %s19, 1
      %s239 = scalar_select %p238, %s19, 1
      %p240 = scmp.lt.s32.totalorder %s237, 31
      %s241 = scalar_select %p240, %s237, 31
      %s242 = smul.addr %s239, 32
      %s243 = sadd.s32 %s241, %s242
      %s244 = smul.addr %s243, 8
      %s245 = scalar_lea.vmem %s3, %s244
      %s246 = smul.u32 16, %s20
      %p247 = scmp.lt.s32.totalorder %s19, 1
      %s248 = scalar_select %p247, %s19, 1
      %p249 = scmp.lt.s32.totalorder %s246, 31
      %s250 = scalar_select %p249, %s246, 31
      %s251 = smul.addr %s248, 32
      %s252 = sadd.s32 %s250, %s251
      %s253 = smul.addr %s252, 8
      %s254 = scalar_lea.vmem %s0, %s253
      %s255 = smul.u32 16, %s20
      %p256 = scmp.lt.s32.totalorder %s19, 1
      %s257 = scalar_select %p256, %s19, 1
      %p258 = scmp.lt.s32.totalorder %s21, 1
      %s259 = scalar_select %p258, %s21, 1
      %s260 = smul.addr %s257, 2
      %s261 = sadd.s32 %s259, %s260
      %s262 = smul.addr %s261, 8
      %s263 = scalar_lea.vmem %s1, %s262
      %s264 = smul.u32 16, %s21
      %p265 = scmp.lt.s32.totalorder %s19, 1
      %s266 = scalar_select %p265, %s19, 1
      %p267 = scmp.lt.s32.totalorder %s264, 31
      %s268 = scalar_select %p267, %s264, 31
      %s269 = smul.addr %s266, 32
      %s270 = sadd.s32 %s268, %s269
      %s271 = smul.addr %s270, 8
      %s272 = scalar_lea.vmem %s2, %s271
      %s273 = smul.u32 16, %s21
      %s274 = smul.u32 16, %s20
      %p275 = scmp.lt.s32.totalorder %s19, 1
      %s276 = scalar_select %p275, %s19, 1
      %p277 = scmp.lt.s32.totalorder %s274, 31
      %s278 = scalar_select %p277, %s274, 31
      %s279 = smul.addr %s276, 32
      %s280 = sadd.s32 %s278, %s279
      %s281 = smul.addr %s280, 8
      %s282 = scalar_lea.vmem %s3, %s281
      %s283 = smul.u32 16, %s20
      %p284 = scmp.eq.s32.totalorder %s21, 0
      // Predicated region
      $region33: #{pam_forward.5} parent=31 // pred_check
        %p285 = pneg %p284
      $region34: #{pam_forward.5} parent=31 // pred_check_branch
        %287 = sbr.rel (%p285) target = $region36
      $region35: #{pam_forward.5} parent=31 // pred_region
        %vm288 = vcmask 7168
        %289 = vst.msk [vmem:[#allocation2] sm:$0xff] %vm288, -inf
        %290 = vst.msk [vmem:[#allocation2 + $0x8] sm:$0xff] %vm288, -inf
        %291 = vst.msk [vmem:[#allocation2 + $0x10] sm:$0xff] %vm288, -inf
        %292 = vst.msk [vmem:[#allocation2 + $0x18] sm:$0xff] %vm288, -inf
        %293 = vst.msk [vmem:[#allocation2 + $0x20] sm:$0xff] %vm288, -inf
        %294 = vst.msk [vmem:[#allocation2 + $0x28] sm:$0xff] %vm288, -inf
        %295 = vst.msk [vmem:[#allocation2 + $0x30] sm:$0xff] %vm288, -inf
        %296 = vst.msk [vmem:[#allocation2 + $0x38] sm:$0xff] %vm288, -inf
        %297 = vst.msk [vmem:[#allocation2 + $0x40] sm:$0xff] %vm288, -inf
        %298 = vst.msk [vmem:[#allocation2 + $0x48] sm:$0xff] %vm288, -inf
        %299 = vst.msk [vmem:[#allocation2 + $0x50] sm:$0xff] %vm288, -inf
        %300 = vst.msk [vmem:[#allocation2 + $0x58] sm:$0xff] %vm288, -inf
        %301 = vst.msk [vmem:[#allocation2 + $0x60] sm:$0xff] %vm288, -inf
        %302 = vst.msk [vmem:[#allocation2 + $0x68] sm:$0xff] %vm288, -inf
        %303 = vst.msk [vmem:[#allocation2 + $0x70] sm:$0xff] %vm288, -inf
        %304 = vst.msk [vmem:[#allocation2 + $0x78] sm:$0xff] %vm288, -inf
        %305 = vst.msk [vmem:[#allocation3] sm:$0xff] %vm288, 0.0
        %306 = vst.msk [vmem:[#allocation3 + $0x8] sm:$0xff] %vm288, 0.0
        %307 = vst.msk [vmem:[#allocation3 + $0x10] sm:$0xff] %vm288, 0.0
        %308 = vst.msk [vmem:[#allocation3 + $0x18] sm:$0xff] %vm288, 0.0
        %309 = vst.msk [vmem:[#allocation3 + $0x20] sm:$0xff] %vm288, 0.0
        %310 = vst.msk [vmem:[#allocation3 + $0x28] sm:$0xff] %vm288, 0.0
        %311 = vst.msk [vmem:[#allocation3 + $0x30] sm:$0xff] %vm288, 0.0
        %312 = vst.msk [vmem:[#allocation3 + $0x38] sm:$0xff] %vm288, 0.0
        %313 = vst.msk [vmem:[#allocation3 + $0x40] sm:$0xff] %vm288, 0.0
        %314 = vst.msk [vmem:[#allocation3 + $0x48] sm:$0xff] %vm288, 0.0
        %315 = vst.msk [vmem:[#allocation3 + $0x50] sm:$0xff] %vm288, 0.0
        %316 = vst.msk [vmem:[#allocation3 + $0x58] sm:$0xff] %vm288, 0.0
        %317 = vst.msk [vmem:[#allocation3 + $0x60] sm:$0xff] %vm288, 0.0
        %318 = vst.msk [vmem:[#allocation3 + $0x68] sm:$0xff] %vm288, 0.0
        %319 = vst.msk [vmem:[#allocation3 + $0x70] sm:$0xff] %vm288, 0.0
        %320 = vst.msk [vmem:[#allocation3 + $0x78] sm:$0xff] %vm288, 0.0
        %vm321 = vcmask 64512
        %322 = vst.msk [vmem:[#allocation4] sm:$0xff] %vm321, 0.0
        %323 = vst.msk [vmem:[#allocation4 + $0x8] sm:$0xff] %vm321, 0.0
        %324 = vst.msk [vmem:[#allocation4 + $0x10] sm:$0xff] %vm321, 0.0
        %325 = vst.msk [vmem:[#allocation4 + $0x18] sm:$0xff] %vm321, 0.0
        %326 = vst.msk [vmem:[#allocation4 + $0x20] sm:$0xff] %vm321, 0.0
        %327 = vst.msk [vmem:[#allocation4 + $0x28] sm:$0xff] %vm321, 0.0
        %328 = vst.msk [vmem:[#allocation4 + $0x30] sm:$0xff] %vm321, 0.0
        %329 = vst.msk [vmem:[#allocation4 + $0x38] sm:$0xff] %vm321, 0.0
        %330 = vst.msk [vmem:[#allocation4 + $0x40] sm:$0xff] %vm321, 0.0
        %331 = vst.msk [vmem:[#allocation4 + $0x48] sm:$0xff] %vm321, 0.0
        %332 = vst.msk [vmem:[#allocation4 + $0x50] sm:$0xff] %vm321, 0.0
        %333 = vst.msk [vmem:[#allocation4 + $0x58] sm:$0xff] %vm321, 0.0
        %334 = vst.msk [vmem:[#allocation4 + $0x60] sm:$0xff] %vm321, 0.0
        %335 = vst.msk [vmem:[#allocation4 + $0x68] sm:$0xff] %vm321, 0.0
        %336 = vst.msk [vmem:[#allocation4 + $0x70] sm:$0xff] %vm321, 0.0
        %337 = vst.msk [vmem:[#allocation4 + $0x78] sm:$0xff] %vm321, 0.0
      $region36: #{pam_forward.5} parent=31 // pred_fallthru
        _
      %v338 = vld [vmem:[%s254] sm:$0xff]
      %v339 = vld [vmem:[%s254 + $0x8] sm:$0xff]
      %v340 = vld [vmem:[%s254 + $0x10] sm:$0xff]
      %v341 = vld [vmem:[%s254 + $0x18] sm:$0xff]
      %v342 = vld [vmem:[%s254 + $0x20] sm:$0xff]
      %v343 = vld [vmem:[%s254 + $0x28] sm:$0xff]
      %v344 = vld [vmem:[%s254 + $0x30] sm:$0xff]
      %v345 = vld [vmem:[%s254 + $0x38] sm:$0xff]
      %v346 = vld [vmem:[%s254 + $0x40] sm:$0xff]
      %v347 = vld [vmem:[%s254 + $0x48] sm:$0xff]
      %v348 = vld [vmem:[%s254 + $0x50] sm:$0xff]
      %v349 = vld [vmem:[%s254 + $0x58] sm:$0xff]
      %v350 = vld [vmem:[%s254 + $0x60] sm:$0xff]
      %v351 = vld [vmem:[%s254 + $0x68] sm:$0xff]
      %v352 = vld [vmem:[%s254 + $0x70] sm:$0xff]
      %v353 = vld [vmem:[%s254 + $0x78] sm:$0xff]
      %v354 = vld [vmem:[%s263] sm:$0xff]
      %vm355 = vcmask 64512
      %v357 = vsel %vm355, %v338, 0
      %v360 = vsel %vm355, %v339, 0
      %v363 = vsel %vm355, %v340, 0
      %v366 = vsel %vm355, %v341, 0
      %v369 = vsel %vm355, %v342, 0
      %v372 = vsel %vm355, %v343, 0
      %v375 = vsel %vm355, %v344, 0
      %v378 = vsel %vm355, %v345, 0
      %v381 = vsel %vm355, %v346, 0
      %v384 = vsel %vm355, %v347, 0
      %v387 = vsel %vm355, %v348, 0
      %v390 = vsel %vm355, %v349, 0
      %v393 = vsel %vm355, %v350, 0
      %v396 = vsel %vm355, %v351, 0
      %v399 = vsel %vm355, %v352, 0
      %v402 = vsel %vm355, %v353, 0
      %404 = vmatprep.subr.mxu0 0.0
      %v405 = vand.u32 %v354, 4294901760
      %406 = vmatpush1.msra.mxu0 %v405
      %407 = vmatprep.subr.mxu0 0.0
      %408 = vmatpush1.msra.mxu0 0.0
      %409 = vmatprep.subr.mxu0 0.0
      %410 = vmatpush1.msra.mxu0 0.0
      %411 = vmatprep.subr.mxu0 0.0
      %412 = vmatpush1.msra.mxu0 0.0
      %413 = vmatprep.subr.mxu0 0.0
      %414 = vmatpush1.msra.mxu0 0.0
      %415 = vmatprep.subr.mxu0 0.0
      %416 = vmatpush1.msra.mxu0 0.0
      %417 = vmatprep.subr.mxu0 0.0
      %418 = vmatpush1.msra.mxu0 0.0
      %419 = vmatprep.subr.mxu0 0.0
      %420 = vmatpush1.msra.mxu0 0.0
      %421 = vmatprep.subr.mxu0 0.0
      %422 = vmatpush1.msra.mxu0 0.0
      %423 = vmatprep.subr.mxu0 0.0
      %424 = vmatpush1.msra.mxu0 0.0
      %425 = vmatprep.subr.mxu0 0.0
      %426 = vmatpush1.msra.mxu0 0.0
      %427 = vmatprep.subr.mxu0 0.0
      %428 = vmatpush1.msra.mxu0 0.0
      %429 = vmatprep.subr.mxu0 0.0
      %430 = vmatpush1.msra.mxu0 0.0
      %431 = vmatprep.subr.mxu0 0.0
      %432 = vmatpush1.msra.mxu0 0.0
      %433 = vmatprep.subr.mxu0 0.0
      %434 = vmatpush1.msra.mxu0 0.0
      %435 = vmatprep.subr.mxu0 0.0
      %436 = vmatpush1.msra.mxu0 0.0
      %437 = vmatprep.subr.mxu0 0.0
      %438 = vmatpush1.msra.mxu0 0.0
      %439 = vmatprep.subr.mxu0 0.0
      %440 = vmatpush1.msra.mxu0 0.0
      %441 = vmatprep.subr.mxu0 0.0
      %442 = vmatpush1.msra.mxu0 0.0
      %443 = vmatprep.subr.mxu0 0.0
      %444 = vmatpush1.msra.mxu0 0.0
      %445 = vmatprep.subr.mxu0 0.0
      %446 = vmatpush1.msra.mxu0 0.0
      %447 = vmatprep.subr.mxu0 0.0
      %448 = vmatpush1.msra.mxu0 0.0
      %449 = vmatprep.subr.mxu0 0.0
      %450 = vmatpush1.msra.mxu0 0.0
      %451 = vmatprep.subr.mxu0 0.0
      %452 = vmatpush1.msra.mxu0 0.0
      %453 = vmatprep.subr.mxu0 0.0
      %454 = vmatpush1.msra.mxu0 0.0
      %455 = vmatprep.subr.mxu0 0.0
      %456 = vmatpush1.msra.mxu0 0.0
      %457 = vmatprep.subr.mxu0 0.0
      %458 = vmatpush1.msra.mxu0 0.0
      %459 = vmatprep.subr.mxu0 0.0
      %460 = vmatpush1.msra.mxu0 0.0
      %461 = vmatprep.subr.mxu0 0.0
      %462 = vmatpush1.msra.mxu0 0.0
      %463 = vmatprep.subr.mxu0 0.0
      %464 = vmatpush1.msra.mxu0 0.0
      %465 = vmatprep.subr.mxu0 0.0
      %466 = vmatpush1.msra.mxu0 0.0
      %467 = vmatprep.subr.mxu0 0.0
      %468 = vmatpush1.msra.mxu0 0.0
      %469 = vmatprep.mubr.f32.mxu0 0.0
      %v470 = vand.u32 %v357, 4294901760
      %v471 = vsub.f32 %v357, %v470
      %v472 = vand.u32 %v471, 4294901760
      %v473 = vsub.f32 %v471, %v472
      %v474 = vand.u32 %v473, 4294901760
      %475 = vmatmul.mubr.f32.gmra.mrb[0].mxu0 %v474
      %v476 = vpop.f32.mrb[0].mxu0
      %v477 = vadd.f32 0.0, %v476
      %v478 = vpop.f32.mrb[0].mxu0
      %479 = vmatprep.mubr.f32.mxu0 0.0
      %v480 = vand.u32 %v360, 4294901760
      %v481 = vsub.f32 %v360, %v480
      %v482 = vand.u32 %v481, 4294901760
      %v483 = vsub.f32 %v481, %v482
      %v484 = vand.u32 %v483, 4294901760
      %485 = vmatmul.mubr.f32.gmra.mrb[0].mxu0 %v484
      %v486 = vpop.f32.mrb[0].mxu0
      %v487 = vadd.f32 0.0, %v486
      %v488 = vpop.f32.mrb[0].mxu0
      %489 = vmatprep.mubr.f32.mxu0 0.0
      %v490 = vand.u32 %v363, 4294901760
      %v491 = vsub.f32 %v363, %v490
      %v492 = vand.u32 %v491, 4294901760
      %v493 = vsub.f32 %v491, %v492
      %v494 = vand.u32 %v493, 4294901760
      %495 = vmatmul.mubr.f32.gmra.mrb[0].mxu0 %v494
      %v496 = vpop.f32.mrb[0].mxu0
      %v497 = vadd.f32 0.0, %v496
      %v498 = vpop.f32.mrb[0].mxu0
      %499 = vmatprep.mubr.f32.mxu0 0.0
      %v500 = vand.u32 %v366, 4294901760
      %v501 = vsub.f32 %v366, %v500
      %v502 = vand.u32 %v501, 4294901760
      %v503 = vsub.f32 %v501, %v502
      %v504 = vand.u32 %v503, 4294901760
      %505 = vmatmul.mubr.f32.gmra.mrb[0].mxu0 %v504
      %v506 = vpop.f32.mrb[0].mxu0
      %v507 = vadd.f32 0.0, %v506
      %v508 = vpop.f32.mrb[0].mxu0
      %509 = vmatprep.mubr.f32.mxu0 0.0
      %v510 = vand.u32 %v369, 4294901760
      %v511 = vsub.f32 %v369, %v510
      %v512 = vand.u32 %v511, 4294901760
      %v513 = vsub.f32 %v511, %v512
      %v514 = vand.u32 %v513, 4294901760
      %515 = vmatmul.mubr.f32.gmra.mrb[0].mxu0 %v514
      %v516 = vpop.f32.mrb[0].mxu0
      %v517 = vadd.f32 0.0, %v516
      %v518 = vpop.f32.mrb[0].mxu0
      %519 = vmatprep.mubr.f32.mxu0 0.0
      %v520 = vand.u32 %v372, 4294901760
      %v521 = vsub.f32 %v372, %v520
      %v522 = vand.u32 %v521, 4294901760
      %v523 = vsub.f32 %v521, %v522
      %v524 = vand.u32 %v523, 4294901760
      %525 = vmatmul.mubr.f32.gmra.mrb[0].mxu0 %v524
      %v526 = vpop.f32.mrb[0].mxu0
      %v527 = vadd.f32 0.0, %v526
      %v528 = vpop.f32.mrb[0].mxu0
      %529 = vmatprep.mubr.f32.mxu0 0.0
      %v530 = vand.u32 %v375, 4294901760
      %v531 = vsub.f32 %v375, %v530
      %v532 = vand.u32 %v531, 4294901760
      %v533 = vsub.f32 %v531, %v532
      %v534 = vand.u32 %v533, 4294901760
      %535 = vmatmul.mubr.f32.gmra.mrb[0].mxu0 %v534
      %v536 = vpop.f32.mrb[0].mxu0
      %v537 = vadd.f32 0.0, %v536
      %v538 = vpop.f32.mrb[0].mxu0
      %539 = vmatprep.mubr.f32.mxu0 0.0
      %v540 = vand.u32 %v378, 4294901760
      %v541 = vsub.f32 %v378, %v540
      %v542 = vand.u32 %v541, 4294901760
      %v543 = vsub.f32 %v541, %v542
      %v544 = vand.u32 %v543, 4294901760
      %545 = vmatmul.mubr.f32.gmra.mrb[0].mxu0 %v544
      %v546 = vpop.f32.mrb[0].mxu0
      %v547 = vadd.f32 0.0, %v546
      %v548 = vpop.f32.mrb[0].mxu0
      %549 = vmatprep.mubr.f32.mxu0 0.0
      %v550 = vand.u32 %v381, 4294901760
      %v551 = vsub.f32 %v381, %v550
      %v552 = vand.u32 %v551, 4294901760
      %v553 = vsub.f32 %v551, %v552
      %v554 = vand.u32 %v553, 4294901760
      %555 = vmatmul.mubr.f32.gmra.mrb[0].mxu0 %v554
      %v556 = vpop.f32.mrb[0].mxu0
      %v557 = vadd.f32 0.0, %v556
      %v558 = vpop.f32.mrb[0].mxu0
      %559 = vmatprep.mubr.f32.mxu0 0.0
      %v560 = vand.u32 %v384, 4294901760
      %v561 = vsub.f32 %v384, %v560
      %v562 = vand.u32 %v561, 4294901760
      %v563 = vsub.f32 %v561, %v562
      %v564 = vand.u32 %v563, 4294901760
      %565 = vmatmul.mubr.f32.gmra.mrb[0].mxu0 %v564
      %v566 = vpop.f32.mrb[0].mxu0
      %v567 = vadd.f32 0.0, %v566
      %v568 = vpop.f32.mrb[0].mxu0
      %569 = vmatprep.mubr.f32.mxu0 0.0
      %v570 = vand.u32 %v387, 4294901760
      %v571 = vsub.f32 %v387, %v570
      %v572 = vand.u32 %v571, 4294901760
      %v573 = vsub.f32 %v571, %v572
      %v574 = vand.u32 %v573, 4294901760
      %575 = vmatmul.mubr.f32.gmra.mrb[0].mxu0 %v574
      %v576 = vpop.f32.mrb[0].mxu0
      %v577 = vadd.f32 0.0, %v576
      %v578 = vpop.f32.mrb[0].mxu0
      %579 = vmatprep.mubr.f32.mxu0 0.0
      %v580 = vand.u32 %v390, 4294901760
      %v581 = vsub.f32 %v390, %v580
      %v582 = vand.u32 %v581, 4294901760
      %v583 = vsub.f32 %v581, %v582
      %v584 = vand.u32 %v583, 4294901760
      %585 = vmatmul.mubr.f32.gmra.mrb[0].mxu0 %v584
      %v586 = vpop.f32.mrb[0].mxu0
      %v587 = vadd.f32 0.0, %v586
      %v588 = vpop.f32.mrb[0].mxu0
      %589 = vmatprep.mubr.f32.mxu0 0.0
      %v590 = vand.u32 %v393, 4294901760
      %v591 = vsub.f32 %v393, %v590
      %v592 = vand.u32 %v591, 4294901760
      %v593 = vsub.f32 %v591, %v592
      %v594 = vand.u32 %v593, 4294901760
      %595 = vmatmul.mubr.f32.gmra.mrb[0].mxu0 %v594
      %v596 = vpop.f32.mrb[0].mxu0
      %v597 = vadd.f32 0.0, %v596
      %v598 = vpop.f32.mrb[0].mxu0
      %599 = vmatprep.mubr.f32.mxu0 0.0
      %v600 = vand.u32 %v396, 4294901760
      %v601 = vsub.f32 %v396, %v600
      %v602 = vand.u32 %v601, 4294901760
      %v603 = vsub.f32 %v601, %v602
      %v604 = vand.u32 %v603, 4294901760
      %605 = vmatmul.mubr.f32.gmra.mrb[0].mxu0 %v604
      %v606 = vpop.f32.mrb[0].mxu0
      %v607 = vadd.f32 0.0, %v606
      %v608 = vpop.f32.mrb[0].mxu0
      %609 = vmatprep.mubr.f32.mxu0 0.0
      %v610 = vand.u32 %v399, 4294901760
      %v611 = vsub.f32 %v399, %v610
      %v612 = vand.u32 %v611, 4294901760
      %v613 = vsub.f32 %v611, %v612
      %v614 = vand.u32 %v613, 4294901760
      %615 = vmatmul.mubr.f32.gmra.mrb[0].mxu0 %v614
      %v616 = vpop.f32.mrb[0].mxu0
      %v617 = vadd.f32 0.0, %v616
      %v618 = vpop.f32.mrb[0].mxu0
      %619 = vmatprep.mubr.f32.mxu0 0.0
      %v620 = vand.u32 %v402, 4294901760
      %v621 = vsub.f32 %v402, %v620
      %v622 = vand.u32 %v621, 4294901760
      %v623 = vsub.f32 %v621, %v622
      %v624 = vand.u32 %v623, 4294901760
      %625 = vmatmul.mubr.f32.gmra.mrb[0].mxu0 %v624
      %v626 = vpop.f32.mrb[0].mxu0
      %v627 = vadd.f32 0.0, %v626
      %v628 = vpop.f32.mrb[0].mxu0
      %629 = vdwg.mxu0
      %630 = vmatprep.subr.mxu0 0.0
      %v631 = vand.u32 %v354, 4294901760
      %v632 = vsub.f32 %v354, %v631
      %v633 = vand.u32 %v632, 4294901760
      %v634 = vsub.f32 %v632, %v633
      %v635 = vand.u32 %v634, 4294901760
      %636 = vmatpush1.msra.mxu0 %v635
      %637 = vmatprep.subr.mxu0 0.0
      %638 = vmatpush1.msra.mxu0 0.0
      %639 = vmatprep.subr.mxu0 0.0
      %640 = vmatpush1.msra.mxu0 0.0
      %641 = vmatprep.subr.mxu0 0.0
      %642 = vmatpush1.msra.mxu0 0.0
      %643 = vmatprep.subr.mxu0 0.0
      %644 = vmatpush1.msra.mxu0 0.0
      %645 = vmatprep.subr.mxu0 0.0
      %646 = vmatpush1.msra.mxu0 0.0
      %647 = vmatprep.subr.mxu0 0.0
      %648 = vmatpush1.msra.mxu0 0.0
      %649 = vmatprep.subr.mxu0 0.0
      %650 = vmatpush1.msra.mxu0 0.0
      %651 = vmatprep.subr.mxu0 0.0
      %652 = vmatpush1.msra.mxu0 0.0
      %653 = vmatprep.subr.mxu0 0.0
      %654 = vmatpush1.msra.mxu0 0.0
      %655 = vmatprep.subr.mxu0 0.0
      %656 = vmatpush1.msra.mxu0 0.0
      %657 = vmatprep.subr.mxu0 0.0
      %658 = vmatpush1.msra.mxu0 0.0
      %659 = vmatprep.subr.mxu0 0.0
      %660 = vmatpush1.msra.mxu0 0.0
      %661 = vmatprep.subr.mxu0 0.0
      %662 = vmatpush1.msra.mxu0 0.0
      %663 = vmatprep.subr.mxu0 0.0
      %664 = vmatpush1.msra.mxu0 0.0
      %665 = vmatprep.subr.mxu0 0.0
      %666 = vmatpush1.msra.mxu0 0.0
      %667 = vmatprep.subr.mxu0 0.0
      %668 = vmatpush1.msra.mxu0 0.0
      %669 = vmatprep.subr.mxu0 0.0
      %670 = vmatpush1.msra.mxu0 0.0
      %671 = vmatprep.subr.mxu0 0.0
      %672 = vmatpush1.msra.mxu0 0.0
      %673 = vmatprep.subr.mxu0 0.0
      %674 = vmatpush1.msra.mxu0 0.0
      %675 = vmatprep.subr.mxu0 0.0
      %676 = vmatpush1.msra.mxu0 0.0
      %677 = vmatprep.subr.mxu0 0.0
      %678 = vmatpush1.msra.mxu0 0.0
      %679 = vmatprep.subr.mxu0 0.0
      %680 = vmatpush1.msra.mxu0 0.0
      %681 = vmatprep.subr.mxu0 0.0
      %682 = vmatpush1.msra.mxu0 0.0
      %683 = vmatprep.subr.mxu0 0.0
      %684 = vmatpush1.msra.mxu0 0.0
      %685 = vmatprep.subr.mxu0 0.0
      %686 = vmatpush1.msra.mxu0 0.0
      %687 = vmatprep.subr.mxu0 0.0
      %688 = vmatpush1.msra.mxu0 0.0
      %689 = vmatprep.subr.mxu0 0.0
      %690 = vmatpush1.msra.mxu0 0.0
      %691 = vmatprep.subr.mxu0 0.0
      %692 = vmatpush1.msra.mxu0 0.0
      %693 = vmatprep.subr.mxu0 0.0
      %694 = vmatpush1.msra.mxu0 0.0
      %695 = vmatprep.subr.mxu0 0.0
      %696 = vmatpush1.msra.mxu0 0.0
      %697 = vmatprep.subr.mxu0 0.0
      %698 = vmatpush1.msra.mxu0 0.0
      %699 = vmatprep.mubr.f32.mxu0 0.0
      %v700 = vand.u32 %v357, 4294901760
      %701 = vmatmul.mubr.f32.gmra.mrb[0].mxu0 %v700
      %v702 = vpop.f32.mrb[0].mxu0
      %v703 = vadd.f32 %v477, %v702
      %v704 = vpop.f32.mrb[0].mxu0
      %705 = vmatprep.mubr.f32.mxu0 0.0
      %v706 = vand.u32 %v360, 4294901760
      %707 = vmatmul.mubr.f32.gmra.mrb[0].mxu0 %v706
      %v708 = vpop.f32.mrb[0].mxu0
      %v709 = vadd.f32 %v487, %v708
      %v710 = vpop.f32.mrb[0].mxu0
      %711 = vmatprep.mubr.f32.mxu0 0.0
      %v712 = vand.u32 %v363, 4294901760
      %713 = vmatmul.mubr.f32.gmra.mrb[0].mxu0 %v712
      %v714 = vpop.f32.mrb[0].mxu0
      %v715 = vadd.f32 %v497, %v714
      %v716 = vpop.f32.mrb[0].mxu0
      %717 = vmatprep.mubr.f32.mxu0 0.0
      %v718 = vand.u32 %v366, 4294901760
      %719 = vmatmul.mubr.f32.gmra.mrb[0].mxu0 %v718
      %v720 = vpop.f32.mrb[0].mxu0
      %v721 = vadd.f32 %v507, %v720
      %v722 = vpop.f32.mrb[0].mxu0
      %723 = vmatprep.mubr.f32.mxu0 0.0
      %v724 = vand.u32 %v369, 4294901760
      %725 = vmatmul.mubr.f32.gmra.mrb[0].mxu0 %v724
      %v726 = vpop.f32.mrb[0].mxu0
      %v727 = vadd.f32 %v517, %v726
      %v728 = vpop.f32.mrb[0].mxu0
      %729 = vmatprep.mubr.f32.mxu0 0.0
      %v730 = vand.u32 %v372, 4294901760
      %731 = vmatmul.mubr.f32.gmra.mrb[0].mxu0 %v730
      %v732 = vpop.f32.mrb[0].mxu0
      %v733 = vadd.f32 %v527, %v732
      %v734 = vpop.f32.mrb[0].mxu0
      %735 = vmatprep.mubr.f32.mxu0 0.0
      %v736 = vand.u32 %v375, 4294901760
      %737 = vmatmul.mubr.f32.gmra.mrb[0].mxu0 %v736
      %v738 = vpop.f32.mrb[0].mxu0
      %v739 = vadd.f32 %v537, %v738
      %v740 = vpop.f32.mrb[0].mxu0
      %741 = vmatprep.mubr.f32.mxu0 0.0
      %v742 = vand.u32 %v378, 4294901760
      %743 = vmatmul.mubr.f32.gmra.mrb[0].mxu0 %v742
      %v744 = vpop.f32.mrb[0].mxu0
      %v745 = vadd.f32 %v547, %v744
      %v746 = vpop.f32.mrb[0].mxu0
      %747 = vmatprep.mubr.f32.mxu0 0.0
      %v748 = vand.u32 %v381, 4294901760
      %749 = vmatmul.mubr.f32.gmra.mrb[0].mxu0 %v748
      %v750 = vpop.f32.mrb[0].mxu0
      %v751 = vadd.f32 %v557, %v750
      %v752 = vpop.f32.mrb[0].mxu0
      %753 = vmatprep.mubr.f32.mxu0 0.0
      %v754 = vand.u32 %v384, 4294901760
      %755 = vmatmul.mubr.f32.gmra.mrb[0].mxu0 %v754
      %v756 = vpop.f32.mrb[0].mxu0
      %v757 = vadd.f32 %v567, %v756
      %v758 = vpop.f32.mrb[0].mxu0
      %759 = vmatprep.mubr.f32.mxu0 0.0
      %v760 = vand.u32 %v387, 4294901760
      %761 = vmatmul.mubr.f32.gmra.mrb[0].mxu0 %v760
      %v762 = vpop.f32.mrb[0].mxu0
      %v763 = vadd.f32 %v577, %v762
      %v764 = vpop.f32.mrb[0].mxu0
      %765 = vmatprep.mubr.f32.mxu0 0.0
      %v766 = vand.u32 %v390, 4294901760
      %767 = vmatmul.mubr.f32.gmra.mrb[0].mxu0 %v766
      %v768 = vpop.f32.mrb[0].mxu0
      %v769 = vadd.f32 %v587, %v768
      %v770 = vpop.f32.mrb[0].mxu0
      %771 = vmatprep.mubr.f32.mxu0 0.0
      %v772 = vand.u32 %v393, 4294901760
      %773 = vmatmul.mubr.f32.gmra.mrb[0].mxu0 %v772
      %v774 = vpop.f32.mrb[0].mxu0
      %v775 = vadd.f32 %v597, %v774
      %v776 = vpop.f32.mrb[0].mxu0
      %777 = vmatprep.mubr.f32.mxu0 0.0
      %v778 = vand.u32 %v396, 4294901760
      %779 = vmatmul.mubr.f32.gmra.mrb[0].mxu0 %v778
      %v780 = vpop.f32.mrb[0].mxu0
      %v781 = vadd.f32 %v607, %v780
      %v782 = vpop.f32.mrb[0].mxu0
      %783 = vmatprep.mubr.f32.mxu0 0.0
      %v784 = vand.u32 %v399, 4294901760
      %785 = vmatmul.mubr.f32.gmra.mrb[0].mxu0 %v784
      %v786 = vpop.f32.mrb[0].mxu0
      %v787 = vadd.f32 %v617, %v786
      %v788 = vpop.f32.mrb[0].mxu0
      %789 = vmatprep.mubr.f32.mxu0 0.0
      %v790 = vand.u32 %v402, 4294901760
      %791 = vmatmul.mubr.f32.gmra.mrb[0].mxu0 %v790
      %v792 = vpop.f32.mrb[0].mxu0
      %v793 = vadd.f32 %v627, %v792
      %v794 = vpop.f32.mrb[0].mxu0
      %795 = vdwg.mxu0
      %796 = vmatprep.subr.mxu0 0.0
      %v797 = vand.u32 %v354, 4294901760
      %v798 = vsub.f32 %v354, %v797
      %799 = vmatpush1.msra.mxu0 %v798
      %800 = vmatprep.subr.mxu0 0.0
      %801 = vmatpush1.msra.mxu0 0.0
      %802 = vmatprep.subr.mxu0 0.0
      %803 = vmatpush1.msra.mxu0 0.0
      %804 = vmatprep.subr.mxu0 0.0
      %805 = vmatpush1.msra.mxu0 0.0
      %806 = vmatprep.subr.mxu0 0.0
      %807 = vmatpush1.msra.mxu0 0.0
      %808 = vmatprep.subr.mxu0 0.0
      %809 = vmatpush1.msra.mxu0 0.0
      %810 = vmatprep.subr.mxu0 0.0
      %811 = vmatpush1.msra.mxu0 0.0
      %812 = vmatprep.subr.mxu0 0.0
      %813 = vmatpush1.msra.mxu0 0.0
      %814 = vmatprep.subr.mxu0 0.0
      %815 = vmatpush1.msra.mxu0 0.0
      %816 = vmatprep.subr.mxu0 0.0
      %817 = vmatpush1.msra.mxu0 0.0
      %818 = vmatprep.subr.mxu0 0.0
      %819 = vmatpush1.msra.mxu0 0.0
      %820 = vmatprep.subr.mxu0 0.0
      %821 = vmatpush1.msra.mxu0 0.0
      %822 = vmatprep.subr.mxu0 0.0
      %823 = vmatpush1.msra.mxu0 0.0
      %824 = vmatprep.subr.mxu0 0.0
      %825 = vmatpush1.msra.mxu0 0.0
      %826 = vmatprep.subr.mxu0 0.0
      %827 = vmatpush1.msra.mxu0 0.0
      %828 = vmatprep.subr.mxu0 0.0
      %829 = vmatpush1.msra.mxu0 0.0
      %830 = vmatprep.subr.mxu0 0.0
      %831 = vmatpush1.msra.mxu0 0.0
      %832 = vmatprep.subr.mxu0 0.0
      %833 = vmatpush1.msra.mxu0 0.0
      %834 = vmatprep.subr.mxu0 0.0
      %835 = vmatpush1.msra.mxu0 0.0
      %836 = vmatprep.subr.mxu0 0.0
      %837 = vmatpush1.msra.mxu0 0.0
      %838 = vmatprep.subr.mxu0 0.0
      %839 = vmatpush1.msra.mxu0 0.0
      %840 = vmatprep.subr.mxu0 0.0
      %841 = vmatpush1.msra.mxu0 0.0
      %842 = vmatprep.subr.mxu0 0.0
      %843 = vmatpush1.msra.mxu0 0.0
      %844 = vmatprep.subr.mxu0 0.0
      %845 = vmatpush1.msra.mxu0 0.0
      %846 = vmatprep.subr.mxu0 0.0
      %847 = vmatpush1.msra.mxu0 0.0
      %848 = vmatprep.subr.mxu0 0.0
      %849 = vmatpush1.msra.mxu0 0.0
      %850 = vmatprep.subr.mxu0 0.0
      %851 = vmatpush1.msra.mxu0 0.0
      %852 = vmatprep.subr.mxu0 0.0
      %853 = vmatpush1.msra.mxu0 0.0
      %854 = vmatprep.subr.mxu0 0.0
      %855 = vmatpush1.msra.mxu0 0.0
      %856 = vmatprep.subr.mxu0 0.0
      %857 = vmatpush1.msra.mxu0 0.0
      %858 = vmatprep.subr.mxu0 0.0
      %859 = vmatpush1.msra.mxu0 0.0
      %860 = vmatprep.subr.mxu0 0.0
      %861 = vmatpush1.msra.mxu0 0.0
      %862 = vmatprep.mubr.f32.mxu0 0.0
      %v863 = vand.u32 %v357, 4294901760
      %v864 = vsub.f32 %v357, %v863
      %865 = vmatmul.mubr.f32.gmra.mrb[0].mxu0 %v864
      %v866 = vpop.f32.mrb[0].mxu0
      %v867 = vadd.f32 %v703, %v866
      %v868 = vpop.f32.mrb[0].mxu0
      %869 = vmatprep.mubr.f32.mxu0 0.0
      %v870 = vand.u32 %v360, 4294901760
      %v871 = vsub.f32 %v360, %v870
      %872 = vmatmul.mubr.f32.gmra.mrb[0].mxu0 %v871
      %v873 = vpop.f32.mrb[0].mxu0
      %v874 = vadd.f32 %v709, %v873
      %v875 = vpop.f32.mrb[0].mxu0
      %876 = vmatprep.mubr.f32.mxu0 0.0
      %v877 = vand.u32 %v363, 4294901760
      %v878 = vsub.f32 %v363, %v877
      %879 = vmatmul.mubr.f32.gmra.mrb[0].mxu0 %v878
      %v880 = vpop.f32.mrb[0].mxu0
      %v881 = vadd.f32 %v715, %v880
      %v882 = vpop.f32.mrb[0].mxu0
      %883 = vmatprep.mubr.f32.mxu0 0.0
      %v884 = vand.u32 %v366, 4294901760
      %v885 = vsub.f32 %v366, %v884
      %886 = vmatmul.mubr.f32.gmra.mrb[0].mxu0 %v885
      %v887 = vpop.f32.mrb[0].mxu0
      %v888 = vadd.f32 %v721, %v887
      %v889 = vpop.f32.mrb[0].mxu0
      %890 = vmatprep.mubr.f32.mxu0 0.0
      %v891 = vand.u32 %v369, 4294901760
      %v892 = vsub.f32 %v369, %v891
      %893 = vmatmul.mubr.f32.gmra.mrb[0].mxu0 %v892
      %v894 = vpop.f32.mrb[0].mxu0
      %v895 = vadd.f32 %v727, %v894
      %v896 = vpop.f32.mrb[0].mxu0
      %897 = vmatprep.mubr.f32.mxu0 0.0
      %v898 = vand.u32 %v372, 4294901760
      %v899 = vsub.f32 %v372, %v898
      %900 = vmatmul.mubr.f32.gmra.mrb[0].mxu0 %v899
      %v901 = vpop.f32.mrb[0].mxu0
      %v902 = vadd.f32 %v733, %v901
      %v903 = vpop.f32.mrb[0].mxu0
      %904 = vmatprep.mubr.f32.mxu0 0.0
      %v905 = vand.u32 %v375, 4294901760
      %v906 = vsub.f32 %v375, %v905
      %907 = vmatmul.mubr.f32.gmra.mrb[0].mxu0 %v906
      %v908 = vpop.f32.mrb[0].mxu0
      %v909 = vadd.f32 %v739, %v908
      %v910 = vpop.f32.mrb[0].mxu0
      %911 = vmatprep.mubr.f32.mxu0 0.0
      %v912 = vand.u32 %v378, 4294901760
      %v913 = vsub.f32 %v378, %v912
      %914 = vmatmul.mubr.f32.gmra.mrb[0].mxu0 %v913
      %v915 = vpop.f32.mrb[0].mxu0
      %v916 = vadd.f32 %v745, %v915
      %v917 = vpop.f32.mrb[0].mxu0
      %918 = vmatprep.mubr.f32.mxu0 0.0
      %v919 = vand.u32 %v381, 4294901760
      %v920 = vsub.f32 %v381, %v919
      %921 = vmatmul.mubr.f32.gmra.mrb[0].mxu0 %v920
      %v922 = vpop.f32.mrb[0].mxu0
      %v923 = vadd.f32 %v751, %v922
      %v924 = vpop.f32.mrb[0].mxu0
      %925 = vmatprep.mubr.f32.mxu0 0.0
      %v926 = vand.u32 %v384, 4294901760
      %v927 = vsub.f32 %v384, %v926
      %928 = vmatmul.mubr.f32.gmra.mrb[0].mxu0 %v927
      %v929 = vpop.f32.mrb[0].mxu0
      %v930 = vadd.f32 %v757, %v929
      %v931 = vpop.f32.mrb[0].mxu0
      %932 = vmatprep.mubr.f32.mxu0 0.0
      %v933 = vand.u32 %v387, 4294901760
      %v934 = vsub.f32 %v387, %v933
      %935 = vmatmul.mubr.f32.gmra.mrb[0].mxu0 %v934
      %v936 = vpop.f32.mrb[0].mxu0
      %v937 = vadd.f32 %v763, %v936
      %v938 = vpop.f32.mrb[0].mxu0
      %939 = vmatprep.mubr.f32.mxu0 0.0
      %v940 = vand.u32 %v390, 4294901760
      %v941 = vsub.f32 %v390, %v940
      %942 = vmatmul.mubr.f32.gmra.mrb[0].mxu0 %v941
      %v943 = vpop.f32.mrb[0].mxu0
      %v944 = vadd.f32 %v769, %v943
      %v945 = vpop.f32.mrb[0].mxu0
      %946 = vmatprep.mubr.f32.mxu0 0.0
      %v947 = vand.u32 %v393, 4294901760
      %v948 = vsub.f32 %v393, %v947
      %949 = vmatmul.mubr.f32.gmra.mrb[0].mxu0 %v948
      %v950 = vpop.f32.mrb[0].mxu0
      %v951 = vadd.f32 %v775, %v950
      %v952 = vpop.f32.mrb[0].mxu0
      %953 = vmatprep.mubr.f32.mxu0 0.0
      %v954 = vand.u32 %v396, 4294901760
      %v955 = vsub.f32 %v396, %v954
      %956 = vmatmul.mubr.f32.gmra.mrb[0].mxu0 %v955
      %v957 = vpop.f32.mrb[0].mxu0
      %v958 = vadd.f32 %v781, %v957
      %v959 = vpop.f32.mrb[0].mxu0
      %960 = vmatprep.mubr.f32.mxu0 0.0
      %v961 = vand.u32 %v399, 4294901760
      %v962 = vsub.f32 %v399, %v961
      %963 = vmatmul.mubr.f32.gmra.mrb[0].mxu0 %v962
      %v964 = vpop.f32.mrb[0].mxu0
      %v965 = vadd.f32 %v787, %v964
      %v966 = vpop.f32.mrb[0].mxu0
      %967 = vmatprep.mubr.f32.mxu0 0.0
      %v968 = vand.u32 %v402, 4294901760
      %v969 = vsub.f32 %v402, %v968
      %970 = vmatmul.mubr.f32.gmra.mrb[0].mxu0 %v969
      %v971 = vpop.f32.mrb[0].mxu0
      %v972 = vadd.f32 %v793, %v971
      %v973 = vpop.f32.mrb[0].mxu0
      %974 = vdwg.mxu0
      %975 = vmatprep.subr.mxu0 0.0
      %v976 = vand.u32 %v354, 4294901760
      %977 = vmatpush1.msra.mxu0 %v976
      %978 = vmatprep.subr.mxu0 0.0
      %979 = vmatpush1.msra.mxu0 0.0
      %980 = vmatprep.subr.mxu0 0.0
      %981 = vmatpush1.msra.mxu0 0.0
      %982 = vmatprep.subr.mxu0 0.0
      %983 = vmatpush1.msra.mxu0 0.0
      %984 = vmatprep.subr.mxu0 0.0
      %985 = vmatpush1.msra.mxu0 0.0
      %986 = vmatprep.subr.mxu0 0.0
      %987 = vmatpush1.msra.mxu0 0.0
      %988 = vmatprep.subr.mxu0 0.0
      %989 = vmatpush1.msra.mxu0 0.0
      %990 = vmatprep.subr.mxu0 0.0
      %991 = vmatpush1.msra.mxu0 0.0
      %992 = vmatprep.subr.mxu0 0.0
      %993 = vmatpush1.msra.mxu0 0.0
      %994 = vmatprep.subr.mxu0 0.0
      %995 = vmatpush1.msra.mxu0 0.0
      %996 = vmatprep.subr.mxu0 0.0
      %997 = vmatpush1.msra.mxu0 0.0
      %998 = vmatprep.subr.mxu0 0.0
      %999 = vmatpush1.msra.mxu0 0.0
      %1000 = vmatprep.subr.mxu0 0.0
      %1001 = vmatpush1.msra.mxu0 0.0
      %1002 = vmatprep.subr.mxu0 0.0
      %1003 = vmatpush1.msra.mxu0 0.0
      %1004 = vmatprep.subr.mxu0 0.0
      %1005 = vmatpush1.msra.mxu0 0.0
      %1006 = vmatprep.subr.mxu0 0.0
      %1007 = vmatpush1.msra.mxu0 0.0
      %1008 = vmatprep.subr.mxu0 0.0
      %1009 = vmatpush1.msra.mxu0 0.0
      %1010 = vmatprep.subr.mxu0 0.0
      %1011 = vmatpush1.msra.mxu0 0.0
      %1012 = vmatprep.subr.mxu0 0.0
      %1013 = vmatpush1.msra.mxu0 0.0
      %1014 = vmatprep.subr.mxu0 0.0
      %1015 = vmatpush1.msra.mxu0 0.0
      %1016 = vmatprep.subr.mxu0 0.0
      %1017 = vmatpush1.msra.mxu0 0.0
      %1018 = vmatprep.subr.mxu0 0.0
      %1019 = vmatpush1.msra.mxu0 0.0
      %1020 = vmatprep.subr.mxu0 0.0
      %1021 = vmatpush1.msra.mxu0 0.0
      %1022 = vmatprep.subr.mxu0 0.0
      %1023 = vmatpush1.msra.mxu0 0.0
      %1024 = vmatprep.subr.mxu0 0.0
      %1025 = vmatpush1.msra.mxu0 0.0
      %1026 = vmatprep.subr.mxu0 0.0
      %1027 = vmatpush1.msra.mxu0 0.0
      %1028 = vmatprep.subr.mxu0 0.0
      %1029 = vmatpush1.msra.mxu0 0.0
      %1030 = vmatprep.subr.mxu0 0.0
      %1031 = vmatpush1.msra.mxu0 0.0
      %1032 = vmatprep.subr.mxu0 0.0
      %1033 = vmatpush1.msra.mxu0 0.0
      %1034 = vmatprep.subr.mxu0 0.0
      %1035 = vmatpush1.msra.mxu0 0.0
      %1036 = vmatprep.subr.mxu0 0.0
      %1037 = vmatpush1.msra.mxu0 0.0
      %1038 = vmatprep.subr.mxu0 0.0
      %1039 = vmatpush1.msra.mxu0 0.0
      %1040 = vmatprep.mubr.f32.mxu0 0.0
      %v1041 = vand.u32 %v357, 4294901760
      %v1042 = vsub.f32 %v357, %v1041
      %v1043 = vand.u32 %v1042, 4294901760
      %1044 = vmatmul.mubr.f32.gmra.mrb[0].mxu0 %v1043
      %v1045 = vpop.f32.mrb[0].mxu0
      %v1046 = vadd.f32 %v867, %v1045
      %v1047 = vpop.f32.mrb[0].mxu0
      %1048 = vmatprep.mubr.f32.mxu0 0.0
      %v1049 = vand.u32 %v360, 4294901760
      %v1050 = vsub.f32 %v360, %v1049
      %v1051 = vand.u32 %v1050, 4294901760
      %1052 = vmatmul.mubr.f32.gmra.mrb[0].mxu0 %v1051
      %v1053 = vpop.f32.mrb[0].mxu0
      %v1054 = vadd.f32 %v874, %v1053
      %v1055 = vpop.f32.mrb[0].mxu0
      %1056 = vmatprep.mubr.f32.mxu0 0.0
      %v1057 = vand.u32 %v363, 4294901760
      %v1058 = vsub.f32 %v363, %v1057
      %v1059 = vand.u32 %v1058, 4294901760
      %1060 = vmatmul.mubr.f32.gmra.mrb[0].mxu0 %v1059
      %v1061 = vpop.f32.mrb[0].mxu0
      %v1062 = vadd.f32 %v881, %v1061
      %v1063 = vpop.f32.mrb[0].mxu0
      %1064 = vmatprep.mubr.f32.mxu0 0.0
      %v1065 = vand.u32 %v366, 4294901760
      %v1066 = vsub.f32 %v366, %v1065
      %v1067 = vand.u32 %v1066, 4294901760
      %1068 = vmatmul.mubr.f32.gmra.mrb[0].mxu0 %v1067
      %v1069 = vpop.f32.mrb[0].mxu0
      %v1070 = vadd.f32 %v888, %v1069
      %v1071 = vpop.f32.mrb[0].mxu0
      %1072 = vmatprep.mubr.f32.mxu0 0.0
      %v1073 = vand.u32 %v369, 4294901760
      %v1074 = vsub.f32 %v369, %v1073
      %v1075 = vand.u32 %v1074, 4294901760
      %1076 = vmatmul.mubr.f32.gmra.mrb[0].mxu0 %v1075
      %v1077 = vpop.f32.mrb[0].mxu0
      %v1078 = vadd.f32 %v895, %v1077
      %v1079 = vpop.f32.mrb[0].mxu0
      %1080 = vmatprep.mubr.f32.mxu0 0.0
      %v1081 = vand.u32 %v372, 4294901760
      %v1082 = vsub.f32 %v372, %v1081
      %v1083 = vand.u32 %v1082, 4294901760
      %1084 = vmatmul.mubr.f32.gmra.mrb[0].mxu0 %v1083
      %v1085 = vpop.f32.mrb[0].mxu0
      %v1086 = vadd.f32 %v902, %v1085
      %v1087 = vpop.f32.mrb[0].mxu0
      %1088 = vmatprep.mubr.f32.mxu0 0.0
      %v1089 = vand.u32 %v375, 4294901760
      %v1090 = vsub.f32 %v375, %v1089
      %v1091 = vand.u32 %v1090, 4294901760
      %1092 = vmatmul.mubr.f32.gmra.mrb[0].mxu0 %v1091
      %v1093 = vpop.f32.mrb[0].mxu0
      %v1094 = vadd.f32 %v909, %v1093
      %v1095 = vpop.f32.mrb[0].mxu0
      %1096 = vmatprep.mubr.f32.mxu0 0.0
      %v1097 = vand.u32 %v378, 4294901760
      %v1098 = vsub.f32 %v378, %v1097
      %v1099 = vand.u32 %v1098, 4294901760
      %1100 = vmatmul.mubr.f32.gmra.mrb[0].mxu0 %v1099
      %v1101 = vpop.f32.mrb[0].mxu0
      %v1102 = vadd.f32 %v916, %v1101
      %v1103 = vpop.f32.mrb[0].mxu0
      %1104 = vmatprep.mubr.f32.mxu0 0.0
      %v1105 = vand.u32 %v381, 4294901760
      %v1106 = vsub.f32 %v381, %v1105
      %v1107 = vand.u32 %v1106, 4294901760
      %1108 = vmatmul.mubr.f32.gmra.mrb[0].mxu0 %v1107
      %v1109 = vpop.f32.mrb[0].mxu0
      %v1110 = vadd.f32 %v923, %v1109
      %v1111 = vpop.f32.mrb[0].mxu0
      %1112 = vmatprep.mubr.f32.mxu0 0.0
      %v1113 = vand.u32 %v384, 4294901760
      %v1114 = vsub.f32 %v384, %v1113
      %v1115 = vand.u32 %v1114, 4294901760
      %1116 = vmatmul.mubr.f32.gmra.mrb[0].mxu0 %v1115
      %v1117 = vpop.f32.mrb[0].mxu0
      %v1118 = vadd.f32 %v930, %v1117
      %v1119 = vpop.f32.mrb[0].mxu0
      %1120 = vmatprep.mubr.f32.mxu0 0.0
      %v1121 = vand.u32 %v387, 4294901760
      %v1122 = vsub.f32 %v387, %v1121
      %v1123 = vand.u32 %v1122, 4294901760
      %1124 = vmatmul.mubr.f32.gmra.mrb[0].mxu0 %v1123
      %v1125 = vpop.f32.mrb[0].mxu0
      %v1126 = vadd.f32 %v937, %v1125
      %v1127 = vpop.f32.mrb[0].mxu0
      %1128 = vmatprep.mubr.f32.mxu0 0.0
      %v1129 = vand.u32 %v390, 4294901760
      %v1130 = vsub.f32 %v390, %v1129
      %v1131 = vand.u32 %v1130, 4294901760
      %1132 = vmatmul.mubr.f32.gmra.mrb[0].mxu0 %v1131
      %v1133 = vpop.f32.mrb[0].mxu0
      %v1134 = vadd.f32 %v944, %v1133
      %v1135 = vpop.f32.mrb[0].mxu0
      %1136 = vmatprep.mubr.f32.mxu0 0.0
      %v1137 = vand.u32 %v393, 4294901760
      %v1138 = vsub.f32 %v393, %v1137
      %v1139 = vand.u32 %v1138, 4294901760
      %1140 = vmatmul.mubr.f32.gmra.mrb[0].mxu0 %v1139
      %v1141 = vpop.f32.mrb[0].mxu0
      %v1142 = vadd.f32 %v951, %v1141
      %v1143 = vpop.f32.mrb[0].mxu0
      %1144 = vmatprep.mubr.f32.mxu0 0.0
      %v1145 = vand.u32 %v396, 4294901760
      %v1146 = vsub.f32 %v396, %v1145
      %v1147 = vand.u32 %v1146, 4294901760
      %1148 = vmatmul.mubr.f32.gmra.mrb[0].mxu0 %v1147
      %v1149 = vpop.f32.mrb[0].mxu0
      %v1150 = vadd.f32 %v958, %v1149
      %v1151 = vpop.f32.mrb[0].mxu0
      %1152 = vmatprep.mubr.f32.mxu0 0.0
      %v1153 = vand.u32 %v399, 4294901760
      %v1154 = vsub.f32 %v399, %v1153
      %v1155 = vand.u32 %v1154, 4294901760
      %1156 = vmatmul.mubr.f32.gmra.mrb[0].mxu0 %v1155
      %v1157 = vpop.f32.mrb[0].mxu0
      %v1158 = vadd.f32 %v965, %v1157
      %v1159 = vpop.f32.mrb[0].mxu0
      %1160 = vmatprep.mubr.f32.mxu0 0.0
      %v1161 = vand.u32 %v402, 4294901760
      %v1162 = vsub.f32 %v402, %v1161
      %v1163 = vand.u32 %v1162, 4294901760
      %1164 = vmatmul.mubr.f32.gmra.mrb[0].mxu0 %v1163
      %v1165 = vpop.f32.mrb[0].mxu0
      %v1166 = vadd.f32 %v972, %v1165
      %v1167 = vpop.f32.mrb[0].mxu0
      %1168 = vdwg.mxu0
      %1169 = vmatprep.subr.mxu0 0.0
      %v1170 = vand.u32 %v354, 4294901760
      %v1171 = vsub.f32 %v354, %v1170
      %v1172 = vand.u32 %v1171, 4294901760
      %1173 = vmatpush1.msra.mxu0 %v1172
      %1174 = vmatprep.subr.mxu0 0.0
      %1175 = vmatpush1.msra.mxu0 0.0
      %1176 = vmatprep.subr.mxu0 0.0
      %1177 = vmatpush1.msra.mxu0 0.0
      %1178 = vmatprep.subr.mxu0 0.0
      %1179 = vmatpush1.msra.mxu0 0.0
      %1180 = vmatprep.subr.mxu0 0.0
      %1181 = vmatpush1.msra.mxu0 0.0
      %1182 = vmatprep.subr.mxu0 0.0
      %1183 = vmatpush1.msra.mxu0 0.0
      %1184 = vmatprep.subr.mxu0 0.0
      %1185 = vmatpush1.msra.mxu0 0.0
      %1186 = vmatprep.subr.mxu0 0.0
      %1187 = vmatpush1.msra.mxu0 0.0
      %1188 = vmatprep.subr.mxu0 0.0
      %1189 = vmatpush1.msra.mxu0 0.0
      %1190 = vmatprep.subr.mxu0 0.0
      %1191 = vmatpush1.msra.mxu0 0.0
      %1192 = vmatprep.subr.mxu0 0.0
      %1193 = vmatpush1.msra.mxu0 0.0
      %1194 = vmatprep.subr.mxu0 0.0
      %1195 = vmatpush1.msra.mxu0 0.0
      %1196 = vmatprep.subr.mxu0 0.0
      %1197 = vmatpush1.msra.mxu0 0.0
      %1198 = vmatprep.subr.mxu0 0.0
      %1199 = vmatpush1.msra.mxu0 0.0
      %1200 = vmatprep.subr.mxu0 0.0
      %1201 = vmatpush1.msra.mxu0 0.0
      %1202 = vmatprep.subr.mxu0 0.0
      %1203 = vmatpush1.msra.mxu0 0.0
      %1204 = vmatprep.subr.mxu0 0.0
      %1205 = vmatpush1.msra.mxu0 0.0
      %1206 = vmatprep.subr.mxu0 0.0
      %1207 = vmatpush1.msra.mxu0 0.0
      %1208 = vmatprep.subr.mxu0 0.0
      %1209 = vmatpush1.msra.mxu0 0.0
      %1210 = vmatprep.subr.mxu0 0.0
      %1211 = vmatpush1.msra.mxu0 0.0
      %1212 = vmatprep.subr.mxu0 0.0
      %1213 = vmatpush1.msra.mxu0 0.0
      %1214 = vmatprep.subr.mxu0 0.0
      %1215 = vmatpush1.msra.mxu0 0.0
      %1216 = vmatprep.subr.mxu0 0.0
      %1217 = vmatpush1.msra.mxu0 0.0
      %1218 = vmatprep.subr.mxu0 0.0
      %1219 = vmatpush1.msra.mxu0 0.0
      %1220 = vmatprep.subr.mxu0 0.0
      %1221 = vmatpush1.msra.mxu0 0.0
      %1222 = vmatprep.subr.mxu0 0.0
      %1223 = vmatpush1.msra.mxu0 0.0
      %1224 = vmatprep.subr.mxu0 0.0
      %1225 = vmatpush1.msra.mxu0 0.0
      %1226 = vmatprep.subr.mxu0 0.0
      %1227 = vmatpush1.msra.mxu0 0.0
      %1228 = vmatprep.subr.mxu0 0.0
      %1229 = vmatpush1.msra.mxu0 0.0
      %1230 = vmatprep.subr.mxu0 0.0
      %1231 = vmatpush1.msra.mxu0 0.0
      %1232 = vmatprep.subr.mxu0 0.0
      %1233 = vmatpush1.msra.mxu0 0.0
      %1234 = vmatprep.subr.mxu0 0.0
      %1235 = vmatpush1.msra.mxu0 0.0
      %1236 = vmatprep.mubr.f32.mxu0 0.0
      %v1237 = vand.u32 %v357, 4294901760
      %1238 = vmatmul.mubr.f32.gmra.mrb[0].mxu0 %v1237
      %v1239 = vpop.f32.mrb[0].mxu0
      %v1240 = vadd.f32 %v1046, %v1239
      %v1241 = vpop.f32.mrb[0].mxu0
      %1242 = vmatprep.mubr.f32.mxu0 0.0
      %v1243 = vand.u32 %v360, 4294901760
      %1244 = vmatmul.mubr.f32.gmra.mrb[0].mxu0 %v1243
      %v1245 = vpop.f32.mrb[0].mxu0
      %v1246 = vadd.f32 %v1054, %v1245
      %v1247 = vpop.f32.mrb[0].mxu0
      %1248 = vmatprep.mubr.f32.mxu0 0.0
      %v1249 = vand.u32 %v363, 4294901760
      %1250 = vmatmul.mubr.f32.gmra.mrb[0].mxu0 %v1249
      %v1251 = vpop.f32.mrb[0].mxu0
      %v1252 = vadd.f32 %v1062, %v1251
      %v1253 = vpop.f32.mrb[0].mxu0
      %1254 = vmatprep.mubr.f32.mxu0 0.0
      %v1255 = vand.u32 %v366, 4294901760
      %1256 = vmatmul.mubr.f32.gmra.mrb[0].mxu0 %v1255
      %v1257 = vpop.f32.mrb[0].mxu0
      %v1258 = vadd.f32 %v1070, %v1257
      %v1259 = vpop.f32.mrb[0].mxu0
      %1260 = vmatprep.mubr.f32.mxu0 0.0
      %v1261 = vand.u32 %v369, 4294901760
      %1262 = vmatmul.mubr.f32.gmra.mrb[0].mxu0 %v1261
      %v1263 = vpop.f32.mrb[0].mxu0
      %v1264 = vadd.f32 %v1078, %v1263
      %v1265 = vpop.f32.mrb[0].mxu0
      %1266 = vmatprep.mubr.f32.mxu0 0.0
      %v1267 = vand.u32 %v372, 4294901760
      %1268 = vmatmul.mubr.f32.gmra.mrb[0].mxu0 %v1267
      %v1269 = vpop.f32.mrb[0].mxu0
      %v1270 = vadd.f32 %v1086, %v1269
      %v1271 = vpop.f32.mrb[0].mxu0
      %1272 = vmatprep.mubr.f32.mxu0 0.0
      %v1273 = vand.u32 %v375, 4294901760
      %1274 = vmatmul.mubr.f32.gmra.mrb[0].mxu0 %v1273
      %v1275 = vpop.f32.mrb[0].mxu0
      %v1276 = vadd.f32 %v1094, %v1275
      %v1277 = vpop.f32.mrb[0].mxu0
      %1278 = vmatprep.mubr.f32.mxu0 0.0
      %v1279 = vand.u32 %v378, 4294901760
      %1280 = vmatmul.mubr.f32.gmra.mrb[0].mxu0 %v1279
      %v1281 = vpop.f32.mrb[0].mxu0
      %v1282 = vadd.f32 %v1102, %v1281
      %v1283 = vpop.f32.mrb[0].mxu0
      %1284 = vmatprep.mubr.f32.mxu0 0.0
      %v1285 = vand.u32 %v381, 4294901760
      %1286 = vmatmul.mubr.f32.gmra.mrb[0].mxu0 %v1285
      %v1287 = vpop.f32.mrb[0].mxu0
      %v1288 = vadd.f32 %v1110, %v1287
      %v1289 = vpop.f32.mrb[0].mxu0
      %1290 = vmatprep.mubr.f32.mxu0 0.0
      %v1291 = vand.u32 %v384, 4294901760
      %1292 = vmatmul.mubr.f32.gmra.mrb[0].mxu0 %v1291
      %v1293 = vpop.f32.mrb[0].mxu0
      %v1294 = vadd.f32 %v1118, %v1293
      %v1295 = vpop.f32.mrb[0].mxu0
      %1296 = vmatprep.mubr.f32.mxu0 0.0
      %v1297 = vand.u32 %v387, 4294901760
      %1298 = vmatmul.mubr.f32.gmra.mrb[0].mxu0 %v1297
      %v1299 = vpop.f32.mrb[0].mxu0
      %v1300 = vadd.f32 %v1126, %v1299
      %v1301 = vpop.f32.mrb[0].mxu0
      %1302 = vmatprep.mubr.f32.mxu0 0.0
      %v1303 = vand.u32 %v390, 4294901760
      %1304 = vmatmul.mubr.f32.gmra.mrb[0].mxu0 %v1303
      %v1305 = vpop.f32.mrb[0].mxu0
      %v1306 = vadd.f32 %v1134, %v1305
      %v1307 = vpop.f32.mrb[0].mxu0
      %1308 = vmatprep.mubr.f32.mxu0 0.0
      %v1309 = vand.u32 %v393, 4294901760
      %1310 = vmatmul.mubr.f32.gmra.mrb[0].mxu0 %v1309
      %v1311 = vpop.f32.mrb[0].mxu0
      %v1312 = vadd.f32 %v1142, %v1311
      %v1313 = vpop.f32.mrb[0].mxu0
      %1314 = vmatprep.mubr.f32.mxu0 0.0
      %v1315 = vand.u32 %v396, 4294901760
      %1316 = vmatmul.mubr.f32.gmra.mrb[0].mxu0 %v1315
      %v1317 = vpop.f32.mrb[0].mxu0
      %v1318 = vadd.f32 %v1150, %v1317
      %v1319 = vpop.f32.mrb[0].mxu0
      %1320 = vmatprep.mubr.f32.mxu0 0.0
      %v1321 = vand.u32 %v399, 4294901760
      %1322 = vmatmul.mubr.f32.gmra.mrb[0].mxu0 %v1321
      %v1323 = vpop.f32.mrb[0].mxu0
      %v1324 = vadd.f32 %v1158, %v1323
      %v1325 = vpop.f32.mrb[0].mxu0
      %1326 = vmatprep.mubr.f32.mxu0 0.0
      %v1327 = vand.u32 %v402, 4294901760
      %1328 = vmatmul.mubr.f32.gmra.mrb[0].mxu0 %v1327
      %v1329 = vpop.f32.mrb[0].mxu0
      %v1330 = vadd.f32 %v1166, %v1329
      %v1331 = vpop.f32.mrb[0].mxu0
      %1332 = vdwg.mxu0
      %1333 = vmatprep.subr.mxu0 0.0
      %v1334 = vand.u32 %v354, 4294901760
      %1335 = vmatpush1.msra.mxu0 %v1334
      %1336 = vmatprep.subr.mxu0 0.0
      %1337 = vmatpush1.msra.mxu0 0.0
      %1338 = vmatprep.subr.mxu0 0.0
      %1339 = vmatpush1.msra.mxu0 0.0
      %1340 = vmatprep.subr.mxu0 0.0
      %1341 = vmatpush1.msra.mxu0 0.0
      %1342 = vmatprep.subr.mxu0 0.0
      %1343 = vmatpush1.msra.mxu0 0.0
      %1344 = vmatprep.subr.mxu0 0.0
      %1345 = vmatpush1.msra.mxu0 0.0
      %1346 = vmatprep.subr.mxu0 0.0
      %1347 = vmatpush1.msra.mxu0 0.0
      %1348 = vmatprep.subr.mxu0 0.0
      %1349 = vmatpush1.msra.mxu0 0.0
      %1350 = vmatprep.subr.mxu0 0.0
      %1351 = vmatpush1.msra.mxu0 0.0
      %1352 = vmatprep.subr.mxu0 0.0
      %1353 = vmatpush1.msra.mxu0 0.0
      %1354 = vmatprep.subr.mxu0 0.0
      %1355 = vmatpush1.msra.mxu0 0.0
      %1356 = vmatprep.subr.mxu0 0.0
      %1357 = vmatpush1.msra.mxu0 0.0
      %1358 = vmatprep.subr.mxu0 0.0
      %1359 = vmatpush1.msra.mxu0 0.0
      %1360 = vmatprep.subr.mxu0 0.0
      %1361 = vmatpush1.msra.mxu0 0.0
      %1362 = vmatprep.subr.mxu0 0.0
      %1363 = vmatpush1.msra.mxu0 0.0
      %1364 = vmatprep.subr.mxu0 0.0
      %1365 = vmatpush1.msra.mxu0 0.0
      %1366 = vmatprep.subr.mxu0 0.0
      %1367 = vmatpush1.msra.mxu0 0.0
      %1368 = vmatprep.subr.mxu0 0.0
      %1369 = vmatpush1.msra.mxu0 0.0
      %1370 = vmatprep.subr.mxu0 0.0
      %1371 = vmatpush1.msra.mxu0 0.0
      %1372 = vmatprep.subr.mxu0 0.0
      %1373 = vmatpush1.msra.mxu0 0.0
      %1374 = vmatprep.subr.mxu0 0.0
      %1375 = vmatpush1.msra.mxu0 0.0
      %1376 = vmatprep.subr.mxu0 0.0
      %1377 = vmatpush1.msra.mxu0 0.0
      %1378 = vmatprep.subr.mxu0 0.0
      %1379 = vmatpush1.msra.mxu0 0.0
      %1380 = vmatprep.subr.mxu0 0.0
      %1381 = vmatpush1.msra.mxu0 0.0
      %1382 = vmatprep.subr.mxu0 0.0
      %1383 = vmatpush1.msra.mxu0 0.0
      %1384 = vmatprep.subr.mxu0 0.0
      %1385 = vmatpush1.msra.mxu0 0.0
      %1386 = vmatprep.subr.mxu0 0.0
      %1387 = vmatpush1.msra.mxu0 0.0
      %1388 = vmatprep.subr.mxu0 0.0
      %1389 = vmatpush1.msra.mxu0 0.0
      %1390 = vmatprep.subr.mxu0 0.0
      %1391 = vmatpush1.msra.mxu0 0.0
      %1392 = vmatprep.subr.mxu0 0.0
      %1393 = vmatpush1.msra.mxu0 0.0
      %1394 = vmatprep.subr.mxu0 0.0
      %1395 = vmatpush1.msra.mxu0 0.0
      %1396 = vmatprep.subr.mxu0 0.0
      %1397 = vmatpush1.msra.mxu0 0.0
      %1398 = vmatprep.mubr.f32.mxu0 0.0
      %v1399 = vand.u32 %v357, 4294901760
      %1400 = vmatmul.mubr.f32.gmra.mrb[0].mxu0 %v1399
      %v1401 = vpop.f32.mrb[0].mxu0
      %v1402 = vadd.f32 %v1240, %v1401
      %v1403 = vpop.f32.mrb[0].mxu0
      %1404 = vmatprep.mubr.f32.mxu0 0.0
      %v1405 = vand.u32 %v360, 4294901760
      %1406 = vmatmul.mubr.f32.gmra.mrb[0].mxu0 %v1405
      %v1407 = vpop.f32.mrb[0].mxu0
      %v1408 = vadd.f32 %v1246, %v1407
      %v1409 = vpop.f32.mrb[0].mxu0
      %1410 = vmatprep.mubr.f32.mxu0 0.0
      %v1411 = vand.u32 %v363, 4294901760
      %1412 = vmatmul.mubr.f32.gmra.mrb[0].mxu0 %v1411
      %v1413 = vpop.f32.mrb[0].mxu0
      %v1414 = vadd.f32 %v1252, %v1413
      %v1415 = vpop.f32.mrb[0].mxu0
      %1416 = vmatprep.mubr.f32.mxu0 0.0
      %v1417 = vand.u32 %v366, 4294901760
      %1418 = vmatmul.mubr.f32.gmra.mrb[0].mxu0 %v1417
      %v1419 = vpop.f32.mrb[0].mxu0
      %v1420 = vadd.f32 %v1258, %v1419
      %v1421 = vpop.f32.mrb[0].mxu0
      %1422 = vmatprep.mubr.f32.mxu0 0.0
      %v1423 = vand.u32 %v369, 4294901760
      %1424 = vmatmul.mubr.f32.gmra.mrb[0].mxu0 %v1423
      %v1425 = vpop.f32.mrb[0].mxu0
      %v1426 = vadd.f32 %v1264, %v1425
      %v1427 = vpop.f32.mrb[0].mxu0
      %1428 = vmatprep.mubr.f32.mxu0 0.0
      %v1429 = vand.u32 %v372, 4294901760
      %1430 = vmatmul.mubr.f32.gmra.mrb[0].mxu0 %v1429
      %v1431 = vpop.f32.mrb[0].mxu0
      %v1432 = vadd.f32 %v1270, %v1431
      %v1433 = vpop.f32.mrb[0].mxu0
      %1434 = vmatprep.mubr.f32.mxu0 0.0
      %v1435 = vand.u32 %v375, 4294901760
      %1436 = vmatmul.mubr.f32.gmra.mrb[0].mxu0 %v1435
      %v1437 = vpop.f32.mrb[0].mxu0
      %v1438 = vadd.f32 %v1276, %v1437
      %v1439 = vpop.f32.mrb[0].mxu0
      %1440 = vmatprep.mubr.f32.mxu0 0.0
      %v1441 = vand.u32 %v378, 4294901760
      %1442 = vmatmul.mubr.f32.gmra.mrb[0].mxu0 %v1441
      %v1443 = vpop.f32.mrb[0].mxu0
      %v1444 = vadd.f32 %v1282, %v1443
      %v1445 = vpop.f32.mrb[0].mxu0
      %1446 = vmatprep.mubr.f32.mxu0 0.0
      %v1447 = vand.u32 %v381, 4294901760
      %1448 = vmatmul.mubr.f32.gmra.mrb[0].mxu0 %v1447
      %v1449 = vpop.f32.mrb[0].mxu0
      %v1450 = vadd.f32 %v1288, %v1449
      %v1451 = vpop.f32.mrb[0].mxu0
      %1452 = vmatprep.mubr.f32.mxu0 0.0
      %v1453 = vand.u32 %v384, 4294901760
      %1454 = vmatmul.mubr.f32.gmra.mrb[0].mxu0 %v1453
      %v1455 = vpop.f32.mrb[0].mxu0
      %v1456 = vadd.f32 %v1294, %v1455
      %v1457 = vpop.f32.mrb[0].mxu0
      %1458 = vmatprep.mubr.f32.mxu0 0.0
      %v1459 = vand.u32 %v387, 4294901760
      %1460 = vmatmul.mubr.f32.gmra.mrb[0].mxu0 %v1459
      %v1461 = vpop.f32.mrb[0].mxu0
      %v1462 = vadd.f32 %v1300, %v1461
      %v1463 = vpop.f32.mrb[0].mxu0
      %1464 = vmatprep.mubr.f32.mxu0 0.0
      %v1465 = vand.u32 %v390, 4294901760
      %1466 = vmatmul.mubr.f32.gmra.mrb[0].mxu0 %v1465
      %v1467 = vpop.f32.mrb[0].mxu0
      %v1468 = vadd.f32 %v1306, %v1467
      %v1469 = vpop.f32.mrb[0].mxu0
      %1470 = vmatprep.mubr.f32.mxu0 0.0
      %v1471 = vand.u32 %v393, 4294901760
      %1472 = vmatmul.mubr.f32.gmra.mrb[0].mxu0 %v1471
      %v1473 = vpop.f32.mrb[0].mxu0
      %v1474 = vadd.f32 %v1312, %v1473
      %v1475 = vpop.f32.mrb[0].mxu0
      %1476 = vmatprep.mubr.f32.mxu0 0.0
      %v1477 = vand.u32 %v396, 4294901760
      %1478 = vmatmul.mubr.f32.gmra.mrb[0].mxu0 %v1477
      %v1479 = vpop.f32.mrb[0].mxu0
      %v1480 = vadd.f32 %v1318, %v1479
      %v1481 = vpop.f32.mrb[0].mxu0
      %1482 = vmatprep.mubr.f32.mxu0 0.0
      %v1483 = vand.u32 %v399, 4294901760
      %1484 = vmatmul.mubr.f32.gmra.mrb[0].mxu0 %v1483
      %v1485 = vpop.f32.mrb[0].mxu0
      %v1486 = vadd.f32 %v1324, %v1485
      %v1487 = vpop.f32.mrb[0].mxu0
      %1488 = vmatprep.mubr.f32.mxu0 0.0
      %v1489 = vand.u32 %v402, 4294901760
      %1490 = vmatmul.mubr.f32.gmra.mrb[0].mxu0 %v1489
      %v1491 = vpop.f32.mrb[0].mxu0
      %v1492 = vadd.f32 %v1330, %v1491
      %v1493 = vpop.f32.mrb[0].mxu0
      %1494 = vdwg.mxu0
      %v1495 = vld [vmem:[#allocation2] sm:$0xff]
      %v1496 = vld [vmem:[#allocation2 + $0x8] sm:$0xff]
      %v1497 = vld [vmem:[#allocation2 + $0x10] sm:$0xff]
      %v1498 = vld [vmem:[#allocation2 + $0x18] sm:$0xff]
      %v1499 = vld [vmem:[#allocation2 + $0x20] sm:$0xff]
      %v1500 = vld [vmem:[#allocation2 + $0x28] sm:$0xff]
      %v1501 = vld [vmem:[#allocation2 + $0x30] sm:$0xff]
      %v1502 = vld [vmem:[#allocation2 + $0x38] sm:$0xff]
      %v1503 = vld [vmem:[#allocation2 + $0x40] sm:$0xff]
      %v1504 = vld [vmem:[#allocation2 + $0x48] sm:$0xff]
      %v1505 = vld [vmem:[#allocation2 + $0x50] sm:$0xff]
      %v1506 = vld [vmem:[#allocation2 + $0x58] sm:$0xff]
      %v1507 = vld [vmem:[#allocation2 + $0x60] sm:$0xff]
      %v1508 = vld [vmem:[#allocation2 + $0x68] sm:$0xff]
      %v1509 = vld [vmem:[#allocation2 + $0x70] sm:$0xff]
      %v1510 = vld [vmem:[#allocation2 + $0x78] sm:$0xff]
      %1511 = vmax.xlane.f32.xlu0 %v1402
      %v1512 = vpop.xlane.xlu0 %1511
      %1513 = vmax.xlane.f32.xlu0 %v1408
      %v1514 = vpop.xlane.xlu0 %1513
      %1515 = vmax.xlane.f32.xlu0 %v1414
      %v1516 = vpop.xlane.xlu0 %1515
      %1517 = vmax.xlane.f32.xlu0 %v1420
      %v1518 = vpop.xlane.xlu0 %1517
      %1519 = vmax.xlane.f32.xlu0 %v1426
      %v1520 = vpop.xlane.xlu0 %1519
      %1521 = vmax.xlane.f32.xlu0 %v1432
      %v1522 = vpop.xlane.xlu0 %1521
      %1523 = vmax.xlane.f32.xlu0 %v1438
      %v1524 = vpop.xlane.xlu0 %1523
      %1525 = vmax.xlane.f32.xlu0 %v1444
      %v1526 = vpop.xlane.xlu0 %1525
      %1527 = vmax.xlane.f32.xlu0 %v1450
      %v1528 = vpop.xlane.xlu0 %1527
      %1529 = vmax.xlane.f32.xlu0 %v1456
      %v1530 = vpop.xlane.xlu0 %1529
      %1531 = vmax.xlane.f32.xlu0 %v1462
      %v1532 = vpop.xlane.xlu0 %1531
      %1533 = vmax.xlane.f32.xlu0 %v1468
      %v1534 = vpop.xlane.xlu0 %1533
      %1535 = vmax.xlane.f32.xlu0 %v1474
      %v1536 = vpop.xlane.xlu0 %1535
      %1537 = vmax.xlane.f32.xlu0 %v1480
      %v1538 = vpop.xlane.xlu0 %1537
      %1539 = vmax.xlane.f32.xlu0 %v1486
      %v1540 = vpop.xlane.xlu0 %1539
      %1541 = vmax.xlane.f32.xlu0 %v1492
      %v1542 = vpop.xlane.xlu0 %1541
      %v1543 = vmax.f32 %v1495, %v1512
      %v1544 = vmax.f32 %v1496, %v1514
      %v1545 = vmax.f32 %v1497, %v1516
      %v1546 = vmax.f32 %v1498, %v1518
      %v1547 = vmax.f32 %v1499, %v1520
      %v1548 = vmax.f32 %v1500, %v1522
      %v1549 = vmax.f32 %v1501, %v1524
      %v1550 = vmax.f32 %v1502, %v1526
      %v1551 = vmax.f32 %v1503, %v1528
      %v1552 = vmax.f32 %v1504, %v1530
      %v1553 = vmax.f32 %v1505, %v1532
      %v1554 = vmax.f32 %v1506, %v1534
      %v1555 = vmax.f32 %v1507, %v1536
      %v1556 = vmax.f32 %v1508, %v1538
      %v1557 = vmax.f32 %v1509, %v1540
      %v1558 = vmax.f32 %v1510, %v1542
      %v1559 = vsub.f32 %v1495, %v1543
      %v1560 = vsub.f32 %v1496, %v1544
      %v1561 = vsub.f32 %v1497, %v1545
      %v1562 = vsub.f32 %v1498, %v1546
      %v1563 = vsub.f32 %v1499, %v1547
      %v1564 = vsub.f32 %v1500, %v1548
      %v1565 = vsub.f32 %v1501, %v1549
      %v1566 = vsub.f32 %v1502, %v1550
      %v1567 = vsub.f32 %v1503, %v1551
      %v1568 = vsub.f32 %v1504, %v1552
      %v1569 = vsub.f32 %v1505, %v1553
      %v1570 = vsub.f32 %v1506, %v1554
      %v1571 = vsub.f32 %v1507, %v1555
      %v1572 = vsub.f32 %v1508, %v1556
      %v1573 = vsub.f32 %v1509, %v1557
      %v1574 = vsub.f32 %v1510, %v1558
      %v1575 = vmul.f32 %v1559, 1.442695
      %v1576 = vpow.pop %v1575
      %v1577 = vmul.f32 %v1560, 1.442695
      %v1578 = vpow.pop %v1577
      %v1579 = vmul.f32 %v1561, 1.442695
      %v1580 = vpow.pop %v1579
      %v1581 = vmul.f32 %v1562, 1.442695
      %v1582 = vpow.pop %v1581
      %v1583 = vmul.f32 %v1563, 1.442695
      %v1584 = vpow.pop %v1583
      %v1585 = vmul.f32 %v1564, 1.442695
      %v1586 = vpow.pop %v1585
      %v1587 = vmul.f32 %v1565, 1.442695
      %v1588 = vpow.pop %v1587
      %v1589 = vmul.f32 %v1566, 1.442695
      %v1590 = vpow.pop %v1589
      %v1591 = vmul.f32 %v1567, 1.442695
      %v1592 = vpow.pop %v1591
      %v1593 = vmul.f32 %v1568, 1.442695
      %v1594 = vpow.pop %v1593
      %v1595 = vmul.f32 %v1569, 1.442695
      %v1596 = vpow.pop %v1595
      %v1597 = vmul.f32 %v1570, 1.442695
      %v1598 = vpow.pop %v1597
      %v1599 = vmul.f32 %v1571, 1.442695
      %v1600 = vpow.pop %v1599
      %v1601 = vmul.f32 %v1572, 1.442695
      %v1602 = vpow.pop %v1601
      %v1603 = vmul.f32 %v1573, 1.442695
      %v1604 = vpow.pop %v1603
      %v1605 = vmul.f32 %v1574, 1.442695
      %v1606 = vpow.pop %v1605
      %1608 = vset.pattern.permute.xlu0 0
      %1609 = vperm.xlu0 %1608, %v1543
      %v1610 = vpop.permute.xlu0 %1609
      %1613 = vset.pattern.permute.xlu0 0
      %1614 = vperm.xlu0 %1613, %v1544
      %v1615 = vpop.permute.xlu0 %1614
      %1618 = vset.pattern.permute.xlu0 0
      %1619 = vperm.xlu0 %1618, %v1545
      %v1620 = vpop.permute.xlu0 %1619
      %1623 = vset.pattern.permute.xlu0 0
      %1624 = vperm.xlu0 %1623, %v1546
      %v1625 = vpop.permute.xlu0 %1624
      %1628 = vset.pattern.permute.xlu0 0
      %1629 = vperm.xlu0 %1628, %v1547
      %v1630 = vpop.permute.xlu0 %1629
      %1633 = vset.pattern.permute.xlu0 0
      %1634 = vperm.xlu0 %1633, %v1548
      %v1635 = vpop.permute.xlu0 %1634
      %1638 = vset.pattern.permute.xlu0 0
      %1639 = vperm.xlu0 %1638, %v1549
      %v1640 = vpop.permute.xlu0 %1639
      %1643 = vset.pattern.permute.xlu0 0
      %1644 = vperm.xlu0 %1643, %v1550
      %v1645 = vpop.permute.xlu0 %1644
      %1648 = vset.pattern.permute.xlu0 0
      %1649 = vperm.xlu0 %1648, %v1551
      %v1650 = vpop.permute.xlu0 %1649
      %1653 = vset.pattern.permute.xlu0 0
      %1654 = vperm.xlu0 %1653, %v1552
      %v1655 = vpop.permute.xlu0 %1654
      %1658 = vset.pattern.permute.xlu0 0
      %1659 = vperm.xlu0 %1658, %v1553
      %v1660 = vpop.permute.xlu0 %1659
      %1663 = vset.pattern.permute.xlu0 0
      %1664 = vperm.xlu0 %1663, %v1554
      %v1665 = vpop.permute.xlu0 %1664
      %1668 = vset.pattern.permute.xlu0 0
      %1669 = vperm.xlu0 %1668, %v1555
      %v1670 = vpop.permute.xlu0 %1669
      %1673 = vset.pattern.permute.xlu0 0
      %1674 = vperm.xlu0 %1673, %v1556
      %v1675 = vpop.permute.xlu0 %1674
      %1678 = vset.pattern.permute.xlu0 0
      %1679 = vperm.xlu0 %1678, %v1557
      %v1680 = vpop.permute.xlu0 %1679
      %1683 = vset.pattern.permute.xlu0 0
      %1684 = vperm.xlu0 %1683, %v1558
      %v1685 = vpop.permute.xlu0 %1684
      %v1687 = vsub.f32 %v1402, %v1610
      %v1688 = vsub.f32 %v1408, %v1615
      %v1689 = vsub.f32 %v1414, %v1620
      %v1690 = vsub.f32 %v1420, %v1625
      %v1691 = vsub.f32 %v1426, %v1630
      %v1692 = vsub.f32 %v1432, %v1635
      %v1693 = vsub.f32 %v1438, %v1640
      %v1694 = vsub.f32 %v1444, %v1645
      %v1695 = vsub.f32 %v1450, %v1650
      %v1696 = vsub.f32 %v1456, %v1655
      %v1697 = vsub.f32 %v1462, %v1660
      %v1698 = vsub.f32 %v1468, %v1665
      %v1699 = vsub.f32 %v1474, %v1670
      %v1700 = vsub.f32 %v1480, %v1675
      %v1701 = vsub.f32 %v1486, %v1680
      %v1702 = vsub.f32 %v1492, %v1685
      %v1703 = vmul.f32 %v1687, 1.442695
      %v1704 = vpow.pop %v1703
      %v1705 = vmul.f32 %v1688, 1.442695
      %v1706 = vpow.pop %v1705
      %v1707 = vmul.f32 %v1689, 1.442695
      %v1708 = vpow.pop %v1707
      %v1709 = vmul.f32 %v1690, 1.442695
      %v1710 = vpow.pop %v1709
      %v1711 = vmul.f32 %v1691, 1.442695
      %v1712 = vpow.pop %v1711
      %v1713 = vmul.f32 %v1692, 1.442695
      %v1714 = vpow.pop %v1713
      %v1715 = vmul.f32 %v1693, 1.442695
      %v1716 = vpow.pop %v1715
      %v1717 = vmul.f32 %v1694, 1.442695
      %v1718 = vpow.pop %v1717
      %v1719 = vmul.f32 %v1695, 1.442695
      %v1720 = vpow.pop %v1719
      %v1721 = vmul.f32 %v1696, 1.442695
      %v1722 = vpow.pop %v1721
      %v1723 = vmul.f32 %v1697, 1.442695
      %v1724 = vpow.pop %v1723
      %v1725 = vmul.f32 %v1698, 1.442695
      %v1726 = vpow.pop %v1725
      %v1727 = vmul.f32 %v1699, 1.442695
      %v1728 = vpow.pop %v1727
      %v1729 = vmul.f32 %v1700, 1.442695
      %v1730 = vpow.pop %v1729
      %v1731 = vmul.f32 %v1701, 1.442695
      %v1732 = vpow.pop %v1731
      %v1733 = vmul.f32 %v1702, 1.442695
      %v1734 = vpow.pop %v1733
      %v1735 = vld [vmem:[#allocation3] sm:$0xff]
      %v1736 = vld [vmem:[#allocation3 + $0x8] sm:$0xff]
      %v1737 = vld [vmem:[#allocation3 + $0x10] sm:$0xff]
      %v1738 = vld [vmem:[#allocation3 + $0x18] sm:$0xff]
      %v1739 = vld [vmem:[#allocation3 + $0x20] sm:$0xff]
      %v1740 = vld [vmem:[#allocation3 + $0x28] sm:$0xff]
      %v1741 = vld [vmem:[#allocation3 + $0x30] sm:$0xff]
      %v1742 = vld [vmem:[#allocation3 + $0x38] sm:$0xff]
      %v1743 = vld [vmem:[#allocation3 + $0x40] sm:$0xff]
      %v1744 = vld [vmem:[#allocation3 + $0x48] sm:$0xff]
      %v1745 = vld [vmem:[#allocation3 + $0x50] sm:$0xff]
      %v1746 = vld [vmem:[#allocation3 + $0x58] sm:$0xff]
      %v1747 = vld [vmem:[#allocation3 + $0x60] sm:$0xff]
      %v1748 = vld [vmem:[#allocation3 + $0x68] sm:$0xff]
      %v1749 = vld [vmem:[#allocation3 + $0x70] sm:$0xff]
      %v1750 = vld [vmem:[#allocation3 + $0x78] sm:$0xff]
      %v1751 = vmul.f32 %v1576, %v1735
      %v1752 = vmul.f32 %v1578, %v1736
      %v1753 = vmul.f32 %v1580, %v1737
      %v1754 = vmul.f32 %v1582, %v1738
      %v1755 = vmul.f32 %v1584, %v1739
      %v1756 = vmul.f32 %v1586, %v1740
      %v1757 = vmul.f32 %v1588, %v1741
      %v1758 = vmul.f32 %v1590, %v1742
      %v1759 = vmul.f32 %v1592, %v1743
      %v1760 = vmul.f32 %v1594, %v1744
      %v1761 = vmul.f32 %v1596, %v1745
      %v1762 = vmul.f32 %v1598, %v1746
      %v1763 = vmul.f32 %v1600, %v1747
      %v1764 = vmul.f32 %v1602, %v1748
      %v1765 = vmul.f32 %v1604, %v1749
      %v1766 = vmul.f32 %v1606, %v1750
      %1767 = vadd.xlane.f32.xlu0 %v1704
      %v1768 = vpop.xlane.xlu0 %1767
      %1769 = vadd.xlane.f32.xlu0 %v1706
      %v1770 = vpop.xlane.xlu0 %1769
      %1771 = vadd.xlane.f32.xlu0 %v1708
      %v1772 = vpop.xlane.xlu0 %1771
      %1773 = vadd.xlane.f32.xlu0 %v1710
      %v1774 = vpop.xlane.xlu0 %1773
      %1775 = vadd.xlane.f32.xlu0 %v1712
      %v1776 = vpop.xlane.xlu0 %1775
      %1777 = vadd.xlane.f32.xlu0 %v1714
      %v1778 = vpop.xlane.xlu0 %1777
      %1779 = vadd.xlane.f32.xlu0 %v1716
      %v1780 = vpop.xlane.xlu0 %1779
      %1781 = vadd.xlane.f32.xlu0 %v1718
      %v1782 = vpop.xlane.xlu0 %1781
      %1783 = vadd.xlane.f32.xlu0 %v1720
      %v1784 = vpop.xlane.xlu0 %1783
      %1785 = vadd.xlane.f32.xlu0 %v1722
      %v1786 = vpop.xlane.xlu0 %1785
      %1787 = vadd.xlane.f32.xlu0 %v1724
      %v1788 = vpop.xlane.xlu0 %1787
      %1789 = vadd.xlane.f32.xlu0 %v1726
      %v1790 = vpop.xlane.xlu0 %1789
      %1791 = vadd.xlane.f32.xlu0 %v1728
      %v1792 = vpop.xlane.xlu0 %1791
      %1793 = vadd.xlane.f32.xlu0 %v1730
      %v1794 = vpop.xlane.xlu0 %1793
      %1795 = vadd.xlane.f32.xlu0 %v1732
      %v1796 = vpop.xlane.xlu0 %1795
      %1797 = vadd.xlane.f32.xlu0 %v1734
      %v1798 = vpop.xlane.xlu0 %1797
      %v1799 = vadd.f32 %v1751, %v1768
      %v1800 = vadd.f32 %v1752, %v1770
      %v1801 = vadd.f32 %v1753, %v1772
      %v1802 = vadd.f32 %v1754, %v1774
      %v1803 = vadd.f32 %v1755, %v1776
      %v1804 = vadd.f32 %v1756, %v1778
      %v1805 = vadd.f32 %v1757, %v1780
      %v1806 = vadd.f32 %v1758, %v1782
      %v1807 = vadd.f32 %v1759, %v1784
      %v1808 = vadd.f32 %v1760, %v1786
      %v1809 = vadd.f32 %v1761, %v1788
      %v1810 = vadd.f32 %v1762, %v1790
      %v1811 = vadd.f32 %v1763, %v1792
      %v1812 = vadd.f32 %v1764, %v1794
      %v1813 = vadd.f32 %v1765, %v1796
      %v1814 = vadd.f32 %v1766, %v1798
      %vm1815 = vcmask 7168
      %1816 = vst.msk [vmem:[#allocation3] sm:$0xff] %vm1815, %v1799
      %1817 = vst.msk [vmem:[#allocation3 + $0x8] sm:$0xff] %vm1815, %v1800
      %1818 = vst.msk [vmem:[#allocation3 + $0x10] sm:$0xff] %vm1815, %v1801
      %1819 = vst.msk [vmem:[#allocation3 + $0x18] sm:$0xff] %vm1815, %v1802
      %1820 = vst.msk [vmem:[#allocation3 + $0x20] sm:$0xff] %vm1815, %v1803
      %1821 = vst.msk [vmem:[#allocation3 + $0x28] sm:$0xff] %vm1815, %v1804
      %1822 = vst.msk [vmem:[#allocation3 + $0x30] sm:$0xff] %vm1815, %v1805
      %1823 = vst.msk [vmem:[#allocation3 + $0x38] sm:$0xff] %vm1815, %v1806
      %1824 = vst.msk [vmem:[#allocation3 + $0x40] sm:$0xff] %vm1815, %v1807
      %1825 = vst.msk [vmem:[#allocation3 + $0x48] sm:$0xff] %vm1815, %v1808
      %1826 = vst.msk [vmem:[#allocation3 + $0x50] sm:$0xff] %vm1815, %v1809
      %1827 = vst.msk [vmem:[#allocation3 + $0x58] sm:$0xff] %vm1815, %v1810
      %1828 = vst.msk [vmem:[#allocation3 + $0x60] sm:$0xff] %vm1815, %v1811
      %1829 = vst.msk [vmem:[#allocation3 + $0x68] sm:$0xff] %vm1815, %v1812
      %1830 = vst.msk [vmem:[#allocation3 + $0x70] sm:$0xff] %vm1815, %v1813
      %1831 = vst.msk [vmem:[#allocation3 + $0x78] sm:$0xff] %vm1815, %v1814
      %v1832 = vld [vmem:[%s272] sm:$0xff]
      %v1833 = vld [vmem:[%s272 + $0x8] sm:$0xff]
      %v1834 = vld [vmem:[%s272 + $0x10] sm:$0xff]
      %v1835 = vld [vmem:[%s272 + $0x18] sm:$0xff]
      %v1836 = vld [vmem:[%s272 + $0x20] sm:$0xff]
      %v1837 = vld [vmem:[%s272 + $0x28] sm:$0xff]
      %v1838 = vld [vmem:[%s272 + $0x30] sm:$0xff]
      %v1839 = vld [vmem:[%s272 + $0x38] sm:$0xff]
      %v1840 = vld [vmem:[%s272 + $0x40] sm:$0xff]
      %v1841 = vld [vmem:[%s272 + $0x48] sm:$0xff]
      %v1842 = vld [vmem:[%s272 + $0x50] sm:$0xff]
      %v1843 = vld [vmem:[%s272 + $0x58] sm:$0xff]
      %v1844 = vld [vmem:[%s272 + $0x60] sm:$0xff]
      %v1845 = vld [vmem:[%s272 + $0x68] sm:$0xff]
      %v1846 = vld [vmem:[%s272 + $0x70] sm:$0xff]
      %v1847 = vld [vmem:[%s272 + $0x78] sm:$0xff]
      %1848 = vmatprep.subr.mxu0 0.0
      %v1849 = vand.u32 %v1832, 4294901760
      %1850 = vmatpush1.msra.mxu0 %v1849
      %1851 = vmatprep.subr.mxu0 0.0
      %v1852 = vand.u32 %v1833, 4294901760
      %1853 = vmatpush1.msra.mxu0 %v1852
      %1854 = vmatprep.subr.mxu0 0.0
      %v1855 = vand.u32 %v1834, 4294901760
      %1856 = vmatpush1.msra.mxu0 %v1855
      %1857 = vmatprep.subr.mxu0 0.0
      %v1858 = vand.u32 %v1835, 4294901760
      %1859 = vmatpush1.msra.mxu0 %v1858
      %1860 = vmatprep.subr.mxu0 0.0
      %v1861 = vand.u32 %v1836, 4294901760
      %1862 = vmatpush1.msra.mxu0 %v1861
      %1863 = vmatprep.subr.mxu0 0.0
      %v1864 = vand.u32 %v1837, 4294901760
      %1865 = vmatpush1.msra.mxu0 %v1864
      %1866 = vmatprep.subr.mxu0 0.0
      %v1867 = vand.u32 %v1838, 4294901760
      %1868 = vmatpush1.msra.mxu0 %v1867
      %1869 = vmatprep.subr.mxu0 0.0
      %v1870 = vand.u32 %v1839, 4294901760
      %1871 = vmatpush1.msra.mxu0 %v1870
      %1872 = vmatprep.subr.mxu0 0.0
      %v1873 = vand.u32 %v1840, 4294901760
      %1874 = vmatpush1.msra.mxu0 %v1873
      %1875 = vmatprep.subr.mxu0 0.0
      %v1876 = vand.u32 %v1841, 4294901760
      %1877 = vmatpush1.msra.mxu0 %v1876
      %1878 = vmatprep.subr.mxu0 0.0
      %v1879 = vand.u32 %v1842, 4294901760
      %1880 = vmatpush1.msra.mxu0 %v1879
      %1881 = vmatprep.subr.mxu0 0.0
      %v1882 = vand.u32 %v1843, 4294901760
      %1883 = vmatpush1.msra.mxu0 %v1882
      %1884 = vmatprep.subr.mxu0 0.0
      %v1885 = vand.u32 %v1844, 4294901760
      %1886 = vmatpush1.msra.mxu0 %v1885
      %1887 = vmatprep.subr.mxu0 0.0
      %v1888 = vand.u32 %v1845, 4294901760
      %1889 = vmatpush1.msra.mxu0 %v1888
      %1890 = vmatprep.subr.mxu0 0.0
      %v1891 = vand.u32 %v1846, 4294901760
      %1892 = vmatpush1.msra.mxu0 %v1891
      %1893 = vmatprep.subr.mxu0 0.0
      %v1894 = vand.u32 %v1847, 4294901760
      %1895 = vmatpush1.msra.mxu0 %v1894
      %1896 = vmatprep.subr.mxu0 0.0
      %1897 = vmatpush1.msra.mxu0 0.0
      %1898 = vmatprep.subr.mxu0 0.0
      %1899 = vmatpush1.msra.mxu0 0.0
      %1900 = vmatprep.subr.mxu0 0.0
      %1901 = vmatpush1.msra.mxu0 0.0
      %1902 = vmatprep.subr.mxu0 0.0
      %1903 = vmatpush1.msra.mxu0 0.0
      %1904 = vmatprep.subr.mxu0 0.0
      %1905 = vmatpush1.msra.mxu0 0.0
      %1906 = vmatprep.subr.mxu0 0.0
      %1907 = vmatpush1.msra.mxu0 0.0
      %1908 = vmatprep.subr.mxu0 0.0
      %1909 = vmatpush1.msra.mxu0 0.0
      %1910 = vmatprep.subr.mxu0 0.0
      %1911 = vmatpush1.msra.mxu0 0.0
      %1912 = vmatprep.subr.mxu0 0.0
      %1913 = vmatpush1.msra.mxu0 0.0
      %1914 = vmatprep.subr.mxu0 0.0
      %1915 = vmatpush1.msra.mxu0 0.0
      %1916 = vmatprep.subr.mxu0 0.0
      %1917 = vmatpush1.msra.mxu0 0.0
      %1918 = vmatprep.subr.mxu0 0.0
      %1919 = vmatpush1.msra.mxu0 0.0
      %1920 = vmatprep.subr.mxu0 0.0
      %1921 = vmatpush1.msra.mxu0 0.0
      %1922 = vmatprep.subr.mxu0 0.0
      %1923 = vmatpush1.msra.mxu0 0.0
      %1924 = vmatprep.subr.mxu0 0.0
      %1925 = vmatpush1.msra.mxu0 0.0
      %1926 = vmatprep.subr.mxu0 0.0
      %1927 = vmatpush1.msra.mxu0 0.0
      %1928 = vmatprep.mubr.f32.mxu0 0.0
      %v1929 = vand.u32 %v1704, 4294901760
      %v1930 = vsub.f32 %v1704, %v1929
      %v1931 = vand.u32 %v1930, 4294901760
      %v1932 = vsub.f32 %v1930, %v1931
      %v1933 = vand.u32 %v1932, 4294901760
      %1934 = vmatmul.mubr.f32.gmra.mrb[0].mxu0 %v1933
      %v1935 = vpop.f32.mrb[0].mxu0
      %v1936 = vadd.f32 0.0, %v1935
      %v1937 = vpop.f32.mrb[0].mxu0
      %1938 = vmatprep.mubr.f32.mxu0 0.0
      %v1939 = vand.u32 %v1706, 4294901760
      %v1940 = vsub.f32 %v1706, %v1939
      %v1941 = vand.u32 %v1940, 4294901760
      %v1942 = vsub.f32 %v1940, %v1941
      %v1943 = vand.u32 %v1942, 4294901760
      %1944 = vmatmul.mubr.f32.gmra.mrb[0].mxu0 %v1943
      %v1945 = vpop.f32.mrb[0].mxu0
      %v1946 = vadd.f32 0.0, %v1945
      %v1947 = vpop.f32.mrb[0].mxu0
      %1948 = vmatprep.mubr.f32.mxu0 0.0
      %v1949 = vand.u32 %v1708, 4294901760
      %v1950 = vsub.f32 %v1708, %v1949
      %v1951 = vand.u32 %v1950, 4294901760
      %v1952 = vsub.f32 %v1950, %v1951
      %v1953 = vand.u32 %v1952, 4294901760
      %1954 = vmatmul.mubr.f32.gmra.mrb[0].mxu0 %v1953
      %v1955 = vpop.f32.mrb[0].mxu0
      %v1956 = vadd.f32 0.0, %v1955
      %v1957 = vpop.f32.mrb[0].mxu0
      %1958 = vmatprep.mubr.f32.mxu0 0.0
      %v1959 = vand.u32 %v1710, 4294901760
      %v1960 = vsub.f32 %v1710, %v1959
      %v1961 = vand.u32 %v1960, 4294901760
      %v1962 = vsub.f32 %v1960, %v1961
      %v1963 = vand.u32 %v1962, 4294901760
      %1964 = vmatmul.mubr.f32.gmra.mrb[0].mxu0 %v1963
      %v1965 = vpop.f32.mrb[0].mxu0
      %v1966 = vadd.f32 0.0, %v1965
      %v1967 = vpop.f32.mrb[0].mxu0
      %1968 = vmatprep.mubr.f32.mxu0 0.0
      %v1969 = vand.u32 %v1712, 4294901760
      %v1970 = vsub.f32 %v1712, %v1969
      %v1971 = vand.u32 %v1970, 4294901760
      %v1972 = vsub.f32 %v1970, %v1971
      %v1973 = vand.u32 %v1972, 4294901760
      %1974 = vmatmul.mubr.f32.gmra.mrb[0].mxu0 %v1973
      %v1975 = vpop.f32.mrb[0].mxu0
      %v1976 = vadd.f32 0.0, %v1975
      %v1977 = vpop.f32.mrb[0].mxu0
      %1978 = vmatprep.mubr.f32.mxu0 0.0
      %v1979 = vand.u32 %v1714, 4294901760
      %v1980 = vsub.f32 %v1714, %v1979
      %v1981 = vand.u32 %v1980, 4294901760
      %v1982 = vsub.f32 %v1980, %v1981
      %v1983 = vand.u32 %v1982, 4294901760
      %1984 = vmatmul.mubr.f32.gmra.mrb[0].mxu0 %v1983
      %v1985 = vpop.f32.mrb[0].mxu0
      %v1986 = vadd.f32 0.0, %v1985
      %v1987 = vpop.f32.mrb[0].mxu0
      %1988 = vmatprep.mubr.f32.mxu0 0.0
      %v1989 = vand.u32 %v1716, 4294901760
      %v1990 = vsub.f32 %v1716, %v1989
      %v1991 = vand.u32 %v1990, 4294901760
      %v1992 = vsub.f32 %v1990, %v1991
      %v1993 = vand.u32 %v1992, 4294901760
      %1994 = vmatmul.mubr.f32.gmra.mrb[0].mxu0 %v1993
      %v1995 = vpop.f32.mrb[0].mxu0
      %v1996 = vadd.f32 0.0, %v1995
      %v1997 = vpop.f32.mrb[0].mxu0
      %1998 = vmatprep.mubr.f32.mxu0 0.0
      %v1999 = vand.u32 %v1718, 4294901760
      %v2000 = vsub.f32 %v1718, %v1999
      %v2001 = vand.u32 %v2000, 4294901760
      %v2002 = vsub.f32 %v2000, %v2001
      %v2003 = vand.u32 %v2002, 4294901760
      %2004 = vmatmul.mubr.f32.gmra.mrb[0].mxu0 %v2003
      %v2005 = vpop.f32.mrb[0].mxu0
      %v2006 = vadd.f32 0.0, %v2005
      %v2007 = vpop.f32.mrb[0].mxu0
      %2008 = vmatprep.mubr.f32.mxu0 0.0
      %v2009 = vand.u32 %v1720, 4294901760
      %v2010 = vsub.f32 %v1720, %v2009
      %v2011 = vand.u32 %v2010, 4294901760
      %v2012 = vsub.f32 %v2010, %v2011
      %v2013 = vand.u32 %v2012, 4294901760
      %2014 = vmatmul.mubr.f32.gmra.mrb[0].mxu0 %v2013
      %v2015 = vpop.f32.mrb[0].mxu0
      %v2016 = vadd.f32 0.0, %v2015
      %v2017 = vpop.f32.mrb[0].mxu0
      %2018 = vmatprep.mubr.f32.mxu0 0.0
      %v2019 = vand.u32 %v1722, 4294901760
      %v2020 = vsub.f32 %v1722, %v2019
      %v2021 = vand.u32 %v2020, 4294901760
      %v2022 = vsub.f32 %v2020, %v2021
      %v2023 = vand.u32 %v2022, 4294901760
      %2024 = vmatmul.mubr.f32.gmra.mrb[0].mxu0 %v2023
      %v2025 = vpop.f32.mrb[0].mxu0
      %v2026 = vadd.f32 0.0, %v2025
      %v2027 = vpop.f32.mrb[0].mxu0
      %2028 = vmatprep.mubr.f32.mxu0 0.0
      %v2029 = vand.u32 %v1724, 4294901760
      %v2030 = vsub.f32 %v1724, %v2029
      %v2031 = vand.u32 %v2030, 4294901760
      %v2032 = vsub.f32 %v2030, %v2031
      %v2033 = vand.u32 %v2032, 4294901760
      %2034 = vmatmul.mubr.f32.gmra.mrb[0].mxu0 %v2033
      %v2035 = vpop.f32.mrb[0].mxu0
      %v2036 = vadd.f32 0.0, %v2035
      %v2037 = vpop.f32.mrb[0].mxu0
      %2038 = vmatprep.mubr.f32.mxu0 0.0
      %v2039 = vand.u32 %v1726, 4294901760
      %v2040 = vsub.f32 %v1726, %v2039
      %v2041 = vand.u32 %v2040, 4294901760
      %v2042 = vsub.f32 %v2040, %v2041
      %v2043 = vand.u32 %v2042, 4294901760
      %2044 = vmatmul.mubr.f32.gmra.mrb[0].mxu0 %v2043
      %v2045 = vpop.f32.mrb[0].mxu0
      %v2046 = vadd.f32 0.0, %v2045
      %v2047 = vpop.f32.mrb[0].mxu0
      %2048 = vmatprep.mubr.f32.mxu0 0.0
      %v2049 = vand.u32 %v1728, 4294901760
      %v2050 = vsub.f32 %v1728, %v2049
      %v2051 = vand.u32 %v2050, 4294901760
      %v2052 = vsub.f32 %v2050, %v2051
      %v2053 = vand.u32 %v2052, 4294901760
      %2054 = vmatmul.mubr.f32.gmra.mrb[0].mxu0 %v2053
      %v2055 = vpop.f32.mrb[0].mxu0
      %v2056 = vadd.f32 0.0, %v2055
      %v2057 = vpop.f32.mrb[0].mxu0
      %2058 = vmatprep.mubr.f32.mxu0 0.0
      %v2059 = vand.u32 %v1730, 4294901760
      %v2060 = vsub.f32 %v1730, %v2059
      %v2061 = vand.u32 %v2060, 4294901760
      %v2062 = vsub.f32 %v2060, %v2061
      %v2063 = vand.u32 %v2062, 4294901760
      %2064 = vmatmul.mubr.f32.gmra.mrb[0].mxu0 %v2063
      %v2065 = vpop.f32.mrb[0].mxu0
      %v2066 = vadd.f32 0.0, %v2065
      %v2067 = vpop.f32.mrb[0].mxu0
      %2068 = vmatprep.mubr.f32.mxu0 0.0
      %v2069 = vand.u32 %v1732, 4294901760
      %v2070 = vsub.f32 %v1732, %v2069
      %v2071 = vand.u32 %v2070, 4294901760
      %v2072 = vsub.f32 %v2070, %v2071
      %v2073 = vand.u32 %v2072, 4294901760
      %2074 = vmatmul.mubr.f32.gmra.mrb[0].mxu0 %v2073
      %v2075 = vpop.f32.mrb[0].mxu0
      %v2076 = vadd.f32 0.0, %v2075
      %v2077 = vpop.f32.mrb[0].mxu0
      %2078 = vmatprep.mubr.f32.mxu0 0.0
      %v2079 = vand.u32 %v1734, 4294901760
      %v2080 = vsub.f32 %v1734, %v2079
      %v2081 = vand.u32 %v2080, 4294901760
      %v2082 = vsub.f32 %v2080, %v2081
      %v2083 = vand.u32 %v2082, 4294901760
      %2084 = vmatmul.mubr.f32.gmra.mrb[0].mxu0 %v2083
      %v2085 = vpop.f32.mrb[0].mxu0
      %v2086 = vadd.f32 0.0, %v2085
      %v2087 = vpop.f32.mrb[0].mxu0
      %2088 = vdwg.mxu0
      %2089 = vmatprep.subr.mxu0 0.0
      %v2090 = vand.u32 %v1832, 4294901760
      %v2091 = vsub.f32 %v1832, %v2090
      %v2092 = vand.u32 %v2091, 4294901760
      %v2093 = vsub.f32 %v2091, %v2092
      %v2094 = vand.u32 %v2093, 4294901760
      %2095 = vmatpush1.msra.mxu0 %v2094
      %2096 = vmatprep.subr.mxu0 0.0
      %v2097 = vand.u32 %v1833, 4294901760
      %v2098 = vsub.f32 %v1833, %v2097
      %v2099 = vand.u32 %v2098, 4294901760
      %v2100 = vsub.f32 %v2098, %v2099
      %v2101 = vand.u32 %v2100, 4294901760
      %2102 = vmatpush1.msra.mxu0 %v2101
      %2103 = vmatprep.subr.mxu0 0.0
      %v2104 = vand.u32 %v1834, 4294901760
      %v2105 = vsub.f32 %v1834, %v2104
      %v2106 = vand.u32 %v2105, 4294901760
      %v2107 = vsub.f32 %v2105, %v2106
      %v2108 = vand.u32 %v2107, 4294901760
      %2109 = vmatpush1.msra.mxu0 %v2108
      %2110 = vmatprep.subr.mxu0 0.0
      %v2111 = vand.u32 %v1835, 4294901760
      %v2112 = vsub.f32 %v1835, %v2111
      %v2113 = vand.u32 %v2112, 4294901760
      %v2114 = vsub.f32 %v2112, %v2113
      %v2115 = vand.u32 %v2114, 4294901760
      %2116 = vmatpush1.msra.mxu0 %v2115
      %2117 = vmatprep.subr.mxu0 0.0
      %v2118 = vand.u32 %v1836, 4294901760
      %v2119 = vsub.f32 %v1836, %v2118
      %v2120 = vand.u32 %v2119, 4294901760
      %v2121 = vsub.f32 %v2119, %v2120
      %v2122 = vand.u32 %v2121, 4294901760
      %2123 = vmatpush1.msra.mxu0 %v2122
      %2124 = vmatprep.subr.mxu0 0.0
      %v2125 = vand.u32 %v1837, 4294901760
      %v2126 = vsub.f32 %v1837, %v2125
      %v2127 = vand.u32 %v2126, 4294901760
      %v2128 = vsub.f32 %v2126, %v2127
      %v2129 = vand.u32 %v2128, 4294901760
      %2130 = vmatpush1.msra.mxu0 %v2129
      %2131 = vmatprep.subr.mxu0 0.0
      %v2132 = vand.u32 %v1838, 4294901760
      %v2133 = vsub.f32 %v1838, %v2132
      %v2134 = vand.u32 %v2133, 4294901760
      %v2135 = vsub.f32 %v2133, %v2134
      %v2136 = vand.u32 %v2135, 4294901760
      %2137 = vmatpush1.msra.mxu0 %v2136
      %2138 = vmatprep.subr.mxu0 0.0
      %v2139 = vand.u32 %v1839, 4294901760
      %v2140 = vsub.f32 %v1839, %v2139
      %v2141 = vand.u32 %v2140, 4294901760
      %v2142 = vsub.f32 %v2140, %v2141
      %v2143 = vand.u32 %v2142, 4294901760
      %2144 = vmatpush1.msra.mxu0 %v2143
      %2145 = vmatprep.subr.mxu0 0.0
      %v2146 = vand.u32 %v1840, 4294901760
      %v2147 = vsub.f32 %v1840, %v2146
      %v2148 = vand.u32 %v2147, 4294901760
      %v2149 = vsub.f32 %v2147, %v2148
      %v2150 = vand.u32 %v2149, 4294901760
      %2151 = vmatpush1.msra.mxu0 %v2150
      %2152 = vmatprep.subr.mxu0 0.0
      %v2153 = vand.u32 %v1841, 4294901760
      %v2154 = vsub.f32 %v1841, %v2153
      %v2155 = vand.u32 %v2154, 4294901760
      %v2156 = vsub.f32 %v2154, %v2155
      %v2157 = vand.u32 %v2156, 4294901760
      %2158 = vmatpush1.msra.mxu0 %v2157
      %2159 = vmatprep.subr.mxu0 0.0
      %v2160 = vand.u32 %v1842, 4294901760
      %v2161 = vsub.f32 %v1842, %v2160
      %v2162 = vand.u32 %v2161, 4294901760
      %v2163 = vsub.f32 %v2161, %v2162
      %v2164 = vand.u32 %v2163, 4294901760
      %2165 = vmatpush1.msra.mxu0 %v2164
      %2166 = vmatprep.subr.mxu0 0.0
      %v2167 = vand.u32 %v1843, 4294901760
      %v2168 = vsub.f32 %v1843, %v2167
      %v2169 = vand.u32 %v2168, 4294901760
      %v2170 = vsub.f32 %v2168, %v2169
      %v2171 = vand.u32 %v2170, 4294901760
      %2172 = vmatpush1.msra.mxu0 %v2171
      %2173 = vmatprep.subr.mxu0 0.0
      %v2174 = vand.u32 %v1844, 4294901760
      %v2175 = vsub.f32 %v1844, %v2174
      %v2176 = vand.u32 %v2175, 4294901760
      %v2177 = vsub.f32 %v2175, %v2176
      %v2178 = vand.u32 %v2177, 4294901760
      %2179 = vmatpush1.msra.mxu0 %v2178
      %2180 = vmatprep.subr.mxu0 0.0
      %v2181 = vand.u32 %v1845, 4294901760
      %v2182 = vsub.f32 %v1845, %v2181
      %v2183 = vand.u32 %v2182, 4294901760
      %v2184 = vsub.f32 %v2182, %v2183
      %v2185 = vand.u32 %v2184, 4294901760
      %2186 = vmatpush1.msra.mxu0 %v2185
      %2187 = vmatprep.subr.mxu0 0.0
      %v2188 = vand.u32 %v1846, 4294901760
      %v2189 = vsub.f32 %v1846, %v2188
      %v2190 = vand.u32 %v2189, 4294901760
      %v2191 = vsub.f32 %v2189, %v2190
      %v2192 = vand.u32 %v2191, 4294901760
      %2193 = vmatpush1.msra.mxu0 %v2192
      %2194 = vmatprep.subr.mxu0 0.0
      %v2195 = vand.u32 %v1847, 4294901760
      %v2196 = vsub.f32 %v1847, %v2195
      %v2197 = vand.u32 %v2196, 4294901760
      %v2198 = vsub.f32 %v2196, %v2197
      %v2199 = vand.u32 %v2198, 4294901760
      %2200 = vmatpush1.msra.mxu0 %v2199
      %2201 = vmatprep.subr.mxu0 0.0
      %2202 = vmatpush1.msra.mxu0 0.0
      %2203 = vmatprep.subr.mxu0 0.0
      %2204 = vmatpush1.msra.mxu0 0.0
      %2205 = vmatprep.subr.mxu0 0.0
      %2206 = vmatpush1.msra.mxu0 0.0
      %2207 = vmatprep.subr.mxu0 0.0
      %2208 = vmatpush1.msra.mxu0 0.0
      %2209 = vmatprep.subr.mxu0 0.0
      %2210 = vmatpush1.msra.mxu0 0.0
      %2211 = vmatprep.subr.mxu0 0.0
      %2212 = vmatpush1.msra.mxu0 0.0
      %2213 = vmatprep.subr.mxu0 0.0
      %2214 = vmatpush1.msra.mxu0 0.0
      %2215 = vmatprep.subr.mxu0 0.0
      %2216 = vmatpush1.msra.mxu0 0.0
      %2217 = vmatprep.subr.mxu0 0.0
      %2218 = vmatpush1.msra.mxu0 0.0
      %2219 = vmatprep.subr.mxu0 0.0
      %2220 = vmatpush1.msra.mxu0 0.0
      %2221 = vmatprep.subr.mxu0 0.0
      %2222 = vmatpush1.msra.mxu0 0.0
      %2223 = vmatprep.subr.mxu0 0.0
      %2224 = vmatpush1.msra.mxu0 0.0
      %2225 = vmatprep.subr.mxu0 0.0
      %2226 = vmatpush1.msra.mxu0 0.0
      %2227 = vmatprep.subr.mxu0 0.0
      %2228 = vmatpush1.msra.mxu0 0.0
      %2229 = vmatprep.subr.mxu0 0.0
      %2230 = vmatpush1.msra.mxu0 0.0
      %2231 = vmatprep.subr.mxu0 0.0
      %2232 = vmatpush1.msra.mxu0 0.0
      %2233 = vmatprep.mubr.f32.mxu0 0.0
      %v2234 = vand.u32 %v1704, 4294901760
      %2235 = vmatmul.mubr.f32.gmra.mrb[0].mxu0 %v2234
      %v2236 = vpop.f32.mrb[0].mxu0
      %v2237 = vadd.f32 %v1936, %v2236
      %v2238 = vpop.f32.mrb[0].mxu0
      %2239 = vmatprep.mubr.f32.mxu0 0.0
      %v2240 = vand.u32 %v1706, 4294901760
      %2241 = vmatmul.mubr.f32.gmra.mrb[0].mxu0 %v2240
      %v2242 = vpop.f32.mrb[0].mxu0
      %v2243 = vadd.f32 %v1946, %v2242
      %v2244 = vpop.f32.mrb[0].mxu0
      %2245 = vmatprep.mubr.f32.mxu0 0.0
      %v2246 = vand.u32 %v1708, 4294901760
      %2247 = vmatmul.mubr.f32.gmra.mrb[0].mxu0 %v2246
      %v2248 = vpop.f32.mrb[0].mxu0
      %v2249 = vadd.f32 %v1956, %v2248
      %v2250 = vpop.f32.mrb[0].mxu0
      %2251 = vmatprep.mubr.f32.mxu0 0.0
      %v2252 = vand.u32 %v1710, 4294901760
      %2253 = vmatmul.mubr.f32.gmra.mrb[0].mxu0 %v2252
      %v2254 = vpop.f32.mrb[0].mxu0
      %v2255 = vadd.f32 %v1966, %v2254
      %v2256 = vpop.f32.mrb[0].mxu0
      %2257 = vmatprep.mubr.f32.mxu0 0.0
      %v2258 = vand.u32 %v1712, 4294901760
      %2259 = vmatmul.mubr.f32.gmra.mrb[0].mxu0 %v2258
      %v2260 = vpop.f32.mrb[0].mxu0
      %v2261 = vadd.f32 %v1976, %v2260
      %v2262 = vpop.f32.mrb[0].mxu0
      %2263 = vmatprep.mubr.f32.mxu0 0.0
      %v2264 = vand.u32 %v1714, 4294901760
      %2265 = vmatmul.mubr.f32.gmra.mrb[0].mxu0 %v2264
      %v2266 = vpop.f32.mrb[0].mxu0
      %v2267 = vadd.f32 %v1986, %v2266
      %v2268 = vpop.f32.mrb[0].mxu0
      %2269 = vmatprep.mubr.f32.mxu0 0.0
      %v2270 = vand.u32 %v1716, 4294901760
      %2271 = vmatmul.mubr.f32.gmra.mrb[0].mxu0 %v2270
      %v2272 = vpop.f32.mrb[0].mxu0
      %v2273 = vadd.f32 %v1996, %v2272
      %v2274 = vpop.f32.mrb[0].mxu0
      %2275 = vmatprep.mubr.f32.mxu0 0.0
      %v2276 = vand.u32 %v1718, 4294901760
      %2277 = vmatmul.mubr.f32.gmra.mrb[0].mxu0 %v2276
      %v2278 = vpop.f32.mrb[0].mxu0
      %v2279 = vadd.f32 %v2006, %v2278
      %v2280 = vpop.f32.mrb[0].mxu0
      %2281 = vmatprep.mubr.f32.mxu0 0.0
      %v2282 = vand.u32 %v1720, 4294901760
      %2283 = vmatmul.mubr.f32.gmra.mrb[0].mxu0 %v2282
      %v2284 = vpop.f32.mrb[0].mxu0
      %v2285 = vadd.f32 %v2016, %v2284
      %v2286 = vpop.f32.mrb[0].mxu0
      %2287 = vmatprep.mubr.f32.mxu0 0.0
      %v2288 = vand.u32 %v1722, 4294901760
      %2289 = vmatmul.mubr.f32.gmra.mrb[0].mxu0 %v2288
      %v2290 = vpop.f32.mrb[0].mxu0
      %v2291 = vadd.f32 %v2026, %v2290
      %v2292 = vpop.f32.mrb[0].mxu0
      %2293 = vmatprep.mubr.f32.mxu0 0.0
      %v2294 = vand.u32 %v1724, 4294901760
      %2295 = vmatmul.mubr.f32.gmra.mrb[0].mxu0 %v2294
      %v2296 = vpop.f32.mrb[0].mxu0
      %v2297 = vadd.f32 %v2036, %v2296
      %v2298 = vpop.f32.mrb[0].mxu0
      %2299 = vmatprep.mubr.f32.mxu0 0.0
      %v2300 = vand.u32 %v1726, 4294901760
      %2301 = vmatmul.mubr.f32.gmra.mrb[0].mxu0 %v2300
      %v2302 = vpop.f32.mrb[0].mxu0
      %v2303 = vadd.f32 %v2046, %v2302
      %v2304 = vpop.f32.mrb[0].mxu0
      %2305 = vmatprep.mubr.f32.mxu0 0.0
      %v2306 = vand.u32 %v1728, 4294901760
      %2307 = vmatmul.mubr.f32.gmra.mrb[0].mxu0 %v2306
      %v2308 = vpop.f32.mrb[0].mxu0
      %v2309 = vadd.f32 %v2056, %v2308
      %v2310 = vpop.f32.mrb[0].mxu0
      %2311 = vmatprep.mubr.f32.mxu0 0.0
      %v2312 = vand.u32 %v1730, 4294901760
      %2313 = vmatmul.mubr.f32.gmra.mrb[0].mxu0 %v2312
      %v2314 = vpop.f32.mrb[0].mxu0
      %v2315 = vadd.f32 %v2066, %v2314
      %v2316 = vpop.f32.mrb[0].mxu0
      %2317 = vmatprep.mubr.f32.mxu0 0.0
      %v2318 = vand.u32 %v1732, 4294901760
      %2319 = vmatmul.mubr.f32.gmra.mrb[0].mxu0 %v2318
      %v2320 = vpop.f32.mrb[0].mxu0
      %v2321 = vadd.f32 %v2076, %v2320
      %v2322 = vpop.f32.mrb[0].mxu0
      %2323 = vmatprep.mubr.f32.mxu0 0.0
      %v2324 = vand.u32 %v1734, 4294901760
      %2325 = vmatmul.mubr.f32.gmra.mrb[0].mxu0 %v2324
      %v2326 = vpop.f32.mrb[0].mxu0
      %v2327 = vadd.f32 %v2086, %v2326
      %v2328 = vpop.f32.mrb[0].mxu0
      %2329 = vdwg.mxu0
      %2330 = vmatprep.subr.mxu0 0.0
      %v2331 = vand.u32 %v1832, 4294901760
      %v2332 = vsub.f32 %v1832, %v2331
      %2333 = vmatpush1.msra.mxu0 %v2332
      %2334 = vmatprep.subr.mxu0 0.0
      %v2335 = vand.u32 %v1833, 4294901760
      %v2336 = vsub.f32 %v1833, %v2335
      %2337 = vmatpush1.msra.mxu0 %v2336
      %2338 = vmatprep.subr.mxu0 0.0
      %v2339 = vand.u32 %v1834, 4294901760
      %v2340 = vsub.f32 %v1834, %v2339
      %2341 = vmatpush1.msra.mxu0 %v2340
      %2342 = vmatprep.subr.mxu0 0.0
      %v2343 = vand.u32 %v1835, 4294901760
      %v2344 = vsub.f32 %v1835, %v2343
      %2345 = vmatpush1.msra.mxu0 %v2344
      %2346 = vmatprep.subr.mxu0 0.0
      %v2347 = vand.u32 %v1836, 4294901760
      %v2348 = vsub.f32 %v1836, %v2347
      %2349 = vmatpush1.msra.mxu0 %v2348
      %2350 = vmatprep.subr.mxu0 0.0
      %v2351 = vand.u32 %v1837, 4294901760
      %v2352 = vsub.f32 %v1837, %v2351
      %2353 = vmatpush1.msra.mxu0 %v2352
      %2354 = vmatprep.subr.mxu0 0.0
      %v2355 = vand.u32 %v1838, 4294901760
      %v2356 = vsub.f32 %v1838, %v2355
      %2357 = vmatpush1.msra.mxu0 %v2356
      %2358 = vmatprep.subr.mxu0 0.0
      %v2359 = vand.u32 %v1839, 4294901760
      %v2360 = vsub.f32 %v1839, %v2359
      %2361 = vmatpush1.msra.mxu0 %v2360
      %2362 = vmatprep.subr.mxu0 0.0
      %v2363 = vand.u32 %v1840, 4294901760
      %v2364 = vsub.f32 %v1840, %v2363
      %2365 = vmatpush1.msra.mxu0 %v2364
      %2366 = vmatprep.subr.mxu0 0.0
      %v2367 = vand.u32 %v1841, 4294901760
      %v2368 = vsub.f32 %v1841, %v2367
      %2369 = vmatpush1.msra.mxu0 %v2368
      %2370 = vmatprep.subr.mxu0 0.0
      %v2371 = vand.u32 %v1842, 4294901760
      %v2372 = vsub.f32 %v1842, %v2371
      %2373 = vmatpush1.msra.mxu0 %v2372
      %2374 = vmatprep.subr.mxu0 0.0
      %v2375 = vand.u32 %v1843, 4294901760
      %v2376 = vsub.f32 %v1843, %v2375
      %2377 = vmatpush1.msra.mxu0 %v2376
      %2378 = vmatprep.subr.mxu0 0.0
      %v2379 = vand.u32 %v1844, 4294901760
      %v2380 = vsub.f32 %v1844, %v2379
      %2381 = vmatpush1.msra.mxu0 %v2380
      %2382 = vmatprep.subr.mxu0 0.0
      %v2383 = vand.u32 %v1845, 4294901760
      %v2384 = vsub.f32 %v1845, %v2383
      %2385 = vmatpush1.msra.mxu0 %v2384
      %2386 = vmatprep.subr.mxu0 0.0
      %v2387 = vand.u32 %v1846, 4294901760
      %v2388 = vsub.f32 %v1846, %v2387
      %2389 = vmatpush1.msra.mxu0 %v2388
      %2390 = vmatprep.subr.mxu0 0.0
      %v2391 = vand.u32 %v1847, 4294901760
      %v2392 = vsub.f32 %v1847, %v2391
      %2393 = vmatpush1.msra.mxu0 %v2392
      %2394 = vmatprep.subr.mxu0 0.0
      %2395 = vmatpush1.msra.mxu0 0.0
      %2396 = vmatprep.subr.mxu0 0.0
      %2397 = vmatpush1.msra.mxu0 0.0
      %2398 = vmatprep.subr.mxu0 0.0
      %2399 = vmatpush1.msra.mxu0 0.0
      %2400 = vmatprep.subr.mxu0 0.0
      %2401 = vmatpush1.msra.mxu0 0.0
      %2402 = vmatprep.subr.mxu0 0.0
      %2403 = vmatpush1.msra.mxu0 0.0
      %2404 = vmatprep.subr.mxu0 0.0
      %2405 = vmatpush1.msra.mxu0 0.0
      %2406 = vmatprep.subr.mxu0 0.0
      %2407 = vmatpush1.msra.mxu0 0.0
      %2408 = vmatprep.subr.mxu0 0.0
      %2409 = vmatpush1.msra.mxu0 0.0
      %2410 = vmatprep.subr.mxu0 0.0
      %2411 = vmatpush1.msra.mxu0 0.0
      %2412 = vmatprep.subr.mxu0 0.0
      %2413 = vmatpush1.msra.mxu0 0.0
      %2414 = vmatprep.subr.mxu0 0.0
      %2415 = vmatpush1.msra.mxu0 0.0
      %2416 = vmatprep.subr.mxu0 0.0
      %2417 = vmatpush1.msra.mxu0 0.0
      %2418 = vmatprep.subr.mxu0 0.0
      %2419 = vmatpush1.msra.mxu0 0.0
      %2420 = vmatprep.subr.mxu0 0.0
      %2421 = vmatpush1.msra.mxu0 0.0
      %2422 = vmatprep.subr.mxu0 0.0
      %2423 = vmatpush1.msra.mxu0 0.0
      %2424 = vmatprep.subr.mxu0 0.0
      %2425 = vmatpush1.msra.mxu0 0.0
      %2426 = vmatprep.mubr.f32.mxu0 0.0
      %v2427 = vand.u32 %v1704, 4294901760
      %v2428 = vsub.f32 %v1704, %v2427
      %2429 = vmatmul.mubr.f32.gmra.mrb[0].mxu0 %v2428
      %v2430 = vpop.f32.mrb[0].mxu0
      %v2431 = vadd.f32 %v2237, %v2430
      %v2432 = vpop.f32.mrb[0].mxu0
      %2433 = vmatprep.mubr.f32.mxu0 0.0
      %v2434 = vand.u32 %v1706, 4294901760
      %v2435 = vsub.f32 %v1706, %v2434
      %2436 = vmatmul.mubr.f32.gmra.mrb[0].mxu0 %v2435
      %v2437 = vpop.f32.mrb[0].mxu0
      %v2438 = vadd.f32 %v2243, %v2437
      %v2439 = vpop.f32.mrb[0].mxu0
      %2440 = vmatprep.mubr.f32.mxu0 0.0
      %v2441 = vand.u32 %v1708, 4294901760
      %v2442 = vsub.f32 %v1708, %v2441
      %2443 = vmatmul.mubr.f32.gmra.mrb[0].mxu0 %v2442
      %v2444 = vpop.f32.mrb[0].mxu0
      %v2445 = vadd.f32 %v2249, %v2444
      %v2446 = vpop.f32.mrb[0].mxu0
      %2447 = vmatprep.mubr.f32.mxu0 0.0
      %v2448 = vand.u32 %v1710, 4294901760
      %v2449 = vsub.f32 %v1710, %v2448
      %2450 = vmatmul.mubr.f32.gmra.mrb[0].mxu0 %v2449
      %v2451 = vpop.f32.mrb[0].mxu0
      %v2452 = vadd.f32 %v2255, %v2451
      %v2453 = vpop.f32.mrb[0].mxu0
      %2454 = vmatprep.mubr.f32.mxu0 0.0
      %v2455 = vand.u32 %v1712, 4294901760
      %v2456 = vsub.f32 %v1712, %v2455
      %2457 = vmatmul.mubr.f32.gmra.mrb[0].mxu0 %v2456
      %v2458 = vpop.f32.mrb[0].mxu0
      %v2459 = vadd.f32 %v2261, %v2458
      %v2460 = vpop.f32.mrb[0].mxu0
      %2461 = vmatprep.mubr.f32.mxu0 0.0
      %v2462 = vand.u32 %v1714, 4294901760
      %v2463 = vsub.f32 %v1714, %v2462
      %2464 = vmatmul.mubr.f32.gmra.mrb[0].mxu0 %v2463
      %v2465 = vpop.f32.mrb[0].mxu0
      %v2466 = vadd.f32 %v2267, %v2465
      %v2467 = vpop.f32.mrb[0].mxu0
      %2468 = vmatprep.mubr.f32.mxu0 0.0
      %v2469 = vand.u32 %v1716, 4294901760
      %v2470 = vsub.f32 %v1716, %v2469
      %2471 = vmatmul.mubr.f32.gmra.mrb[0].mxu0 %v2470
      %v2472 = vpop.f32.mrb[0].mxu0
      %v2473 = vadd.f32 %v2273, %v2472
      %v2474 = vpop.f32.mrb[0].mxu0
      %2475 = vmatprep.mubr.f32.mxu0 0.0
      %v2476 = vand.u32 %v1718, 4294901760
      %v2477 = vsub.f32 %v1718, %v2476
      %2478 = vmatmul.mubr.f32.gmra.mrb[0].mxu0 %v2477
      %v2479 = vpop.f32.mrb[0].mxu0
      %v2480 = vadd.f32 %v2279, %v2479
      %v2481 = vpop.f32.mrb[0].mxu0
      %2482 = vmatprep.mubr.f32.mxu0 0.0
      %v2483 = vand.u32 %v1720, 4294901760
      %v2484 = vsub.f32 %v1720, %v2483
      %2485 = vmatmul.mubr.f32.gmra.mrb[0].mxu0 %v2484
      %v2486 = vpop.f32.mrb[0].mxu0
      %v2487 = vadd.f32 %v2285, %v2486
      %v2488 = vpop.f32.mrb[0].mxu0
      %2489 = vmatprep.mubr.f32.mxu0 0.0
      %v2490 = vand.u32 %v1722, 4294901760
      %v2491 = vsub.f32 %v1722, %v2490
      %2492 = vmatmul.mubr.f32.gmra.mrb[0].mxu0 %v2491
      %v2493 = vpop.f32.mrb[0].mxu0
      %v2494 = vadd.f32 %v2291, %v2493
      %v2495 = vpop.f32.mrb[0].mxu0
      %2496 = vmatprep.mubr.f32.mxu0 0.0
      %v2497 = vand.u32 %v1724, 4294901760
      %v2498 = vsub.f32 %v1724, %v2497
      %2499 = vmatmul.mubr.f32.gmra.mrb[0].mxu0 %v2498
      %v2500 = vpop.f32.mrb[0].mxu0
      %v2501 = vadd.f32 %v2297, %v2500
      %v2502 = vpop.f32.mrb[0].mxu0
      %2503 = vmatprep.mubr.f32.mxu0 0.0
      %v2504 = vand.u32 %v1726, 4294901760
      %v2505 = vsub.f32 %v1726, %v2504
      %2506 = vmatmul.mubr.f32.gmra.mrb[0].mxu0 %v2505
      %v2507 = vpop.f32.mrb[0].mxu0
      %v2508 = vadd.f32 %v2303, %v2507
      %v2509 = vpop.f32.mrb[0].mxu0
      %2510 = vmatprep.mubr.f32.mxu0 0.0
      %v2511 = vand.u32 %v1728, 4294901760
      %v2512 = vsub.f32 %v1728, %v2511
      %2513 = vmatmul.mubr.f32.gmra.mrb[0].mxu0 %v2512
      %v2514 = vpop.f32.mrb[0].mxu0
      %v2515 = vadd.f32 %v2309, %v2514
      %v2516 = vpop.f32.mrb[0].mxu0
      %2517 = vmatprep.mubr.f32.mxu0 0.0
      %v2518 = vand.u32 %v1730, 4294901760
      %v2519 = vsub.f32 %v1730, %v2518
      %2520 = vmatmul.mubr.f32.gmra.mrb[0].mxu0 %v2519
      %v2521 = vpop.f32.mrb[0].mxu0
      %v2522 = vadd.f32 %v2315, %v2521
      %v2523 = vpop.f32.mrb[0].mxu0
      %2524 = vmatprep.mubr.f32.mxu0 0.0
      %v2525 = vand.u32 %v1732, 4294901760
      %v2526 = vsub.f32 %v1732, %v2525
      %2527 = vmatmul.mubr.f32.gmra.mrb[0].mxu0 %v2526
      %v2528 = vpop.f32.mrb[0].mxu0
      %v2529 = vadd.f32 %v2321, %v2528
      %v2530 = vpop.f32.mrb[0].mxu0
      %2531 = vmatprep.mubr.f32.mxu0 0.0
      %v2532 = vand.u32 %v1734, 4294901760
      %v2533 = vsub.f32 %v1734, %v2532
      %2534 = vmatmul.mubr.f32.gmra.mrb[0].mxu0 %v2533
      %v2535 = vpop.f32.mrb[0].mxu0
      %v2536 = vadd.f32 %v2327, %v2535
      %v2537 = vpop.f32.mrb[0].mxu0
      %2538 = vdwg.mxu0
      %2539 = vmatprep.subr.mxu0 0.0
      %v2540 = vand.u32 %v1832, 4294901760
      %2541 = vmatpush1.msra.mxu0 %v2540
      %2542 = vmatprep.subr.mxu0 0.0
      %v2543 = vand.u32 %v1833, 4294901760
      %2544 = vmatpush1.msra.mxu0 %v2543
      %2545 = vmatprep.subr.mxu0 0.0
      %v2546 = vand.u32 %v1834, 4294901760
      %2547 = vmatpush1.msra.mxu0 %v2546
      %2548 = vmatprep.subr.mxu0 0.0
      %v2549 = vand.u32 %v1835, 4294901760
      %2550 = vmatpush1.msra.mxu0 %v2549
      %2551 = vmatprep.subr.mxu0 0.0
      %v2552 = vand.u32 %v1836, 4294901760
      %2553 = vmatpush1.msra.mxu0 %v2552
      %2554 = vmatprep.subr.mxu0 0.0
      %v2555 = vand.u32 %v1837, 4294901760
      %2556 = vmatpush1.msra.mxu0 %v2555
      %2557 = vmatprep.subr.mxu0 0.0
      %v2558 = vand.u32 %v1838, 4294901760
      %2559 = vmatpush1.msra.mxu0 %v2558
      %2560 = vmatprep.subr.mxu0 0.0
      %v2561 = vand.u32 %v1839, 4294901760
      %2562 = vmatpush1.msra.mxu0 %v2561
      %2563 = vmatprep.subr.mxu0 0.0
      %v2564 = vand.u32 %v1840, 4294901760
      %2565 = vmatpush1.msra.mxu0 %v2564
      %2566 = vmatprep.subr.mxu0 0.0
      %v2567 = vand.u32 %v1841, 4294901760
      %2568 = vmatpush1.msra.mxu0 %v2567
      %2569 = vmatprep.subr.mxu0 0.0
      %v2570 = vand.u32 %v1842, 4294901760
      %2571 = vmatpush1.msra.mxu0 %v2570
      %2572 = vmatprep.subr.mxu0 0.0
      %v2573 = vand.u32 %v1843, 4294901760
      %2574 = vmatpush1.msra.mxu0 %v2573
      %2575 = vmatprep.subr.mxu0 0.0
      %v2576 = vand.u32 %v1844, 4294901760
      %2577 = vmatpush1.msra.mxu0 %v2576
      %2578 = vmatprep.subr.mxu0 0.0
      %v2579 = vand.u32 %v1845, 4294901760
      %2580 = vmatpush1.msra.mxu0 %v2579
      %2581 = vmatprep.subr.mxu0 0.0
      %v2582 = vand.u32 %v1846, 4294901760
      %2583 = vmatpush1.msra.mxu0 %v2582
      %2584 = vmatprep.subr.mxu0 0.0
      %v2585 = vand.u32 %v1847, 4294901760
      %2586 = vmatpush1.msra.mxu0 %v2585
      %2587 = vmatprep.subr.mxu0 0.0
      %2588 = vmatpush1.msra.mxu0 0.0
      %2589 = vmatprep.subr.mxu0 0.0
      %2590 = vmatpush1.msra.mxu0 0.0
      %2591 = vmatprep.subr.mxu0 0.0
      %2592 = vmatpush1.msra.mxu0 0.0
      %2593 = vmatprep.subr.mxu0 0.0
      %2594 = vmatpush1.msra.mxu0 0.0
      %2595 = vmatprep.subr.mxu0 0.0
      %2596 = vmatpush1.msra.mxu0 0.0
      %2597 = vmatprep.subr.mxu0 0.0
      %2598 = vmatpush1.msra.mxu0 0.0
      %2599 = vmatprep.subr.mxu0 0.0
      %2600 = vmatpush1.msra.mxu0 0.0
      %2601 = vmatprep.subr.mxu0 0.0
      %2602 = vmatpush1.msra.mxu0 0.0
      %2603 = vmatprep.subr.mxu0 0.0
      %2604 = vmatpush1.msra.mxu0 0.0
      %2605 = vmatprep.subr.mxu0 0.0
      %2606 = vmatpush1.msra.mxu0 0.0
      %2607 = vmatprep.subr.mxu0 0.0
      %2608 = vmatpush1.msra.mxu0 0.0
      %2609 = vmatprep.subr.mxu0 0.0
      %2610 = vmatpush1.msra.mxu0 0.0
      %2611 = vmatprep.subr.mxu0 0.0
      %2612 = vmatpush1.msra.mxu0 0.0
      %2613 = vmatprep.subr.mxu0 0.0
      %2614 = vmatpush1.msra.mxu0 0.0
      %2615 = vmatprep.subr.mxu0 0.0
      %2616 = vmatpush1.msra.mxu0 0.0
      %2617 = vmatprep.subr.mxu0 0.0
      %2618 = vmatpush1.msra.mxu0 0.0
      %2619 = vmatprep.mubr.f32.mxu0 0.0
      %v2620 = vand.u32 %v1704, 4294901760
      %v2621 = vsub.f32 %v1704, %v2620
      %v2622 = vand.u32 %v2621, 4294901760
      %2623 = vmatmul.mubr.f32.gmra.mrb[0].mxu0 %v2622
      %v2624 = vpop.f32.mrb[0].mxu0
      %v2625 = vadd.f32 %v2431, %v2624
      %v2626 = vpop.f32.mrb[0].mxu0
      %2627 = vmatprep.mubr.f32.mxu0 0.0
      %v2628 = vand.u32 %v1706, 4294901760
      %v2629 = vsub.f32 %v1706, %v2628
      %v2630 = vand.u32 %v2629, 4294901760
      %2631 = vmatmul.mubr.f32.gmra.mrb[0].mxu0 %v2630
      %v2632 = vpop.f32.mrb[0].mxu0
      %v2633 = vadd.f32 %v2438, %v2632
      %v2634 = vpop.f32.mrb[0].mxu0
      %2635 = vmatprep.mubr.f32.mxu0 0.0
      %v2636 = vand.u32 %v1708, 4294901760
      %v2637 = vsub.f32 %v1708, %v2636
      %v2638 = vand.u32 %v2637, 4294901760
      %2639 = vmatmul.mubr.f32.gmra.mrb[0].mxu0 %v2638
      %v2640 = vpop.f32.mrb[0].mxu0
      %v2641 = vadd.f32 %v2445, %v2640
      %v2642 = vpop.f32.mrb[0].mxu0
      %2643 = vmatprep.mubr.f32.mxu0 0.0
      %v2644 = vand.u32 %v1710, 4294901760
      %v2645 = vsub.f32 %v1710, %v2644
      %v2646 = vand.u32 %v2645, 4294901760
      %2647 = vmatmul.mubr.f32.gmra.mrb[0].mxu0 %v2646
      %v2648 = vpop.f32.mrb[0].mxu0
      %v2649 = vadd.f32 %v2452, %v2648
      %v2650 = vpop.f32.mrb[0].mxu0
      %2651 = vmatprep.mubr.f32.mxu0 0.0
      %v2652 = vand.u32 %v1712, 4294901760
      %v2653 = vsub.f32 %v1712, %v2652
      %v2654 = vand.u32 %v2653, 4294901760
      %2655 = vmatmul.mubr.f32.gmra.mrb[0].mxu0 %v2654
      %v2656 = vpop.f32.mrb[0].mxu0
      %v2657 = vadd.f32 %v2459, %v2656
      %v2658 = vpop.f32.mrb[0].mxu0
      %2659 = vmatprep.mubr.f32.mxu0 0.0
      %v2660 = vand.u32 %v1714, 4294901760
      %v2661 = vsub.f32 %v1714, %v2660
      %v2662 = vand.u32 %v2661, 4294901760
      %2663 = vmatmul.mubr.f32.gmra.mrb[0].mxu0 %v2662
      %v2664 = vpop.f32.mrb[0].mxu0
      %v2665 = vadd.f32 %v2466, %v2664
      %v2666 = vpop.f32.mrb[0].mxu0
      %2667 = vmatprep.mubr.f32.mxu0 0.0
      %v2668 = vand.u32 %v1716, 4294901760
      %v2669 = vsub.f32 %v1716, %v2668
      %v2670 = vand.u32 %v2669, 4294901760
      %2671 = vmatmul.mubr.f32.gmra.mrb[0].mxu0 %v2670
      %v2672 = vpop.f32.mrb[0].mxu0
      %v2673 = vadd.f32 %v2473, %v2672
      %v2674 = vpop.f32.mrb[0].mxu0
      %2675 = vmatprep.mubr.f32.mxu0 0.0
      %v2676 = vand.u32 %v1718, 4294901760
      %v2677 = vsub.f32 %v1718, %v2676
      %v2678 = vand.u32 %v2677, 4294901760
      %2679 = vmatmul.mubr.f32.gmra.mrb[0].mxu0 %v2678
      %v2680 = vpop.f32.mrb[0].mxu0
      %v2681 = vadd.f32 %v2480, %v2680
      %v2682 = vpop.f32.mrb[0].mxu0
      %2683 = vmatprep.mubr.f32.mxu0 0.0
      %v2684 = vand.u32 %v1720, 4294901760
      %v2685 = vsub.f32 %v1720, %v2684
      %v2686 = vand.u32 %v2685, 4294901760
      %2687 = vmatmul.mubr.f32.gmra.mrb[0].mxu0 %v2686
      %v2688 = vpop.f32.mrb[0].mxu0
      %v2689 = vadd.f32 %v2487, %v2688
      %v2690 = vpop.f32.mrb[0].mxu0
      %2691 = vmatprep.mubr.f32.mxu0 0.0
      %v2692 = vand.u32 %v1722, 4294901760
      %v2693 = vsub.f32 %v1722, %v2692
      %v2694 = vand.u32 %v2693, 4294901760
      %2695 = vmatmul.mubr.f32.gmra.mrb[0].mxu0 %v2694
      %v2696 = vpop.f32.mrb[0].mxu0
      %v2697 = vadd.f32 %v2494, %v2696
      %v2698 = vpop.f32.mrb[0].mxu0
      %2699 = vmatprep.mubr.f32.mxu0 0.0
      %v2700 = vand.u32 %v1724, 4294901760
      %v2701 = vsub.f32 %v1724, %v2700
      %v2702 = vand.u32 %v2701, 4294901760
      %2703 = vmatmul.mubr.f32.gmra.mrb[0].mxu0 %v2702
      %v2704 = vpop.f32.mrb[0].mxu0
      %v2705 = vadd.f32 %v2501, %v2704
      %v2706 = vpop.f32.mrb[0].mxu0
      %2707 = vmatprep.mubr.f32.mxu0 0.0
      %v2708 = vand.u32 %v1726, 4294901760
      %v2709 = vsub.f32 %v1726, %v2708
      %v2710 = vand.u32 %v2709, 4294901760
      %2711 = vmatmul.mubr.f32.gmra.mrb[0].mxu0 %v2710
      %v2712 = vpop.f32.mrb[0].mxu0
      %v2713 = vadd.f32 %v2508, %v2712
      %v2714 = vpop.f32.mrb[0].mxu0
      %2715 = vmatprep.mubr.f32.mxu0 0.0
      %v2716 = vand.u32 %v1728, 4294901760
      %v2717 = vsub.f32 %v1728, %v2716
      %v2718 = vand.u32 %v2717, 4294901760
      %2719 = vmatmul.mubr.f32.gmra.mrb[0].mxu0 %v2718
      %v2720 = vpop.f32.mrb[0].mxu0
      %v2721 = vadd.f32 %v2515, %v2720
      %v2722 = vpop.f32.mrb[0].mxu0
      %2723 = vmatprep.mubr.f32.mxu0 0.0
      %v2724 = vand.u32 %v1730, 4294901760
      %v2725 = vsub.f32 %v1730, %v2724
      %v2726 = vand.u32 %v2725, 4294901760
      %2727 = vmatmul.mubr.f32.gmra.mrb[0].mxu0 %v2726
      %v2728 = vpop.f32.mrb[0].mxu0
      %v2729 = vadd.f32 %v2522, %v2728
      %v2730 = vpop.f32.mrb[0].mxu0
      %2731 = vmatprep.mubr.f32.mxu0 0.0
      %v2732 = vand.u32 %v1732, 4294901760
      %v2733 = vsub.f32 %v1732, %v2732
      %v2734 = vand.u32 %v2733, 4294901760
      %2735 = vmatmul.mubr.f32.gmra.mrb[0].mxu0 %v2734
      %v2736 = vpop.f32.mrb[0].mxu0
      %v2737 = vadd.f32 %v2529, %v2736
      %v2738 = vpop.f32.mrb[0].mxu0
      %2739 = vmatprep.mubr.f32.mxu0 0.0
      %v2740 = vand.u32 %v1734, 4294901760
      %v2741 = vsub.f32 %v1734, %v2740
      %v2742 = vand.u32 %v2741, 4294901760
      %2743 = vmatmul.mubr.f32.gmra.mrb[0].mxu0 %v2742
      %v2744 = vpop.f32.mrb[0].mxu0
      %v2745 = vadd.f32 %v2536, %v2744
      %v2746 = vpop.f32.mrb[0].mxu0
      %2747 = vdwg.mxu0
      %2748 = vmatprep.subr.mxu0 0.0
      %v2749 = vand.u32 %v1832, 4294901760
      %v2750 = vsub.f32 %v1832, %v2749
      %v2751 = vand.u32 %v2750, 4294901760
      %2752 = vmatpush1.msra.mxu0 %v2751
      %2753 = vmatprep.subr.mxu0 0.0
      %v2754 = vand.u32 %v1833, 4294901760
      %v2755 = vsub.f32 %v1833, %v2754
      %v2756 = vand.u32 %v2755, 4294901760
      %2757 = vmatpush1.msra.mxu0 %v2756
      %2758 = vmatprep.subr.mxu0 0.0
      %v2759 = vand.u32 %v1834, 4294901760
      %v2760 = vsub.f32 %v1834, %v2759
      %v2761 = vand.u32 %v2760, 4294901760
      %2762 = vmatpush1.msra.mxu0 %v2761
      %2763 = vmatprep.subr.mxu0 0.0
      %v2764 = vand.u32 %v1835, 4294901760
      %v2765 = vsub.f32 %v1835, %v2764
      %v2766 = vand.u32 %v2765, 4294901760
      %2767 = vmatpush1.msra.mxu0 %v2766
      %2768 = vmatprep.subr.mxu0 0.0
      %v2769 = vand.u32 %v1836, 4294901760
      %v2770 = vsub.f32 %v1836, %v2769
      %v2771 = vand.u32 %v2770, 4294901760
      %2772 = vmatpush1.msra.mxu0 %v2771
      %2773 = vmatprep.subr.mxu0 0.0
      %v2774 = vand.u32 %v1837, 4294901760
      %v2775 = vsub.f32 %v1837, %v2774
      %v2776 = vand.u32 %v2775, 4294901760
      %2777 = vmatpush1.msra.mxu0 %v2776
      %2778 = vmatprep.subr.mxu0 0.0
      %v2779 = vand.u32 %v1838, 4294901760
      %v2780 = vsub.f32 %v1838, %v2779
      %v2781 = vand.u32 %v2780, 4294901760
      %2782 = vmatpush1.msra.mxu0 %v2781
      %2783 = vmatprep.subr.mxu0 0.0
      %v2784 = vand.u32 %v1839, 4294901760
      %v2785 = vsub.f32 %v1839, %v2784
      %v2786 = vand.u32 %v2785, 4294901760
      %2787 = vmatpush1.msra.mxu0 %v2786
      %2788 = vmatprep.subr.mxu0 0.0
      %v2789 = vand.u32 %v1840, 4294901760
      %v2790 = vsub.f32 %v1840, %v2789
      %v2791 = vand.u32 %v2790, 4294901760
      %2792 = vmatpush1.msra.mxu0 %v2791
      %2793 = vmatprep.subr.mxu0 0.0
      %v2794 = vand.u32 %v1841, 4294901760
      %v2795 = vsub.f32 %v1841, %v2794
      %v2796 = vand.u32 %v2795, 4294901760
      %2797 = vmatpush1.msra.mxu0 %v2796
      %2798 = vmatprep.subr.mxu0 0.0
      %v2799 = vand.u32 %v1842, 4294901760
      %v2800 = vsub.f32 %v1842, %v2799
      %v2801 = vand.u32 %v2800, 4294901760
      %2802 = vmatpush1.msra.mxu0 %v2801
      %2803 = vmatprep.subr.mxu0 0.0
      %v2804 = vand.u32 %v1843, 4294901760
      %v2805 = vsub.f32 %v1843, %v2804
      %v2806 = vand.u32 %v2805, 4294901760
      %2807 = vmatpush1.msra.mxu0 %v2806
      %2808 = vmatprep.subr.mxu0 0.0
      %v2809 = vand.u32 %v1844, 4294901760
      %v2810 = vsub.f32 %v1844, %v2809
      %v2811 = vand.u32 %v2810, 4294901760
      %2812 = vmatpush1.msra.mxu0 %v2811
      %2813 = vmatprep.subr.mxu0 0.0
      %v2814 = vand.u32 %v1845, 4294901760
      %v2815 = vsub.f32 %v1845, %v2814
      %v2816 = vand.u32 %v2815, 4294901760
      %2817 = vmatpush1.msra.mxu0 %v2816
      %2818 = vmatprep.subr.mxu0 0.0
      %v2819 = vand.u32 %v1846, 4294901760
      %v2820 = vsub.f32 %v1846, %v2819
      %v2821 = vand.u32 %v2820, 4294901760
      %2822 = vmatpush1.msra.mxu0 %v2821
      %2823 = vmatprep.subr.mxu0 0.0
      %v2824 = vand.u32 %v1847, 4294901760
      %v2825 = vsub.f32 %v1847, %v2824
      %v2826 = vand.u32 %v2825, 4294901760
      %2827 = vmatpush1.msra.mxu0 %v2826
      %2828 = vmatprep.subr.mxu0 0.0
      %2829 = vmatpush1.msra.mxu0 0.0
      %2830 = vmatprep.subr.mxu0 0.0
      %2831 = vmatpush1.msra.mxu0 0.0
      %2832 = vmatprep.subr.mxu0 0.0
      %2833 = vmatpush1.msra.mxu0 0.0
      %2834 = vmatprep.subr.mxu0 0.0
      %2835 = vmatpush1.msra.mxu0 0.0
      %2836 = vmatprep.subr.mxu0 0.0
      %2837 = vmatpush1.msra.mxu0 0.0
      %2838 = vmatprep.subr.mxu0 0.0
      %2839 = vmatpush1.msra.mxu0 0.0
      %2840 = vmatprep.subr.mxu0 0.0
      %2841 = vmatpush1.msra.mxu0 0.0
      %2842 = vmatprep.subr.mxu0 0.0
      %2843 = vmatpush1.msra.mxu0 0.0
      %2844 = vmatprep.subr.mxu0 0.0
      %2845 = vmatpush1.msra.mxu0 0.0
      %2846 = vmatprep.subr.mxu0 0.0
      %2847 = vmatpush1.msra.mxu0 0.0
      %2848 = vmatprep.subr.mxu0 0.0
      %2849 = vmatpush1.msra.mxu0 0.0
      %2850 = vmatprep.subr.mxu0 0.0
      %2851 = vmatpush1.msra.mxu0 0.0
      %2852 = vmatprep.subr.mxu0 0.0
      %2853 = vmatpush1.msra.mxu0 0.0
      %2854 = vmatprep.subr.mxu0 0.0
      %2855 = vmatpush1.msra.mxu0 0.0
      %2856 = vmatprep.subr.mxu0 0.0
      %2857 = vmatpush1.msra.mxu0 0.0
      %2858 = vmatprep.subr.mxu0 0.0
      %2859 = vmatpush1.msra.mxu0 0.0
      %2860 = vmatprep.mubr.f32.mxu0 0.0
      %v2861 = vand.u32 %v1704, 4294901760
      %2862 = vmatmul.mubr.f32.gmra.mrb[0].mxu0 %v2861
      %v2863 = vpop.f32.mrb[0].mxu0
      %v2864 = vadd.f32 %v2625, %v2863
      %v2865 = vpop.f32.mrb[0].mxu0
      %2866 = vmatprep.mubr.f32.mxu0 0.0
      %v2867 = vand.u32 %v1706, 4294901760
      %2868 = vmatmul.mubr.f32.gmra.mrb[0].mxu0 %v2867
      %v2869 = vpop.f32.mrb[0].mxu0
      %v2870 = vadd.f32 %v2633, %v2869
      %v2871 = vpop.f32.mrb[0].mxu0
      %2872 = vmatprep.mubr.f32.mxu0 0.0
      %v2873 = vand.u32 %v1708, 4294901760
      %2874 = vmatmul.mubr.f32.gmra.mrb[0].mxu0 %v2873
      %v2875 = vpop.f32.mrb[0].mxu0
      %v2876 = vadd.f32 %v2641, %v2875
      %v2877 = vpop.f32.mrb[0].mxu0
      %2878 = vmatprep.mubr.f32.mxu0 0.0
      %v2879 = vand.u32 %v1710, 4294901760
      %2880 = vmatmul.mubr.f32.gmra.mrb[0].mxu0 %v2879
      %v2881 = vpop.f32.mrb[0].mxu0
      %v2882 = vadd.f32 %v2649, %v2881
      %v2883 = vpop.f32.mrb[0].mxu0
      %2884 = vmatprep.mubr.f32.mxu0 0.0
      %v2885 = vand.u32 %v1712, 4294901760
      %2886 = vmatmul.mubr.f32.gmra.mrb[0].mxu0 %v2885
      %v2887 = vpop.f32.mrb[0].mxu0
      %v2888 = vadd.f32 %v2657, %v2887
      %v2889 = vpop.f32.mrb[0].mxu0
      %2890 = vmatprep.mubr.f32.mxu0 0.0
      %v2891 = vand.u32 %v1714, 4294901760
      %2892 = vmatmul.mubr.f32.gmra.mrb[0].mxu0 %v2891
      %v2893 = vpop.f32.mrb[0].mxu0
      %v2894 = vadd.f32 %v2665, %v2893
      %v2895 = vpop.f32.mrb[0].mxu0
      %2896 = vmatprep.mubr.f32.mxu0 0.0
      %v2897 = vand.u32 %v1716, 4294901760
      %2898 = vmatmul.mubr.f32.gmra.mrb[0].mxu0 %v2897
      %v2899 = vpop.f32.mrb[0].mxu0
      %v2900 = vadd.f32 %v2673, %v2899
      %v2901 = vpop.f32.mrb[0].mxu0
      %2902 = vmatprep.mubr.f32.mxu0 0.0
      %v2903 = vand.u32 %v1718, 4294901760
      %2904 = vmatmul.mubr.f32.gmra.mrb[0].mxu0 %v2903
      %v2905 = vpop.f32.mrb[0].mxu0
      %v2906 = vadd.f32 %v2681, %v2905
      %v2907 = vpop.f32.mrb[0].mxu0
      %2908 = vmatprep.mubr.f32.mxu0 0.0
      %v2909 = vand.u32 %v1720, 4294901760
      %2910 = vmatmul.mubr.f32.gmra.mrb[0].mxu0 %v2909
      %v2911 = vpop.f32.mrb[0].mxu0
      %v2912 = vadd.f32 %v2689, %v2911
      %v2913 = vpop.f32.mrb[0].mxu0
      %2914 = vmatprep.mubr.f32.mxu0 0.0
      %v2915 = vand.u32 %v1722, 4294901760
      %2916 = vmatmul.mubr.f32.gmra.mrb[0].mxu0 %v2915
      %v2917 = vpop.f32.mrb[0].mxu0
      %v2918 = vadd.f32 %v2697, %v2917
      %v2919 = vpop.f32.mrb[0].mxu0
      %2920 = vmatprep.mubr.f32.mxu0 0.0
      %v2921 = vand.u32 %v1724, 4294901760
      %2922 = vmatmul.mubr.f32.gmra.mrb[0].mxu0 %v2921
      %v2923 = vpop.f32.mrb[0].mxu0
      %v2924 = vadd.f32 %v2705, %v2923
      %v2925 = vpop.f32.mrb[0].mxu0
      %2926 = vmatprep.mubr.f32.mxu0 0.0
      %v2927 = vand.u32 %v1726, 4294901760
      %2928 = vmatmul.mubr.f32.gmra.mrb[0].mxu0 %v2927
      %v2929 = vpop.f32.mrb[0].mxu0
      %v2930 = vadd.f32 %v2713, %v2929
      %v2931 = vpop.f32.mrb[0].mxu0
      %2932 = vmatprep.mubr.f32.mxu0 0.0
      %v2933 = vand.u32 %v1728, 4294901760
      %2934 = vmatmul.mubr.f32.gmra.mrb[0].mxu0 %v2933
      %v2935 = vpop.f32.mrb[0].mxu0
      %v2936 = vadd.f32 %v2721, %v2935
      %v2937 = vpop.f32.mrb[0].mxu0
      %2938 = vmatprep.mubr.f32.mxu0 0.0
      %v2939 = vand.u32 %v1730, 4294901760
      %2940 = vmatmul.mubr.f32.gmra.mrb[0].mxu0 %v2939
      %v2941 = vpop.f32.mrb[0].mxu0
      %v2942 = vadd.f32 %v2729, %v2941
      %v2943 = vpop.f32.mrb[0].mxu0
      %2944 = vmatprep.mubr.f32.mxu0 0.0
      %v2945 = vand.u32 %v1732, 4294901760
      %2946 = vmatmul.mubr.f32.gmra.mrb[0].mxu0 %v2945
      %v2947 = vpop.f32.mrb[0].mxu0
      %v2948 = vadd.f32 %v2737, %v2947
      %v2949 = vpop.f32.mrb[0].mxu0
      %2950 = vmatprep.mubr.f32.mxu0 0.0
      %v2951 = vand.u32 %v1734, 4294901760
      %2952 = vmatmul.mubr.f32.gmra.mrb[0].mxu0 %v2951
      %v2953 = vpop.f32.mrb[0].mxu0
      %v2954 = vadd.f32 %v2745, %v2953
      %v2955 = vpop.f32.mrb[0].mxu0
      %2956 = vdwg.mxu0
      %2957 = vmatprep.subr.mxu0 0.0
      %v2958 = vand.u32 %v1832, 4294901760
      %2959 = vmatpush1.msra.mxu0 %v2958
      %2960 = vmatprep.subr.mxu0 0.0
      %v2961 = vand.u32 %v1833, 4294901760
      %2962 = vmatpush1.msra.mxu0 %v2961
      %2963 = vmatprep.subr.mxu0 0.0
      %v2964 = vand.u32 %v1834, 4294901760
      %2965 = vmatpush1.msra.mxu0 %v2964
      %2966 = vmatprep.subr.mxu0 0.0
      %v2967 = vand.u32 %v1835, 4294901760
      %2968 = vmatpush1.msra.mxu0 %v2967
      %2969 = vmatprep.subr.mxu0 0.0
      %v2970 = vand.u32 %v1836, 4294901760
      %2971 = vmatpush1.msra.mxu0 %v2970
      %2972 = vmatprep.subr.mxu0 0.0
      %v2973 = vand.u32 %v1837, 4294901760
      %2974 = vmatpush1.msra.mxu0 %v2973
      %2975 = vmatprep.subr.mxu0 0.0
      %v2976 = vand.u32 %v1838, 4294901760
      %2977 = vmatpush1.msra.mxu0 %v2976
      %2978 = vmatprep.subr.mxu0 0.0
      %v2979 = vand.u32 %v1839, 4294901760
      %2980 = vmatpush1.msra.mxu0 %v2979
      %2981 = vmatprep.subr.mxu0 0.0
      %v2982 = vand.u32 %v1840, 4294901760
      %2983 = vmatpush1.msra.mxu0 %v2982
      %2984 = vmatprep.subr.mxu0 0.0
      %v2985 = vand.u32 %v1841, 4294901760
      %2986 = vmatpush1.msra.mxu0 %v2985
      %2987 = vmatprep.subr.mxu0 0.0
      %v2988 = vand.u32 %v1842, 4294901760
      %2989 = vmatpush1.msra.mxu0 %v2988
      %2990 = vmatprep.subr.mxu0 0.0
      %v2991 = vand.u32 %v1843, 4294901760
      %2992 = vmatpush1.msra.mxu0 %v2991
      %2993 = vmatprep.subr.mxu0 0.0
      %v2994 = vand.u32 %v1844, 4294901760
      %2995 = vmatpush1.msra.mxu0 %v2994
      %2996 = vmatprep.subr.mxu0 0.0
      %v2997 = vand.u32 %v1845, 4294901760
      %2998 = vmatpush1.msra.mxu0 %v2997
      %2999 = vmatprep.subr.mxu0 0.0
      %v3000 = vand.u32 %v1846, 4294901760
      %3001 = vmatpush1.msra.mxu0 %v3000
      %3002 = vmatprep.subr.mxu0 0.0
      %v3003 = vand.u32 %v1847, 4294901760
      %3004 = vmatpush1.msra.mxu0 %v3003
      %3005 = vmatprep.subr.mxu0 0.0
      %3006 = vmatpush1.msra.mxu0 0.0
      %3007 = vmatprep.subr.mxu0 0.0
      %3008 = vmatpush1.msra.mxu0 0.0
      %3009 = vmatprep.subr.mxu0 0.0
      %3010 = vmatpush1.msra.mxu0 0.0
      %3011 = vmatprep.subr.mxu0 0.0
      %3012 = vmatpush1.msra.mxu0 0.0
      %3013 = vmatprep.subr.mxu0 0.0
      %3014 = vmatpush1.msra.mxu0 0.0
      %3015 = vmatprep.subr.mxu0 0.0
      %3016 = vmatpush1.msra.mxu0 0.0
      %3017 = vmatprep.subr.mxu0 0.0
      %3018 = vmatpush1.msra.mxu0 0.0
      %3019 = vmatprep.subr.mxu0 0.0
      %3020 = vmatpush1.msra.mxu0 0.0
      %3021 = vmatprep.subr.mxu0 0.0
      %3022 = vmatpush1.msra.mxu0 0.0
      %3023 = vmatprep.subr.mxu0 0.0
      %3024 = vmatpush1.msra.mxu0 0.0
      %3025 = vmatprep.subr.mxu0 0.0
      %3026 = vmatpush1.msra.mxu0 0.0
      %3027 = vmatprep.subr.mxu0 0.0
      %3028 = vmatpush1.msra.mxu0 0.0
      %3029 = vmatprep.subr.mxu0 0.0
      %3030 = vmatpush1.msra.mxu0 0.0
      %3031 = vmatprep.subr.mxu0 0.0
      %3032 = vmatpush1.msra.mxu0 0.0
      %3033 = vmatprep.subr.mxu0 0.0
      %3034 = vmatpush1.msra.mxu0 0.0
      %3035 = vmatprep.subr.mxu0 0.0
      %3036 = vmatpush1.msra.mxu0 0.0
      %3037 = vmatprep.mubr.f32.mxu0 0.0
      %v3038 = vand.u32 %v1704, 4294901760
      %3039 = vmatmul.mubr.f32.gmra.mrb[0].mxu0 %v3038
      %v3040 = vpop.f32.mrb[0].mxu0
      %v3041 = vadd.f32 %v2864, %v3040
      %v3042 = vpop.f32.mrb[0].mxu0
      %3043 = vmatprep.mubr.f32.mxu0 0.0
      %v3044 = vand.u32 %v1706, 4294901760
      %3045 = vmatmul.mubr.f32.gmra.mrb[0].mxu0 %v3044
      %v3046 = vpop.f32.mrb[0].mxu0
      %v3047 = vadd.f32 %v2870, %v3046
      %v3048 = vpop.f32.mrb[0].mxu0
      %3049 = vmatprep.mubr.f32.mxu0 0.0
      %v3050 = vand.u32 %v1708, 4294901760
      %3051 = vmatmul.mubr.f32.gmra.mrb[0].mxu0 %v3050
      %v3052 = vpop.f32.mrb[0].mxu0
      %v3053 = vadd.f32 %v2876, %v3052
      %v3054 = vpop.f32.mrb[0].mxu0
      %3055 = vmatprep.mubr.f32.mxu0 0.0
      %v3056 = vand.u32 %v1710, 4294901760
      %3057 = vmatmul.mubr.f32.gmra.mrb[0].mxu0 %v3056
      %v3058 = vpop.f32.mrb[0].mxu0
      %v3059 = vadd.f32 %v2882, %v3058
      %v3060 = vpop.f32.mrb[0].mxu0
      %3061 = vmatprep.mubr.f32.mxu0 0.0
      %v3062 = vand.u32 %v1712, 4294901760
      %3063 = vmatmul.mubr.f32.gmra.mrb[0].mxu0 %v3062
      %v3064 = vpop.f32.mrb[0].mxu0
      %v3065 = vadd.f32 %v2888, %v3064
      %v3066 = vpop.f32.mrb[0].mxu0
      %3067 = vmatprep.mubr.f32.mxu0 0.0
      %v3068 = vand.u32 %v1714, 4294901760
      %3069 = vmatmul.mubr.f32.gmra.mrb[0].mxu0 %v3068
      %v3070 = vpop.f32.mrb[0].mxu0
      %v3071 = vadd.f32 %v2894, %v3070
      %v3072 = vpop.f32.mrb[0].mxu0
      %3073 = vmatprep.mubr.f32.mxu0 0.0
      %v3074 = vand.u32 %v1716, 4294901760
      %3075 = vmatmul.mubr.f32.gmra.mrb[0].mxu0 %v3074
      %v3076 = vpop.f32.mrb[0].mxu0
      %v3077 = vadd.f32 %v2900, %v3076
      %v3078 = vpop.f32.mrb[0].mxu0
      %3079 = vmatprep.mubr.f32.mxu0 0.0
      %v3080 = vand.u32 %v1718, 4294901760
      %3081 = vmatmul.mubr.f32.gmra.mrb[0].mxu0 %v3080
      %v3082 = vpop.f32.mrb[0].mxu0
      %v3083 = vadd.f32 %v2906, %v3082
      %v3084 = vpop.f32.mrb[0].mxu0
      %3085 = vmatprep.mubr.f32.mxu0 0.0
      %v3086 = vand.u32 %v1720, 4294901760
      %3087 = vmatmul.mubr.f32.gmra.mrb[0].mxu0 %v3086
      %v3088 = vpop.f32.mrb[0].mxu0
      %v3089 = vadd.f32 %v2912, %v3088
      %v3090 = vpop.f32.mrb[0].mxu0
      %3091 = vmatprep.mubr.f32.mxu0 0.0
      %v3092 = vand.u32 %v1722, 4294901760
      %3093 = vmatmul.mubr.f32.gmra.mrb[0].mxu0 %v3092
      %v3094 = vpop.f32.mrb[0].mxu0
      %v3095 = vadd.f32 %v2918, %v3094
      %v3096 = vpop.f32.mrb[0].mxu0
      %3097 = vmatprep.mubr.f32.mxu0 0.0
      %v3098 = vand.u32 %v1724, 4294901760
      %3099 = vmatmul.mubr.f32.gmra.mrb[0].mxu0 %v3098
      %v3100 = vpop.f32.mrb[0].mxu0
      %v3101 = vadd.f32 %v2924, %v3100
      %v3102 = vpop.f32.mrb[0].mxu0
      %3103 = vmatprep.mubr.f32.mxu0 0.0
      %v3104 = vand.u32 %v1726, 4294901760
      %3105 = vmatmul.mubr.f32.gmra.mrb[0].mxu0 %v3104
      %v3106 = vpop.f32.mrb[0].mxu0
      %v3107 = vadd.f32 %v2930, %v3106
      %v3108 = vpop.f32.mrb[0].mxu0
      %3109 = vmatprep.mubr.f32.mxu0 0.0
      %v3110 = vand.u32 %v1728, 4294901760
      %3111 = vmatmul.mubr.f32.gmra.mrb[0].mxu0 %v3110
      %v3112 = vpop.f32.mrb[0].mxu0
      %v3113 = vadd.f32 %v2936, %v3112
      %v3114 = vpop.f32.mrb[0].mxu0
      %3115 = vmatprep.mubr.f32.mxu0 0.0
      %v3116 = vand.u32 %v1730, 4294901760
      %3117 = vmatmul.mubr.f32.gmra.mrb[0].mxu0 %v3116
      %v3118 = vpop.f32.mrb[0].mxu0
      %v3119 = vadd.f32 %v2942, %v3118
      %v3120 = vpop.f32.mrb[0].mxu0
      %3121 = vmatprep.mubr.f32.mxu0 0.0
      %v3122 = vand.u32 %v1732, 4294901760
      %3123 = vmatmul.mubr.f32.gmra.mrb[0].mxu0 %v3122
      %v3124 = vpop.f32.mrb[0].mxu0
      %v3125 = vadd.f32 %v2948, %v3124
      %v3126 = vpop.f32.mrb[0].mxu0
      %3127 = vmatprep.mubr.f32.mxu0 0.0
      %v3128 = vand.u32 %v1734, 4294901760
      %3129 = vmatmul.mubr.f32.gmra.mrb[0].mxu0 %v3128
      %v3130 = vpop.f32.mrb[0].mxu0
      %v3131 = vadd.f32 %v2954, %v3130
      %v3132 = vpop.f32.mrb[0].mxu0
      %3133 = vdwg.mxu0
      %v3134 = vld [vmem:[#allocation4] sm:$0xff]
      %v3135 = vld [vmem:[#allocation4 + $0x8] sm:$0xff]
      %v3136 = vld [vmem:[#allocation4 + $0x10] sm:$0xff]
      %v3137 = vld [vmem:[#allocation4 + $0x18] sm:$0xff]
      %v3138 = vld [vmem:[#allocation4 + $0x20] sm:$0xff]
      %v3139 = vld [vmem:[#allocation4 + $0x28] sm:$0xff]
      %v3140 = vld [vmem:[#allocation4 + $0x30] sm:$0xff]
      %v3141 = vld [vmem:[#allocation4 + $0x38] sm:$0xff]
      %v3142 = vld [vmem:[#allocation4 + $0x40] sm:$0xff]
      %v3143 = vld [vmem:[#allocation4 + $0x48] sm:$0xff]
      %v3144 = vld [vmem:[#allocation4 + $0x50] sm:$0xff]
      %v3145 = vld [vmem:[#allocation4 + $0x58] sm:$0xff]
      %v3146 = vld [vmem:[#allocation4 + $0x60] sm:$0xff]
      %v3147 = vld [vmem:[#allocation4 + $0x68] sm:$0xff]
      %v3148 = vld [vmem:[#allocation4 + $0x70] sm:$0xff]
      %v3149 = vld [vmem:[#allocation4 + $0x78] sm:$0xff]
      %3151 = vset.pattern.permute.xlu0 0
      %3152 = vperm.xlu0 %3151, %v1576
      %v3153 = vpop.permute.xlu0 %3152
      %3156 = vset.pattern.permute.xlu0 0
      %3157 = vperm.xlu0 %3156, %v1578
      %v3158 = vpop.permute.xlu0 %3157
      %3161 = vset.pattern.permute.xlu0 0
      %3162 = vperm.xlu0 %3161, %v1580
      %v3163 = vpop.permute.xlu0 %3162
      %3166 = vset.pattern.permute.xlu0 0
      %3167 = vperm.xlu0 %3166, %v1582
      %v3168 = vpop.permute.xlu0 %3167
      %3171 = vset.pattern.permute.xlu0 0
      %3172 = vperm.xlu0 %3171, %v1584
      %v3173 = vpop.permute.xlu0 %3172
      %3176 = vset.pattern.permute.xlu0 0
      %3177 = vperm.xlu0 %3176, %v1586
      %v3178 = vpop.permute.xlu0 %3177
      %3181 = vset.pattern.permute.xlu0 0
      %3182 = vperm.xlu0 %3181, %v1588
      %v3183 = vpop.permute.xlu0 %3182
      %3186 = vset.pattern.permute.xlu0 0
      %3187 = vperm.xlu0 %3186, %v1590
      %v3188 = vpop.permute.xlu0 %3187
      %3191 = vset.pattern.permute.xlu0 0
      %3192 = vperm.xlu0 %3191, %v1592
      %v3193 = vpop.permute.xlu0 %3192
      %3196 = vset.pattern.permute.xlu0 0
      %3197 = vperm.xlu0 %3196, %v1594
      %v3198 = vpop.permute.xlu0 %3197
      %3201 = vset.pattern.permute.xlu0 0
      %3202 = vperm.xlu0 %3201, %v1596
      %v3203 = vpop.permute.xlu0 %3202
      %3206 = vset.pattern.permute.xlu0 0
      %3207 = vperm.xlu0 %3206, %v1598
      %v3208 = vpop.permute.xlu0 %3207
      %3211 = vset.pattern.permute.xlu0 0
      %3212 = vperm.xlu0 %3211, %v1600
      %v3213 = vpop.permute.xlu0 %3212
      %3216 = vset.pattern.permute.xlu0 0
      %3217 = vperm.xlu0 %3216, %v1602
      %v3218 = vpop.permute.xlu0 %3217
      %3221 = vset.pattern.permute.xlu0 0
      %3222 = vperm.xlu0 %3221, %v1604
      %v3223 = vpop.permute.xlu0 %3222
      %3226 = vset.pattern.permute.xlu0 0
      %3227 = vperm.xlu0 %3226, %v1606
      %v3228 = vpop.permute.xlu0 %3227
      %v3230 = vmul.f32 %v3153, %v3134
      %v3231 = vmul.f32 %v3158, %v3135
      %v3232 = vmul.f32 %v3163, %v3136
      %v3233 = vmul.f32 %v3168, %v3137
      %v3234 = vmul.f32 %v3173, %v3138
      %v3235 = vmul.f32 %v3178, %v3139
      %v3236 = vmul.f32 %v3183, %v3140
      %v3237 = vmul.f32 %v3188, %v3141
      %v3238 = vmul.f32 %v3193, %v3142
      %v3239 = vmul.f32 %v3198, %v3143
      %v3240 = vmul.f32 %v3203, %v3144
      %v3241 = vmul.f32 %v3208, %v3145
      %v3242 = vmul.f32 %v3213, %v3146
      %v3243 = vmul.f32 %v3218, %v3147
      %v3244 = vmul.f32 %v3223, %v3148
      %v3245 = vmul.f32 %v3228, %v3149
      %v3246 = vadd.f32 %v3230, %v3041
      %v3247 = vadd.f32 %v3231, %v3047
      %v3248 = vadd.f32 %v3232, %v3053
      %v3249 = vadd.f32 %v3233, %v3059
      %v3250 = vadd.f32 %v3234, %v3065
      %v3251 = vadd.f32 %v3235, %v3071
      %v3252 = vadd.f32 %v3236, %v3077
      %v3253 = vadd.f32 %v3237, %v3083
      %v3254 = vadd.f32 %v3238, %v3089
      %v3255 = vadd.f32 %v3239, %v3095
      %v3256 = vadd.f32 %v3240, %v3101
      %v3257 = vadd.f32 %v3241, %v3107
      %v3258 = vadd.f32 %v3242, %v3113
      %v3259 = vadd.f32 %v3243, %v3119
      %v3260 = vadd.f32 %v3244, %v3125
      %v3261 = vadd.f32 %v3245, %v3131
      %3262 = vst.msk [vmem:[#allocation4] sm:$0xff] %vm355, %v3246
      %3263 = vst.msk [vmem:[#allocation4 + $0x8] sm:$0xff] %vm355, %v3247
      %3264 = vst.msk [vmem:[#allocation4 + $0x10] sm:$0xff] %vm355, %v3248
      %3265 = vst.msk [vmem:[#allocation4 + $0x18] sm:$0xff] %vm355, %v3249
      %3266 = vst.msk [vmem:[#allocation4 + $0x20] sm:$0xff] %vm355, %v3250
      %3267 = vst.msk [vmem:[#allocation4 + $0x28] sm:$0xff] %vm355, %v3251
      %3268 = vst.msk [vmem:[#allocation4 + $0x30] sm:$0xff] %vm355, %v3252
      %3269 = vst.msk [vmem:[#allocation4 + $0x38] sm:$0xff] %vm355, %v3253
      %3270 = vst.msk [vmem:[#allocation4 + $0x40] sm:$0xff] %vm355, %v3254
      %3271 = vst.msk [vmem:[#allocation4 + $0x48] sm:$0xff] %vm355, %v3255
      %3272 = vst.msk [vmem:[#allocation4 + $0x50] sm:$0xff] %vm355, %v3256
      %3273 = vst.msk [vmem:[#allocation4 + $0x58] sm:$0xff] %vm355, %v3257
      %3274 = vst.msk [vmem:[#allocation4 + $0x60] sm:$0xff] %vm355, %v3258
      %3275 = vst.msk [vmem:[#allocation4 + $0x68] sm:$0xff] %vm355, %v3259
      %3276 = vst.msk [vmem:[#allocation4 + $0x70] sm:$0xff] %vm355, %v3260
      %3277 = vst.msk [vmem:[#allocation4 + $0x78] sm:$0xff] %vm355, %v3261
      %3278 = vst.msk [vmem:[#allocation2] sm:$0xff] %vm1815, %v1543
      %3279 = vst.msk [vmem:[#allocation2 + $0x8] sm:$0xff] %vm1815, %v1544
      %3280 = vst.msk [vmem:[#allocation2 + $0x10] sm:$0xff] %vm1815, %v1545
      %3281 = vst.msk [vmem:[#allocation2 + $0x18] sm:$0xff] %vm1815, %v1546
      %3282 = vst.msk [vmem:[#allocation2 + $0x20] sm:$0xff] %vm1815, %v1547
      %3283 = vst.msk [vmem:[#allocation2 + $0x28] sm:$0xff] %vm1815, %v1548
      %3284 = vst.msk [vmem:[#allocation2 + $0x30] sm:$0xff] %vm1815, %v1549
      %3285 = vst.msk [vmem:[#allocation2 + $0x38] sm:$0xff] %vm1815, %v1550
      %3286 = vst.msk [vmem:[#allocation2 + $0x40] sm:$0xff] %vm1815, %v1551
      %3287 = vst.msk [vmem:[#allocation2 + $0x48] sm:$0xff] %vm1815, %v1552
      %3288 = vst.msk [vmem:[#allocation2 + $0x50] sm:$0xff] %vm1815, %v1553
      %3289 = vst.msk [vmem:[#allocation2 + $0x58] sm:$0xff] %vm1815, %v1554
      %3290 = vst.msk [vmem:[#allocation2 + $0x60] sm:$0xff] %vm1815, %v1555
      %3291 = vst.msk [vmem:[#allocation2 + $0x68] sm:$0xff] %vm1815, %v1556
      %3292 = vst.msk [vmem:[#allocation2 + $0x70] sm:$0xff] %vm1815, %v1557
      %3293 = vst.msk [vmem:[#allocation2 + $0x78] sm:$0xff] %vm1815, %v1558
      %p3294 = scmp.eq.s32.totalorder %s21, 1
      // Predicated region
      $region37: #{pam_forward.5} parent=31 // pred_check
        %p3295 = pneg %p3294
      $region38: #{pam_forward.5} parent=31 // pred_check_branch
        %3297 = sbr.rel (%p3295) target = $region40
      $region39: #{pam_forward.5} parent=31 // pred_region
        %v3298 = vld [vmem:[#allocation4] sm:$0xff]
        %v3299 = vld [vmem:[#allocation4 + $0x8] sm:$0xff]
        %v3300 = vld [vmem:[#allocation4 + $0x10] sm:$0xff]
        %v3301 = vld [vmem:[#allocation4 + $0x18] sm:$0xff]
        %v3302 = vld [vmem:[#allocation4 + $0x20] sm:$0xff]
        %v3303 = vld [vmem:[#allocation4 + $0x28] sm:$0xff]
        %v3304 = vld [vmem:[#allocation4 + $0x30] sm:$0xff]
        %v3305 = vld [vmem:[#allocation4 + $0x38] sm:$0xff]
        %v3306 = vld [vmem:[#allocation4 + $0x40] sm:$0xff]
        %v3307 = vld [vmem:[#allocation4 + $0x48] sm:$0xff]
        %v3308 = vld [vmem:[#allocation4 + $0x50] sm:$0xff]
        %v3309 = vld [vmem:[#allocation4 + $0x58] sm:$0xff]
        %v3310 = vld [vmem:[#allocation4 + $0x60] sm:$0xff]
        %v3311 = vld [vmem:[#allocation4 + $0x68] sm:$0xff]
        %v3312 = vld [vmem:[#allocation4 + $0x70] sm:$0xff]
        %v3313 = vld [vmem:[#allocation4 + $0x78] sm:$0xff]
        %v3314 = vld [vmem:[#allocation3] sm:$0xff]
        %v3315 = vld [vmem:[#allocation3 + $0x8] sm:$0xff]
        %v3316 = vld [vmem:[#allocation3 + $0x10] sm:$0xff]
        %v3317 = vld [vmem:[#allocation3 + $0x18] sm:$0xff]
        %v3318 = vld [vmem:[#allocation3 + $0x20] sm:$0xff]
        %v3319 = vld [vmem:[#allocation3 + $0x28] sm:$0xff]
        %v3320 = vld [vmem:[#allocation3 + $0x30] sm:$0xff]
        %v3321 = vld [vmem:[#allocation3 + $0x38] sm:$0xff]
        %v3322 = vld [vmem:[#allocation3 + $0x40] sm:$0xff]
        %v3323 = vld [vmem:[#allocation3 + $0x48] sm:$0xff]
        %v3324 = vld [vmem:[#allocation3 + $0x50] sm:$0xff]
        %v3325 = vld [vmem:[#allocation3 + $0x58] sm:$0xff]
        %v3326 = vld [vmem:[#allocation3 + $0x60] sm:$0xff]
        %v3327 = vld [vmem:[#allocation3 + $0x68] sm:$0xff]
        %v3328 = vld [vmem:[#allocation3 + $0x70] sm:$0xff]
        %v3329 = vld [vmem:[#allocation3 + $0x78] sm:$0xff]
        %3331 = vset.pattern.permute.xlu0 0
        %3332 = vperm.xlu0 %3331, %v3314
        %v3333 = vpop.permute.xlu0 %3332
        %3336 = vset.pattern.permute.xlu0 0
        %3337 = vperm.xlu0 %3336, %v3315
        %v3338 = vpop.permute.xlu0 %3337
        %3341 = vset.pattern.permute.xlu0 0
        %3342 = vperm.xlu0 %3341, %v3316
        %v3343 = vpop.permute.xlu0 %3342
        %3346 = vset.pattern.permute.xlu0 0
        %3347 = vperm.xlu0 %3346, %v3317
        %v3348 = vpop.permute.xlu0 %3347
        %3351 = vset.pattern.permute.xlu0 0
        %3352 = vperm.xlu0 %3351, %v3318
        %v3353 = vpop.permute.xlu0 %3352
        %3356 = vset.pattern.permute.xlu0 0
        %3357 = vperm.xlu0 %3356, %v3319
        %v3358 = vpop.permute.xlu0 %3357
        %3361 = vset.pattern.permute.xlu0 0
        %3362 = vperm.xlu0 %3361, %v3320
        %v3363 = vpop.permute.xlu0 %3362
        %3366 = vset.pattern.permute.xlu0 0
        %3367 = vperm.xlu0 %3366, %v3321
        %v3368 = vpop.permute.xlu0 %3367
        %3371 = vset.pattern.permute.xlu0 0
        %3372 = vperm.xlu0 %3371, %v3322
        %v3373 = vpop.permute.xlu0 %3372
        %3376 = vset.pattern.permute.xlu0 0
        %3377 = vperm.xlu0 %3376, %v3323
        %v3378 = vpop.permute.xlu0 %3377
        %3381 = vset.pattern.permute.xlu0 0
        %3382 = vperm.xlu0 %3381, %v3324
        %v3383 = vpop.permute.xlu0 %3382
        %3386 = vset.pattern.permute.xlu0 0
        %3387 = vperm.xlu0 %3386, %v3325
        %v3388 = vpop.permute.xlu0 %3387
        %3391 = vset.pattern.permute.xlu0 0
        %3392 = vperm.xlu0 %3391, %v3326
        %v3393 = vpop.permute.xlu0 %3392
        %3396 = vset.pattern.permute.xlu0 0
        %3397 = vperm.xlu0 %3396, %v3327
        %v3398 = vpop.permute.xlu0 %3397
        %3401 = vset.pattern.permute.xlu0 0
        %3402 = vperm.xlu0 %3401, %v3328
        %v3403 = vpop.permute.xlu0 %3402
        %3406 = vset.pattern.permute.xlu0 0
        %3407 = vperm.xlu0 %3406, %v3329
        %v3408 = vpop.permute.xlu0 %3407
        %v3410 = vrcp.pop %v3333
        %v3411 = vmul.f32 %v3298, %v3410
        %v3412 = vrcp.pop %v3338
        %v3413 = vmul.f32 %v3299, %v3412
        %v3414 = vrcp.pop %v3343
        %v3415 = vmul.f32 %v3300, %v3414
        %v3416 = vrcp.pop %v3348
        %v3417 = vmul.f32 %v3301, %v3416
        %v3418 = vrcp.pop %v3353
        %v3419 = vmul.f32 %v3302, %v3418
        %v3420 = vrcp.pop %v3358
        %v3421 = vmul.f32 %v3303, %v3420
        %v3422 = vrcp.pop %v3363
        %v3423 = vmul.f32 %v3304, %v3422
        %v3424 = vrcp.pop %v3368
        %v3425 = vmul.f32 %v3305, %v3424
        %v3426 = vrcp.pop %v3373
        %v3427 = vmul.f32 %v3306, %v3426
        %v3428 = vrcp.pop %v3378
        %v3429 = vmul.f32 %v3307, %v3428
        %v3430 = vrcp.pop %v3383
        %v3431 = vmul.f32 %v3308, %v3430
        %v3432 = vrcp.pop %v3388
        %v3433 = vmul.f32 %v3309, %v3432
        %v3434 = vrcp.pop %v3393
        %v3435 = vmul.f32 %v3310, %v3434
        %v3436 = vrcp.pop %v3398
        %v3437 = vmul.f32 %v3311, %v3436
        %v3438 = vrcp.pop %v3403
        %v3439 = vmul.f32 %v3312, %v3438
        %v3440 = vrcp.pop %v3408
        %v3441 = vmul.f32 %v3313, %v3440
        %3442 = vst.msk [vmem:[%s282] sm:$0xff] %vm355, %v3411
        %3443 = vst.msk [vmem:[%s282 + $0x8] sm:$0xff] %vm355, %v3413
        %3444 = vst.msk [vmem:[%s282 + $0x10] sm:$0xff] %vm355, %v3415
        %3445 = vst.msk [vmem:[%s282 + $0x18] sm:$0xff] %vm355, %v3417
        %3446 = vst.msk [vmem:[%s282 + $0x20] sm:$0xff] %vm355, %v3419
        %3447 = vst.msk [vmem:[%s282 + $0x28] sm:$0xff] %vm355, %v3421
        %3448 = vst.msk [vmem:[%s282 + $0x30] sm:$0xff] %vm355, %v3423
        %3449 = vst.msk [vmem:[%s282 + $0x38] sm:$0xff] %vm355, %v3425
        %3450 = vst.msk [vmem:[%s282 + $0x40] sm:$0xff] %vm355, %v3427
        %3451 = vst.msk [vmem:[%s282 + $0x48] sm:$0xff] %vm355, %v3429
        %3452 = vst.msk [vmem:[%s282 + $0x50] sm:$0xff] %vm355, %v3431
        %3453 = vst.msk [vmem:[%s282 + $0x58] sm:$0xff] %vm355, %v3433
        %3454 = vst.msk [vmem:[%s282 + $0x60] sm:$0xff] %vm355, %v3435
        %3455 = vst.msk [vmem:[%s282 + $0x68] sm:$0xff] %vm355, %v3437
        %3456 = vst.msk [vmem:[%s282 + $0x70] sm:$0xff] %vm355, %v3439
        %3457 = vst.msk [vmem:[%s282 + $0x78] sm:$0xff] %vm355, %v3441
      $region40: #{pam_forward.5} parent=31 // pred_fallthru
        _
      %s3458 = smul.u32 16, %s20
      %p3459 = scmp.lt.s32.totalorder %s19, 1
      %s3460 = scalar_select %p3459, %s19, 1
      %p3461 = scmp.lt.s32.totalorder %s3458, 31
      %s3462 = scalar_select %p3461, %s3458, 31
      %s3463 = smul.addr %s3460, 32
      %s3464 = sadd.s32 %s3462, %s3463
      %s3465 = smul.addr %s3464, 8
      %s3466 = scalar_lea.vmem %s3, %s3465
      // Predicated region
      $region41: #{pam_forward.5} parent=31 // pred_check
        %p3467 = pneg %p137
      $region42: #{pam_forward.5} parent=31 // pred_check_branch
        %3469 = sbr.rel (%p3467) target = $region44
      $region43: #{pam_forward.5} parent=31 // pred_region
        %s3470 = smul.u32 16, %s20
      $region44: #{pam_forward.5} parent=31 // pred_fallthru
        _
    $region32: #{pam_forward.5} parent=5 // pred_fallthru
      _
    %p3471 = scmp.le.s32.totalorder 2, %s9
    // Predicated region
    $region45: #{pam_forward.5} parent=5 // pred_check
      %p3472 = pneg %p3471
    $region46: #{pam_forward.5} parent=5 // pred_check_branch
      %3474 = sbr.rel (%p3472) target = $region48
    $region47: #{pam_forward.5} parent=5 // pred_region
      %s3475 = ssub.s32 %s9, 2
      // Predicated region
      $region49: #{pam_forward.5} parent=47 // pred_check
        %p3476 = pneg %p143
      $region50: #{pam_forward.5} parent=47 // pred_check_branch
        %3478 = sbr.rel (%p3476) target = $region52
      $region51: #{pam_forward.5} parent=47 // pred_region
        %s3479 = smul.u32 16, %s23
        %p3480 = scmp.lt.s32.totalorder %s22, 1
        %s3481 = scalar_select %p3480, %s22, 1
        %p3482 = scmp.lt.s32.totalorder %s3479, 31
        %s3483 = scalar_select %p3482, %s3479, 31
        %s3484 = smul.addr %s3481, 32
        %s3485 = sadd.s32 %s3483, %s3484
        %s3486 = smul.addr %s3485, 8
        %s3487 = scalar_lea.vmem %s3, %s3486
      $region52: #{pam_forward.5} parent=47 // pred_fallthru
        _
    $region48: #{pam_forward.5} parent=5 // pred_fallthru
      _
  $region6: #{pam_forward.5} parent=0 // loop_footer
    %s13 = sadd.s32 1, %s9
  $region7: #{pam_forward.5} parent=0 // loop_footer_branch
    %8 = sbr.rel target = $region3
  $region8: #{pam_forward.5} parent=0 // loop_exit
    _

// kernel: pam_forward.6
$region0: #{pam_forward.6}
  #allocation0 [shape = 'u32[]', space=smem, size = 0x4, offset = 0x4, fixed_abs, tag = 'smem constant byte address 0x4 - core index']
  #allocation1 [shape = 'u32[144,128]{1,0:T(1,128)}', space=vmem, size = 0x12000, scoped, tag = 'internal scratch']
  %s0 = inlined_call_operand.vmem [shape: f32[2,8,256], index: 0, kind: input, shape index: {}]
  %s1 = inlined_call_operand.vmem [shape: f32[16,8], index: 1, kind: input, shape index: {}]
  %s2 = inlined_call_operand.vmem [shape: f32[16,1], index: 2, kind: input, shape index: {}]
  %s3 = inlined_call_operand.vmem [shape: f32[2,2,16,128], index: 3, kind: output, shape index: {0}]
  %s4 = inlined_call_operand.vmem [shape: f32[2,2,16,128], index: 4, kind: output, shape index: {1}]
  %5 = xla_tuple %s3, %s4
  %s6 = sld [smem:[#allocation0]]
  $region57: #{pam_forward.6} parent=0
    _
  %s8 = ssub.s32 1, %s6
  %s9 = scalar_select 0, %s8, %s6
  loop: start=0, step=1, limit=6
  $region2: #{pam_forward.6} parent=0 // loop_pre_header
    _
  $region3: #{pam_forward.6} parent=0 // loop_header
    %s11 = sphi 0, %s15
    %p12 = scmp.ge.s32.totalorder %s11, 6
    %s18 = sphi 0, %s37
    %s19 = sphi 0, %s33
    %s20 = sphi 0, %s29
    %s21 = sphi 0, %s18
    %s22 = sphi 0, %s19
    %s23 = sphi 0, %s20
    %s24 = sphi 0, %s21
    %s25 = sphi 0, %s22
    %s26 = sphi 0, %s23
    %s44 = sphi 0, %s46
    %s47 = sphi 0, %s44
    %s48 = sphi 0, %s47
    %s64 = sphi 0, %s48
    %s68 = sphi 0, %s68
    %s70 = sphi 0, %s68
    %s71 = sphi 0, %s70
    %s85 = sphi 0, %s71
    %s89 = sphi 0, %s89
    %s91 = sphi 0, %s89
    %s92 = sphi 0, %s91
    %s106 = sphi 0, %s92
    %s114 = sphi 0, %s116
    %s117 = sphi 0, %s114
    %s118 = sphi 0, %s117
    %s134 = sphi 0, %s118
    %s142 = sphi 0, %s144
    %s145 = sphi 0, %s142
    %s146 = sphi 0, %s145
    %s162 = sphi 0, %s146
  $region4: #{pam_forward.6} parent=0 // loop_header_branch
    %14 = sbr.rel (%p12) target = $region8
  $region5: #{pam_forward.6} parent=0 // loop_body
    %s16 = ssub.s32 %s11, 1
    %s17 = ssub.s32 %s11, 2
    %s27 = sadd.s32 1, %s20
    %p28 = scmp.ge.s32.totalorder %s27, 1
    %s29 = scalar_select %p28, 0, %s27
    %s30 = sadd.s32 1, %s19
    %s31 = scalar_select %p28, %s30, %s19
    %p32 = scmp.ge.s32.totalorder %s31, 2
    %s33 = scalar_select %p32, 0, %s31
    %s34 = sadd.s32 1, %s18
    %s35 = scalar_select %p32, %s34, %s18
    %p36 = scmp.ge.s32.totalorder %s35, 2
    %s37 = scalar_select %p36, 0, %s35
    %s38 = sadd.s32 %s19, %s20
    %s39 = sadd.s32 %s33, %s29
    %s40 = ssub.s32 %s18, %s37
    %s41 = ssub.s32 %s38, %s39
    %s42 = sor.u32 %s40, %s41
    %p43 = scmp.eq.s32.totalorder %s42, 0
    %s45 = sadd.s32 %s44, 1
    %s46 = scalar_select %p43, %s44, %s45
    %p49 = pneg %p43
    %p50 = scmp.eq.s32.totalorder %s11, 3
    %p51 = por %p49, %p50
    %p52 = scmp.ne.s32.totalorder %s44, %s47
    %p53 = scmp.eq.s32.totalorder %s11, 0
    %p54 = por %p52, %p53
    %p55 = scmp.ne.s32.totalorder %s44, %s47
    %p56 = scmp.eq.s32.totalorder %s16, 3
    %p57 = por %p55, %p56
    %p58 = scmp.ne.s32.totalorder %s47, %s48
    %p59 = scmp.eq.s32.totalorder %s16, 0
    %p60 = por %p58, %p59
    %p61 = scmp.ne.s32.totalorder %s47, %s48
    %p62 = scmp.eq.s32.totalorder %s17, 3
    %p63 = por %p61, %p62
    %p65 = scmp.ne.s32.totalorder %s48, %s64
    %p66 = scmp.eq.s32.totalorder %s17, 0
    %p67 = por %p65, %p66
    %s69 = sadd.s32 %s68, 1
    %p72 = scmp.eq.s32.totalorder %s11, 3
    %p73 = scmp.ne.s32.totalorder %s68, %s70
    %p74 = scmp.eq.s32.totalorder %s11, 0
    %p75 = por %p73, %p74
    %p76 = scmp.ne.s32.totalorder %s68, %s70
    %p77 = scmp.eq.s32.totalorder %s16, 3
    %p78 = por %p76, %p77
    %p79 = scmp.ne.s32.totalorder %s70, %s71
    %p80 = scmp.eq.s32.totalorder %s16, 0
    %p81 = por %p79, %p80
    %p82 = scmp.ne.s32.totalorder %s70, %s71
    %p83 = scmp.eq.s32.totalorder %s17, 3
    %p84 = por %p82, %p83
    %p86 = scmp.ne.s32.totalorder %s71, %s85
    %p87 = scmp.eq.s32.totalorder %s17, 0
    %p88 = por %p86, %p87
    %s90 = sadd.s32 %s89, 1
    %p93 = scmp.eq.s32.totalorder %s11, 3
    %p94 = scmp.ne.s32.totalorder %s89, %s91
    %p95 = scmp.eq.s32.totalorder %s11, 0
    %p96 = por %p94, %p95
    %p97 = scmp.ne.s32.totalorder %s89, %s91
    %p98 = scmp.eq.s32.totalorder %s16, 3
    %p99 = por %p97, %p98
    %p100 = scmp.ne.s32.totalorder %s91, %s92
    %p101 = scmp.eq.s32.totalorder %s16, 0
    %p102 = por %p100, %p101
    %p103 = scmp.ne.s32.totalorder %s91, %s92
    %p104 = scmp.eq.s32.totalorder %s17, 3
    %p105 = por %p103, %p104
    %p107 = scmp.ne.s32.totalorder %s92, %s106
    %p108 = scmp.eq.s32.totalorder %s17, 0
    %p109 = por %p107, %p108
    %s110 = ssub.s32 %s18, %s37
    %s111 = ssub.s32 %s19, %s33
    %s112 = sor.u32 %s110, %s111
    %p113 = scmp.eq.s32.totalorder %s112, 0
    %s115 = sadd.s32 %s114, 1
    %s116 = scalar_select %p113, %s114, %s115
    %p119 = pneg %p113
    %p120 = scmp.eq.s32.totalorder %s11, 3
    %p121 = por %p119, %p120
    %p122 = scmp.ne.s32.totalorder %s114, %s117
    %p123 = scmp.eq.s32.totalorder %s11, 0
    %p124 = por %p122, %p123
    %p125 = scmp.ne.s32.totalorder %s114, %s117
    %p126 = scmp.eq.s32.totalorder %s16, 3
    %p127 = por %p125, %p126
    %p128 = scmp.ne.s32.totalorder %s117, %s118
    %p129 = scmp.eq.s32.totalorder %s16, 0
    %p130 = por %p128, %p129
    %p131 = scmp.ne.s32.totalorder %s117, %s118
    %p132 = scmp.eq.s32.totalorder %s17, 3
    %p133 = por %p131, %p132
    %p135 = scmp.ne.s32.totalorder %s118, %s134
    %p136 = scmp.eq.s32.totalorder %s17, 0
    %p137 = por %p135, %p136
    %s138 = ssub.s32 %s18, %s37
    %s139 = ssub.s32 %s19, %s33
    %s140 = sor.u32 %s138, %s139
    %p141 = scmp.eq.s32.totalorder %s140, 0
    %s143 = sadd.s32 %s142, 1
    %s144 = scalar_select %p141, %s142, %s143
    %p147 = pneg %p141
    %p148 = scmp.eq.s32.totalorder %s11, 3
    %p149 = por %p147, %p148
    %p150 = scmp.ne.s32.totalorder %s142, %s145
    %p151 = scmp.eq.s32.totalorder %s11, 0
    %p152 = por %p150, %p151
    %p153 = scmp.ne.s32.totalorder %s142, %s145
    %p154 = scmp.eq.s32.totalorder %s16, 3
    %p155 = por %p153, %p154
    %p156 = scmp.ne.s32.totalorder %s145, %s146
    %p157 = scmp.eq.s32.totalorder %s16, 0
    %p158 = por %p156, %p157
    %p159 = scmp.ne.s32.totalorder %s145, %s146
    %p160 = scmp.eq.s32.totalorder %s17, 3
    %p161 = por %p159, %p160
    %p163 = scmp.ne.s32.totalorder %s146, %s162
    %p164 = scmp.eq.s32.totalorder %s17, 0
    %p165 = por %p163, %p164
    %p166 = scmp.le.s32.totalorder 1, %s11
    %p167 = scmp.lt.s32.totalorder %s11, 5
    %p168 = pnand %p166, %p167
    %p169 = pneg %p168
    // Predicated region
    $region9: #{pam_forward.6} parent=5 // pred_check
      _
    $region10: #{pam_forward.6} parent=5 // pred_check_branch
      %171 = sbr.rel (%p168) target = $region12
    $region11: #{pam_forward.6} parent=5 // pred_region
      %s172 = ssub.s32 %s11, 1
      // Predicated region
      $region13: #{pam_forward.6} parent=11 // pred_check
        %p173 = pneg %p81
      $region14: #{pam_forward.6} parent=11 // pred_check_branch
        %175 = sbr.rel (%p173) target = $region16
      $region15: #{pam_forward.6} parent=11 // pred_region
        _
      $region16: #{pam_forward.6} parent=11 // pred_fallthru
        _
      // Predicated region
      $region17: #{pam_forward.6} parent=11 // pred_check
        %p176 = pneg %p102
      $region18: #{pam_forward.6} parent=11 // pred_check_branch
        %178 = sbr.rel (%p176) target = $region20
      $region19: #{pam_forward.6} parent=11 // pred_region
        _
      $region20: #{pam_forward.6} parent=11 // pred_fallthru
        _
    $region12: #{pam_forward.6} parent=5 // pred_fallthru
      _
    %p179 = scmp.lt.s32.totalorder %s11, 4
    // Predicated region
    $region21: #{pam_forward.6} parent=5 // pred_check
      %p180 = pneg %p179
    $region22: #{pam_forward.6} parent=5 // pred_check_branch
      %182 = sbr.rel (%p180) target = $region24
    $region23: #{pam_forward.6} parent=5 // pred_region
      // Predicated region
      $region25: #{pam_forward.6} parent=23 // pred_check
        %p183 = pneg %p54
      $region26: #{pam_forward.6} parent=23 // pred_check_branch
        %185 = sbr.rel (%p183) target = $region28
      $region27: #{pam_forward.6} parent=23 // pred_region
        %s186 = sadd.s32 %s19, %s20
        %p187 = scmp.lt.s32.totalorder %s18, 1
        %s188 = scalar_select %p187, %s18, 1
        %p189 = scmp.lt.s32.totalorder %s186, 1
        %s190 = scalar_select %p189, %s186, 1
        %s191 = smul.addr %s188, 2
        %s192 = sadd.s32 %s190, %s191
        %s193 = smul.addr %s192, 8
        %s194 = scalar_lea.vmem %s0, %s193
        %s195 = sadd.s32 %s19, %s20
      $region28: #{pam_forward.6} parent=23 // pred_fallthru
        _
    $region24: #{pam_forward.6} parent=5 // pred_fallthru
      _
    %p196 = scmp.le.s32.totalorder 1, %s11
    %p197 = scmp.lt.s32.totalorder %s11, 5
    %p198 = pnand %p196, %p197
    %p199 = pneg %p198
    // Predicated region
    $region29: #{pam_forward.6} parent=5 // pred_check
      _
    $region30: #{pam_forward.6} parent=5 // pred_check_branch
      %201 = sbr.rel (%p198) target = $region32
    $region31: #{pam_forward.6} parent=5 // pred_region
      %s202 = ssub.s32 %s11, 1
      %s203 = sadd.s32 %s22, %s23
      %p204 = scmp.lt.s32.totalorder %s21, 1
      %s205 = scalar_select %p204, %s21, 1
      %p206 = scmp.lt.s32.totalorder %s203, 1
      %s207 = scalar_select %p206, %s203, 1
      %s208 = smul.addr %s205, 2
      %s209 = sadd.s32 %s207, %s208
      %s210 = smul.addr %s209, 8
      %s211 = scalar_lea.vmem %s0, %s210
      %p212 = pneg %p60
      %p213 = pneg %p57
      %p214 = pneg %p81
      %p215 = pneg %p78
      %p216 = pneg %p102
      %p217 = pneg %p99
      %p218 = pneg %p130
      %p219 = pneg %p127
      %p220 = scmp.lt.s32.totalorder %s21, 1
      %s221 = scalar_select %p220, %s21, 1
      %p222 = scmp.lt.s32.totalorder %s22, 1
      %s223 = scalar_select %p222, %s22, 1
      %s224 = smul.addr %s223, 2
      %s225 = smul.addr %s221, 4
      %s226 = sadd.s32 %s224, %s225
      %s227 = smul.addr %s226, 8
      %s228 = scalar_lea.vmem %s3, %s227
      %p229 = pneg %p158
      %p230 = pneg %p155
      %p231 = scmp.lt.s32.totalorder %s21, 1
      %s232 = scalar_select %p231, %s21, 1
      %p233 = scmp.lt.s32.totalorder %s22, 1
      %s234 = scalar_select %p233, %s22, 1
      %s235 = smul.addr %s234, 2
      %s236 = smul.addr %s232, 4
      %s237 = sadd.s32 %s235, %s236
      %s238 = smul.addr %s237, 8
      %s239 = scalar_lea.vmem %s4, %s238
      %s240 = sadd.s32 %s22, %s23
      %p241 = scmp.lt.s32.totalorder %s21, 1
      %s242 = scalar_select %p241, %s21, 1
      %p243 = scmp.lt.s32.totalorder %s240, 1
      %s244 = scalar_select %p243, %s240, 1
      %s245 = smul.addr %s242, 2
      %s246 = sadd.s32 %s244, %s245
      %s247 = smul.addr %s246, 8
      %s248 = scalar_lea.vmem %s0, %s247
      %s249 = sadd.s32 %s22, %s23
      %p250 = scmp.lt.s32.totalorder %s21, 1
      %s251 = scalar_select %p250, %s21, 1
      %p252 = scmp.lt.s32.totalorder %s22, 1
      %s253 = scalar_select %p252, %s22, 1
      %s254 = smul.addr %s253, 2
      %s255 = smul.addr %s251, 4
      %s256 = sadd.s32 %s254, %s255
      %s257 = smul.addr %s256, 8
      %s258 = scalar_lea.vmem %s3, %s257
      %p259 = scmp.lt.s32.totalorder %s21, 1
      %s260 = scalar_select %p259, %s21, 1
      %p261 = scmp.lt.s32.totalorder %s22, 1
      %s262 = scalar_select %p261, %s22, 1
      %s263 = smul.addr %s262, 2
      %s264 = smul.addr %s260, 4
      %s265 = sadd.s32 %s263, %s264
      %s266 = smul.addr %s265, 8
      %s267 = scalar_lea.vmem %s4, %s266
      %v268 = vld [vmem:[%s1] sm:$0xff]
      %v269 = vld [vmem:[%s1 + $0x8] sm:$0xff]
      %v270 = vld [vmem:[%s248] sm:$0xff]
      %vm271 = vcmask 64512
      %v273 = vsel %vm271, %v268, 0
      %v276 = vsel %vm271, %v269, 0
      %278 = vmatprep.subr.mxu0 0.0
      %v279 = vand.u32 %v270, 4294901760
      %280 = vmatpush1.msra.mxu0 %v279
      %281 = vmatprep.subr.mxu0 0.0
      %282 = vmatpush1.msra.mxu0 0.0
      %283 = vmatprep.subr.mxu0 0.0
      %284 = vmatpush1.msra.mxu0 0.0
      %285 = vmatprep.subr.mxu0 0.0
      %286 = vmatpush1.msra.mxu0 0.0
      %287 = vmatprep.subr.mxu0 0.0
      %288 = vmatpush1.msra.mxu0 0.0
      %289 = vmatprep.subr.mxu0 0.0
      %290 = vmatpush1.msra.mxu0 0.0
      %291 = vmatprep.subr.mxu0 0.0
      %292 = vmatpush1.msra.mxu0 0.0
      %293 = vmatprep.subr.mxu0 0.0
      %294 = vmatpush1.msra.mxu0 0.0
      %295 = vmatprep.subr.mxu0 0.0
      %296 = vmatpush1.msra.mxu0 0.0
      %297 = vmatprep.subr.mxu0 0.0
      %298 = vmatpush1.msra.mxu0 0.0
      %299 = vmatprep.subr.mxu0 0.0
      %300 = vmatpush1.msra.mxu0 0.0
      %301 = vmatprep.subr.mxu0 0.0
      %302 = vmatpush1.msra.mxu0 0.0
      %303 = vmatprep.subr.mxu0 0.0
      %304 = vmatpush1.msra.mxu0 0.0
      %305 = vmatprep.subr.mxu0 0.0
      %306 = vmatpush1.msra.mxu0 0.0
      %307 = vmatprep.subr.mxu0 0.0
      %308 = vmatpush1.msra.mxu0 0.0
      %309 = vmatprep.subr.mxu0 0.0
      %310 = vmatpush1.msra.mxu0 0.0
      %311 = vmatprep.subr.mxu0 0.0
      %312 = vmatpush1.msra.mxu0 0.0
      %313 = vmatprep.subr.mxu0 0.0
      %314 = vmatpush1.msra.mxu0 0.0
      %315 = vmatprep.subr.mxu0 0.0
      %316 = vmatpush1.msra.mxu0 0.0
      %317 = vmatprep.subr.mxu0 0.0
      %318 = vmatpush1.msra.mxu0 0.0
      %319 = vmatprep.subr.mxu0 0.0
      %320 = vmatpush1.msra.mxu0 0.0
      %321 = vmatprep.subr.mxu0 0.0
      %322 = vmatpush1.msra.mxu0 0.0
      %323 = vmatprep.subr.mxu0 0.0
      %324 = vmatpush1.msra.mxu0 0.0
      %325 = vmatprep.subr.mxu0 0.0
      %326 = vmatpush1.msra.mxu0 0.0
      %327 = vmatprep.subr.mxu0 0.0
      %328 = vmatpush1.msra.mxu0 0.0
      %329 = vmatprep.subr.mxu0 0.0
      %330 = vmatpush1.msra.mxu0 0.0
      %331 = vmatprep.subr.mxu0 0.0
      %332 = vmatpush1.msra.mxu0 0.0
      %333 = vmatprep.subr.mxu0 0.0
      %334 = vmatpush1.msra.mxu0 0.0
      %335 = vmatprep.subr.mxu0 0.0
      %336 = vmatpush1.msra.mxu0 0.0
      %337 = vmatprep.subr.mxu0 0.0
      %338 = vmatpush1.msra.mxu0 0.0
      %339 = vmatprep.subr.mxu0 0.0
      %340 = vmatpush1.msra.mxu0 0.0
      %341 = vmatprep.subr.mxu0 0.0
      %342 = vmatpush1.msra.mxu0 0.0
      %343 = vmatprep.mubr.f32.mxu0 0.0
      %v344 = vand.u32 %v273, 4294901760
      %v345 = vsub.f32 %v273, %v344
      %v346 = vand.u32 %v345, 4294901760
      %v347 = vsub.f32 %v345, %v346
      %v348 = vand.u32 %v347, 4294901760
      %349 = vmatmul.mubr.f32.gmra.mrb[0].mxu0 %v348
      %v350 = vpop.f32.mrb[0].mxu0
      %v351 = vadd.f32 0.0, %v350
      %v352 = vpop.f32.mrb[0].mxu0
      %353 = vmatprep.mubr.f32.mxu0 0.0
      %v354 = vand.u32 %v276, 4294901760
      %v355 = vsub.f32 %v276, %v354
      %v356 = vand.u32 %v355, 4294901760
      %v357 = vsub.f32 %v355, %v356
      %v358 = vand.u32 %v357, 4294901760
      %359 = vmatmul.mubr.f32.gmra.mrb[0].mxu0 %v358
      %v360 = vpop.f32.mrb[0].mxu0
      %v361 = vadd.f32 0.0, %v360
      %v362 = vpop.f32.mrb[0].mxu0
      %363 = vdwg.mxu0
      %364 = vmatprep.subr.mxu0 0.0
      %v365 = vand.u32 %v270, 4294901760
      %v366 = vsub.f32 %v270, %v365
      %v367 = vand.u32 %v366, 4294901760
      %v368 = vsub.f32 %v366, %v367
      %v369 = vand.u32 %v368, 4294901760
      %370 = vmatpush1.msra.mxu0 %v369
      %371 = vmatprep.subr.mxu0 0.0
      %372 = vmatpush1.msra.mxu0 0.0
      %373 = vmatprep.subr.mxu0 0.0
      %374 = vmatpush1.msra.mxu0 0.0
      %375 = vmatprep.subr.mxu0 0.0
      %376 = vmatpush1.msra.mxu0 0.0
      %377 = vmatprep.subr.mxu0 0.0
      %378 = vmatpush1.msra.mxu0 0.0
      %379 = vmatprep.subr.mxu0 0.0
      %380 = vmatpush1.msra.mxu0 0.0
      %381 = vmatprep.subr.mxu0 0.0
      %382 = vmatpush1.msra.mxu0 0.0
      %383 = vmatprep.subr.mxu0 0.0
      %384 = vmatpush1.msra.mxu0 0.0
      %385 = vmatprep.subr.mxu0 0.0
      %386 = vmatpush1.msra.mxu0 0.0
      %387 = vmatprep.subr.mxu0 0.0
      %388 = vmatpush1.msra.mxu0 0.0
      %389 = vmatprep.subr.mxu0 0.0
      %390 = vmatpush1.msra.mxu0 0.0
      %391 = vmatprep.subr.mxu0 0.0
      %392 = vmatpush1.msra.mxu0 0.0
      %393 = vmatprep.subr.mxu0 0.0
      %394 = vmatpush1.msra.mxu0 0.0
      %395 = vmatprep.subr.mxu0 0.0
      %396 = vmatpush1.msra.mxu0 0.0
      %397 = vmatprep.subr.mxu0 0.0
      %398 = vmatpush1.msra.mxu0 0.0
      %399 = vmatprep.subr.mxu0 0.0
      %400 = vmatpush1.msra.mxu0 0.0
      %401 = vmatprep.subr.mxu0 0.0
      %402 = vmatpush1.msra.mxu0 0.0
      %403 = vmatprep.subr.mxu0 0.0
      %404 = vmatpush1.msra.mxu0 0.0
      %405 = vmatprep.subr.mxu0 0.0
      %406 = vmatpush1.msra.mxu0 0.0
      %407 = vmatprep.subr.mxu0 0.0
      %408 = vmatpush1.msra.mxu0 0.0
      %409 = vmatprep.subr.mxu0 0.0
      %410 = vmatpush1.msra.mxu0 0.0
      %411 = vmatprep.subr.mxu0 0.0
      %412 = vmatpush1.msra.mxu0 0.0
      %413 = vmatprep.subr.mxu0 0.0
      %414 = vmatpush1.msra.mxu0 0.0
      %415 = vmatprep.subr.mxu0 0.0
      %416 = vmatpush1.msra.mxu0 0.0
      %417 = vmatprep.subr.mxu0 0.0
      %418 = vmatpush1.msra.mxu0 0.0
      %419 = vmatprep.subr.mxu0 0.0
      %420 = vmatpush1.msra.mxu0 0.0
      %421 = vmatprep.subr.mxu0 0.0
      %422 = vmatpush1.msra.mxu0 0.0
      %423 = vmatprep.subr.mxu0 0.0
      %424 = vmatpush1.msra.mxu0 0.0
      %425 = vmatprep.subr.mxu0 0.0
      %426 = vmatpush1.msra.mxu0 0.0
      %427 = vmatprep.subr.mxu0 0.0
      %428 = vmatpush1.msra.mxu0 0.0
      %429 = vmatprep.subr.mxu0 0.0
      %430 = vmatpush1.msra.mxu0 0.0
      %431 = vmatprep.subr.mxu0 0.0
      %432 = vmatpush1.msra.mxu0 0.0
      %433 = vmatprep.mubr.f32.mxu0 0.0
      %v434 = vand.u32 %v273, 4294901760
      %435 = vmatmul.mubr.f32.gmra.mrb[0].mxu0 %v434
      %v436 = vpop.f32.mrb[0].mxu0
      %v437 = vadd.f32 %v351, %v436
      %v438 = vpop.f32.mrb[0].mxu0
      %439 = vmatprep.mubr.f32.mxu0 0.0
      %v440 = vand.u32 %v276, 4294901760
      %441 = vmatmul.mubr.f32.gmra.mrb[0].mxu0 %v440
      %v442 = vpop.f32.mrb[0].mxu0
      %v443 = vadd.f32 %v361, %v442
      %v444 = vpop.f32.mrb[0].mxu0
      %445 = vdwg.mxu0
      %446 = vmatprep.subr.mxu0 0.0
      %v447 = vand.u32 %v270, 4294901760
      %v448 = vsub.f32 %v270, %v447
      %449 = vmatpush1.msra.mxu0 %v448
      %450 = vmatprep.subr.mxu0 0.0
      %451 = vmatpush1.msra.mxu0 0.0
      %452 = vmatprep.subr.mxu0 0.0
      %453 = vmatpush1.msra.mxu0 0.0
      %454 = vmatprep.subr.mxu0 0.0
      %455 = vmatpush1.msra.mxu0 0.0
      %456 = vmatprep.subr.mxu0 0.0
      %457 = vmatpush1.msra.mxu0 0.0
      %458 = vmatprep.subr.mxu0 0.0
      %459 = vmatpush1.msra.mxu0 0.0
      %460 = vmatprep.subr.mxu0 0.0
      %461 = vmatpush1.msra.mxu0 0.0
      %462 = vmatprep.subr.mxu0 0.0
      %463 = vmatpush1.msra.mxu0 0.0
      %464 = vmatprep.subr.mxu0 0.0
      %465 = vmatpush1.msra.mxu0 0.0
      %466 = vmatprep.subr.mxu0 0.0
      %467 = vmatpush1.msra.mxu0 0.0
      %468 = vmatprep.subr.mxu0 0.0
      %469 = vmatpush1.msra.mxu0 0.0
      %470 = vmatprep.subr.mxu0 0.0
      %471 = vmatpush1.msra.mxu0 0.0
      %472 = vmatprep.subr.mxu0 0.0
      %473 = vmatpush1.msra.mxu0 0.0
      %474 = vmatprep.subr.mxu0 0.0
      %475 = vmatpush1.msra.mxu0 0.0
      %476 = vmatprep.subr.mxu0 0.0
      %477 = vmatpush1.msra.mxu0 0.0
      %478 = vmatprep.subr.mxu0 0.0
      %479 = vmatpush1.msra.mxu0 0.0
      %480 = vmatprep.subr.mxu0 0.0
      %481 = vmatpush1.msra.mxu0 0.0
      %482 = vmatprep.subr.mxu0 0.0
      %483 = vmatpush1.msra.mxu0 0.0
      %484 = vmatprep.subr.mxu0 0.0
      %485 = vmatpush1.msra.mxu0 0.0
      %486 = vmatprep.subr.mxu0 0.0
      %487 = vmatpush1.msra.mxu0 0.0
      %488 = vmatprep.subr.mxu0 0.0
      %489 = vmatpush1.msra.mxu0 0.0
      %490 = vmatprep.subr.mxu0 0.0
      %491 = vmatpush1.msra.mxu0 0.0
      %492 = vmatprep.subr.mxu0 0.0
      %493 = vmatpush1.msra.mxu0 0.0
      %494 = vmatprep.subr.mxu0 0.0
      %495 = vmatpush1.msra.mxu0 0.0
      %496 = vmatprep.subr.mxu0 0.0
      %497 = vmatpush1.msra.mxu0 0.0
      %498 = vmatprep.subr.mxu0 0.0
      %499 = vmatpush1.msra.mxu0 0.0
      %500 = vmatprep.subr.mxu0 0.0
      %501 = vmatpush1.msra.mxu0 0.0
      %502 = vmatprep.subr.mxu0 0.0
      %503 = vmatpush1.msra.mxu0 0.0
      %504 = vmatprep.subr.mxu0 0.0
      %505 = vmatpush1.msra.mxu0 0.0
      %506 = vmatprep.subr.mxu0 0.0
      %507 = vmatpush1.msra.mxu0 0.0
      %508 = vmatprep.subr.mxu0 0.0
      %509 = vmatpush1.msra.mxu0 0.0
      %510 = vmatprep.subr.mxu0 0.0
      %511 = vmatpush1.msra.mxu0 0.0
      %512 = vmatprep.mubr.f32.mxu0 0.0
      %v513 = vand.u32 %v273, 4294901760
      %v514 = vsub.f32 %v273, %v513
      %515 = vmatmul.mubr.f32.gmra.mrb[0].mxu0 %v514
      %v516 = vpop.f32.mrb[0].mxu0
      %v517 = vadd.f32 %v437, %v516
      %v518 = vpop.f32.mrb[0].mxu0
      %519 = vmatprep.mubr.f32.mxu0 0.0
      %v520 = vand.u32 %v276, 4294901760
      %v521 = vsub.f32 %v276, %v520
      %522 = vmatmul.mubr.f32.gmra.mrb[0].mxu0 %v521
      %v523 = vpop.f32.mrb[0].mxu0
      %v524 = vadd.f32 %v443, %v523
      %v525 = vpop.f32.mrb[0].mxu0
      %526 = vdwg.mxu0
      %527 = vmatprep.subr.mxu0 0.0
      %v528 = vand.u32 %v270, 4294901760
      %529 = vmatpush1.msra.mxu0 %v528
      %530 = vmatprep.subr.mxu0 0.0
      %531 = vmatpush1.msra.mxu0 0.0
      %532 = vmatprep.subr.mxu0 0.0
      %533 = vmatpush1.msra.mxu0 0.0
      %534 = vmatprep.subr.mxu0 0.0
      %535 = vmatpush1.msra.mxu0 0.0
      %536 = vmatprep.subr.mxu0 0.0
      %537 = vmatpush1.msra.mxu0 0.0
      %538 = vmatprep.subr.mxu0 0.0
      %539 = vmatpush1.msra.mxu0 0.0
      %540 = vmatprep.subr.mxu0 0.0
      %541 = vmatpush1.msra.mxu0 0.0
      %542 = vmatprep.subr.mxu0 0.0
      %543 = vmatpush1.msra.mxu0 0.0
      %544 = vmatprep.subr.mxu0 0.0
      %545 = vmatpush1.msra.mxu0 0.0
      %546 = vmatprep.subr.mxu0 0.0
      %547 = vmatpush1.msra.mxu0 0.0
      %548 = vmatprep.subr.mxu0 0.0
      %549 = vmatpush1.msra.mxu0 0.0
      %550 = vmatprep.subr.mxu0 0.0
      %551 = vmatpush1.msra.mxu0 0.0
      %552 = vmatprep.subr.mxu0 0.0
      %553 = vmatpush1.msra.mxu0 0.0
      %554 = vmatprep.subr.mxu0 0.0
      %555 = vmatpush1.msra.mxu0 0.0
      %556 = vmatprep.subr.mxu0 0.0
      %557 = vmatpush1.msra.mxu0 0.0
      %558 = vmatprep.subr.mxu0 0.0
      %559 = vmatpush1.msra.mxu0 0.0
      %560 = vmatprep.subr.mxu0 0.0
      %561 = vmatpush1.msra.mxu0 0.0
      %562 = vmatprep.subr.mxu0 0.0
      %563 = vmatpush1.msra.mxu0 0.0
      %564 = vmatprep.subr.mxu0 0.0
      %565 = vmatpush1.msra.mxu0 0.0
      %566 = vmatprep.subr.mxu0 0.0
      %567 = vmatpush1.msra.mxu0 0.0
      %568 = vmatprep.subr.mxu0 0.0
      %569 = vmatpush1.msra.mxu0 0.0
      %570 = vmatprep.subr.mxu0 0.0
      %571 = vmatpush1.msra.mxu0 0.0
      %572 = vmatprep.subr.mxu0 0.0
      %573 = vmatpush1.msra.mxu0 0.0
      %574 = vmatprep.subr.mxu0 0.0
      %575 = vmatpush1.msra.mxu0 0.0
      %576 = vmatprep.subr.mxu0 0.0
      %577 = vmatpush1.msra.mxu0 0.0
      %578 = vmatprep.subr.mxu0 0.0
      %579 = vmatpush1.msra.mxu0 0.0
      %580 = vmatprep.subr.mxu0 0.0
      %581 = vmatpush1.msra.mxu0 0.0
      %582 = vmatprep.subr.mxu0 0.0
      %583 = vmatpush1.msra.mxu0 0.0
      %584 = vmatprep.subr.mxu0 0.0
      %585 = vmatpush1.msra.mxu0 0.0
      %586 = vmatprep.subr.mxu0 0.0
      %587 = vmatpush1.msra.mxu0 0.0
      %588 = vmatprep.subr.mxu0 0.0
      %589 = vmatpush1.msra.mxu0 0.0
      %590 = vmatprep.subr.mxu0 0.0
      %591 = vmatpush1.msra.mxu0 0.0
      %592 = vmatprep.mubr.f32.mxu0 0.0
      %v593 = vand.u32 %v273, 4294901760
      %v594 = vsub.f32 %v273, %v593
      %v595 = vand.u32 %v594, 4294901760
      %596 = vmatmul.mubr.f32.gmra.mrb[0].mxu0 %v595
      %v597 = vpop.f32.mrb[0].mxu0
      %v598 = vadd.f32 %v517, %v597
      %v599 = vpop.f32.mrb[0].mxu0
      %600 = vmatprep.mubr.f32.mxu0 0.0
      %v601 = vand.u32 %v276, 4294901760
      %v602 = vsub.f32 %v276, %v601
      %v603 = vand.u32 %v602, 4294901760
      %604 = vmatmul.mubr.f32.gmra.mrb[0].mxu0 %v603
      %v605 = vpop.f32.mrb[0].mxu0
      %v606 = vadd.f32 %v524, %v605
      %v607 = vpop.f32.mrb[0].mxu0
      %608 = vdwg.mxu0
      %609 = vmatprep.subr.mxu0 0.0
      %v610 = vand.u32 %v270, 4294901760
      %v611 = vsub.f32 %v270, %v610
      %v612 = vand.u32 %v611, 4294901760
      %613 = vmatpush1.msra.mxu0 %v612
      %614 = vmatprep.subr.mxu0 0.0
      %615 = vmatpush1.msra.mxu0 0.0
      %616 = vmatprep.subr.mxu0 0.0
      %617 = vmatpush1.msra.mxu0 0.0
      %618 = vmatprep.subr.mxu0 0.0
      %619 = vmatpush1.msra.mxu0 0.0
      %620 = vmatprep.subr.mxu0 0.0
      %621 = vmatpush1.msra.mxu0 0.0
      %622 = vmatprep.subr.mxu0 0.0
      %623 = vmatpush1.msra.mxu0 0.0
      %624 = vmatprep.subr.mxu0 0.0
      %625 = vmatpush1.msra.mxu0 0.0
      %626 = vmatprep.subr.mxu0 0.0
      %627 = vmatpush1.msra.mxu0 0.0
      %628 = vmatprep.subr.mxu0 0.0
      %629 = vmatpush1.msra.mxu0 0.0
      %630 = vmatprep.subr.mxu0 0.0
      %631 = vmatpush1.msra.mxu0 0.0
      %632 = vmatprep.subr.mxu0 0.0
      %633 = vmatpush1.msra.mxu0 0.0
      %634 = vmatprep.subr.mxu0 0.0
      %635 = vmatpush1.msra.mxu0 0.0
      %636 = vmatprep.subr.mxu0 0.0
      %637 = vmatpush1.msra.mxu0 0.0
      %638 = vmatprep.subr.mxu0 0.0
      %639 = vmatpush1.msra.mxu0 0.0
      %640 = vmatprep.subr.mxu0 0.0
      %641 = vmatpush1.msra.mxu0 0.0
      %642 = vmatprep.subr.mxu0 0.0
      %643 = vmatpush1.msra.mxu0 0.0
      %644 = vmatprep.subr.mxu0 0.0
      %645 = vmatpush1.msra.mxu0 0.0
      %646 = vmatprep.subr.mxu0 0.0
      %647 = vmatpush1.msra.mxu0 0.0
      %648 = vmatprep.subr.mxu0 0.0
      %649 = vmatpush1.msra.mxu0 0.0
      %650 = vmatprep.subr.mxu0 0.0
      %651 = vmatpush1.msra.mxu0 0.0
      %652 = vmatprep.subr.mxu0 0.0
      %653 = vmatpush1.msra.mxu0 0.0
      %654 = vmatprep.subr.mxu0 0.0
      %655 = vmatpush1.msra.mxu0 0.0
      %656 = vmatprep.subr.mxu0 0.0
      %657 = vmatpush1.msra.mxu0 0.0
      %658 = vmatprep.subr.mxu0 0.0
      %659 = vmatpush1.msra.mxu0 0.0
      %660 = vmatprep.subr.mxu0 0.0
      %661 = vmatpush1.msra.mxu0 0.0
      %662 = vmatprep.subr.mxu0 0.0
      %663 = vmatpush1.msra.mxu0 0.0
      %664 = vmatprep.subr.mxu0 0.0
      %665 = vmatpush1.msra.mxu0 0.0
      %666 = vmatprep.subr.mxu0 0.0
      %667 = vmatpush1.msra.mxu0 0.0
      %668 = vmatprep.subr.mxu0 0.0
      %669 = vmatpush1.msra.mxu0 0.0
      %670 = vmatprep.subr.mxu0 0.0
      %671 = vmatpush1.msra.mxu0 0.0
      %672 = vmatprep.subr.mxu0 0.0
      %673 = vmatpush1.msra.mxu0 0.0
      %674 = vmatprep.subr.mxu0 0.0
      %675 = vmatpush1.msra.mxu0 0.0
      %676 = vmatprep.mubr.f32.mxu0 0.0
      %v677 = vand.u32 %v273, 4294901760
      %678 = vmatmul.mubr.f32.gmra.mrb[0].mxu0 %v677
      %v679 = vpop.f32.mrb[0].mxu0
      %v680 = vadd.f32 %v598, %v679
      %v681 = vpop.f32.mrb[0].mxu0
      %682 = vmatprep.mubr.f32.mxu0 0.0
      %v683 = vand.u32 %v276, 4294901760
      %684 = vmatmul.mubr.f32.gmra.mrb[0].mxu0 %v683
      %v685 = vpop.f32.mrb[0].mxu0
      %v686 = vadd.f32 %v606, %v685
      %v687 = vpop.f32.mrb[0].mxu0
      %688 = vdwg.mxu0
      %689 = vmatprep.subr.mxu0 0.0
      %v690 = vand.u32 %v270, 4294901760
      %691 = vmatpush1.msra.mxu0 %v690
      %692 = vmatprep.subr.mxu0 0.0
      %693 = vmatpush1.msra.mxu0 0.0
      %694 = vmatprep.subr.mxu0 0.0
      %695 = vmatpush1.msra.mxu0 0.0
      %696 = vmatprep.subr.mxu0 0.0
      %697 = vmatpush1.msra.mxu0 0.0
      %698 = vmatprep.subr.mxu0 0.0
      %699 = vmatpush1.msra.mxu0 0.0
      %700 = vmatprep.subr.mxu0 0.0
      %701 = vmatpush1.msra.mxu0 0.0
      %702 = vmatprep.subr.mxu0 0.0
      %703 = vmatpush1.msra.mxu0 0.0
      %704 = vmatprep.subr.mxu0 0.0
      %705 = vmatpush1.msra.mxu0 0.0
      %706 = vmatprep.subr.mxu0 0.0
      %707 = vmatpush1.msra.mxu0 0.0
      %708 = vmatprep.subr.mxu0 0.0
      %709 = vmatpush1.msra.mxu0 0.0
      %710 = vmatprep.subr.mxu0 0.0
      %711 = vmatpush1.msra.mxu0 0.0
      %712 = vmatprep.subr.mxu0 0.0
      %713 = vmatpush1.msra.mxu0 0.0
      %714 = vmatprep.subr.mxu0 0.0
      %715 = vmatpush1.msra.mxu0 0.0
      %716 = vmatprep.subr.mxu0 0.0
      %717 = vmatpush1.msra.mxu0 0.0
      %718 = vmatprep.subr.mxu0 0.0
      %719 = vmatpush1.msra.mxu0 0.0
      %720 = vmatprep.subr.mxu0 0.0
      %721 = vmatpush1.msra.mxu0 0.0
      %722 = vmatprep.subr.mxu0 0.0
      %723 = vmatpush1.msra.mxu0 0.0
      %724 = vmatprep.subr.mxu0 0.0
      %725 = vmatpush1.msra.mxu0 0.0
      %726 = vmatprep.subr.mxu0 0.0
      %727 = vmatpush1.msra.mxu0 0.0
      %728 = vmatprep.subr.mxu0 0.0
      %729 = vmatpush1.msra.mxu0 0.0
      %730 = vmatprep.subr.mxu0 0.0
      %731 = vmatpush1.msra.mxu0 0.0
      %732 = vmatprep.subr.mxu0 0.0
      %733 = vmatpush1.msra.mxu0 0.0
      %734 = vmatprep.subr.mxu0 0.0
      %735 = vmatpush1.msra.mxu0 0.0
      %736 = vmatprep.subr.mxu0 0.0
      %737 = vmatpush1.msra.mxu0 0.0
      %738 = vmatprep.subr.mxu0 0.0
      %739 = vmatpush1.msra.mxu0 0.0
      %740 = vmatprep.subr.mxu0 0.0
      %741 = vmatpush1.msra.mxu0 0.0
      %742 = vmatprep.subr.mxu0 0.0
      %743 = vmatpush1.msra.mxu0 0.0
      %744 = vmatprep.subr.mxu0 0.0
      %745 = vmatpush1.msra.mxu0 0.0
      %746 = vmatprep.subr.mxu0 0.0
      %747 = vmatpush1.msra.mxu0 0.0
      %748 = vmatprep.subr.mxu0 0.0
      %749 = vmatpush1.msra.mxu0 0.0
      %750 = vmatprep.subr.mxu0 0.0
      %751 = vmatpush1.msra.mxu0 0.0
      %752 = vmatprep.subr.mxu0 0.0
      %753 = vmatpush1.msra.mxu0 0.0
      %754 = vmatprep.mubr.f32.mxu0 0.0
      %v755 = vand.u32 %v273, 4294901760
      %756 = vmatmul.mubr.f32.gmra.mrb[0].mxu0 %v755
      %v757 = vpop.f32.mrb[0].mxu0
      %v758 = vadd.f32 %v680, %v757
      %v759 = vpop.f32.mrb[0].mxu0
      %760 = vmatprep.mubr.f32.mxu0 0.0
      %v761 = vand.u32 %v276, 4294901760
      %762 = vmatmul.mubr.f32.gmra.mrb[0].mxu0 %v761
      %v763 = vpop.f32.mrb[0].mxu0
      %v764 = vadd.f32 %v686, %v763
      %v765 = vpop.f32.mrb[0].mxu0
      %766 = vdwg.mxu0
      %v767 = vld [vmem:[%s2] sm:$0xff]
      %v768 = vld [vmem:[%s2 + $0x8] sm:$0xff]
      %770 = vset.pattern.permute.xlu0 0
      %771 = vperm.xlu0 %770, %v767
      %v772 = vpop.permute.xlu0 %771
      %775 = vset.pattern.permute.xlu0 0
      %776 = vperm.xlu0 %775, %v768
      %v777 = vpop.permute.xlu0 %776
      %v779 = vsub.f32 %v758, %v772
      %v780 = vsub.f32 %v764, %v777
      %p781 = scmp.eq.s32.totalorder %s23, 0
      // Predicated region
      $region33: #{pam_forward.6} parent=31 // pred_check
        %p782 = pneg %p781
      $region34: #{pam_forward.6} parent=31 // pred_check_branch
        %784 = sbr.rel (%p782) target = $region36
      $region35: #{pam_forward.6} parent=31 // pred_region
        %785 = vst [vmem:[%s258] sm:$0xff] 0.0
        %786 = vst [vmem:[%s258 + $0x8] sm:$0xff] 0.0
        %787 = vst [vmem:[%s267] sm:$0xff] 0.0
        %788 = vst [vmem:[%s267 + $0x8] sm:$0xff] 0.0
      $region36: #{pam_forward.6} parent=31 // pred_fallthru
        _
      %v789 = vld [vmem:[%s258] sm:$0xff]
      %v790 = vld [vmem:[%s258 + $0x8] sm:$0xff]
      %v791 = vadd.f32 %v789, %v779
      %v792 = vadd.f32 %v790, %v780
      %793 = vst [vmem:[%s258] sm:$0xff] %v791
      %794 = vst [vmem:[%s258 + $0x8] sm:$0xff] %v792
      %v795 = vld [vmem:[%s267] sm:$0xff]
      %v796 = vld [vmem:[%s267 + $0x8] sm:$0xff]
      %v797 = vmul.f32 %v779, %v779
      %v798 = vmul.f32 %v780, %v780
      %v799 = vadd.f32 %v795, %v797
      %v800 = vadd.f32 %v796, %v798
      %801 = vst [vmem:[%s267] sm:$0xff] %v799
      %802 = vst [vmem:[%s267 + $0x8] sm:$0xff] %v800
      %p803 = scmp.lt.s32.totalorder %s21, 1
      %s804 = scalar_select %p803, %s21, 1
      %p805 = scmp.lt.s32.totalorder %s22, 1
      %s806 = scalar_select %p805, %s22, 1
      %s807 = smul.addr %s806, 2
      %s808 = smul.addr %s804, 4
      %s809 = sadd.s32 %s807, %s808
      %s810 = smul.addr %s809, 8
      %s811 = scalar_lea.vmem %s3, %s810
      %p812 = scmp.lt.s32.totalorder %s21, 1
      %s813 = scalar_select %p812, %s21, 1
      %p814 = scmp.lt.s32.totalorder %s22, 1
      %s815 = scalar_select %p814, %s22, 1
      %s816 = smul.addr %s815, 2
      %s817 = smul.addr %s813, 4
      %s818 = sadd.s32 %s816, %s817
      %s819 = smul.addr %s818, 8
      %s820 = scalar_lea.vmem %s4, %s819
      // Predicated region
      $region37: #{pam_forward.6} parent=31 // pred_check
        %p821 = pneg %p127
      $region38: #{pam_forward.6} parent=31 // pred_check_branch
        %823 = sbr.rel (%p821) target = $region40
      $region39: #{pam_forward.6} parent=31 // pred_region
        _
      $region40: #{pam_forward.6} parent=31 // pred_fallthru
        _
      // Predicated region
      $region41: #{pam_forward.6} parent=31 // pred_check
        %p824 = pneg %p155
      $region42: #{pam_forward.6} parent=31 // pred_check_branch
        %826 = sbr.rel (%p824) target = $region44
      $region43: #{pam_forward.6} parent=31 // pred_region
        _
      $region44: #{pam_forward.6} parent=31 // pred_fallthru
        _
    $region32: #{pam_forward.6} parent=5 // pred_fallthru
      _
    %p827 = scmp.le.s32.totalorder 2, %s11
    // Predicated region
    $region45: #{pam_forward.6} parent=5 // pred_check
      %p828 = pneg %p827
    $region46: #{pam_forward.6} parent=5 // pred_check_branch
      %830 = sbr.rel (%p828) target = $region48
    $region47: #{pam_forward.6} parent=5 // pred_region
      %s831 = ssub.s32 %s11, 2
      // Predicated region
      $region49: #{pam_forward.6} parent=47 // pred_check
        %p832 = pneg %p133
      $region50: #{pam_forward.6} parent=47 // pred_check_branch
        %834 = sbr.rel (%p832) target = $region52
      $region51: #{pam_forward.6} parent=47 // pred_region
        %p835 = scmp.lt.s32.totalorder %s24, 1
        %s836 = scalar_select %p835, %s24, 1
        %p837 = scmp.lt.s32.totalorder %s25, 1
        %s838 = scalar_select %p837, %s25, 1
        %s839 = smul.addr %s838, 2
        %s840 = smul.addr %s836, 4
        %s841 = sadd.s32 %s839, %s840
        %s842 = smul.addr %s841, 8
        %s843 = scalar_lea.vmem %s3, %s842
      $region52: #{pam_forward.6} parent=47 // pred_fallthru
        _
      // Predicated region
      $region53: #{pam_forward.6} parent=47 // pred_check
        %p844 = pneg %p161
      $region54: #{pam_forward.6} parent=47 // pred_check_branch
        %846 = sbr.rel (%p844) target = $region56
      $region55: #{pam_forward.6} parent=47 // pred_region
        %p847 = scmp.lt.s32.totalorder %s24, 1
        %s848 = scalar_select %p847, %s24, 1
        %p849 = scmp.lt.s32.totalorder %s25, 1
        %s850 = scalar_select %p849, %s25, 1
        %s851 = smul.addr %s850, 2
        %s852 = smul.addr %s848, 4
        %s853 = sadd.s32 %s851, %s852
        %s854 = smul.addr %s853, 8
        %s855 = scalar_lea.vmem %s4, %s854
      $region56: #{pam_forward.6} parent=47 // pred_fallthru
        _
    $region48: #{pam_forward.6} parent=5 // pred_fallthru
      _
  $region6: #{pam_forward.6} parent=0 // loop_footer
    %s15 = sadd.s32 1, %s11
  $region7: #{pam_forward.6} parent=0 // loop_footer_branch
    %10 = sbr.rel target = $region3
  $region8: #{pam_forward.6} parent=0 // loop_exit
    _

// kernel: pam_forward.7
$region0: #{pam_forward.7}
  #allocation0 [shape = 'u32[]', space=smem, size = 0x4, offset = 0x4, fixed_abs, tag = 'smem constant byte address 0x4 - core index']
  #allocation1 [shape = 'u32[144,128]{1,0:T(1,128)}', space=vmem, size = 0x12000, scoped, tag = 'internal scratch']
  %s0 = inlined_call_operand.vmem [shape: f32[2,8,256], index: 0, kind: input, shape index: {}]
  %s1 = inlined_call_operand.vmem [shape: f32[2,16,256], index: 1, kind: input, shape index: {}]
  %s2 = inlined_call_operand.vmem [shape: f32[16,8], index: 2, kind: input, shape index: {}]
  %s3 = inlined_call_operand.vmem [shape: f32[16,1], index: 3, kind: input, shape index: {}]
  %s4 = inlined_call_operand.vmem [shape: f32[16,1], index: 4, kind: input, shape index: {}]
  %s5 = inlined_call_operand.vmem [shape: f32[2,16,256], index: 5, kind: output, shape index: {}]
  %s6 = sld [smem:[#allocation0]]
  $region125: #{pam_forward.7} parent=0
    _
  %s8 = ssub.s32 1, %s6
  %s9 = scalar_select 0, %s8, %s6
  $region1: #{pam_forward.7} parent=0
    #allocation2 [shape = 'u8[16384]{0}', space=vmem, size = 0x4000, scoped, tag = 'input window, operand 1']
    #allocation3 [shape = 'u8[16384]{0}', space=vmem, size = 0x4000, scoped, tag = 'output window, operand 0']
    loop: start=0, step=1, limit=6
    $region2: #{pam_forward.7} parent=1 // loop_pre_header
      _
    $region3: #{pam_forward.7} parent=1 // loop_header
      %s11 = sphi 0, %s15
      %p12 = scmp.ge.s32.totalorder %s11, 6
      %s18 = sphi 0, %s30
      %s19 = sphi 0, %s26
      %s20 = sphi 0, %s18
      %s21 = sphi 0, %s19
      %s22 = sphi 0, %s20
      %s23 = sphi 0, %s21
      %s35 = sphi 0, %s37
      %s38 = sphi 0, %s35
      %s39 = sphi 0, %s38
      %s55 = sphi 0, %s39
      %s63 = sphi 0, %s65
      %s66 = sphi 0, %s63
      %s67 = sphi 0, %s66
      %s83 = sphi 0, %s67
      %s87 = sphi 0, %s87
      %s89 = sphi 0, %s87
      %s90 = sphi 0, %s89
      %s104 = sphi 0, %s90
      %s108 = sphi 0, %s108
      %s110 = sphi 0, %s108
      %s111 = sphi 0, %s110
      %s125 = sphi 0, %s111
      %s129 = sphi 0, %s129
      %s131 = sphi 0, %s129
      %s132 = sphi 0, %s131
      %s146 = sphi 0, %s132
      %s154 = sphi 0, %s156
      %s157 = sphi 0, %s154
      %s158 = sphi 0, %s157
      %s174 = sphi 0, %s158
    $region4: #{pam_forward.7} parent=1 // loop_header_branch
      %14 = sbr.rel (%p12) target = $region8
    $region5: #{pam_forward.7} parent=1 // loop_body
      %s16 = ssub.s32 %s11, 1
      %s17 = ssub.s32 %s11, 2
      %s24 = sadd.s32 1, %s19
      %p25 = scmp.ge.s32.totalorder %s24, 2
      %s26 = scalar_select %p25, 0, %s24
      %s27 = sadd.s32 1, %s18
      %s28 = scalar_select %p25, %s27, %s18
      %p29 = scmp.ge.s32.totalorder %s28, 2
      %s30 = scalar_select %p29, 0, %s28
      %s31 = ssub.s32 %s18, %s30
      %s32 = ssub.s32 %s19, %s26
      %s33 = sor.u32 %s31, %s32
      %p34 = scmp.eq.s32.totalorder %s33, 0
      %s36 = sadd.s32 %s35, 1
      %s37 = scalar_select %p34, %s35, %s36
      %p40 = pneg %p34
      %p41 = scmp.eq.s32.totalorder %s11, 3
      %p42 = por %p40, %p41
      %p43 = scmp.ne.s32.totalorder %s35, %s38
      %p44 = scmp.eq.s32.totalorder %s11, 0
      %p45 = por %p43, %p44
      %p46 = scmp.ne.s32.totalorder %s35, %s38
      %p47 = scmp.eq.s32.totalorder %s16, 3
      %p48 = por %p46, %p47
      %p49 = scmp.ne.s32.totalorder %s38, %s39
      %p50 = scmp.eq.s32.totalorder %s16, 0
      %p51 = por %p49, %p50
      %p52 = scmp.ne.s32.totalorder %s38, %s39
      %p53 = scmp.eq.s32.totalorder %s17, 3
      %p54 = por %p52, %p53
      %p56 = scmp.ne.s32.totalorder %s39, %s55
      %p57 = scmp.eq.s32.totalorder %s17, 0
      %p58 = por %p56, %p57
      %s59 = ssub.s32 %s18, %s30
      %s60 = ssub.s32 %s19, %s26
      %s61 = sor.u32 %s59, %s60
      %p62 = scmp.eq.s32.totalorder %s61, 0
      %s64 = sadd.s32 %s63, 1
      %s65 = scalar_select %p62, %s63, %s64
      %p68 = pneg %p62
      %p69 = scmp.eq.s32.totalorder %s11, 3
      %p70 = por %p68, %p69
      %p71 = scmp.ne.s32.totalorder %s63, %s66
      %p72 = scmp.eq.s32.totalorder %s11, 0
      %p73 = por %p71, %p72
      %p74 = scmp.ne.s32.totalorder %s63, %s66
      %p75 = scmp.eq.s32.totalorder %s16, 3
      %p76 = por %p74, %p75
      %p77 = scmp.ne.s32.totalorder %s66, %s67
      %p78 = scmp.eq.s32.totalorder %s16, 0
      %p79 = por %p77, %p78
      %p80 = scmp.ne.s32.totalorder %s66, %s67
      %p81 = scmp.eq.s32.totalorder %s17, 3
      %p82 = por %p80, %p81
      %p84 = scmp.ne.s32.totalorder %s67, %s83
      %p85 = scmp.eq.s32.totalorder %s17, 0
      %p86 = por %p84, %p85
      %s88 = sadd.s32 %s87, 1
      %p91 = scmp.eq.s32.totalorder %s11, 3
      %p92 = scmp.ne.s32.totalorder %s87, %s89
      %p93 = scmp.eq.s32.totalorder %s11, 0
      %p94 = por %p92, %p93
      %p95 = scmp.ne.s32.totalorder %s87, %s89
      %p96 = scmp.eq.s32.totalorder %s16, 3
      %p97 = por %p95, %p96
      %p98 = scmp.ne.s32.totalorder %s89, %s90
      %p99 = scmp.eq.s32.totalorder %s16, 0
      %p100 = por %p98, %p99
      %p101 = scmp.ne.s32.totalorder %s89, %s90
      %p102 = scmp.eq.s32.totalorder %s17, 3
      %p103 = por %p101, %p102
      %p105 = scmp.ne.s32.totalorder %s90, %s104
      %p106 = scmp.eq.s32.totalorder %s17, 0
      %p107 = por %p105, %p106
      %s109 = sadd.s32 %s108, 1
      %p112 = scmp.eq.s32.totalorder %s11, 3
      %p113 = scmp.ne.s32.totalorder %s108, %s110
      %p114 = scmp.eq.s32.totalorder %s11, 0
      %p115 = por %p113, %p114
      %p116 = scmp.ne.s32.totalorder %s108, %s110
      %p117 = scmp.eq.s32.totalorder %s16, 3
      %p118 = por %p116, %p117
      %p119 = scmp.ne.s32.totalorder %s110, %s111
      %p120 = scmp.eq.s32.totalorder %s16, 0
      %p121 = por %p119, %p120
      %p122 = scmp.ne.s32.totalorder %s110, %s111
      %p123 = scmp.eq.s32.totalorder %s17, 3
      %p124 = por %p122, %p123
      %p126 = scmp.ne.s32.totalorder %s111, %s125
      %p127 = scmp.eq.s32.totalorder %s17, 0
      %p128 = por %p126, %p127
      %s130 = sadd.s32 %s129, 1
      %p133 = scmp.eq.s32.totalorder %s11, 3
      %p134 = scmp.ne.s32.totalorder %s129, %s131
      %p135 = scmp.eq.s32.totalorder %s11, 0
      %p136 = por %p134, %p135
      %p137 = scmp.ne.s32.totalorder %s129, %s131
      %p138 = scmp.eq.s32.totalorder %s16, 3
      %p139 = por %p137, %p138
      %p140 = scmp.ne.s32.totalorder %s131, %s132
      %p141 = scmp.eq.s32.totalorder %s16, 0
      %p142 = por %p140, %p141
      %p143 = scmp.ne.s32.totalorder %s131, %s132
      %p144 = scmp.eq.s32.totalorder %s17, 3
      %p145 = por %p143, %p144
      %p147 = scmp.ne.s32.totalorder %s132, %s146
      %p148 = scmp.eq.s32.totalorder %s17, 0
      %p149 = por %p147, %p148
      %s150 = ssub.s32 %s18, %s30
      %s151 = ssub.s32 %s19, %s26
      %s152 = sor.u32 %s150, %s151
      %p153 = scmp.eq.s32.totalorder %s152, 0
      %s155 = sadd.s32 %s154, 1
      %s156 = scalar_select %p153, %s154, %s155
      %p159 = pneg %p153
      %p160 = scmp.eq.s32.totalorder %s11, 3
      %p161 = por %p159, %p160
      %p162 = scmp.ne.s32.totalorder %s154, %s157
      %p163 = scmp.eq.s32.totalorder %s11, 0
      %p164 = por %p162, %p163
      %p165 = scmp.ne.s32.totalorder %s154, %s157
      %p166 = scmp.eq.s32.totalorder %s16, 3
      %p167 = por %p165, %p166
      %p168 = scmp.ne.s32.totalorder %s157, %s158
      %p169 = scmp.eq.s32.totalorder %s16, 0
      %p170 = por %p168, %p169
      %p171 = scmp.ne.s32.totalorder %s157, %s158
      %p172 = scmp.eq.s32.totalorder %s17, 3
      %p173 = por %p171, %p172
      %p175 = scmp.ne.s32.totalorder %s158, %s174
      %p176 = scmp.eq.s32.totalorder %s17, 0
      %p177 = por %p175, %p176
      %p178 = scmp.le.s32.totalorder 1, %s11
      %p179 = scmp.lt.s32.totalorder %s11, 5
      %p180 = pnand %p178, %p179
      %p181 = pneg %p180
      // Predicated region
      $region9: #{pam_forward.7} parent=5 // pred_check
        _
      $region10: #{pam_forward.7} parent=5 // pred_check_branch
        %183 = sbr.rel (%p180) target = $region12
      $region11: #{pam_forward.7} parent=5 // pred_region
        %s184 = ssub.s32 %s11, 1
        // Predicated region
        $region13: #{pam_forward.7} parent=11 // pred_check
          %p185 = pneg %p100
        $region14: #{pam_forward.7} parent=11 // pred_check_branch
          %187 = sbr.rel (%p185) target = $region16
        $region15: #{pam_forward.7} parent=11 // pred_region
          _
        $region16: #{pam_forward.7} parent=11 // pred_fallthru
          _
        // Predicated region
        $region17: #{pam_forward.7} parent=11 // pred_check
          %p188 = pneg %p121
        $region18: #{pam_forward.7} parent=11 // pred_check_branch
          %190 = sbr.rel (%p188) target = $region20
        $region19: #{pam_forward.7} parent=11 // pred_region
          _
        $region20: #{pam_forward.7} parent=11 // pred_fallthru
          _
        // Predicated region
        $region21: #{pam_forward.7} parent=11 // pred_check
          %p191 = pneg %p142
        $region22: #{pam_forward.7} parent=11 // pred_check_branch
          %193 = sbr.rel (%p191) target = $region24
        $region23: #{pam_forward.7} parent=11 // pred_region
          _
        $region24: #{pam_forward.7} parent=11 // pred_fallthru
          _
      $region12: #{pam_forward.7} parent=5 // pred_fallthru
        _
      %p194 = scmp.lt.s32.totalorder %s11, 4
      // Predicated region
      $region25: #{pam_forward.7} parent=5 // pred_check
        %p195 = pneg %p194
      $region26: #{pam_forward.7} parent=5 // pred_check_branch
        %197 = sbr.rel (%p195) target = $region28
      $region27: #{pam_forward.7} parent=5 // pred_region
        // Predicated region
        $region29: #{pam_forward.7} parent=27 // pred_check
          %p198 = pneg %p45
        $region30: #{pam_forward.7} parent=27 // pred_check_branch
          %200 = sbr.rel (%p198) target = $region32
        $region31: #{pam_forward.7} parent=27 // pred_region
          %p201 = scmp.lt.s32.totalorder %s18, 1
          %s202 = scalar_select %p201, %s18, 1
          %p203 = scmp.lt.s32.totalorder %s19, 1
          %s204 = scalar_select %p203, %s19, 1
          %s205 = smul.addr %s202, 2
          %s206 = sadd.s32 %s204, %s205
          %s207 = smul.addr %s206, 8
          %s208 = scalar_lea.vmem %s0, %s207
        $region32: #{pam_forward.7} parent=27 // pred_fallthru
          _
        // Predicated region
        $region33: #{pam_forward.7} parent=27 // pred_check
          %p209 = pneg %p73
        $region34: #{pam_forward.7} parent=27 // pred_check_branch
          %211 = sbr.rel (%p209) target = $region36
        $region35: #{pam_forward.7} parent=27 // pred_region
          %s212 = sand.u32 %s63, 1
          %s213 = sand.u32 %s63, 1
          %s214 = smul.addr %s213, 16
          %s215 = scalar_lea.vmem [#allocation2], %s214
          %s216 = smul.addr %s18, 4
          %s217 = sadd.s32 %s19, %s216
          %s218 = smul.addr %s217, 8
          %s219 = scalar_lea.vmem %s1, %s218
          // Predicated region
          $region37: #{pam_forward.7} parent=35 // pred_check
            _
          $region38: #{pam_forward.7} parent=35 // pred_check_branch
            %221 = sbr.rel (0) target = $region40
          $region39: #{pam_forward.7} parent=35 // pred_region
            // Predicated region
            $region41: #{pam_forward.7} parent=39 // pred_check
              _
            $region42: #{pam_forward.7} parent=39 // pred_check_branch
              %223 = sbr.rel (0) target = $region44
            $region43: #{pam_forward.7} parent=39 // pred_region
              // Predicated region
              $region56: #{pam_forward.7} parent=43 // pred_check
                _
              $region57: #{pam_forward.7} parent=43 // pred_check_branch
                %240 = sbr.rel (0) target = $region59
              $region58: #{pam_forward.7} parent=43 // pred_region
                loop: start=0, step=1, limit=1
                $region60: #{pam_forward.7} parent=58 // loop_pre_header
                  _
                $region61: #{pam_forward.7} parent=58 // loop_header
                  %s242 = sphi 0, %s246
                  %p243 = scmp.ge.s32.totalorder %s242, 1
                  %s247 = sphi %s219, %s219
                  %s248 = sphi %s215, %s215
                $region62: #{pam_forward.7} parent=58 // loop_header_branch
                  %245 = sbr.rel (%p243) target = $region66
                $region63: #{pam_forward.7} parent=58 // loop_body
                  %v249 = vld [vmem:[%s247] sm:$0xff]
                  %250 = vst [vmem:[%s248] sm:$0xff] %v249
                  %v251 = vld [vmem:[%s247 + $0x10] sm:$0xff]
                  %252 = vst [vmem:[%s248 + $0x8] sm:$0xff] %v251
                $region64: #{pam_forward.7} parent=58 // loop_footer
                  %s246 = sadd.s32 1, %s242
                $region65: #{pam_forward.7} parent=58 // loop_footer_branch
                  %241 = sbr.rel target = $region61
                $region66: #{pam_forward.7} parent=58 // loop_exit
                  _
              $region59: #{pam_forward.7} parent=43 // pred_fallthru
                _
              // Predicated region
              $region67: #{pam_forward.7} parent=43 // pred_check
                _
              $region68: #{pam_forward.7} parent=43 // pred_check_branch
                %254 = sbr.rel target = $region70
              $region69: #{pam_forward.7} parent=43 // pred_region
                _
              $region70: #{pam_forward.7} parent=43 // pred_fallthru
                _
            $region44: #{pam_forward.7} parent=39 // pred_fallthru
              _
            // Predicated region
            $region45: #{pam_forward.7} parent=39 // pred_check
              _
            $region46: #{pam_forward.7} parent=39 // pred_check_branch
              %225 = sbr.rel target = $region48
            $region47: #{pam_forward.7} parent=39 // pred_region
              loop: start=0, step=1, limit=1
              $region49: #{pam_forward.7} parent=47 // loop_pre_header
                _
              $region50: #{pam_forward.7} parent=47 // loop_header
                %s228 = sphi 0, %s232
                %p229 = scmp.ge.s32.totalorder %s228, 1
                %s233 = sphi %s219, %s219
                %s234 = sphi %s215, %s215
              $region51: #{pam_forward.7} parent=47 // loop_header_branch
                %231 = sbr.rel (%p229) target = $region55
              $region52: #{pam_forward.7} parent=47 // loop_body
                %v235 = vld [vmem:[%s233] sm:$0xff]
                %236 = vst [vmem:[%s234] sm:$0xff] %v235
                %v237 = vld [vmem:[%s233 + $0x10] sm:$0xff]
                %238 = vst [vmem:[%s234 + $0x8] sm:$0xff] %v237
              $region53: #{pam_forward.7} parent=47 // loop_footer
                %s232 = sadd.s32 1, %s228
              $region54: #{pam_forward.7} parent=47 // loop_footer_branch
                %227 = sbr.rel target = $region50
              $region55: #{pam_forward.7} parent=47 // loop_exit
                _
            $region48: #{pam_forward.7} parent=39 // pred_fallthru
              _
          $region40: #{pam_forward.7} parent=35 // pred_fallthru
            _
          %255 = vnop
        $region36: #{pam_forward.7} parent=27 // pred_fallthru
          _
      $region28: #{pam_forward.7} parent=5 // pred_fallthru
        _
      %p256 = scmp.le.s32.totalorder 1, %s11
      %p257 = scmp.lt.s32.totalorder %s11, 5
      %p258 = pnand %p256, %p257
      %p259 = pneg %p258
      // Predicated region
      $region71: #{pam_forward.7} parent=5 // pred_check
        _
      $region72: #{pam_forward.7} parent=5 // pred_check_branch
        %261 = sbr.rel (%p258) target = $region74
      $region73: #{pam_forward.7} parent=5 // pred_region
        %s262 = ssub.s32 %s11, 1
        %s263 = sand.u32 %s66, 1
        %s264 = sand.u32 %s66, 1
        %s265 = smul.addr %s264, 16
        %s266 = scalar_lea.vmem [#allocation2], %s265
        // Predicated region
        $region75: #{pam_forward.7} parent=73 // pred_check
          %p267 = pneg %p79
        $region76: #{pam_forward.7} parent=73 // pred_check_branch
          %269 = sbr.rel (%p267) target = $region78
        $region77: #{pam_forward.7} parent=73 // pred_region
          _
        $region78: #{pam_forward.7} parent=73 // pred_fallthru
          _
        %p270 = scmp.lt.s32.totalorder %s20, 1
        %s271 = scalar_select %p270, %s20, 1
        %p272 = scmp.lt.s32.totalorder %s21, 1
        %s273 = scalar_select %p272, %s21, 1
        %s274 = smul.addr %s271, 2
        %s275 = sadd.s32 %s273, %s274
        %s276 = smul.addr %s275, 8
        %s277 = scalar_lea.vmem %s0, %s276
        %p278 = pneg %p51
        %p279 = pneg %p48
        %s280 = sand.u32 %s66, 1
        %s281 = sand.u32 %s66, 1
        %s282 = smul.addr %s281, 16
        %s283 = scalar_lea.vmem [#allocation2], %s282
        %p284 = pneg %p79
        %p285 = pneg %p76
        %p286 = pneg %p100
        %p287 = pneg %p97
        %p288 = pneg %p121
        %p289 = pneg %p118
        %p290 = pneg %p142
        %p291 = pneg %p139
        %p292 = pneg %p170
        %p293 = pneg %p167
        %s294 = sand.u32 %s157, 1
        %s295 = sand.u32 %s157, 1
        %s296 = smul.addr %s295, 16
        %s297 = scalar_lea.vmem [#allocation3], %s296
        %p298 = scmp.lt.s32.totalorder %s20, 1
        %s299 = scalar_select %p298, %s20, 1
        %p300 = scmp.lt.s32.totalorder %s21, 1
        %s301 = scalar_select %p300, %s21, 1
        %s302 = smul.addr %s299, 2
        %s303 = sadd.s32 %s301, %s302
        %s304 = smul.addr %s303, 8
        %s305 = scalar_lea.vmem %s0, %s304
        %v306 = vld [vmem:[%s2] sm:$0xff]
        %v307 = vld [vmem:[%s2 + $0x8] sm:$0xff]
        %v308 = vld [vmem:[%s305] sm:$0xff]
        %vm309 = vcmask 64512
        %v311 = vsel %vm309, %v306, 0
        %v314 = vsel %vm309, %v307, 0
        %316 = vmatprep.subr.mxu0 0.0
        %v317 = vand.u32 %v308, 4294901760
        %318 = vmatpush1.msra.mxu0 %v317
        %319 = vmatprep.subr.mxu0 0.0
        %320 = vmatpush1.msra.mxu0 0.0
        %321 = vmatprep.subr.mxu0 0.0
        %322 = vmatpush1.msra.mxu0 0.0
        %323 = vmatprep.subr.mxu0 0.0
        %324 = vmatpush1.msra.mxu0 0.0
        %325 = vmatprep.subr.mxu0 0.0
        %326 = vmatpush1.msra.mxu0 0.0
        %327 = vmatprep.subr.mxu0 0.0
        %328 = vmatpush1.msra.mxu0 0.0
        %329 = vmatprep.subr.mxu0 0.0
        %330 = vmatpush1.msra.mxu0 0.0
        %331 = vmatprep.subr.mxu0 0.0
        %332 = vmatpush1.msra.mxu0 0.0
        %333 = vmatprep.subr.mxu0 0.0
        %334 = vmatpush1.msra.mxu0 0.0
        %335 = vmatprep.subr.mxu0 0.0
        %336 = vmatpush1.msra.mxu0 0.0
        %337 = vmatprep.subr.mxu0 0.0
        %338 = vmatpush1.msra.mxu0 0.0
        %339 = vmatprep.subr.mxu0 0.0
        %340 = vmatpush1.msra.mxu0 0.0
        %341 = vmatprep.subr.mxu0 0.0
        %342 = vmatpush1.msra.mxu0 0.0
        %343 = vmatprep.subr.mxu0 0.0
        %344 = vmatpush1.msra.mxu0 0.0
        %345 = vmatprep.subr.mxu0 0.0
        %346 = vmatpush1.msra.mxu0 0.0
        %347 = vmatprep.subr.mxu0 0.0
        %348 = vmatpush1.msra.mxu0 0.0
        %349 = vmatprep.subr.mxu0 0.0
        %350 = vmatpush1.msra.mxu0 0.0
        %351 = vmatprep.subr.mxu0 0.0
        %352 = vmatpush1.msra.mxu0 0.0
        %353 = vmatprep.subr.mxu0 0.0
        %354 = vmatpush1.msra.mxu0 0.0
        %355 = vmatprep.subr.mxu0 0.0
        %356 = vmatpush1.msra.mxu0 0.0
        %357 = vmatprep.subr.mxu0 0.0
        %358 = vmatpush1.msra.mxu0 0.0
        %359 = vmatprep.subr.mxu0 0.0
        %360 = vmatpush1.msra.mxu0 0.0
        %361 = vmatprep.subr.mxu0 0.0
        %362 = vmatpush1.msra.mxu0 0.0
        %363 = vmatprep.subr.mxu0 0.0
        %364 = vmatpush1.msra.mxu0 0.0
        %365 = vmatprep.subr.mxu0 0.0
        %366 = vmatpush1.msra.mxu0 0.0
        %367 = vmatprep.subr.mxu0 0.0
        %368 = vmatpush1.msra.mxu0 0.0
        %369 = vmatprep.subr.mxu0 0.0
        %370 = vmatpush1.msra.mxu0 0.0
        %371 = vmatprep.subr.mxu0 0.0
        %372 = vmatpush1.msra.mxu0 0.0
        %373 = vmatprep.subr.mxu0 0.0
        %374 = vmatpush1.msra.mxu0 0.0
        %375 = vmatprep.subr.mxu0 0.0
        %376 = vmatpush1.msra.mxu0 0.0
        %377 = vmatprep.subr.mxu0 0.0
        %378 = vmatpush1.msra.mxu0 0.0
        %379 = vmatprep.subr.mxu0 0.0
        %380 = vmatpush1.msra.mxu0 0.0
        %381 = vmatprep.mubr.f32.mxu0 0.0
        %v382 = vand.u32 %v311, 4294901760
        %v383 = vsub.f32 %v311, %v382
        %v384 = vand.u32 %v383, 4294901760
        %v385 = vsub.f32 %v383, %v384
        %v386 = vand.u32 %v385, 4294901760
        %387 = vmatmul.mubr.f32.gmra.mrb[0].mxu0 %v386
        %v388 = vpop.f32.mrb[0].mxu0
        %v389 = vadd.f32 0.0, %v388
        %v390 = vpop.f32.mrb[0].mxu0
        %391 = vmatprep.mubr.f32.mxu0 0.0
        %v392 = vand.u32 %v314, 4294901760
        %v393 = vsub.f32 %v314, %v392
        %v394 = vand.u32 %v393, 4294901760
        %v395 = vsub.f32 %v393, %v394
        %v396 = vand.u32 %v395, 4294901760
        %397 = vmatmul.mubr.f32.gmra.mrb[0].mxu0 %v396
        %v398 = vpop.f32.mrb[0].mxu0
        %v399 = vadd.f32 0.0, %v398
        %v400 = vpop.f32.mrb[0].mxu0
        %401 = vdwg.mxu0
        %402 = vmatprep.subr.mxu0 0.0
        %v403 = vand.u32 %v308, 4294901760
        %v404 = vsub.f32 %v308, %v403
        %v405 = vand.u32 %v404, 4294901760
        %v406 = vsub.f32 %v404, %v405
        %v407 = vand.u32 %v406, 4294901760
        %408 = vmatpush1.msra.mxu0 %v407
        %409 = vmatprep.subr.mxu0 0.0
        %410 = vmatpush1.msra.mxu0 0.0
        %411 = vmatprep.subr.mxu0 0.0
        %412 = vmatpush1.msra.mxu0 0.0
        %413 = vmatprep.subr.mxu0 0.0
        %414 = vmatpush1.msra.mxu0 0.0
        %415 = vmatprep.subr.mxu0 0.0
        %416 = vmatpush1.msra.mxu0 0.0
        %417 = vmatprep.subr.mxu0 0.0
        %418 = vmatpush1.msra.mxu0 0.0
        %419 = vmatprep.subr.mxu0 0.0
        %420 = vmatpush1.msra.mxu0 0.0
        %421 = vmatprep.subr.mxu0 0.0
        %422 = vmatpush1.msra.mxu0 0.0
        %423 = vmatprep.subr.mxu0 0.0
        %424 = vmatpush1.msra.mxu0 0.0
        %425 = vmatprep.subr.mxu0 0.0
        %426 = vmatpush1.msra.mxu0 0.0
        %427 = vmatprep.subr.mxu0 0.0
        %428 = vmatpush1.msra.mxu0 0.0
        %429 = vmatprep.subr.mxu0 0.0
        %430 = vmatpush1.msra.mxu0 0.0
        %431 = vmatprep.subr.mxu0 0.0
        %432 = vmatpush1.msra.mxu0 0.0
        %433 = vmatprep.subr.mxu0 0.0
        %434 = vmatpush1.msra.mxu0 0.0
        %435 = vmatprep.subr.mxu0 0.0
        %436 = vmatpush1.msra.mxu0 0.0
        %437 = vmatprep.subr.mxu0 0.0
        %438 = vmatpush1.msra.mxu0 0.0
        %439 = vmatprep.subr.mxu0 0.0
        %440 = vmatpush1.msra.mxu0 0.0
        %441 = vmatprep.subr.mxu0 0.0
        %442 = vmatpush1.msra.mxu0 0.0
        %443 = vmatprep.subr.mxu0 0.0
        %444 = vmatpush1.msra.mxu0 0.0
        %445 = vmatprep.subr.mxu0 0.0
        %446 = vmatpush1.msra.mxu0 0.0
        %447 = vmatprep.subr.mxu0 0.0
        %448 = vmatpush1.msra.mxu0 0.0
        %449 = vmatprep.subr.mxu0 0.0
        %450 = vmatpush1.msra.mxu0 0.0
        %451 = vmatprep.subr.mxu0 0.0
        %452 = vmatpush1.msra.mxu0 0.0
        %453 = vmatprep.subr.mxu0 0.0
        %454 = vmatpush1.msra.mxu0 0.0
        %455 = vmatprep.subr.mxu0 0.0
        %456 = vmatpush1.msra.mxu0 0.0
        %457 = vmatprep.subr.mxu0 0.0
        %458 = vmatpush1.msra.mxu0 0.0
        %459 = vmatprep.subr.mxu0 0.0
        %460 = vmatpush1.msra.mxu0 0.0
        %461 = vmatprep.subr.mxu0 0.0
        %462 = vmatpush1.msra.mxu0 0.0
        %463 = vmatprep.subr.mxu0 0.0
        %464 = vmatpush1.msra.mxu0 0.0
        %465 = vmatprep.subr.mxu0 0.0
        %466 = vmatpush1.msra.mxu0 0.0
        %467 = vmatprep.subr.mxu0 0.0
        %468 = vmatpush1.msra.mxu0 0.0
        %469 = vmatprep.subr.mxu0 0.0
        %470 = vmatpush1.msra.mxu0 0.0
        %471 = vmatprep.mubr.f32.mxu0 0.0
        %v472 = vand.u32 %v311, 4294901760
        %473 = vmatmul.mubr.f32.gmra.mrb[0].mxu0 %v472
        %v474 = vpop.f32.mrb[0].mxu0
        %v475 = vadd.f32 %v389, %v474
        %v476 = vpop.f32.mrb[0].mxu0
        %477 = vmatprep.mubr.f32.mxu0 0.0
        %v478 = vand.u32 %v314, 4294901760
        %479 = vmatmul.mubr.f32.gmra.mrb[0].mxu0 %v478
        %v480 = vpop.f32.mrb[0].mxu0
        %v481 = vadd.f32 %v399, %v480
        %v482 = vpop.f32.mrb[0].mxu0
        %483 = vdwg.mxu0
        %484 = vmatprep.subr.mxu0 0.0
        %v485 = vand.u32 %v308, 4294901760
        %v486 = vsub.f32 %v308, %v485
        %487 = vmatpush1.msra.mxu0 %v486
        %488 = vmatprep.subr.mxu0 0.0
        %489 = vmatpush1.msra.mxu0 0.0
        %490 = vmatprep.subr.mxu0 0.0
        %491 = vmatpush1.msra.mxu0 0.0
        %492 = vmatprep.subr.mxu0 0.0
        %493 = vmatpush1.msra.mxu0 0.0
        %494 = vmatprep.subr.mxu0 0.0
        %495 = vmatpush1.msra.mxu0 0.0
        %496 = vmatprep.subr.mxu0 0.0
        %497 = vmatpush1.msra.mxu0 0.0
        %498 = vmatprep.subr.mxu0 0.0
        %499 = vmatpush1.msra.mxu0 0.0
        %500 = vmatprep.subr.mxu0 0.0
        %501 = vmatpush1.msra.mxu0 0.0
        %502 = vmatprep.subr.mxu0 0.0
        %503 = vmatpush1.msra.mxu0 0.0
        %504 = vmatprep.subr.mxu0 0.0
        %505 = vmatpush1.msra.mxu0 0.0
        %506 = vmatprep.subr.mxu0 0.0
        %507 = vmatpush1.msra.mxu0 0.0
        %508 = vmatprep.subr.mxu0 0.0
        %509 = vmatpush1.msra.mxu0 0.0
        %510 = vmatprep.subr.mxu0 0.0
        %511 = vmatpush1.msra.mxu0 0.0
        %512 = vmatprep.subr.mxu0 0.0
        %513 = vmatpush1.msra.mxu0 0.0
        %514 = vmatprep.subr.mxu0 0.0
        %515 = vmatpush1.msra.mxu0 0.0
        %516 = vmatprep.subr.mxu0 0.0
        %517 = vmatpush1.msra.mxu0 0.0
        %518 = vmatprep.subr.mxu0 0.0
        %519 = vmatpush1.msra.mxu0 0.0
        %520 = vmatprep.subr.mxu0 0.0
        %521 = vmatpush1.msra.mxu0 0.0
        %522 = vmatprep.subr.mxu0 0.0
        %523 = vmatpush1.msra.mxu0 0.0
        %524 = vmatprep.subr.mxu0 0.0
        %525 = vmatpush1.msra.mxu0 0.0
        %526 = vmatprep.subr.mxu0 0.0
        %527 = vmatpush1.msra.mxu0 0.0
        %528 = vmatprep.subr.mxu0 0.0
        %529 = vmatpush1.msra.mxu0 0.0
        %530 = vmatprep.subr.mxu0 0.0
        %531 = vmatpush1.msra.mxu0 0.0
        %532 = vmatprep.subr.mxu0 0.0
        %533 = vmatpush1.msra.mxu0 0.0
        %534 = vmatprep.subr.mxu0 0.0
        %535 = vmatpush1.msra.mxu0 0.0
        %536 = vmatprep.subr.mxu0 0.0
        %537 = vmatpush1.msra.mxu0 0.0
        %538 = vmatprep.subr.mxu0 0.0
        %539 = vmatpush1.msra.mxu0 0.0
        %540 = vmatprep.subr.mxu0 0.0
        %541 = vmatpush1.msra.mxu0 0.0
        %542 = vmatprep.subr.mxu0 0.0
        %543 = vmatpush1.msra.mxu0 0.0
        %544 = vmatprep.subr.mxu0 0.0
        %545 = vmatpush1.msra.mxu0 0.0
        %546 = vmatprep.subr.mxu0 0.0
        %547 = vmatpush1.msra.mxu0 0.0
        %548 = vmatprep.subr.mxu0 0.0
        %549 = vmatpush1.msra.mxu0 0.0
        %550 = vmatprep.mubr.f32.mxu0 0.0
        %v551 = vand.u32 %v311, 4294901760
        %v552 = vsub.f32 %v311, %v551
        %553 = vmatmul.mubr.f32.gmra.mrb[0].mxu0 %v552
        %v554 = vpop.f32.mrb[0].mxu0
        %v555 = vadd.f32 %v475, %v554
        %v556 = vpop.f32.mrb[0].mxu0
        %557 = vmatprep.mubr.f32.mxu0 0.0
        %v558 = vand.u32 %v314, 4294901760
        %v559 = vsub.f32 %v314, %v558
        %560 = vmatmul.mubr.f32.gmra.mrb[0].mxu0 %v559
        %v561 = vpop.f32.mrb[0].mxu0
        %v562 = vadd.f32 %v481, %v561
        %v563 = vpop.f32.mrb[0].mxu0
        %564 = vdwg.mxu0
        %565 = vmatprep.subr.mxu0 0.0
        %v566 = vand.u32 %v308, 4294901760
        %567 = vmatpush1.msra.mxu0 %v566
        %568 = vmatprep.subr.mxu0 0.0
        %569 = vmatpush1.msra.mxu0 0.0
        %570 = vmatprep.subr.mxu0 0.0
        %571 = vmatpush1.msra.mxu0 0.0
        %572 = vmatprep.subr.mxu0 0.0
        %573 = vmatpush1.msra.mxu0 0.0
        %574 = vmatprep.subr.mxu0 0.0
        %575 = vmatpush1.msra.mxu0 0.0
        %576 = vmatprep.subr.mxu0 0.0
        %577 = vmatpush1.msra.mxu0 0.0
        %578 = vmatprep.subr.mxu0 0.0
        %579 = vmatpush1.msra.mxu0 0.0
        %580 = vmatprep.subr.mxu0 0.0
        %581 = vmatpush1.msra.mxu0 0.0
        %582 = vmatprep.subr.mxu0 0.0
        %583 = vmatpush1.msra.mxu0 0.0
        %584 = vmatprep.subr.mxu0 0.0
        %585 = vmatpush1.msra.mxu0 0.0
        %586 = vmatprep.subr.mxu0 0.0
        %587 = vmatpush1.msra.mxu0 0.0
        %588 = vmatprep.subr.mxu0 0.0
        %589 = vmatpush1.msra.mxu0 0.0
        %590 = vmatprep.subr.mxu0 0.0
        %591 = vmatpush1.msra.mxu0 0.0
        %592 = vmatprep.subr.mxu0 0.0
        %593 = vmatpush1.msra.mxu0 0.0
        %594 = vmatprep.subr.mxu0 0.0
        %595 = vmatpush1.msra.mxu0 0.0
        %596 = vmatprep.subr.mxu0 0.0
        %597 = vmatpush1.msra.mxu0 0.0
        %598 = vmatprep.subr.mxu0 0.0
        %599 = vmatpush1.msra.mxu0 0.0
        %600 = vmatprep.subr.mxu0 0.0
        %601 = vmatpush1.msra.mxu0 0.0
        %602 = vmatprep.subr.mxu0 0.0
        %603 = vmatpush1.msra.mxu0 0.0
        %604 = vmatprep.subr.mxu0 0.0
        %605 = vmatpush1.msra.mxu0 0.0
        %606 = vmatprep.subr.mxu0 0.0
        %607 = vmatpush1.msra.mxu0 0.0
        %608 = vmatprep.subr.mxu0 0.0
        %609 = vmatpush1.msra.mxu0 0.0
        %610 = vmatprep.subr.mxu0 0.0
        %611 = vmatpush1.msra.mxu0 0.0
        %612 = vmatprep.subr.mxu0 0.0
        %613 = vmatpush1.msra.mxu0 0.0
        %614 = vmatprep.subr.mxu0 0.0
        %615 = vmatpush1.msra.mxu0 0.0
        %616 = vmatprep.subr.mxu0 0.0
        %617 = vmatpush1.msra.mxu0 0.0
        %618 = vmatprep.subr.mxu0 0.0
        %619 = vmatpush1.msra.mxu0 0.0
        %620 = vmatprep.subr.mxu0 0.0
        %621 = vmatpush1.msra.mxu0 0.0
        %622 = vmatprep.subr.mxu0 0.0
        %623 = vmatpush1.msra.mxu0 0.0
        %624 = vmatprep.subr.mxu0 0.0
        %625 = vmatpush1.msra.mxu0 0.0
        %626 = vmatprep.subr.mxu0 0.0
        %627 = vmatpush1.msra.mxu0 0.0
        %628 = vmatprep.subr.mxu0 0.0
        %629 = vmatpush1.msra.mxu0 0.0
        %630 = vmatprep.mubr.f32.mxu0 0.0
        %v631 = vand.u32 %v311, 4294901760
        %v632 = vsub.f32 %v311, %v631
        %v633 = vand.u32 %v632, 4294901760
        %634 = vmatmul.mubr.f32.gmra.mrb[0].mxu0 %v633
        %v635 = vpop.f32.mrb[0].mxu0
        %v636 = vadd.f32 %v555, %v635
        %v637 = vpop.f32.mrb[0].mxu0
        %638 = vmatprep.mubr.f32.mxu0 0.0
        %v639 = vand.u32 %v314, 4294901760
        %v640 = vsub.f32 %v314, %v639
        %v641 = vand.u32 %v640, 4294901760
        %642 = vmatmul.mubr.f32.gmra.mrb[0].mxu0 %v641
        %v643 = vpop.f32.mrb[0].mxu0
        %v644 = vadd.f32 %v562, %v643
        %v645 = vpop.f32.mrb[0].mxu0
        %646 = vdwg.mxu0
        %647 = vmatprep.subr.mxu0 0.0
        %v648 = vand.u32 %v308, 4294901760
        %v649 = vsub.f32 %v308, %v648
        %v650 = vand.u32 %v649, 4294901760
        %651 = vmatpush1.msra.mxu0 %v650
        %652 = vmatprep.subr.mxu0 0.0
        %653 = vmatpush1.msra.mxu0 0.0
        %654 = vmatprep.subr.mxu0 0.0
        %655 = vmatpush1.msra.mxu0 0.0
        %656 = vmatprep.subr.mxu0 0.0
        %657 = vmatpush1.msra.mxu0 0.0
        %658 = vmatprep.subr.mxu0 0.0
        %659 = vmatpush1.msra.mxu0 0.0
        %660 = vmatprep.subr.mxu0 0.0
        %661 = vmatpush1.msra.mxu0 0.0
        %662 = vmatprep.subr.mxu0 0.0
        %663 = vmatpush1.msra.mxu0 0.0
        %664 = vmatprep.subr.mxu0 0.0
        %665 = vmatpush1.msra.mxu0 0.0
        %666 = vmatprep.subr.mxu0 0.0
        %667 = vmatpush1.msra.mxu0 0.0
        %668 = vmatprep.subr.mxu0 0.0
        %669 = vmatpush1.msra.mxu0 0.0
        %670 = vmatprep.subr.mxu0 0.0
        %671 = vmatpush1.msra.mxu0 0.0
        %672 = vmatprep.subr.mxu0 0.0
        %673 = vmatpush1.msra.mxu0 0.0
        %674 = vmatprep.subr.mxu0 0.0
        %675 = vmatpush1.msra.mxu0 0.0
        %676 = vmatprep.subr.mxu0 0.0
        %677 = vmatpush1.msra.mxu0 0.0
        %678 = vmatprep.subr.mxu0 0.0
        %679 = vmatpush1.msra.mxu0 0.0
        %680 = vmatprep.subr.mxu0 0.0
        %681 = vmatpush1.msra.mxu0 0.0
        %682 = vmatprep.subr.mxu0 0.0
        %683 = vmatpush1.msra.mxu0 0.0
        %684 = vmatprep.subr.mxu0 0.0
        %685 = vmatpush1.msra.mxu0 0.0
        %686 = vmatprep.subr.mxu0 0.0
        %687 = vmatpush1.msra.mxu0 0.0
        %688 = vmatprep.subr.mxu0 0.0
        %689 = vmatpush1.msra.mxu0 0.0
        %690 = vmatprep.subr.mxu0 0.0
        %691 = vmatpush1.msra.mxu0 0.0
        %692 = vmatprep.subr.mxu0 0.0
        %693 = vmatpush1.msra.mxu0 0.0
        %694 = vmatprep.subr.mxu0 0.0
        %695 = vmatpush1.msra.mxu0 0.0
        %696 = vmatprep.subr.mxu0 0.0
        %697 = vmatpush1.msra.mxu0 0.0
        %698 = vmatprep.subr.mxu0 0.0
        %699 = vmatpush1.msra.mxu0 0.0
        %700 = vmatprep.subr.mxu0 0.0
        %701 = vmatpush1.msra.mxu0 0.0
        %702 = vmatprep.subr.mxu0 0.0
        %703 = vmatpush1.msra.mxu0 0.0
        %704 = vmatprep.subr.mxu0 0.0
        %705 = vmatpush1.msra.mxu0 0.0
        %706 = vmatprep.subr.mxu0 0.0
        %707 = vmatpush1.msra.mxu0 0.0
        %708 = vmatprep.subr.mxu0 0.0
        %709 = vmatpush1.msra.mxu0 0.0
        %710 = vmatprep.subr.mxu0 0.0
        %711 = vmatpush1.msra.mxu0 0.0
        %712 = vmatprep.subr.mxu0 0.0
        %713 = vmatpush1.msra.mxu0 0.0
        %714 = vmatprep.mubr.f32.mxu0 0.0
        %v715 = vand.u32 %v311, 4294901760
        %716 = vmatmul.mubr.f32.gmra.mrb[0].mxu0 %v715
        %v717 = vpop.f32.mrb[0].mxu0
        %v718 = vadd.f32 %v636, %v717
        %v719 = vpop.f32.mrb[0].mxu0
        %720 = vmatprep.mubr.f32.mxu0 0.0
        %v721 = vand.u32 %v314, 4294901760
        %722 = vmatmul.mubr.f32.gmra.mrb[0].mxu0 %v721
        %v723 = vpop.f32.mrb[0].mxu0
        %v724 = vadd.f32 %v644, %v723
        %v725 = vpop.f32.mrb[0].mxu0
        %726 = vdwg.mxu0
        %727 = vmatprep.subr.mxu0 0.0
        %v728 = vand.u32 %v308, 4294901760
        %729 = vmatpush1.msra.mxu0 %v728
        %730 = vmatprep.subr.mxu0 0.0
        %731 = vmatpush1.msra.mxu0 0.0
        %732 = vmatprep.subr.mxu0 0.0
        %733 = vmatpush1.msra.mxu0 0.0
        %734 = vmatprep.subr.mxu0 0.0
        %735 = vmatpush1.msra.mxu0 0.0
        %736 = vmatprep.subr.mxu0 0.0
        %737 = vmatpush1.msra.mxu0 0.0
        %738 = vmatprep.subr.mxu0 0.0
        %739 = vmatpush1.msra.mxu0 0.0
        %740 = vmatprep.subr.mxu0 0.0
        %741 = vmatpush1.msra.mxu0 0.0
        %742 = vmatprep.subr.mxu0 0.0
        %743 = vmatpush1.msra.mxu0 0.0
        %744 = vmatprep.subr.mxu0 0.0
        %745 = vmatpush1.msra.mxu0 0.0
        %746 = vmatprep.subr.mxu0 0.0
        %747 = vmatpush1.msra.mxu0 0.0
        %748 = vmatprep.subr.mxu0 0.0
        %749 = vmatpush1.msra.mxu0 0.0
        %750 = vmatprep.subr.mxu0 0.0
        %751 = vmatpush1.msra.mxu0 0.0
        %752 = vmatprep.subr.mxu0 0.0
        %753 = vmatpush1.msra.mxu0 0.0
        %754 = vmatprep.subr.mxu0 0.0
        %755 = vmatpush1.msra.mxu0 0.0
        %756 = vmatprep.subr.mxu0 0.0
        %757 = vmatpush1.msra.mxu0 0.0
        %758 = vmatprep.subr.mxu0 0.0
        %759 = vmatpush1.msra.mxu0 0.0
        %760 = vmatprep.subr.mxu0 0.0
        %761 = vmatpush1.msra.mxu0 0.0
        %762 = vmatprep.subr.mxu0 0.0
        %763 = vmatpush1.msra.mxu0 0.0
        %764 = vmatprep.subr.mxu0 0.0
        %765 = vmatpush1.msra.mxu0 0.0
        %766 = vmatprep.subr.mxu0 0.0
        %767 = vmatpush1.msra.mxu0 0.0
        %768 = vmatprep.subr.mxu0 0.0
        %769 = vmatpush1.msra.mxu0 0.0
        %770 = vmatprep.subr.mxu0 0.0
        %771 = vmatpush1.msra.mxu0 0.0
        %772 = vmatprep.subr.mxu0 0.0
        %773 = vmatpush1.msra.mxu0 0.0
        %774 = vmatprep.subr.mxu0 0.0
        %775 = vmatpush1.msra.mxu0 0.0
        %776 = vmatprep.subr.mxu0 0.0
        %777 = vmatpush1.msra.mxu0 0.0
        %778 = vmatprep.subr.mxu0 0.0
        %779 = vmatpush1.msra.mxu0 0.0
        %780 = vmatprep.subr.mxu0 0.0
        %781 = vmatpush1.msra.mxu0 0.0
        %782 = vmatprep.subr.mxu0 0.0
        %783 = vmatpush1.msra.mxu0 0.0
        %784 = vmatprep.subr.mxu0 0.0
        %785 = vmatpush1.msra.mxu0 0.0
        %786 = vmatprep.subr.mxu0 0.0
        %787 = vmatpush1.msra.mxu0 0.0
        %788 = vmatprep.subr.mxu0 0.0
        %789 = vmatpush1.msra.mxu0 0.0
        %790 = vmatprep.subr.mxu0 0.0
        %791 = vmatpush1.msra.mxu0 0.0
        %792 = vmatprep.mubr.f32.mxu0 0.0
        %v793 = vand.u32 %v311, 4294901760
        %794 = vmatmul.mubr.f32.gmra.mrb[0].mxu0 %v793
        %v795 = vpop.f32.mrb[0].mxu0
        %v796 = vadd.f32 %v718, %v795
        %v797 = vpop.f32.mrb[0].mxu0
        %798 = vmatprep.mubr.f32.mxu0 0.0
        %v799 = vand.u32 %v314, 4294901760
        %800 = vmatmul.mubr.f32.gmra.mrb[0].mxu0 %v799
        %v801 = vpop.f32.mrb[0].mxu0
        %v802 = vadd.f32 %v724, %v801
        %v803 = vpop.f32.mrb[0].mxu0
        %804 = vdwg.mxu0
        %v805 = vld [vmem:[%s3] sm:$0xff]
        %v806 = vld [vmem:[%s3 + $0x8] sm:$0xff]
        %808 = vset.pattern.permute.xlu0 0
        %809 = vperm.xlu0 %808, %v805
        %v810 = vpop.permute.xlu0 %809
        %813 = vset.pattern.permute.xlu0 0
        %814 = vperm.xlu0 %813, %v806
        %v815 = vpop.permute.xlu0 %814
        %v817 = vmul.f32 %v796, %v810
        %v818 = vmul.f32 %v802, %v815
        %v819 = vld [vmem:[%s4] sm:$0xff]
        %v820 = vld [vmem:[%s4 + $0x8] sm:$0xff]
        %822 = vset.pattern.permute.xlu0 0
        %823 = vperm.xlu0 %822, %v819
        %v824 = vpop.permute.xlu0 %823
        %827 = vset.pattern.permute.xlu0 0
        %828 = vperm.xlu0 %827, %v820
        %v829 = vpop.permute.xlu0 %828
        %v831 = vadd.f32 %v817, %v824
        %v832 = vadd.f32 %v818, %v829
        %v833 = vld [vmem:[%s266] sm:$0xff]
        %v834 = vld [vmem:[%s266 + $0x8] sm:$0xff]
        %v835 = vadd.f32 %v831, %v833
        %v836 = vadd.f32 %v832, %v834
        %837 = vst [vmem:[%s297] sm:$0xff] %v835
        %838 = vst [vmem:[%s297 + $0x8] sm:$0xff] %v836
        %s839 = sand.u32 %s157, 1
        %s840 = sand.u32 %s157, 1
        %s841 = smul.addr %s840, 16
        %s842 = scalar_lea.vmem [#allocation3], %s841
        // Predicated region
        $region79: #{pam_forward.7} parent=73 // pred_check
          %p843 = pneg %p167
        $region80: #{pam_forward.7} parent=73 // pred_check_branch
          %845 = sbr.rel (%p843) target = $region82
        $region81: #{pam_forward.7} parent=73 // pred_region
          %s846 = smul.addr %s20, 4
          %s847 = sadd.s32 %s21, %s846
          %s848 = smul.addr %s847, 8
          %s849 = scalar_lea.vmem %s5, %s848
          // Predicated region
          $region83: #{pam_forward.7} parent=81 // pred_check
            _
          $region84: #{pam_forward.7} parent=81 // pred_check_branch
            %851 = sbr.rel (0) target = $region86
          $region85: #{pam_forward.7} parent=81 // pred_region
            // Predicated region
            $region87: #{pam_forward.7} parent=85 // pred_check
              _
            $region88: #{pam_forward.7} parent=85 // pred_check_branch
              %853 = sbr.rel (0) target = $region90
            $region89: #{pam_forward.7} parent=85 // pred_region
              // Predicated region
              $region102: #{pam_forward.7} parent=89 // pred_check
                _
              $region103: #{pam_forward.7} parent=89 // pred_check_branch
                %870 = sbr.rel (0) target = $region105
              $region104: #{pam_forward.7} parent=89 // pred_region
                loop: start=0, step=1, limit=1
                $region106: #{pam_forward.7} parent=104 // loop_pre_header
                  _
                $region107: #{pam_forward.7} parent=104 // loop_header
                  %s872 = sphi 0, %s876
                  %p873 = scmp.ge.s32.totalorder %s872, 1
                  %s877 = sphi %s842, %s842
                  %s878 = sphi %s849, %s849
                $region108: #{pam_forward.7} parent=104 // loop_header_branch
                  %875 = sbr.rel (%p873) target = $region112
                $region109: #{pam_forward.7} parent=104 // loop_body
                  %v879 = vld [vmem:[%s877] sm:$0xff]
                  %880 = vst [vmem:[%s878] sm:$0xff] %v879
                  %v881 = vld [vmem:[%s877 + $0x8] sm:$0xff]
                  %882 = vst [vmem:[%s878 + $0x10] sm:$0xff] %v881
                $region110: #{pam_forward.7} parent=104 // loop_footer
                  %s876 = sadd.s32 1, %s872
                $region111: #{pam_forward.7} parent=104 // loop_footer_branch
                  %871 = sbr.rel target = $region107
                $region112: #{pam_forward.7} parent=104 // loop_exit
                  _
              $region105: #{pam_forward.7} parent=89 // pred_fallthru
                _
              // Predicated region
              $region113: #{pam_forward.7} parent=89 // pred_check
                _
              $region114: #{pam_forward.7} parent=89 // pred_check_branch
                %884 = sbr.rel target = $region116
              $region115: #{pam_forward.7} parent=89 // pred_region
                _
              $region116: #{pam_forward.7} parent=89 // pred_fallthru
                _
            $region90: #{pam_forward.7} parent=85 // pred_fallthru
              _
            // Predicated region
            $region91: #{pam_forward.7} parent=85 // pred_check
              _
            $region92: #{pam_forward.7} parent=85 // pred_check_branch
              %855 = sbr.rel target = $region94
            $region93: #{pam_forward.7} parent=85 // pred_region
              loop: start=0, step=1, limit=1
              $region95: #{pam_forward.7} parent=93 // loop_pre_header
                _
              $region96: #{pam_forward.7} parent=93 // loop_header
                %s858 = sphi 0, %s862
                %p859 = scmp.ge.s32.totalorder %s858, 1
                %s863 = sphi %s842, %s842
                %s864 = sphi %s849, %s849
              $region97: #{pam_forward.7} parent=93 // loop_header_branch
                %861 = sbr.rel (%p859) target = $region101
              $region98: #{pam_forward.7} parent=93 // loop_body
                %v865 = vld [vmem:[%s863] sm:$0xff]
                %866 = vst [vmem:[%s864] sm:$0xff] %v865
                %v867 = vld [vmem:[%s863 + $0x8] sm:$0xff]
                %868 = vst [vmem:[%s864 + $0x10] sm:$0xff] %v867
              $region99: #{pam_forward.7} parent=93 // loop_footer
                %s862 = sadd.s32 1, %s858
              $region100: #{pam_forward.7} parent=93 // loop_footer_branch
                %857 = sbr.rel target = $region96
              $region101: #{pam_forward.7} parent=93 // loop_exit
                _
            $region94: #{pam_forward.7} parent=85 // pred_fallthru
              _
          $region86: #{pam_forward.7} parent=81 // pred_fallthru
            _
          %885 = vnop
        $region82: #{pam_forward.7} parent=73 // pred_fallthru
          _
      $region74: #{pam_forward.7} parent=5 // pred_fallthru
        _
      %p886 = scmp.le.s32.totalorder 2, %s11
      // Predicated region
      $region117: #{pam_forward.7} parent=5 // pred_check
        %p887 = pneg %p886
      $region118: #{pam_forward.7} parent=5 // pred_check_branch
        %889 = sbr.rel (%p887) target = $region120
      $region119: #{pam_forward.7} parent=5 // pred_region
        %s890 = ssub.s32 %s11, 2
        // Predicated region
        $region121: #{pam_forward.7} parent=119 // pred_check
          %p891 = pneg %p173
        $region122: #{pam_forward.7} parent=119 // pred_check_branch
          %893 = sbr.rel (%p891) target = $region124
        $region123: #{pam_forward.7} parent=119 // pred_region
          %s894 = sand.u32 %s158, 1
          %s895 = sand.u32 %s158, 1
          %s896 = smul.addr %s895, 16
          %s897 = scalar_lea.vmem [#allocation3], %s896
        $region124: #{pam_forward.7} parent=119 // pred_fallthru
          _
      $region120: #{pam_forward.7} parent=5 // pred_fallthru
        _
    $region6: #{pam_forward.7} parent=1 // loop_footer
      %s15 = sadd.s32 1, %s11
    $region7: #{pam_forward.7} parent=1 // loop_footer_branch
      %10 = sbr.rel target = $region3
    $region8: #{pam_forward.7} parent=1 // loop_exit
      _

</llo_original>
